<compile_context>
chip_gen: v6e
topology: v6e:2x2x1
jax: 0.10.0
libtpu: 0.0.40
codegen_flags: <defaults>
</compile_context>

<pallas_src>
import functools

import jax
import jax.numpy as jnp
from jax import lax
from jax.experimental import pallas as pl
from jax.experimental.pallas import tpu as pltpu


def en_layer_kernel(x_ref, w1_ref, b1_ref, w2_ref, b2_ref, out_ref,
                    xpad_ref, mid_ref, *, strip_h):
    """One batch element per grid step.

    x_ref   : (1, H, W, Cin)        unpadded NHWC input tile, bf16
    w1_ref  : (3, 3*Cin, Cout)      per-dy K-chunked conv1 weights, bf16
    b1_ref  : (1, Cout)             f32
    w2_ref  : (3, 3*Cout, Cout)     per-dy K-chunked conv2 weights, bf16
    b2_ref  : (1, Cout)             f32
    out_ref : (1, H, W, Cout)       f32
    xpad_ref: (H+2, W+2, Cin)       VMEM scratch, zero-halo padded input, bf16
    mid_ref : (H+2, W+2, Cout)      VMEM scratch, zero-halo padded ReLU(conv1), bf16
    """
    H, W, Cin = x_ref.shape[1], x_ref.shape[2], x_ref.shape[3]
    Cout = w1_ref.shape[2]
    SH = strip_h
    n_strips = H // SH
    M = SH * W
    bf16 = jnp.bfloat16

    # ---- build the 1-pixel zero halo around the input (once per step, in VMEM) ----
    xpad_ref[0:1, :, :] = jnp.zeros((1, W + 2, Cin), bf16)
    xpad_ref[H + 1:H + 2, :, :] = jnp.zeros((1, W + 2, Cin), bf16)
    xpad_ref[:, 0:1, :] = jnp.zeros((H + 2, 1, Cin), bf16)
    xpad_ref[:, W + 1:W + 2, :] = jnp.zeros((H + 2, 1, Cin), bf16)
    xpad_ref[1:H + 1, 1:W + 1, :] = x_ref[0]

    # ---- zero the halo of the mid scratch (interior is fully rewritten every step) ----
    mid_ref[0:1, :, :] = jnp.zeros((1, W + 2, Cout), bf16)
    mid_ref[H + 1:H + 2, :, :] = jnp.zeros((1, W + 2, Cout), bf16)
    mid_ref[:, 0:1, :] = jnp.zeros((H + 2, 1, Cout), bf16)
    mid_ref[:, W + 1:W + 2, :] = jnp.zeros((H + 2, 1, Cout), bf16)

    # ---- hoisted loop invariants: weights / biases loaded once ----
    w1 = w1_ref[...]                 # (3, 3*Cin, Cout)  bf16
    w2 = w2_ref[...]                 # (3, 3*Cout, Cout) bf16
    b1 = b1_ref[...]                 # (1, Cout) f32
    b2 = b2_ref[...]                 # (1, Cout) f32

    def conv_strip(src_ref, w, b, h0, cin):
        """3x3 conv over one SH-row strip: 3 MXU matmuls with K = 3*cin (per-dy chunks)."""
        acc = jnp.broadcast_to(b, (M, Cout))                    # start from bias, f32
        for dy in range(3):                                     # static 3-way unroll
            rows = src_ref[pl.ds(h0 + dy, SH), :, :]            # (SH, W+2, cin) bf16
            patch = jnp.concatenate(
                [rows[:, dx:dx + W, :].reshape(M, cin) for dx in range(3)],
                axis=-1)                                        # (M, 3*cin) bf16
            acc = acc + jnp.dot(patch, w[dy], preferred_element_type=jnp.float32)
        return acc                                              # (M, Cout) f32

    def strip1(s, carry):                                       # conv1 + bias + ReLU
        h0 = s * SH if isinstance(s, int) else pl.multiple_of(s * SH, SH)
        acc = conv_strip(xpad_ref, w1, b1, h0, Cin)
        act = jnp.maximum(acc, 0.0).astype(bf16).reshape(SH, W, Cout)
        mid_ref[pl.ds(1 + h0, SH), 1:1 + W, :] = act            # interior of padded mid
        return carry

    def strip2(s, carry):                                       # conv2 + bias
        h0 = s * SH if isinstance(s, int) else pl.multiple_of(s * SH, SH)
        acc = conv_strip(mid_ref, w2, b2, h0, Cout)
        out_ref[0, pl.ds(h0, SH), :, :] = acc.reshape(SH, W, Cout).astype(out_ref.dtype)
        return carry

    if n_strips <= 4:
        # Small trip counts: static unroll (constant offsets, best codegen).
        for s in range(n_strips):
            strip1(s, None)
        for s in range(n_strips):
            strip2(s, None)
    else:
        # Larger images: visible loop bounds code size and vreg live ranges.
        lax.fori_loop(0, n_strips, strip1, None)
        lax.fori_loop(0, n_strips, strip2, None)


def _pick_strip_h(H, W, target=256):
    """Pick a strip height: divisor of H, preferring M = SH*W >= target and SH % 8 == 0."""
    divisors = [d for d in range(1, H + 1) if H % d == 0]
    return min(divisors, key=lambda d: (0 if d * W >= target else 1,
                                        0 if d % 8 == 0 else 1,
                                        d))


def en_layer_forward(x_nchw, w1_oihw, b1, w2_oihw, b2):
    """x_nchw: (B, Cin, H, W) f32; weights OIHW (PyTorch layout); bias (Cout,).
    Returns (B, Cout, H, W) f32 matching the PyTorch module (bf16 MXU operands, f32 accum)."""
    B, Cin, H, W = x_nchw.shape
    Cout = w1_oihw.shape[0]
    assert w1_oihw.shape == (Cout, Cin, 3, 3)
    assert w2_oihw.shape == (Cout, Cout, 3, 3)

    SH = _pick_strip_h(H, W)
    assert H % SH == 0

    # NCHW -> NHWC bf16 activation (single XLA layout pass; halo is built in-kernel).
    x = jnp.transpose(x_nchw, (0, 2, 3, 1)).astype(jnp.bfloat16)

    # OIHW -> HWIO -> (dy, dx*Cin + cin, Cout): row order matches the per-dy dx-tap concat.
    w1k = jnp.transpose(w1_oihw, (2, 3, 1, 0)).reshape(3, 3 * Cin, Cout).astype(jnp.bfloat16)
    w2k = jnp.transpose(w2_oihw, (2, 3, 1, 0)).reshape(3, 3 * Cout, Cout).astype(jnp.bfloat16)
    b1f = b1.reshape(1, Cout).astype(jnp.float32)
    b2f = b2.reshape(1, Cout).astype(jnp.float32)

    kernel = functools.partial(en_layer_kernel, strip_h=SH)

    # Explicit VMEM budget: double-buffered in/out blocks + weights + the two padded scratches.
    vmem_bytes = (
        2 * H * W * Cin * 2                              # x block (bf16), 2 buffers
        + 2 * H * W * Cout * 4                           # out block (f32), 2 buffers
        + 2 * (9 * Cin * Cout + 9 * Cout * Cout) * 2     # weight blocks (bf16)
        + (H + 2) * (W + 2) * (Cin + Cout) * 2           # xpad + mid scratch (bf16)
    )
    vmem_limit = min(int(vmem_bytes * 1.5) + (8 << 20), 100 << 20)

    flops = 2 * B * H * W * (9 * Cin * Cout + 9 * Cout * Cout)
    bytes_accessed = (B * H * W * Cin * 2 + B * H * W * Cout * 4
                      + (9 * Cin * Cout + 9 * Cout * Cout) * 2 + 2 * Cout * 4)

    out_nhwc = pl.pallas_call(
        kernel,
        out_shape=jax.ShapeDtypeStruct((B, H, W, Cout), jnp.float32),
        grid_spec=pltpu.PrefetchScalarGridSpec(
            num_scalar_prefetch=0,
            grid=(B,),
            in_specs=[
                pl.BlockSpec((1, H, W, Cin),       lambda b: (b, 0, 0, 0)),
                pl.BlockSpec((3, 3 * Cin, Cout),   lambda b: (0, 0, 0)),
                pl.BlockSpec((1, Cout),            lambda b: (0, 0)),
                pl.BlockSpec((3, 3 * Cout, Cout),  lambda b: (0, 0, 0)),
                pl.BlockSpec((1, Cout),            lambda b: (0, 0)),
            ],
            out_specs=pl.BlockSpec((1, H, W, Cout), lambda b: (b, 0, 0, 0)),
            scratch_shapes=[
                pltpu.VMEM((H + 2, W + 2, Cin), jnp.bfloat16),   # padded input
                pltpu.VMEM((H + 2, W + 2, Cout), jnp.bfloat16),  # padded ReLU(conv1)
            ],
        ),
        compiler_params=pltpu.CompilerParams(
            dimension_semantics=("parallel",),
            vmem_limit_bytes=vmem_limit,
        ),
        cost_estimate=pl.CostEstimate(flops=flops, transcendentals=0,
                                      bytes_accessed=bytes_accessed),
    )(x, w1k, b1f, w2k, b2f)

    return jnp.transpose(out_nhwc, (0, 3, 1, 2))                 # NHWC -> NCHW


def _reference_forward(x_nchw, w1, b1, w2, b2):
    """Plain-JAX reference with the same bf16 operand / bf16 mid quantization as the kernel."""
    f32 = jnp.float32
    q = lambda a: a.astype(jnp.bfloat16).astype(f32)
    dn = ("NCHW", "OIHW", "NCHW")
    y = lax.conv_general_dilated(q(x_nchw), q(w1), (1, 1), "SAME", dimension_numbers=dn,
                                 precision=lax.Precision.HIGHEST)
    y = jnp.maximum(y + b1.reshape(1, -1, 1, 1), 0.0)
    y = q(y)                                                     # mid is bf16 in the kernel
    y = lax.conv_general_dilated(y, q(w2), (1, 1), "SAME", dimension_numbers=dn,
                                 precision=lax.Precision.HIGHEST)
    return y + b2.reshape(1, -1, 1, 1)


if __name__ == "__main__":
    B, Cin, H, W, Cout = 2, 64, 16, 16, 64        # in_channel=64 is the module default

    key = jax.random.PRNGKey(0)
    kx, kw1, kb1, kw2, kb2 = jax.random.split(key, 5)

    x  = jax.random.normal(kx,  (B, Cin, H, W),    dtype=jnp.float32)
    # PyTorch-layout parameters (OIHW weights, (Cout,) bias), small scale for stability.
    w1 = jax.random.normal(kw1, (Cout, Cin, 3, 3),  dtype=jnp.float32) * 0.05
    b1 = jax.random.normal(kb1, (Cout,),            dtype=jnp.float32) * 0.05
    w2 = jax.random.normal(kw2, (Cout, Cout, 3, 3), dtype=jnp.float32) * 0.05
    b2 = jax.random.normal(kb2, (Cout,),            dtype=jnp.float32) * 0.05

    out = jax.block_until_ready(en_layer_forward(x, w1, b1, w2, b2))
    ref = jax.block_until_ready(_reference_forward(x, w1, b1, w2, b2))

    assert out.shape == (B, Cout, H, W)
    max_err = float(jnp.max(jnp.abs(out - ref)))
    assert jnp.allclose(out, ref, atol=2e-2, rtol=2e-2), max_err

    print("KERNEL_OK")
</pallas_src>

<mosaic_0001>
module attributes {stable_mosaic.version = 11 : i64} {
  func.func @en_layer_kernel(%arg0: i32, %arg1: memref<1x16x16x64xbf16, #tpu.memory_space<vmem>>, %arg2: memref<3x192x64xbf16, #tpu.memory_space<vmem>>, %arg3: memref<1x64xf32, #tpu.memory_space<vmem>>, %arg4: memref<3x192x64xbf16, #tpu.memory_space<vmem>>, %arg5: memref<1x64xf32, #tpu.memory_space<vmem>>, %arg6: memref<1x16x16x64xf32, #tpu.memory_space<vmem>>, %arg7: memref<18x18x64xbf16, #tpu.memory_space<vmem>>, %arg8: memref<18x18x64xbf16, #tpu.memory_space<vmem>>) attributes {dimension_semantics = [#tpu.dimension_semantics<parallel>], iteration_bounds = array<i64: 2>, scalar_prefetch = 0 : i64, scratch_operands = 2 : i64, tpu.core_type = #tpu.core_type<tc>, window_params = [{transform_indices = @transform_0, window_bounds = array<i64: 1, 16, 16, 64>}, {pipeline_mode = #tpu.pipeline_mode<synchronous>, transform_indices = @transform_1, window_bounds = array<i64: 3, 192, 64>}, {pipeline_mode = #tpu.pipeline_mode<synchronous>, transform_indices = @transform_2, window_bounds = array<i64: 1, 64>}, {pipeline_mode = #tpu.pipeline_mode<synchronous>, transform_indices = @transform_3, window_bounds = array<i64: 3, 192, 64>}, {pipeline_mode = #tpu.pipeline_mode<synchronous>, transform_indices = @transform_4, window_bounds = array<i64: 1, 64>}, {transform_indices = @transform_5, window_bounds = array<i64: 1, 16, 16, 64>}]} {
    %cst = arith.constant 0.000000e+00 : bf16
    %0 = vector.broadcast %cst : bf16 to vector<1x18x64xbf16>
    %c0 = arith.constant 0 : index
    %c0_0 = arith.constant 0 : index
    %c0_1 = arith.constant 0 : index
    %1 = vector.load %arg7[%c0, %c0_0, %c0_1] : memref<18x18x64xbf16, #tpu.memory_space<vmem>>, vector<1x18x64xbf16>
    tpu.vector_store %arg7[%c0, %c0_0, %c0_1], %0 {strides = array<i32>} : memref<18x18x64xbf16, #tpu.memory_space<vmem>>, vector<1x18x64xbf16>,
    %cst_2 = arith.constant 0.000000e+00 : bf16
    %2 = vector.broadcast %cst_2 : bf16 to vector<1x18x64xbf16>
    %c17 = arith.constant 17 : index
    %c0_3 = arith.constant 0 : index
    %c0_4 = arith.constant 0 : index
    %3 = vector.load %arg7[%c17, %c0_3, %c0_4] : memref<18x18x64xbf16, #tpu.memory_space<vmem>>, vector<1x18x64xbf16>
    tpu.vector_store %arg7[%c17, %c0_3, %c0_4], %2 {strides = array<i32>} : memref<18x18x64xbf16, #tpu.memory_space<vmem>>, vector<1x18x64xbf16>,
    %cst_5 = arith.constant 0.000000e+00 : bf16
    %4 = vector.broadcast %cst_5 : bf16 to vector<18x1x64xbf16>
    %c0_6 = arith.constant 0 : index
    %c0_7 = arith.constant 0 : index
    %c0_8 = arith.constant 0 : index
    %5 = vector.load %arg7[%c0_6, %c0_7, %c0_8] : memref<18x18x64xbf16, #tpu.memory_space<vmem>>, vector<18x1x64xbf16>
    tpu.vector_store %arg7[%c0_6, %c0_7, %c0_8], %4 {strides = array<i32>} : memref<18x18x64xbf16, #tpu.memory_space<vmem>>, vector<18x1x64xbf16>,
    %cst_9 = arith.constant 0.000000e+00 : bf16
    %6 = vector.broadcast %cst_9 : bf16 to vector<18x1x64xbf16>
    %c0_10 = arith.constant 0 : index
    %c17_11 = arith.constant 17 : index
    %c0_12 = arith.constant 0 : index
    %7 = vector.load %arg7[%c0_10, %c17_11, %c0_12] : memref<18x18x64xbf16, #tpu.memory_space<vmem>>, vector<18x1x64xbf16>
    tpu.vector_store %arg7[%c0_10, %c17_11, %c0_12], %6 {strides = array<i32>} : memref<18x18x64xbf16, #tpu.memory_space<vmem>>, vector<18x1x64xbf16>,
    %c0_13 = arith.constant 0 : index
    %c0_14 = arith.constant 0 : index
    %c0_15 = arith.constant 0 : index
    %c0_16 = arith.constant 0 : index
    %8 = vector.load %arg1[%c0_13, %c0_14, %c0_15, %c0_16] : memref<1x16x16x64xbf16, #tpu.memory_space<vmem>>, vector<1x16x16x64xbf16>
    %9 = vector.shape_cast %8 : vector<1x16x16x64xbf16> to vector<16x16x64xbf16>
    %c1 = arith.constant 1 : index
    %c1_17 = arith.constant 1 : index
    %c0_18 = arith.constant 0 : index
    %10 = vector.load %arg7[%c1, %c1_17, %c0_18] : memref<18x18x64xbf16, #tpu.memory_space<vmem>>, vector<16x16x64xbf16>
    tpu.vector_store %arg7[%c1, %c1_17, %c0_18], %9 {strides = array<i32>} : memref<18x18x64xbf16, #tpu.memory_space<vmem>>, vector<16x16x64xbf16>,
    %cst_19 = arith.constant 0.000000e+00 : bf16
    %11 = vector.broadcast %cst_19 : bf16 to vector<1x18x64xbf16>
    %c0_20 = arith.constant 0 : index
    %c0_21 = arith.constant 0 : index
    %c0_22 = arith.constant 0 : index
    %12 = vector.load %arg8[%c0_20, %c0_21, %c0_22] : memref<18x18x64xbf16, #tpu.memory_space<vmem>>, vector<1x18x64xbf16>
    tpu.vector_store %arg8[%c0_20, %c0_21, %c0_22], %11 {strides = array<i32>} : memref<18x18x64xbf16, #tpu.memory_space<vmem>>, vector<1x18x64xbf16>,
    %cst_23 = arith.constant 0.000000e+00 : bf16
    %13 = vector.broadcast %cst_23 : bf16 to vector<1x18x64xbf16>
    %c17_24 = arith.constant 17 : index
    %c0_25 = arith.constant 0 : index
    %c0_26 = arith.constant 0 : index
    %14 = vector.load %arg8[%c17_24, %c0_25, %c0_26] : memref<18x18x64xbf16, #tpu.memory_space<vmem>>, vector<1x18x64xbf16>
    tpu.vector_store %arg8[%c17_24, %c0_25, %c0_26], %13 {strides = array<i32>} : memref<18x18x64xbf16, #tpu.memory_space<vmem>>, vector<1x18x64xbf16>,
    %cst_27 = arith.constant 0.000000e+00 : bf16
    %15 = vector.broadcast %cst_27 : bf16 to vector<18x1x64xbf16>
    %c0_28 = arith.constant 0 : index
    %c0_29 = arith.constant 0 : index
    %c0_30 = arith.constant 0 : index
    %16 = vector.load %arg8[%c0_28, %c0_29, %c0_30] : memref<18x18x64xbf16, #tpu.memory_space<vmem>>, vector<18x1x64xbf16>
    tpu.vector_store %arg8[%c0_28, %c0_29, %c0_30], %15 {strides = array<i32>} : memref<18x18x64xbf16, #tpu.memory_space<vmem>>, vector<18x1x64xbf16>,
    %cst_31 = arith.constant 0.000000e+00 : bf16
    %17 = vector.broadcast %cst_31 : bf16 to vector<18x1x64xbf16>
    %c0_32 = arith.constant 0 : index
    %c17_33 = arith.constant 17 : index
    %c0_34 = arith.constant 0 : index
    %18 = vector.load %arg8[%c0_32, %c17_33, %c0_34] : memref<18x18x64xbf16, #tpu.memory_space<vmem>>, vector<18x1x64xbf16>
    tpu.vector_store %arg8[%c0_32, %c17_33, %c0_34], %17 {strides = array<i32>} : memref<18x18x64xbf16, #tpu.memory_space<vmem>>, vector<18x1x64xbf16>,
    %c0_35 = arith.constant 0 : index
    %c0_36 = arith.constant 0 : index
    %c0_37 = arith.constant 0 : index
    %19 = vector.load %arg2[%c0_35, %c0_36, %c0_37] : memref<3x192x64xbf16, #tpu.memory_space<vmem>>, vector<3x192x64xbf16>
    %c0_38 = arith.constant 0 : index
    %c0_39 = arith.constant 0 : index
    %c0_40 = arith.constant 0 : index
    %20 = vector.load %arg4[%c0_38, %c0_39, %c0_40] : memref<3x192x64xbf16, #tpu.memory_space<vmem>>, vector<3x192x64xbf16>
    %c0_41 = arith.constant 0 : index
    %c0_42 = arith.constant 0 : index
    %21 = vector.load %arg3[%c0_41, %c0_42] : memref<1x64xf32, #tpu.memory_space<vmem>>, vector<1x64xf32>
    %c0_43 = arith.constant 0 : index
    %c0_44 = arith.constant 0 : index
    %22 = vector.load %arg5[%c0_43, %c0_44] : memref<1x64xf32, #tpu.memory_space<vmem>>, vector<1x64xf32>
    %23 = vector.shape_cast %21 : vector<1x64xf32> to vector<1x64xf32>
    %24 = vector.broadcast %23 : vector<1x64xf32> to vector<256x64xf32>
    %c0_45 = arith.constant 0 : index
    %c0_46 = arith.constant 0 : index
    %c0_47 = arith.constant 0 : index
    %25 = vector.load %arg7[%c0_45, %c0_46, %c0_47] : memref<18x18x64xbf16, #tpu.memory_space<vmem>>, vector<16x18x64xbf16>
    %26 = vector.extract_strided_slice %25 {offsets = [0, 0, 0], sizes = [16, 16, 64], strides = [1, 1, 1]} : vector<16x18x64xbf16> to vector<16x16x64xbf16>
    %27 = vector.shape_cast %26 : vector<16x16x64xbf16> to vector<256x64xbf16>
    %28 = vector.extract_strided_slice %25 {offsets = [0, 1, 0], sizes = [16, 16, 64], strides = [1, 1, 1]} : vector<16x18x64xbf16> to vector<16x16x64xbf16>
    %29 = vector.shape_cast %28 : vector<16x16x64xbf16> to vector<256x64xbf16>
    %30 = vector.extract_strided_slice %25 {offsets = [0, 2, 0], sizes = [16, 16, 64], strides = [1, 1, 1]} : vector<16x18x64xbf16> to vector<16x16x64xbf16>
    %31 = vector.shape_cast %30 : vector<16x16x64xbf16> to vector<256x64xbf16>
    %32 = tpu.concatenate %27, %29, %31 in 1 : vector<256x64xbf16>, vector<256x64xbf16>, vector<256x64xbf16> -> vector<256x192xbf16>
    %33 = vector.extract_strided_slice %19 {offsets = [0, 0, 0], sizes = [1, 192, 64], strides = [1, 1, 1]} : vector<3x192x64xbf16> to vector<1x192x64xbf16>
    %34 = vector.shape_cast %33 : vector<1x192x64xbf16> to vector<192x64xbf16>
    %cst_48 = arith.constant dense<0.000000e+00> : vector<256x64xf32>
    %35 = tpu.matmul %32, %34, %cst_48 {dimension_numbers = #tpu.dot_dimension_numbers<[1], [0], [0], [1], [0, 0, 1, 1], [], []>} : vector<256x192xbf16>, vector<192x64xbf16>, vector<256x64xf32> -> vector<256x64xf32>
    %36 = arith.addf %24, %35 : vector<256x64xf32>
    %c1_49 = arith.constant 1 : index
    %c0_50 = arith.constant 0 : index
    %c0_51 = arith.constant 0 : index
    %37 = vector.load %arg7[%c1_49, %c0_50, %c0_51] : memref<18x18x64xbf16, #tpu.memory_space<vmem>>, vector<16x18x64xbf16>
    %38 = vector.extract_strided_slice %37 {offsets = [0, 0, 0], sizes = [16, 16, 64], strides = [1, 1, 1]} : vector<16x18x64xbf16> to vector<16x16x64xbf16>
    %39 = vector.shape_cast %38 : vector<16x16x64xbf16> to vector<256x64xbf16>
    %40 = vector.extract_strided_slice %37 {offsets = [0, 1, 0], sizes = [16, 16, 64], strides = [1, 1, 1]} : vector<16x18x64xbf16> to vector<16x16x64xbf16>
    %41 = vector.shape_cast %40 : vector<16x16x64xbf16> to vector<256x64xbf16>
    %42 = vector.extract_strided_slice %37 {offsets = [0, 2, 0], sizes = [16, 16, 64], strides = [1, 1, 1]} : vector<16x18x64xbf16> to vector<16x16x64xbf16>
    %43 = vector.shape_cast %42 : vector<16x16x64xbf16> to vector<256x64xbf16>
    %44 = tpu.concatenate %39, %41, %43 in 1 : vector<256x64xbf16>, vector<256x64xbf16>, vector<256x64xbf16> -> vector<256x192xbf16>
    %45 = vector.extract_strided_slice %19 {offsets = [1, 0, 0], sizes = [1, 192, 64], strides = [1, 1, 1]} : vector<3x192x64xbf16> to vector<1x192x64xbf16>
    %46 = vector.shape_cast %45 : vector<1x192x64xbf16> to vector<192x64xbf16>
    %cst_52 = arith.constant dense<0.000000e+00> : vector<256x64xf32>
    %47 = tpu.matmul %44, %46, %cst_52 {dimension_numbers = #tpu.dot_dimension_numbers<[1], [0], [0], [1], [0, 0, 1, 1], [], []>} : vector<256x192xbf16>, vector<192x64xbf16>, vector<256x64xf32> -> vector<256x64xf32>
    %48 = arith.addf %36, %47 : vector<256x64xf32>
    %c2 = arith.constant 2 : index
    %c0_53 = arith.constant 0 : index
    %c0_54 = arith.constant 0 : index
    %49 = vector.load %arg7[%c2, %c0_53, %c0_54] : memref<18x18x64xbf16, #tpu.memory_space<vmem>>, vector<16x18x64xbf16>
    %50 = vector.extract_strided_slice %49 {offsets = [0, 0, 0], sizes = [16, 16, 64], strides = [1, 1, 1]} : vector<16x18x64xbf16> to vector<16x16x64xbf16>
    %51 = vector.shape_cast %50 : vector<16x16x64xbf16> to vector<256x64xbf16>
    %52 = vector.extract_strided_slice %49 {offsets = [0, 1, 0], sizes = [16, 16, 64], strides = [1, 1, 1]} : vector<16x18x64xbf16> to vector<16x16x64xbf16>
    %53 = vector.shape_cast %52 : vector<16x16x64xbf16> to vector<256x64xbf16>
    %54 = vector.extract_strided_slice %49 {offsets = [0, 2, 0], sizes = [16, 16, 64], strides = [1, 1, 1]} : vector<16x18x64xbf16> to vector<16x16x64xbf16>
    %55 = vector.shape_cast %54 : vector<16x16x64xbf16> to vector<256x64xbf16>
    %56 = tpu.concatenate %51, %53, %55 in 1 : vector<256x64xbf16>, vector<256x64xbf16>, vector<256x64xbf16> -> vector<256x192xbf16>
    %57 = vector.extract_strided_slice %19 {offsets = [2, 0, 0], sizes = [1, 192, 64], strides = [1, 1, 1]} : vector<3x192x64xbf16> to vector<1x192x64xbf16>
    %58 = vector.shape_cast %57 : vector<1x192x64xbf16> to vector<192x64xbf16>
    %cst_55 = arith.constant dense<0.000000e+00> : vector<256x64xf32>
    %59 = tpu.matmul %56, %58, %cst_55 {dimension_numbers = #tpu.dot_dimension_numbers<[1], [0], [0], [1], [0, 0, 1, 1], [], []>} : vector<256x192xbf16>, vector<192x64xbf16>, vector<256x64xf32> -> vector<256x64xf32>
    %60 = arith.addf %48, %59 : vector<256x64xf32>
    %cst_56 = arith.constant 0.000000e+00 : f32
    %61 = vector.broadcast %cst_56 : f32 to vector<256x64xf32>
    %62 = arith.maximumf %60, %61 : vector<256x64xf32>
    %63 = arith.truncf %62 : vector<256x64xf32> to vector<256x64xbf16>
    %64 = vector.shape_cast %63 : vector<256x64xbf16> to vector<16x16x64xbf16>
    %c1_57 = arith.constant 1 : index
    %c1_58 = arith.constant 1 : index
    %c0_59 = arith.constant 0 : index
    %65 = vector.load %arg8[%c1_57, %c1_58, %c0_59] : memref<18x18x64xbf16, #tpu.memory_space<vmem>>, vector<16x16x64xbf16>
    tpu.vector_store %arg8[%c1_57, %c1_58, %c0_59], %64 {strides = array<i32>} : memref<18x18x64xbf16, #tpu.memory_space<vmem>>, vector<16x16x64xbf16>,
    %66 = vector.shape_cast %22 : vector<1x64xf32> to vector<1x64xf32>
    %67 = vector.broadcast %66 : vector<1x64xf32> to vector<256x64xf32>
    %c0_60 = arith.constant 0 : index
    %c0_61 = arith.constant 0 : index
    %c0_62 = arith.constant 0 : index
    %68 = vector.load %arg8[%c0_60, %c0_61, %c0_62] : memref<18x18x64xbf16, #tpu.memory_space<vmem>>, vector<16x18x64xbf16>
    %69 = vector.extract_strided_slice %68 {offsets = [0, 0, 0], sizes = [16, 16, 64], strides = [1, 1, 1]} : vector<16x18x64xbf16> to vector<16x16x64xbf16>
    %70 = vector.shape_cast %69 : vector<16x16x64xbf16> to vector<256x64xbf16>
    %71 = vector.extract_strided_slice %68 {offsets = [0, 1, 0], sizes = [16, 16, 64], strides = [1, 1, 1]} : vector<16x18x64xbf16> to vector<16x16x64xbf16>
    %72 = vector.shape_cast %71 : vector<16x16x64xbf16> to vector<256x64xbf16>
    %73 = vector.extract_strided_slice %68 {offsets = [0, 2, 0], sizes = [16, 16, 64], strides = [1, 1, 1]} : vector<16x18x64xbf16> to vector<16x16x64xbf16>
    %74 = vector.shape_cast %73 : vector<16x16x64xbf16> to vector<256x64xbf16>
    %75 = tpu.concatenate %70, %72, %74 in 1 : vector<256x64xbf16>, vector<256x64xbf16>, vector<256x64xbf16> -> vector<256x192xbf16>
    %76 = vector.extract_strided_slice %20 {offsets = [0, 0, 0], sizes = [1, 192, 64], strides = [1, 1, 1]} : vector<3x192x64xbf16> to vector<1x192x64xbf16>
    %77 = vector.shape_cast %76 : vector<1x192x64xbf16> to vector<192x64xbf16>
    %cst_63 = arith.constant dense<0.000000e+00> : vector<256x64xf32>
    %78 = tpu.matmul %75, %77, %cst_63 {dimension_numbers = #tpu.dot_dimension_numbers<[1], [0], [0], [1], [0, 0, 1, 1], [], []>} : vector<256x192xbf16>, vector<192x64xbf16>, vector<256x64xf32> -> vector<256x64xf32>
    %79 = arith.addf %67, %78 : vector<256x64xf32>
    %c1_64 = arith.constant 1 : index
    %c0_65 = arith.constant 0 : index
    %c0_66 = arith.constant 0 : index
    %80 = vector.load %arg8[%c1_64, %c0_65, %c0_66] : memref<18x18x64xbf16, #tpu.memory_space<vmem>>, vector<16x18x64xbf16>
    %81 = vector.extract_strided_slice %80 {offsets = [0, 0, 0], sizes = [16, 16, 64], strides = [1, 1, 1]} : vector<16x18x64xbf16> to vector<16x16x64xbf16>
    %82 = vector.shape_cast %81 : vector<16x16x64xbf16> to vector<256x64xbf16>
    %83 = vector.extract_strided_slice %80 {offsets = [0, 1, 0], sizes = [16, 16, 64], strides = [1, 1, 1]} : vector<16x18x64xbf16> to vector<16x16x64xbf16>
    %84 = vector.shape_cast %83 : vector<16x16x64xbf16> to vector<256x64xbf16>
    %85 = vector.extract_strided_slice %80 {offsets = [0, 2, 0], sizes = [16, 16, 64], strides = [1, 1, 1]} : vector<16x18x64xbf16> to vector<16x16x64xbf16>
    %86 = vector.shape_cast %85 : vector<16x16x64xbf16> to vector<256x64xbf16>
    %87 = tpu.concatenate %82, %84, %86 in 1 : vector<256x64xbf16>, vector<256x64xbf16>, vector<256x64xbf16> -> vector<256x192xbf16>
    %88 = vector.extract_strided_slice %20 {offsets = [1, 0, 0], sizes = [1, 192, 64], strides = [1, 1, 1]} : vector<3x192x64xbf16> to vector<1x192x64xbf16>
    %89 = vector.shape_cast %88 : vector<1x192x64xbf16> to vector<192x64xbf16>
    %cst_67 = arith.constant dense<0.000000e+00> : vector<256x64xf32>
    %90 = tpu.matmul %87, %89, %cst_67 {dimension_numbers = #tpu.dot_dimension_numbers<[1], [0], [0], [1], [0, 0, 1, 1], [], []>} : vector<256x192xbf16>, vector<192x64xbf16>, vector<256x64xf32> -> vector<256x64xf32>
    %91 = arith.addf %79, %90 : vector<256x64xf32>
    %c2_68 = arith.constant 2 : index
    %c0_69 = arith.constant 0 : index
    %c0_70 = arith.constant 0 : index
    %92 = vector.load %arg8[%c2_68, %c0_69, %c0_70] : memref<18x18x64xbf16, #tpu.memory_space<vmem>>, vector<16x18x64xbf16>
    %93 = vector.extract_strided_slice %92 {offsets = [0, 0, 0], sizes = [16, 16, 64], strides = [1, 1, 1]} : vector<16x18x64xbf16> to vector<16x16x64xbf16>
    %94 = vector.shape_cast %93 : vector<16x16x64xbf16> to vector<256x64xbf16>
    %95 = vector.extract_strided_slice %92 {offsets = [0, 1, 0], sizes = [16, 16, 64], strides = [1, 1, 1]} : vector<16x18x64xbf16> to vector<16x16x64xbf16>
    %96 = vector.shape_cast %95 : vector<16x16x64xbf16> to vector<256x64xbf16>
    %97 = vector.extract_strided_slice %92 {offsets = [0, 2, 0], sizes = [16, 16, 64], strides = [1, 1, 1]} : vector<16x18x64xbf16> to vector<16x16x64xbf16>
    %98 = vector.shape_cast %97 : vector<16x16x64xbf16> to vector<256x64xbf16>
    %99 = tpu.concatenate %94, %96, %98 in 1 : vector<256x64xbf16>, vector<256x64xbf16>, vector<256x64xbf16> -> vector<256x192xbf16>
    %100 = vector.extract_strided_slice %20 {offsets = [2, 0, 0], sizes = [1, 192, 64], strides = [1, 1, 1]} : vector<3x192x64xbf16> to vector<1x192x64xbf16>
    %101 = vector.shape_cast %100 : vector<1x192x64xbf16> to vector<192x64xbf16>
    %cst_71 = arith.constant dense<0.000000e+00> : vector<256x64xf32>
    %102 = tpu.matmul %99, %101, %cst_71 {dimension_numbers = #tpu.dot_dimension_numbers<[1], [0], [0], [1], [0, 0, 1, 1], [], []>} : vector<256x192xbf16>, vector<192x64xbf16>, vector<256x64xf32> -> vector<256x64xf32>
    %103 = arith.addf %91, %102 : vector<256x64xf32>
    %104 = vector.shape_cast %103 : vector<256x64xf32> to vector<16x16x64xf32>
    %c0_72 = arith.constant 0 : index
    %c0_73 = arith.constant 0 : index
    %c0_74 = arith.constant 0 : index
    %c0_75 = arith.constant 0 : index
    %105 = vector.load %arg6[%c0_72, %c0_73, %c0_74, %c0_75] : memref<1x16x16x64xf32, #tpu.memory_space<vmem>>, vector<1x16x16x64xf32>
    %106 = vector.shape_cast %105 : vector<1x16x16x64xf32> to vector<16x16x64xf32>
    %107 = vector.shape_cast %104 : vector<16x16x64xf32> to vector<1x16x16x64xf32>
    tpu.vector_store %arg6[%c0_72, %c0_73, %c0_74, %c0_75], %107 {strides = array<i32>} : memref<1x16x16x64xf32, #tpu.memory_space<vmem>>, vector<1x16x16x64xf32>,
    return
  }
  func.func @transform_0(%arg0: i32) -> (i32, i32, i32, i32) {
    %c0_i32 = arith.constant 0 : i32
    %c0_i32_0 = arith.constant 0 : i32
    %c0_i32_1 = arith.constant 0 : i32
    %c0_i32_2 = arith.constant 0 : i32
    return %arg0, %c0_i32, %c0_i32_0, %c0_i32_1 : i32, i32, i32, i32
  }
  func.func @transform_1(%arg0: i32) -> (i32, i32, i32) {
    %c0_i32 = arith.constant 0 : i32
    %c0_i32_0 = arith.constant 0 : i32
    %c0_i32_1 = arith.constant 0 : i32
    %c0_i32_2 = arith.constant 0 : i32
    return %c0_i32, %c0_i32_0, %c0_i32_1 : i32, i32, i32
  }
  func.func @transform_2(%arg0: i32) -> (i32, i32) {
    %c0_i32 = arith.constant 0 : i32
    %c0_i32_0 = arith.constant 0 : i32
    %c0_i32_1 = arith.constant 0 : i32
    return %c0_i32, %c0_i32_0 : i32, i32
  }
  func.func @transform_3(%arg0: i32) -> (i32, i32, i32) {
    %c0_i32 = arith.constant 0 : i32
    %c0_i32_0 = arith.constant 0 : i32
    %c0_i32_1 = arith.constant 0 : i32
    %c0_i32_2 = arith.constant 0 : i32
    return %c0_i32, %c0_i32_0, %c0_i32_1 : i32, i32, i32
  }
  func.func @transform_4(%arg0: i32) -> (i32, i32) {
    %c0_i32 = arith.constant 0 : i32
    %c0_i32_0 = arith.constant 0 : i32
    %c0_i32_1 = arith.constant 0 : i32
    return %c0_i32, %c0_i32_0 : i32, i32
  }
  func.func @transform_5(%arg0: i32) -> (i32, i32, i32, i32) {
    %c0_i32 = arith.constant 0 : i32
    %c0_i32_0 = arith.constant 0 : i32
    %c0_i32_1 = arith.constant 0 : i32
    %c0_i32_2 = arith.constant 0 : i32
    return %arg0, %c0_i32, %c0_i32_0, %c0_i32_1 : i32, i32, i32, i32
  }
}

</mosaic_0001>

<llo_original>
// kernel: tpu_custom_call.1
$region0: #{tpu_custom_call.1}
  #allocation0 [shape = 'u32[]', space=smem, size = 0x4, offset = 0x4, fixed_abs, tag = 'smem constant byte address 0x4 - core index']
  #allocation1 [shape = 'u32[144,128]{1,0:T(1,128)}', space=vmem, size = 0x12000, scoped, tag = 'internal scratch']
  #allocation2 [shape = 'bf16[18,18,64]{2,1,0:T(8,128)(2,1)}', space=vmem, size = 0x1b000, scoped, tag = 'scratch operand']
  #allocation3 [shape = 'bf16[18,18,64]{2,1,0:T(8,128)(2,1)}', space=vmem, size = 0x1b000, scoped, tag = 'scratch operand']
  %s0 = inlined_call_operand.vmem [shape: bf16[2,16,16,64], index: 0, kind: input, shape index: {}]
  %s1 = inlined_call_operand.vmem [shape: bf16[3,192,64], index: 1, kind: input, shape index: {}]
  %s2 = inlined_call_operand.vmem [shape: f32[1,64], index: 2, kind: input, shape index: {}]
  %s3 = inlined_call_operand.vmem [shape: bf16[3,192,64], index: 3, kind: input, shape index: {}]
  %s4 = inlined_call_operand.vmem [shape: f32[1,64], index: 4, kind: input, shape index: {}]
  %s5 = inlined_call_operand.hbm [shape: f32[2,16,16,64], index: 5, kind: output, shape index: {}]
  %s6 = sld [smem:[#allocation0]]
  $region53: #{tpu_custom_call.1} parent=0
    _
  %s8 = ssub.s32 1, %s6
  %s9 = scalar_select 0, %s8, %s6
  $region1: #{tpu_custom_call.1} parent=0
    #allocation4 [shape = 'u8[262144]{0}', space=vmem, size = 0x40000, scoped, tag = 'output window, operand 0']
    #allocation5 [shape = 's32[2]{0}', space=sflag, size = 0x8, scoped, tag = 'scoped memory for tpu_custom_call.1']
    %10 = vsyncpa [#allocation5], 0
    %s11 = scalar_lea.sflag [#allocation5], 1
    %12 = vsyncpa %s11, 0
    loop: start=0, step=1, limit=4
    $region2: #{tpu_custom_call.1} parent=1 // loop_pre_header
      _
    $region3: #{tpu_custom_call.1} parent=1 // loop_header
      %s14 = sphi 0, %s18
      %p15 = scmp.ge.s32.totalorder %s14, 4
      %s24 = sphi 0, %s26
      %s27 = sphi 0, %s24
      %s28 = sphi 0, %s27
      %s44 = sphi 0, %s28
      %s48 = sphi 0, %s48
      %s50 = sphi 0, %s48
      %s51 = sphi 0, %s50
      %s65 = sphi 0, %s51
      %s69 = sphi 0, %s69
      %s71 = sphi 0, %s69
      %s72 = sphi 0, %s71
      %s86 = sphi 0, %s72
      %s90 = sphi 0, %s90
      %s92 = sphi 0, %s90
      %s93 = sphi 0, %s92
      %s107 = sphi 0, %s93
      %s111 = sphi 0, %s111
      %s113 = sphi 0, %s111
      %s114 = sphi 0, %s113
      %s128 = sphi 0, %s114
      %s134 = sphi 0, %s136
      %s137 = sphi 0, %s134
      %s138 = sphi 0, %s137
      %s154 = sphi 0, %s138
    $region4: #{tpu_custom_call.1} parent=1 // loop_header_branch
      %17 = sbr.rel (%p15) target = $region8
    $region5: #{tpu_custom_call.1} parent=1 // loop_body
      %s19 = ssub.s32 %s14, 1
      %s20 = ssub.s32 %s14, 2
      %s21 = sadd.s32 %s14, 1
      %s22 = ssub.s32 %s14, %s21
      %p23 = scmp.eq.s32.totalorder %s22, 0
      %s25 = sadd.s32 %s24, 1
      %s26 = scalar_select %p23, %s24, %s25
      %p29 = pneg %p23
      %p30 = scmp.eq.s32.totalorder %s14, 1
      %p31 = por %p29, %p30
      %p32 = scmp.ne.s32.totalorder %s24, %s27
      %p33 = scmp.eq.s32.totalorder %s14, 0
      %p34 = por %p32, %p33
      %p35 = scmp.ne.s32.totalorder %s24, %s27
      %p36 = scmp.eq.s32.totalorder %s19, 1
      %p37 = por %p35, %p36
      %p38 = scmp.ne.s32.totalorder %s27, %s28
      %p39 = scmp.eq.s32.totalorder %s19, 0
      %p40 = por %p38, %p39
      %p41 = scmp.ne.s32.totalorder %s27, %s28
      %p42 = scmp.eq.s32.totalorder %s20, 1
      %p43 = por %p41, %p42
      %p45 = scmp.ne.s32.totalorder %s28, %s44
      %p46 = scmp.eq.s32.totalorder %s20, 0
      %p47 = por %p45, %p46
      %s49 = sadd.s32 %s48, 1
      %p52 = scmp.eq.s32.totalorder %s14, 1
      %p53 = scmp.ne.s32.totalorder %s48, %s50
      %p54 = scmp.eq.s32.totalorder %s14, 0
      %p55 = por %p53, %p54
      %p56 = scmp.ne.s32.totalorder %s48, %s50
      %p57 = scmp.eq.s32.totalorder %s19, 1
      %p58 = por %p56, %p57
      %p59 = scmp.ne.s32.totalorder %s50, %s51
      %p60 = scmp.eq.s32.totalorder %s19, 0
      %p61 = por %p59, %p60
      %p62 = scmp.ne.s32.totalorder %s50, %s51
      %p63 = scmp.eq.s32.totalorder %s20, 1
      %p64 = por %p62, %p63
      %p66 = scmp.ne.s32.totalorder %s51, %s65
      %p67 = scmp.eq.s32.totalorder %s20, 0
      %p68 = por %p66, %p67
      %s70 = sadd.s32 %s69, 1
      %p73 = scmp.eq.s32.totalorder %s14, 1
      %p74 = scmp.ne.s32.totalorder %s69, %s71
      %p75 = scmp.eq.s32.totalorder %s14, 0
      %p76 = por %p74, %p75
      %p77 = scmp.ne.s32.totalorder %s69, %s71
      %p78 = scmp.eq.s32.totalorder %s19, 1
      %p79 = por %p77, %p78
      %p80 = scmp.ne.s32.totalorder %s71, %s72
      %p81 = scmp.eq.s32.totalorder %s19, 0
      %p82 = por %p80, %p81
      %p83 = scmp.ne.s32.totalorder %s71, %s72
      %p84 = scmp.eq.s32.totalorder %s20, 1
      %p85 = por %p83, %p84
      %p87 = scmp.ne.s32.totalorder %s72, %s86
      %p88 = scmp.eq.s32.totalorder %s20, 0
      %p89 = por %p87, %p88
      %s91 = sadd.s32 %s90, 1
      %p94 = scmp.eq.s32.totalorder %s14, 1
      %p95 = scmp.ne.s32.totalorder %s90, %s92
      %p96 = scmp.eq.s32.totalorder %s14, 0
      %p97 = por %p95, %p96
      %p98 = scmp.ne.s32.totalorder %s90, %s92
      %p99 = scmp.eq.s32.totalorder %s19, 1
      %p100 = por %p98, %p99
      %p101 = scmp.ne.s32.totalorder %s92, %s93
      %p102 = scmp.eq.s32.totalorder %s19, 0
      %p103 = por %p101, %p102
      %p104 = scmp.ne.s32.totalorder %s92, %s93
      %p105 = scmp.eq.s32.totalorder %s20, 1
      %p106 = por %p104, %p105
      %p108 = scmp.ne.s32.totalorder %s93, %s107
      %p109 = scmp.eq.s32.totalorder %s20, 0
      %p110 = por %p108, %p109
      %s112 = sadd.s32 %s111, 1
      %p115 = scmp.eq.s32.totalorder %s14, 1
      %p116 = scmp.ne.s32.totalorder %s111, %s113
      %p117 = scmp.eq.s32.totalorder %s14, 0
      %p118 = por %p116, %p117
      %p119 = scmp.ne.s32.totalorder %s111, %s113
      %p120 = scmp.eq.s32.totalorder %s19, 1
      %p121 = por %p119, %p120
      %p122 = scmp.ne.s32.totalorder %s113, %s114
      %p123 = scmp.eq.s32.totalorder %s19, 0
      %p124 = por %p122, %p123
      %p125 = scmp.ne.s32.totalorder %s113, %s114
      %p126 = scmp.eq.s32.totalorder %s20, 1
      %p127 = por %p125, %p126
      %p129 = scmp.ne.s32.totalorder %s114, %s128
      %p130 = scmp.eq.s32.totalorder %s20, 0
      %p131 = por %p129, %p130
      %s132 = ssub.s32 %s14, %s21
      %p133 = scmp.eq.s32.totalorder %s132, 0
      %s135 = sadd.s32 %s134, 1
      %s136 = scalar_select %p133, %s134, %s135
      %p139 = pneg %p133
      %p140 = scmp.eq.s32.totalorder %s14, 1
      %p141 = por %p139, %p140
      %p142 = scmp.ne.s32.totalorder %s134, %s137
      %p143 = scmp.eq.s32.totalorder %s14, 0
      %p144 = por %p142, %p143
      %p145 = scmp.ne.s32.totalorder %s134, %s137
      %p146 = scmp.eq.s32.totalorder %s19, 1
      %p147 = por %p145, %p146
      %p148 = scmp.ne.s32.totalorder %s137, %s138
      %p149 = scmp.eq.s32.totalorder %s19, 0
      %p150 = por %p148, %p149
      %p151 = scmp.ne.s32.totalorder %s137, %s138
      %p152 = scmp.eq.s32.totalorder %s20, 1
      %p153 = por %p151, %p152
      %p155 = scmp.ne.s32.totalorder %s138, %s154
      %p156 = scmp.eq.s32.totalorder %s20, 0
      %p157 = por %p155, %p156
      %p158 = scmp.le.s32.totalorder 1, %s14
      %p159 = scmp.lt.s32.totalorder %s14, 3
      %p160 = pnand %p158, %p159
      %p161 = pneg %p160
      // Predicated region
      $region9: #{tpu_custom_call.1} parent=5 // pred_check
        _
      $region10: #{tpu_custom_call.1} parent=5 // pred_check_branch
        %163 = sbr.rel (%p160) target = $region12
      $region11: #{tpu_custom_call.1} parent=5 // pred_region
        %s164 = ssub.s32 %s14, 1
        // Predicated region
        $region13: #{tpu_custom_call.1} parent=11 // pred_check
          %p165 = pneg %p61
        $region14: #{tpu_custom_call.1} parent=11 // pred_check_branch
          %167 = sbr.rel (%p165) target = $region16
        $region15: #{tpu_custom_call.1} parent=11 // pred_region
          _
        $region16: #{tpu_custom_call.1} parent=11 // pred_fallthru
          _
        // Predicated region
        $region17: #{tpu_custom_call.1} parent=11 // pred_check
          %p168 = pneg %p82
        $region18: #{tpu_custom_call.1} parent=11 // pred_check_branch
          %170 = sbr.rel (%p168) target = $region20
        $region19: #{tpu_custom_call.1} parent=11 // pred_region
          _
        $region20: #{tpu_custom_call.1} parent=11 // pred_fallthru
          _
        // Predicated region
        $region21: #{tpu_custom_call.1} parent=11 // pred_check
          %p171 = pneg %p103
        $region22: #{tpu_custom_call.1} parent=11 // pred_check_branch
          %173 = sbr.rel (%p171) target = $region24
        $region23: #{tpu_custom_call.1} parent=11 // pred_region
          _
        $region24: #{tpu_custom_call.1} parent=11 // pred_fallthru
          _
        // Predicated region
        $region25: #{tpu_custom_call.1} parent=11 // pred_check
          %p174 = pneg %p124
        $region26: #{tpu_custom_call.1} parent=11 // pred_check_branch
          %176 = sbr.rel (%p174) target = $region28
        $region27: #{tpu_custom_call.1} parent=11 // pred_region
          _
        $region28: #{tpu_custom_call.1} parent=11 // pred_fallthru
          _
      $region12: #{tpu_custom_call.1} parent=5 // pred_fallthru
        _
      %p177 = scmp.lt.s32.totalorder %s14, 2
      // Predicated region
      $region29: #{tpu_custom_call.1} parent=5 // pred_check
        %p178 = pneg %p177
      $region30: #{tpu_custom_call.1} parent=5 // pred_check_branch
        %180 = sbr.rel (%p178) target = $region32
      $region31: #{tpu_custom_call.1} parent=5 // pred_region
        // Predicated region
        $region33: #{tpu_custom_call.1} parent=31 // pred_check
          %p181 = pneg %p34
        $region34: #{tpu_custom_call.1} parent=31 // pred_check_branch
          %183 = sbr.rel (%p181) target = $region36
        $region35: #{tpu_custom_call.1} parent=31 // pred_region
          %p184 = scmp.lt.s32.totalorder %s14, 1
          %s185 = scalar_select %p184, %s14, 1
          %s186 = smul.addr %s185, 32
          %s187 = smul.addr %s186, 4
          %s188 = scalar_lea.vmem %s0, %s187
        $region36: #{tpu_custom_call.1} parent=31 // pred_fallthru
          _
      $region32: #{tpu_custom_call.1} parent=5 // pred_fallthru
        _
      %p189 = scmp.le.s32.totalorder 1, %s14
      %p190 = scmp.lt.s32.totalorder %s14, 3
      %p191 = pnand %p189, %p190
      %p192 = pneg %p191
      // Predicated region
      $region37: #{tpu_custom_call.1} parent=5 // pred_check
        _
      $region38: #{tpu_custom_call.1} parent=5 // pred_check_branch
        %194 = sbr.rel (%p191) target = $region40
      $region39: #{tpu_custom_call.1} parent=5 // pred_region
        %s195 = ssub.s32 %s14, 1
        %p196 = scmp.lt.s32.totalorder %s19, 1
        %s197 = scalar_select %p196, %s19, 1
        %s198 = smul.addr %s197, 32
        %s199 = smul.addr %s198, 4
        %s200 = scalar_lea.vmem %s0, %s199
        %p201 = pneg %p40
        %p202 = pneg %p37
        %p203 = pneg %p61
        %p204 = pneg %p58
        %p205 = pneg %p82
        %p206 = pneg %p79
        %p207 = pneg %p103
        %p208 = pneg %p100
        %p209 = pneg %p124
        %p210 = pneg %p121
        %p211 = pneg %p150
        %p212 = pneg %p147
        %s213 = sand.u32 %s137, 1
        %s214 = scalar_lea.sflag [#allocation5], %s213
        %s215 = sand.u32 %s137, 1
        %s216 = smul.addr %s215, 256
        %s217 = scalar_lea.vmem [#allocation4], %s216
        %p218 = scmp.lt.s32.totalorder %s19, 1
        %s219 = scalar_select %p218, %s19, 1
        %s220 = smul.addr %s219, 32
        %s221 = smul.addr %s220, 4
        %s222 = scalar_lea.vmem %s0, %s221
        %vm224 = vcmask 519168
        %225 = vst.msk [vmem:[#allocation2] sm:$0xf] %vm224, 0
        %226 = vst.msk [vmem:[#allocation2 + $0x4] sm:$0xf] %vm224, 0
        %vm227 = vcmask 516096
        %228 = vst.msk [vmem:[#allocation2 + $0x8] sm:$0x1] %vm227, 0
        %s229 = scalar_lea.vmem [#allocation2], 204
        %230 = vst.msk [vmem:[%s229] sm:$0xf] %vm224, 0
        %231 = vst.msk [vmem:[%s229 + $0x4] sm:$0xf] %vm224, 0
        %232 = vst.msk [vmem:[%s229 + $0x8] sm:$0x1] %vm227, 0
        %vm233 = vcmask 516096
        %vm234 = vsmask.f32 256
        %vm235 = vmand %vm233, %vm234
        %v236 = vld [vmem:[#allocation2] sm:$0x1]
        %v237 = vsel %vm235, 0, %v236
        %238 = vst [vmem:[#allocation2] sm:$0x1] %v237
        %v239 = vld [vmem:[#allocation2 + $0xc] sm:$0x1]
        %v240 = vsel %vm235, 0, %v239
        %241 = vst [vmem:[#allocation2 + $0xc] sm:$0x1] %v240
        %v242 = vld [vmem:[#allocation2 + $0x18] sm:$0x1]
        %v243 = vsel %vm235, 0, %v242
        %244 = vst [vmem:[#allocation2 + $0x18] sm:$0x1] %v243
        %v245 = vld [vmem:[#allocation2 + $0x24] sm:$0x1]
        %v246 = vsel %vm235, 0, %v245
        %247 = vst [vmem:[#allocation2 + $0x24] sm:$0x1] %v246
        %v248 = vld [vmem:[#allocation2 + $0x30] sm:$0x1]
        %v249 = vsel %vm235, 0, %v248
        %250 = vst [vmem:[#allocation2 + $0x30] sm:$0x1] %v249
        %v251 = vld [vmem:[#allocation2 + $0x3c] sm:$0x1]
        %v252 = vsel %vm235, 0, %v251
        %253 = vst [vmem:[#allocation2 + $0x3c] sm:$0x1] %v252
        %v254 = vld [vmem:[#allocation2 + $0x48] sm:$0x1]
        %v255 = vsel %vm235, 0, %v254
        %256 = vst [vmem:[#allocation2 + $0x48] sm:$0x1] %v255
        %v257 = vld [vmem:[#allocation2 + $0x54] sm:$0x1]
        %v258 = vsel %vm235, 0, %v257
        %259 = vst [vmem:[#allocation2 + $0x54] sm:$0x1] %v258
        %v260 = vld [vmem:[#allocation2 + $0x60] sm:$0x1]
        %v261 = vsel %vm235, 0, %v260
        %262 = vst [vmem:[#allocation2 + $0x60] sm:$0x1] %v261
        %v263 = vld [vmem:[#allocation2 + $0x6c] sm:$0x1]
        %v264 = vsel %vm235, 0, %v263
        %265 = vst [vmem:[#allocation2 + $0x6c] sm:$0x1] %v264
        %v266 = vld [vmem:[#allocation2 + $0x78] sm:$0x1]
        %v267 = vsel %vm235, 0, %v266
        %268 = vst [vmem:[#allocation2 + $0x78] sm:$0x1] %v267
        %v269 = vld [vmem:[#allocation2 + $0x84] sm:$0x1]
        %v270 = vsel %vm235, 0, %v269
        %271 = vst [vmem:[#allocation2 + $0x84] sm:$0x1] %v270
        %v272 = vld [vmem:[#allocation2 + $0x90] sm:$0x1]
        %v273 = vsel %vm235, 0, %v272
        %274 = vst [vmem:[#allocation2 + $0x90] sm:$0x1] %v273
        %v275 = vld [vmem:[#allocation2 + $0x9c] sm:$0x1]
        %v276 = vsel %vm235, 0, %v275
        %277 = vst [vmem:[#allocation2 + $0x9c] sm:$0x1] %v276
        %v278 = vld [vmem:[#allocation2 + $0xa8] sm:$0x1]
        %v279 = vsel %vm235, 0, %v278
        %280 = vst [vmem:[#allocation2 + $0xa8] sm:$0x1] %v279
        %v281 = vld [vmem:[#allocation2 + $0xb4] sm:$0x1]
        %v282 = vsel %vm235, 0, %v281
        %283 = vst [vmem:[#allocation2 + $0xb4] sm:$0x1] %v282
        %v284 = vld [vmem:[#allocation2 + $0xc0] sm:$0x1]
        %v285 = vsel %vm235, 0, %v284
        %286 = vst [vmem:[#allocation2 + $0xc0] sm:$0x1] %v285
        %v287 = vld [vmem:[#allocation2 + $0xcc] sm:$0x1]
        %v288 = vsel %vm235, 0, %v287
        %289 = vst [vmem:[#allocation2 + $0xcc] sm:$0x1] %v288
        %vm290 = vsmask.f32 7938
        %vm291 = vmand %vm233, %vm290
        %v292 = vld [vmem:[#allocation2 + $0x8] sm:$0x1]
        %v293 = vsel %vm291, 0, %v292
        %294 = vst [vmem:[#allocation2 + $0x8] sm:$0x1] %v293
        %v295 = vld [vmem:[#allocation2 + $0x14] sm:$0x1]
        %v296 = vsel %vm291, 0, %v295
        %297 = vst [vmem:[#allocation2 + $0x14] sm:$0x1] %v296
        %v298 = vld [vmem:[#allocation2 + $0x20] sm:$0x1]
        %v299 = vsel %vm291, 0, %v298
        %300 = vst [vmem:[#allocation2 + $0x20] sm:$0x1] %v299
        %v301 = vld [vmem:[#allocation2 + $0x2c] sm:$0x1]
        %v302 = vsel %vm291, 0, %v301
        %303 = vst [vmem:[#allocation2 + $0x2c] sm:$0x1] %v302
        %v304 = vld [vmem:[#allocation2 + $0x38] sm:$0x1]
        %v305 = vsel %vm291, 0, %v304
        %306 = vst [vmem:[#allocation2 + $0x38] sm:$0x1] %v305
        %v307 = vld [vmem:[#allocation2 + $0x44] sm:$0x1]
        %v308 = vsel %vm291, 0, %v307
        %309 = vst [vmem:[#allocation2 + $0x44] sm:$0x1] %v308
        %v310 = vld [vmem:[#allocation2 + $0x50] sm:$0x1]
        %v311 = vsel %vm291, 0, %v310
        %312 = vst [vmem:[#allocation2 + $0x50] sm:$0x1] %v311
        %v313 = vld [vmem:[#allocation2 + $0x5c] sm:$0x1]
        %v314 = vsel %vm291, 0, %v313
        %315 = vst [vmem:[#allocation2 + $0x5c] sm:$0x1] %v314
        %v316 = vld [vmem:[#allocation2 + $0x68] sm:$0x1]
        %v317 = vsel %vm291, 0, %v316
        %318 = vst [vmem:[#allocation2 + $0x68] sm:$0x1] %v317
        %v319 = vld [vmem:[#allocation2 + $0x74] sm:$0x1]
        %v320 = vsel %vm291, 0, %v319
        %321 = vst [vmem:[#allocation2 + $0x74] sm:$0x1] %v320
        %v322 = vld [vmem:[#allocation2 + $0x80] sm:$0x1]
        %v323 = vsel %vm291, 0, %v322
        %324 = vst [vmem:[#allocation2 + $0x80] sm:$0x1] %v323
        %v325 = vld [vmem:[#allocation2 + $0x8c] sm:$0x1]
        %v326 = vsel %vm291, 0, %v325
        %327 = vst [vmem:[#allocation2 + $0x8c] sm:$0x1] %v326
        %v328 = vld [vmem:[#allocation2 + $0x98] sm:$0x1]
        %v329 = vsel %vm291, 0, %v328
        %330 = vst [vmem:[#allocation2 + $0x98] sm:$0x1] %v329
        %v331 = vld [vmem:[#allocation2 + $0xa4] sm:$0x1]
        %v332 = vsel %vm291, 0, %v331
        %333 = vst [vmem:[#allocation2 + $0xa4] sm:$0x1] %v332
        %v334 = vld [vmem:[#allocation2 + $0xb0] sm:$0x1]
        %v335 = vsel %vm291, 0, %v334
        %336 = vst [vmem:[#allocation2 + $0xb0] sm:$0x1] %v335
        %v337 = vld [vmem:[#allocation2 + $0xbc] sm:$0x1]
        %v338 = vsel %vm291, 0, %v337
        %339 = vst [vmem:[#allocation2 + $0xbc] sm:$0x1] %v338
        %v340 = vld [vmem:[#allocation2 + $0xc8] sm:$0x1]
        %v341 = vsel %vm291, 0, %v340
        %342 = vst [vmem:[#allocation2 + $0xc8] sm:$0x1] %v341
        %v343 = vld [vmem:[#allocation2 + $0xd4] sm:$0x1]
        %v344 = vsel %vm291, 0, %v343
        %345 = vst [vmem:[#allocation2 + $0xd4] sm:$0x1] %v344
        %v346 = vld [vmem:[%s222] sm:$0xf]
        %v347 = vld [vmem:[%s222 + $0x4] sm:$0xf]
        %v348 = vld [vmem:[%s222 + $0x8] sm:$0xf]
        %v349 = vld [vmem:[%s222 + $0xc] sm:$0xf]
        %v350 = vld [vmem:[%s222 + $0x10] sm:$0xf]
        %v351 = vld [vmem:[%s222 + $0x14] sm:$0xf]
        %v352 = vld [vmem:[%s222 + $0x18] sm:$0xf]
        %v353 = vld [vmem:[%s222 + $0x1c] sm:$0xf]
        %v354 = vld [vmem:[%s222 + $0x20] sm:$0xf]
        %v355 = vld [vmem:[%s222 + $0x24] sm:$0xf]
        %v356 = vld [vmem:[%s222 + $0x28] sm:$0xf]
        %v357 = vld [vmem:[%s222 + $0x2c] sm:$0xf]
        %v358 = vld [vmem:[%s222 + $0x30] sm:$0xf]
        %v359 = vld [vmem:[%s222 + $0x34] sm:$0xf]
        %v360 = vld [vmem:[%s222 + $0x38] sm:$0xf]
        %v361 = vld [vmem:[%s222 + $0x3c] sm:$0xf]
        %v362 = vld [vmem:[%s222 + $0x40] sm:$0xf]
        %v363 = vld [vmem:[%s222 + $0x44] sm:$0xf]
        %v364 = vld [vmem:[%s222 + $0x48] sm:$0xf]
        %v365 = vld [vmem:[%s222 + $0x4c] sm:$0xf]
        %v366 = vld [vmem:[%s222 + $0x50] sm:$0xf]
        %v367 = vld [vmem:[%s222 + $0x54] sm:$0xf]
        %v368 = vld [vmem:[%s222 + $0x58] sm:$0xf]
        %v369 = vld [vmem:[%s222 + $0x5c] sm:$0xf]
        %v370 = vld [vmem:[%s222 + $0x60] sm:$0xf]
        %v371 = vld [vmem:[%s222 + $0x64] sm:$0xf]
        %v372 = vld [vmem:[%s222 + $0x68] sm:$0xf]
        %v373 = vld [vmem:[%s222 + $0x6c] sm:$0xf]
        %v374 = vld [vmem:[%s222 + $0x70] sm:$0xf]
        %v375 = vld [vmem:[%s222 + $0x74] sm:$0xf]
        %v376 = vld [vmem:[%s222 + $0x78] sm:$0xf]
        %v377 = vld [vmem:[%s222 + $0x7c] sm:$0xf]
        %vm378 = vsmask.f32 4368
        %vm379 = vmor %vm234, %vm378
        %v381 = vshrl.u32 %v346, 16
        %v383 = vrot.slane %v381, 7
        %v384 = vshll.u32 %v346, 16
        %v386 = vor.u32 %v383, %v384
        %v387 = vrot.slane %v383, 4
        %v389 = vshrl.u32 %v347, 16
        %v391 = vrot.slane %v389, 7
        %v392 = vshll.u32 %v347, 16
        %v394 = vor.u32 %v391, %v392
        %v395 = vsel %vm379, %v387, %v394
        %v396 = vrot.slane %v391, 4
        %v398 = vshrl.u32 %v348, 16
        %v400 = vrot.slane %v398, 7
        %v401 = vshll.u32 %v348, 16
        %v403 = vor.u32 %v400, %v401
        %v404 = vrot.slane %v400, 4
        %v406 = vshrl.u32 %v349, 16
        %v408 = vrot.slane %v406, 7
        %v409 = vshll.u32 %v349, 16
        %v411 = vor.u32 %v408, %v409
        %v412 = vsel %vm379, %v404, %v411
        %v413 = vrot.slane %v408, 4
        %v415 = vshrl.u32 %v350, 16
        %v417 = vrot.slane %v415, 7
        %v418 = vshll.u32 %v350, 16
        %v420 = vor.u32 %v417, %v418
        %v421 = vrot.slane %v417, 4
        %v423 = vshrl.u32 %v351, 16
        %v425 = vrot.slane %v423, 7
        %v426 = vshll.u32 %v351, 16
        %v428 = vor.u32 %v425, %v426
        %v429 = vsel %vm379, %v421, %v428
        %v430 = vrot.slane %v425, 4
        %v432 = vshrl.u32 %v352, 16
        %v434 = vrot.slane %v432, 7
        %v435 = vshll.u32 %v352, 16
        %v437 = vor.u32 %v434, %v435
        %v438 = vrot.slane %v434, 4
        %v440 = vshrl.u32 %v353, 16
        %v442 = vrot.slane %v440, 7
        %v443 = vshll.u32 %v353, 16
        %v445 = vor.u32 %v442, %v443
        %v446 = vsel %vm379, %v438, %v445
        %v447 = vrot.slane %v442, 4
        %v449 = vshrl.u32 %v354, 16
        %v451 = vrot.slane %v449, 7
        %v452 = vshll.u32 %v354, 16
        %v454 = vor.u32 %v451, %v452
        %v455 = vrot.slane %v451, 4
        %v457 = vshrl.u32 %v355, 16
        %v459 = vrot.slane %v457, 7
        %v460 = vshll.u32 %v355, 16
        %v462 = vor.u32 %v459, %v460
        %v463 = vsel %vm379, %v455, %v462
        %v464 = vrot.slane %v459, 4
        %v466 = vshrl.u32 %v356, 16
        %v468 = vrot.slane %v466, 7
        %v469 = vshll.u32 %v356, 16
        %v471 = vor.u32 %v468, %v469
        %v472 = vrot.slane %v468, 4
        %v474 = vshrl.u32 %v357, 16
        %v476 = vrot.slane %v474, 7
        %v477 = vshll.u32 %v357, 16
        %v479 = vor.u32 %v476, %v477
        %v480 = vsel %vm379, %v472, %v479
        %v481 = vrot.slane %v476, 4
        %v483 = vshrl.u32 %v358, 16
        %v485 = vrot.slane %v483, 7
        %v486 = vshll.u32 %v358, 16
        %v488 = vor.u32 %v485, %v486
        %v489 = vrot.slane %v485, 4
        %v491 = vshrl.u32 %v359, 16
        %v493 = vrot.slane %v491, 7
        %v494 = vshll.u32 %v359, 16
        %v496 = vor.u32 %v493, %v494
        %v497 = vsel %vm379, %v489, %v496
        %v498 = vrot.slane %v493, 4
        %v500 = vshrl.u32 %v360, 16
        %v502 = vrot.slane %v500, 7
        %v503 = vshll.u32 %v360, 16
        %v505 = vor.u32 %v502, %v503
        %v506 = vrot.slane %v502, 4
        %v508 = vshrl.u32 %v361, 16
        %v510 = vrot.slane %v508, 7
        %v511 = vshll.u32 %v361, 16
        %v513 = vor.u32 %v510, %v511
        %v514 = vsel %vm379, %v506, %v513
        %v515 = vrot.slane %v510, 4
        %v517 = vshrl.u32 %v362, 16
        %v519 = vrot.slane %v517, 7
        %v520 = vshll.u32 %v362, 16
        %v522 = vor.u32 %v519, %v520
        %v523 = vrot.slane %v519, 4
        %v525 = vshrl.u32 %v363, 16
        %v527 = vrot.slane %v525, 7
        %v528 = vshll.u32 %v363, 16
        %v530 = vor.u32 %v527, %v528
        %v531 = vsel %vm379, %v523, %v530
        %v532 = vrot.slane %v527, 4
        %v534 = vshrl.u32 %v364, 16
        %v536 = vrot.slane %v534, 7
        %v537 = vshll.u32 %v364, 16
        %v539 = vor.u32 %v536, %v537
        %v540 = vrot.slane %v536, 4
        %v542 = vshrl.u32 %v365, 16
        %v544 = vrot.slane %v542, 7
        %v545 = vshll.u32 %v365, 16
        %v547 = vor.u32 %v544, %v545
        %v548 = vsel %vm379, %v540, %v547
        %v549 = vrot.slane %v544, 4
        %v551 = vshrl.u32 %v366, 16
        %v553 = vrot.slane %v551, 7
        %v554 = vshll.u32 %v366, 16
        %v556 = vor.u32 %v553, %v554
        %v557 = vrot.slane %v553, 4
        %v559 = vshrl.u32 %v367, 16
        %v561 = vrot.slane %v559, 7
        %v562 = vshll.u32 %v367, 16
        %v564 = vor.u32 %v561, %v562
        %v565 = vsel %vm379, %v557, %v564
        %v566 = vrot.slane %v561, 4
        %v568 = vshrl.u32 %v368, 16
        %v570 = vrot.slane %v568, 7
        %v571 = vshll.u32 %v368, 16
        %v573 = vor.u32 %v570, %v571
        %v574 = vrot.slane %v570, 4
        %v576 = vshrl.u32 %v369, 16
        %v578 = vrot.slane %v576, 7
        %v579 = vshll.u32 %v369, 16
        %v581 = vor.u32 %v578, %v579
        %v582 = vsel %vm379, %v574, %v581
        %v583 = vrot.slane %v578, 4
        %v585 = vshrl.u32 %v370, 16
        %v587 = vrot.slane %v585, 7
        %v588 = vshll.u32 %v370, 16
        %v590 = vor.u32 %v587, %v588
        %v591 = vrot.slane %v587, 4
        %v593 = vshrl.u32 %v371, 16
        %v595 = vrot.slane %v593, 7
        %v596 = vshll.u32 %v371, 16
        %v598 = vor.u32 %v595, %v596
        %v599 = vsel %vm379, %v591, %v598
        %v600 = vrot.slane %v595, 4
        %v602 = vshrl.u32 %v372, 16
        %v604 = vrot.slane %v602, 7
        %v605 = vshll.u32 %v372, 16
        %v607 = vor.u32 %v604, %v605
        %v608 = vrot.slane %v604, 4
        %v610 = vshrl.u32 %v373, 16
        %v612 = vrot.slane %v610, 7
        %v613 = vshll.u32 %v373, 16
        %v615 = vor.u32 %v612, %v613
        %v616 = vsel %vm379, %v608, %v615
        %v617 = vrot.slane %v612, 4
        %v619 = vshrl.u32 %v374, 16
        %v621 = vrot.slane %v619, 7
        %v622 = vshll.u32 %v374, 16
        %v624 = vor.u32 %v621, %v622
        %v625 = vrot.slane %v621, 4
        %v627 = vshrl.u32 %v375, 16
        %v629 = vrot.slane %v627, 7
        %v630 = vshll.u32 %v375, 16
        %v632 = vor.u32 %v629, %v630
        %v633 = vsel %vm379, %v625, %v632
        %v634 = vrot.slane %v629, 4
        %v636 = vshrl.u32 %v376, 16
        %v638 = vrot.slane %v636, 7
        %v639 = vshll.u32 %v376, 16
        %v641 = vor.u32 %v638, %v639
        %v642 = vrot.slane %v638, 4
        %v644 = vshrl.u32 %v377, 16
        %v646 = vrot.slane %v644, 7
        %v647 = vshll.u32 %v377, 16
        %v649 = vor.u32 %v646, %v647
        %v650 = vsel %vm379, %v642, %v649
        %v651 = vrot.slane %v646, 4
        %s700 = scalar_lea.vmem [#allocation2], 12
        %vm701 = vcmask 519168
        %vm702 = vmand %vm701, %vm290
        %v703 = vld [vmem:[%s700] sm:$0xf]
        %v704 = vsel %vm702, %v386, %v703
        %705 = vst [vmem:[%s700] sm:$0xf] %v704
        %706 = vst.msk [vmem:[%s700 + $0x4] sm:$0xf] %vm224, %v395
        %v707 = vld [vmem:[%s700 + $0x8] sm:$0x1]
        %v708 = vsel %vm235, %v396, %v707
        %709 = vst [vmem:[%s700 + $0x8] sm:$0x1] %v708
        %v710 = vld [vmem:[%s700 + $0xc] sm:$0xf]
        %v711 = vsel %vm702, %v403, %v710
        %712 = vst [vmem:[%s700 + $0xc] sm:$0xf] %v711
        %713 = vst.msk [vmem:[%s700 + $0x10] sm:$0xf] %vm224, %v412
        %v714 = vld [vmem:[%s700 + $0x14] sm:$0x1]
        %v715 = vsel %vm235, %v413, %v714
        %716 = vst [vmem:[%s700 + $0x14] sm:$0x1] %v715
        %v717 = vld [vmem:[%s700 + $0x18] sm:$0xf]
        %v718 = vsel %vm702, %v420, %v717
        %719 = vst [vmem:[%s700 + $0x18] sm:$0xf] %v718
        %720 = vst.msk [vmem:[%s700 + $0x1c] sm:$0xf] %vm224, %v429
        %v721 = vld [vmem:[%s700 + $0x20] sm:$0x1]
        %v722 = vsel %vm235, %v430, %v721
        %723 = vst [vmem:[%s700 + $0x20] sm:$0x1] %v722
        %v724 = vld [vmem:[%s700 + $0x24] sm:$0xf]
        %v725 = vsel %vm702, %v437, %v724
        %726 = vst [vmem:[%s700 + $0x24] sm:$0xf] %v725
        %727 = vst.msk [vmem:[%s700 + $0x28] sm:$0xf] %vm224, %v446
        %v728 = vld [vmem:[%s700 + $0x2c] sm:$0x1]
        %v729 = vsel %vm235, %v447, %v728
        %730 = vst [vmem:[%s700 + $0x2c] sm:$0x1] %v729
        %v731 = vld [vmem:[%s700 + $0x30] sm:$0xf]
        %v732 = vsel %vm702, %v454, %v731
        %733 = vst [vmem:[%s700 + $0x30] sm:$0xf] %v732
        %734 = vst.msk [vmem:[%s700 + $0x34] sm:$0xf] %vm224, %v463
        %v735 = vld [vmem:[%s700 + $0x38] sm:$0x1]
        %v736 = vsel %vm235, %v464, %v735
        %737 = vst [vmem:[%s700 + $0x38] sm:$0x1] %v736
        %v738 = vld [vmem:[%s700 + $0x3c] sm:$0xf]
        %v739 = vsel %vm702, %v471, %v738
        %740 = vst [vmem:[%s700 + $0x3c] sm:$0xf] %v739
        %741 = vst.msk [vmem:[%s700 + $0x40] sm:$0xf] %vm224, %v480
        %v742 = vld [vmem:[%s700 + $0x44] sm:$0x1]
        %v743 = vsel %vm235, %v481, %v742
        %744 = vst [vmem:[%s700 + $0x44] sm:$0x1] %v743
        %v745 = vld [vmem:[%s700 + $0x48] sm:$0xf]
        %v746 = vsel %vm702, %v488, %v745
        %747 = vst [vmem:[%s700 + $0x48] sm:$0xf] %v746
        %748 = vst.msk [vmem:[%s700 + $0x4c] sm:$0xf] %vm224, %v497
        %v749 = vld [vmem:[%s700 + $0x50] sm:$0x1]
        %v750 = vsel %vm235, %v498, %v749
        %751 = vst [vmem:[%s700 + $0x50] sm:$0x1] %v750
        %v752 = vld [vmem:[%s700 + $0x54] sm:$0xf]
        %v753 = vsel %vm702, %v505, %v752
        %754 = vst [vmem:[%s700 + $0x54] sm:$0xf] %v753
        %755 = vst.msk [vmem:[%s700 + $0x58] sm:$0xf] %vm224, %v514
        %v756 = vld [vmem:[%s700 + $0x5c] sm:$0x1]
        %v757 = vsel %vm235, %v515, %v756
        %758 = vst [vmem:[%s700 + $0x5c] sm:$0x1] %v757
        %v759 = vld [vmem:[%s700 + $0x60] sm:$0xf]
        %v760 = vsel %vm702, %v522, %v759
        %761 = vst [vmem:[%s700 + $0x60] sm:$0xf] %v760
        %762 = vst.msk [vmem:[%s700 + $0x64] sm:$0xf] %vm224, %v531
        %v763 = vld [vmem:[%s700 + $0x68] sm:$0x1]
        %v764 = vsel %vm235, %v532, %v763
        %765 = vst [vmem:[%s700 + $0x68] sm:$0x1] %v764
        %v766 = vld [vmem:[%s700 + $0x6c] sm:$0xf]
        %v767 = vsel %vm702, %v539, %v766
        %768 = vst [vmem:[%s700 + $0x6c] sm:$0xf] %v767
        %769 = vst.msk [vmem:[%s700 + $0x70] sm:$0xf] %vm224, %v548
        %v770 = vld [vmem:[%s700 + $0x74] sm:$0x1]
        %v771 = vsel %vm235, %v549, %v770
        %772 = vst [vmem:[%s700 + $0x74] sm:$0x1] %v771
        %v773 = vld [vmem:[%s700 + $0x78] sm:$0xf]
        %v774 = vsel %vm702, %v556, %v773
        %775 = vst [vmem:[%s700 + $0x78] sm:$0xf] %v774
        %776 = vst.msk [vmem:[%s700 + $0x7c] sm:$0xf] %vm224, %v565
        %v777 = vld [vmem:[%s700 + $0x80] sm:$0x1]
        %v778 = vsel %vm235, %v566, %v777
        %779 = vst [vmem:[%s700 + $0x80] sm:$0x1] %v778
        %v780 = vld [vmem:[%s700 + $0x84] sm:$0xf]
        %v781 = vsel %vm702, %v573, %v780
        %782 = vst [vmem:[%s700 + $0x84] sm:$0xf] %v781
        %783 = vst.msk [vmem:[%s700 + $0x88] sm:$0xf] %vm224, %v582
        %v784 = vld [vmem:[%s700 + $0x8c] sm:$0x1]
        %v785 = vsel %vm235, %v583, %v784
        %786 = vst [vmem:[%s700 + $0x8c] sm:$0x1] %v785
        %v787 = vld [vmem:[%s700 + $0x90] sm:$0xf]
        %v788 = vsel %vm702, %v590, %v787
        %789 = vst [vmem:[%s700 + $0x90] sm:$0xf] %v788
        %790 = vst.msk [vmem:[%s700 + $0x94] sm:$0xf] %vm224, %v599
        %v791 = vld [vmem:[%s700 + $0x98] sm:$0x1]
        %v792 = vsel %vm235, %v600, %v791
        %793 = vst [vmem:[%s700 + $0x98] sm:$0x1] %v792
        %v794 = vld [vmem:[%s700 + $0x9c] sm:$0xf]
        %v795 = vsel %vm702, %v607, %v794
        %796 = vst [vmem:[%s700 + $0x9c] sm:$0xf] %v795
        %797 = vst.msk [vmem:[%s700 + $0xa0] sm:$0xf] %vm224, %v616
        %v798 = vld [vmem:[%s700 + $0xa4] sm:$0x1]
        %v799 = vsel %vm235, %v617, %v798
        %800 = vst [vmem:[%s700 + $0xa4] sm:$0x1] %v799
        %v801 = vld [vmem:[%s700 + $0xa8] sm:$0xf]
        %v802 = vsel %vm702, %v624, %v801
        %803 = vst [vmem:[%s700 + $0xa8] sm:$0xf] %v802
        %804 = vst.msk [vmem:[%s700 + $0xac] sm:$0xf] %vm224, %v633
        %v805 = vld [vmem:[%s700 + $0xb0] sm:$0x1]
        %v806 = vsel %vm235, %v634, %v805
        %807 = vst [vmem:[%s700 + $0xb0] sm:$0x1] %v806
        %v808 = vld [vmem:[%s700 + $0xb4] sm:$0xf]
        %v809 = vsel %vm702, %v641, %v808
        %810 = vst [vmem:[%s700 + $0xb4] sm:$0xf] %v809
        %811 = vst.msk [vmem:[%s700 + $0xb8] sm:$0xf] %vm224, %v650
        %v812 = vld [vmem:[%s700 + $0xbc] sm:$0x1]
        %v813 = vsel %vm235, %v651, %v812
        %814 = vst [vmem:[%s700 + $0xbc] sm:$0x1] %v813
        %815 = vst.msk [vmem:[#allocation3] sm:$0xf] %vm224, 0
        %816 = vst.msk [vmem:[#allocation3 + $0x4] sm:$0xf] %vm224, 0
        %817 = vst.msk [vmem:[#allocation3 + $0x8] sm:$0x1] %vm227, 0
        %s818 = scalar_lea.vmem [#allocation3], 204
        %819 = vst.msk [vmem:[%s818] sm:$0xf] %vm224, 0
        %820 = vst.msk [vmem:[%s818 + $0x4] sm:$0xf] %vm224, 0
        %821 = vst.msk [vmem:[%s818 + $0x8] sm:$0x1] %vm227, 0
        %v822 = vld [vmem:[#allocation3] sm:$0x1]
        %v823 = vsel %vm235, 0, %v822
        %824 = vst [vmem:[#allocation3] sm:$0x1] %v823
        %v825 = vld [vmem:[#allocation3 + $0xc] sm:$0x1]
        %v826 = vsel %vm235, 0, %v825
        %827 = vst [vmem:[#allocation3 + $0xc] sm:$0x1] %v826
        %v828 = vld [vmem:[#allocation3 + $0x18] sm:$0x1]
        %v829 = vsel %vm235, 0, %v828
        %830 = vst [vmem:[#allocation3 + $0x18] sm:$0x1] %v829
        %v831 = vld [vmem:[#allocation3 + $0x24] sm:$0x1]
        %v832 = vsel %vm235, 0, %v831
        %833 = vst [vmem:[#allocation3 + $0x24] sm:$0x1] %v832
        %v834 = vld [vmem:[#allocation3 + $0x30] sm:$0x1]
        %v835 = vsel %vm235, 0, %v834
        %836 = vst [vmem:[#allocation3 + $0x30] sm:$0x1] %v835
        %v837 = vld [vmem:[#allocation3 + $0x3c] sm:$0x1]
        %v838 = vsel %vm235, 0, %v837
        %839 = vst [vmem:[#allocation3 + $0x3c] sm:$0x1] %v838
        %v840 = vld [vmem:[#allocation3 + $0x48] sm:$0x1]
        %v841 = vsel %vm235, 0, %v840
        %842 = vst [vmem:[#allocation3 + $0x48] sm:$0x1] %v841
        %v843 = vld [vmem:[#allocation3 + $0x54] sm:$0x1]
        %v844 = vsel %vm235, 0, %v843
        %845 = vst [vmem:[#allocation3 + $0x54] sm:$0x1] %v844
        %v846 = vld [vmem:[#allocation3 + $0x60] sm:$0x1]
        %v847 = vsel %vm235, 0, %v846
        %848 = vst [vmem:[#allocation3 + $0x60] sm:$0x1] %v847
        %v849 = vld [vmem:[#allocation3 + $0x6c] sm:$0x1]
        %v850 = vsel %vm235, 0, %v849
        %851 = vst [vmem:[#allocation3 + $0x6c] sm:$0x1] %v850
        %v852 = vld [vmem:[#allocation3 + $0x78] sm:$0x1]
        %v853 = vsel %vm235, 0, %v852
        %854 = vst [vmem:[#allocation3 + $0x78] sm:$0x1] %v853
        %v855 = vld [vmem:[#allocation3 + $0x84] sm:$0x1]
        %v856 = vsel %vm235, 0, %v855
        %857 = vst [vmem:[#allocation3 + $0x84] sm:$0x1] %v856
        %v858 = vld [vmem:[#allocation3 + $0x90] sm:$0x1]
        %v859 = vsel %vm235, 0, %v858
        %860 = vst [vmem:[#allocation3 + $0x90] sm:$0x1] %v859
        %v861 = vld [vmem:[#allocation3 + $0x9c] sm:$0x1]
        %v862 = vsel %vm235, 0, %v861
        %863 = vst [vmem:[#allocation3 + $0x9c] sm:$0x1] %v862
        %v864 = vld [vmem:[#allocation3 + $0xa8] sm:$0x1]
        %v865 = vsel %vm235, 0, %v864
        %866 = vst [vmem:[#allocation3 + $0xa8] sm:$0x1] %v865
        %v867 = vld [vmem:[#allocation3 + $0xb4] sm:$0x1]
        %v868 = vsel %vm235, 0, %v867
        %869 = vst [vmem:[#allocation3 + $0xb4] sm:$0x1] %v868
        %v870 = vld [vmem:[#allocation3 + $0xc0] sm:$0x1]
        %v871 = vsel %vm235, 0, %v870
        %872 = vst [vmem:[#allocation3 + $0xc0] sm:$0x1] %v871
        %v873 = vld [vmem:[#allocation3 + $0xcc] sm:$0x1]
        %v874 = vsel %vm235, 0, %v873
        %875 = vst [vmem:[#allocation3 + $0xcc] sm:$0x1] %v874
        %v876 = vld [vmem:[#allocation3 + $0x8] sm:$0x1]
        %v877 = vsel %vm291, 0, %v876
        %878 = vst [vmem:[#allocation3 + $0x8] sm:$0x1] %v877
        %v879 = vld [vmem:[#allocation3 + $0x14] sm:$0x1]
        %v880 = vsel %vm291, 0, %v879
        %881 = vst [vmem:[#allocation3 + $0x14] sm:$0x1] %v880
        %v882 = vld [vmem:[#allocation3 + $0x20] sm:$0x1]
        %v883 = vsel %vm291, 0, %v882
        %884 = vst [vmem:[#allocation3 + $0x20] sm:$0x1] %v883
        %v885 = vld [vmem:[#allocation3 + $0x2c] sm:$0x1]
        %v886 = vsel %vm291, 0, %v885
        %887 = vst [vmem:[#allocation3 + $0x2c] sm:$0x1] %v886
        %v888 = vld [vmem:[#allocation3 + $0x38] sm:$0x1]
        %v889 = vsel %vm291, 0, %v888
        %890 = vst [vmem:[#allocation3 + $0x38] sm:$0x1] %v889
        %v891 = vld [vmem:[#allocation3 + $0x44] sm:$0x1]
        %v892 = vsel %vm291, 0, %v891
        %893 = vst [vmem:[#allocation3 + $0x44] sm:$0x1] %v892
        %v894 = vld [vmem:[#allocation3 + $0x50] sm:$0x1]
        %v895 = vsel %vm291, 0, %v894
        %896 = vst [vmem:[#allocation3 + $0x50] sm:$0x1] %v895
        %v897 = vld [vmem:[#allocation3 + $0x5c] sm:$0x1]
        %v898 = vsel %vm291, 0, %v897
        %899 = vst [vmem:[#allocation3 + $0x5c] sm:$0x1] %v898
        %v900 = vld [vmem:[#allocation3 + $0x68] sm:$0x1]
        %v901 = vsel %vm291, 0, %v900
        %902 = vst [vmem:[#allocation3 + $0x68] sm:$0x1] %v901
        %v903 = vld [vmem:[#allocation3 + $0x74] sm:$0x1]
        %v904 = vsel %vm291, 0, %v903
        %905 = vst [vmem:[#allocation3 + $0x74] sm:$0x1] %v904
        %v906 = vld [vmem:[#allocation3 + $0x80] sm:$0x1]
        %v907 = vsel %vm291, 0, %v906
        %908 = vst [vmem:[#allocation3 + $0x80] sm:$0x1] %v907
        %v909 = vld [vmem:[#allocation3 + $0x8c] sm:$0x1]
        %v910 = vsel %vm291, 0, %v909
        %911 = vst [vmem:[#allocation3 + $0x8c] sm:$0x1] %v910
        %v912 = vld [vmem:[#allocation3 + $0x98] sm:$0x1]
        %v913 = vsel %vm291, 0, %v912
        %914 = vst [vmem:[#allocation3 + $0x98] sm:$0x1] %v913
        %v915 = vld [vmem:[#allocation3 + $0xa4] sm:$0x1]
        %v916 = vsel %vm291, 0, %v915
        %917 = vst [vmem:[#allocation3 + $0xa4] sm:$0x1] %v916
        %v918 = vld [vmem:[#allocation3 + $0xb0] sm:$0x1]
        %v919 = vsel %vm291, 0, %v918
        %920 = vst [vmem:[#allocation3 + $0xb0] sm:$0x1] %v919
        %v921 = vld [vmem:[#allocation3 + $0xbc] sm:$0x1]
        %v922 = vsel %vm291, 0, %v921
        %923 = vst [vmem:[#allocation3 + $0xbc] sm:$0x1] %v922
        %v924 = vld [vmem:[#allocation3 + $0xc8] sm:$0x1]
        %v925 = vsel %vm291, 0, %v924
        %926 = vst [vmem:[#allocation3 + $0xc8] sm:$0x1] %v925
        %v927 = vld [vmem:[#allocation3 + $0xd4] sm:$0x1]
        %v928 = vsel %vm291, 0, %v927
        %929 = vst [vmem:[#allocation3 + $0xd4] sm:$0x1] %v928
        %v930 = vld [vmem:[%s1] sm:$0xf]
        %v931 = vld [vmem:[%s1 + $0x4] sm:$0xf]
        %v932 = vld [vmem:[%s1 + $0x8] sm:$0xf]
        %v933 = vld [vmem:[%s1 + $0xc] sm:$0xf]
        %v934 = vld [vmem:[%s1 + $0x10] sm:$0xf]
        %v935 = vld [vmem:[%s1 + $0x14] sm:$0xf]
        %v936 = vld [vmem:[%s1 + $0x18] sm:$0xf]
        %v937 = vld [vmem:[%s1 + $0x1c] sm:$0xf]
        %v938 = vld [vmem:[%s1 + $0x20] sm:$0xf]
        %v939 = vld [vmem:[%s1 + $0x24] sm:$0xf]
        %v940 = vld [vmem:[%s1 + $0x28] sm:$0xf]
        %v941 = vld [vmem:[%s1 + $0x2c] sm:$0xf]
        %v942 = vld [vmem:[%s1 + $0x30] sm:$0xf]
        %v943 = vld [vmem:[%s1 + $0x34] sm:$0xf]
        %v944 = vld [vmem:[%s1 + $0x38] sm:$0xf]
        %v945 = vld [vmem:[%s1 + $0x3c] sm:$0xf]
        %v946 = vld [vmem:[%s1 + $0x40] sm:$0xf]
        %v947 = vld [vmem:[%s1 + $0x44] sm:$0xf]
        %v948 = vld [vmem:[%s1 + $0x48] sm:$0xf]
        %v949 = vld [vmem:[%s1 + $0x4c] sm:$0xf]
        %v950 = vld [vmem:[%s1 + $0x50] sm:$0xf]
        %v951 = vld [vmem:[%s1 + $0x54] sm:$0xf]
        %v952 = vld [vmem:[%s1 + $0x58] sm:$0xf]
        %v953 = vld [vmem:[%s1 + $0x5c] sm:$0xf]
        %v954 = vld [vmem:[%s1 + $0x60] sm:$0xf]
        %v955 = vld [vmem:[%s1 + $0x64] sm:$0xf]
        %v956 = vld [vmem:[%s1 + $0x68] sm:$0xf]
        %v957 = vld [vmem:[%s1 + $0x6c] sm:$0xf]
        %v958 = vld [vmem:[%s1 + $0x70] sm:$0xf]
        %v959 = vld [vmem:[%s1 + $0x74] sm:$0xf]
        %v960 = vld [vmem:[%s1 + $0x78] sm:$0xf]
        %v961 = vld [vmem:[%s1 + $0x7c] sm:$0xf]
        %v962 = vld [vmem:[%s1 + $0x80] sm:$0xf]
        %v963 = vld [vmem:[%s1 + $0x84] sm:$0xf]
        %v964 = vld [vmem:[%s1 + $0x88] sm:$0xf]
        %v965 = vld [vmem:[%s1 + $0x8c] sm:$0xf]
        %v966 = vld [vmem:[%s1 + $0x90] sm:$0xf]
        %v967 = vld [vmem:[%s1 + $0x94] sm:$0xf]
        %v968 = vld [vmem:[%s1 + $0x98] sm:$0xf]
        %v969 = vld [vmem:[%s1 + $0x9c] sm:$0xf]
        %v970 = vld [vmem:[%s1 + $0xa0] sm:$0xf]
        %v971 = vld [vmem:[%s1 + $0xa4] sm:$0xf]
        %v972 = vld [vmem:[%s1 + $0xa8] sm:$0xf]
        %v973 = vld [vmem:[%s1 + $0xac] sm:$0xf]
        %v974 = vld [vmem:[%s1 + $0xb0] sm:$0xf]
        %v975 = vld [vmem:[%s1 + $0xb4] sm:$0xf]
        %v976 = vld [vmem:[%s1 + $0xb8] sm:$0xf]
        %v977 = vld [vmem:[%s1 + $0xbc] sm:$0xf]
        %v978 = vld [vmem:[%s1 + $0xc0] sm:$0xf]
        %v979 = vld [vmem:[%s1 + $0xc4] sm:$0xf]
        %v980 = vld [vmem:[%s1 + $0xc8] sm:$0xf]
        %v981 = vld [vmem:[%s1 + $0xcc] sm:$0xf]
        %v982 = vld [vmem:[%s1 + $0xd0] sm:$0xf]
        %v983 = vld [vmem:[%s1 + $0xd4] sm:$0xf]
        %v984 = vld [vmem:[%s1 + $0xd8] sm:$0xf]
        %v985 = vld [vmem:[%s1 + $0xdc] sm:$0xf]
        %v986 = vld [vmem:[%s1 + $0xe0] sm:$0xf]
        %v987 = vld [vmem:[%s1 + $0xe4] sm:$0xf]
        %v988 = vld [vmem:[%s1 + $0xe8] sm:$0xf]
        %v989 = vld [vmem:[%s1 + $0xec] sm:$0xf]
        %v990 = vld [vmem:[%s1 + $0xf0] sm:$0xf]
        %v991 = vld [vmem:[%s1 + $0xf4] sm:$0xf]
        %v992 = vld [vmem:[%s1 + $0xf8] sm:$0xf]
        %v993 = vld [vmem:[%s1 + $0xfc] sm:$0xf]
        %v994 = vld [vmem:[%s1 + $0x100] sm:$0xf]
        %v995 = vld [vmem:[%s1 + $0x104] sm:$0xf]
        %v996 = vld [vmem:[%s1 + $0x108] sm:$0xf]
        %v997 = vld [vmem:[%s1 + $0x10c] sm:$0xf]
        %v998 = vld [vmem:[%s1 + $0x110] sm:$0xf]
        %v999 = vld [vmem:[%s1 + $0x114] sm:$0xf]
        %v1000 = vld [vmem:[%s1 + $0x118] sm:$0xf]
        %v1001 = vld [vmem:[%s1 + $0x11c] sm:$0xf]
        %v1002 = vld [vmem:[%s3] sm:$0xf]
        %v1003 = vld [vmem:[%s3 + $0x4] sm:$0xf]
        %v1004 = vld [vmem:[%s3 + $0x8] sm:$0xf]
        %v1005 = vld [vmem:[%s3 + $0xc] sm:$0xf]
        %v1006 = vld [vmem:[%s3 + $0x10] sm:$0xf]
        %v1007 = vld [vmem:[%s3 + $0x14] sm:$0xf]
        %v1008 = vld [vmem:[%s3 + $0x18] sm:$0xf]
        %v1009 = vld [vmem:[%s3 + $0x1c] sm:$0xf]
        %v1010 = vld [vmem:[%s3 + $0x20] sm:$0xf]
        %v1011 = vld [vmem:[%s3 + $0x24] sm:$0xf]
        %v1012 = vld [vmem:[%s3 + $0x28] sm:$0xf]
        %v1013 = vld [vmem:[%s3 + $0x2c] sm:$0xf]
        %v1014 = vld [vmem:[%s3 + $0x30] sm:$0xf]
        %v1015 = vld [vmem:[%s3 + $0x34] sm:$0xf]
        %v1016 = vld [vmem:[%s3 + $0x38] sm:$0xf]
        %v1017 = vld [vmem:[%s3 + $0x3c] sm:$0xf]
        %v1018 = vld [vmem:[%s3 + $0x40] sm:$0xf]
        %v1019 = vld [vmem:[%s3 + $0x44] sm:$0xf]
        %v1020 = vld [vmem:[%s3 + $0x48] sm:$0xf]
        %v1021 = vld [vmem:[%s3 + $0x4c] sm:$0xf]
        %v1022 = vld [vmem:[%s3 + $0x50] sm:$0xf]
        %v1023 = vld [vmem:[%s3 + $0x54] sm:$0xf]
        %v1024 = vld [vmem:[%s3 + $0x58] sm:$0xf]
        %v1025 = vld [vmem:[%s3 + $0x5c] sm:$0xf]
        %v1026 = vld [vmem:[%s3 + $0x60] sm:$0xf]
        %v1027 = vld [vmem:[%s3 + $0x64] sm:$0xf]
        %v1028 = vld [vmem:[%s3 + $0x68] sm:$0xf]
        %v1029 = vld [vmem:[%s3 + $0x6c] sm:$0xf]
        %v1030 = vld [vmem:[%s3 + $0x70] sm:$0xf]
        %v1031 = vld [vmem:[%s3 + $0x74] sm:$0xf]
        %v1032 = vld [vmem:[%s3 + $0x78] sm:$0xf]
        %v1033 = vld [vmem:[%s3 + $0x7c] sm:$0xf]
        %v1034 = vld [vmem:[%s3 + $0x80] sm:$0xf]
        %v1035 = vld [vmem:[%s3 + $0x84] sm:$0xf]
        %v1036 = vld [vmem:[%s3 + $0x88] sm:$0xf]
        %v1037 = vld [vmem:[%s3 + $0x8c] sm:$0xf]
        %v1038 = vld [vmem:[%s3 + $0x90] sm:$0xf]
        %v1039 = vld [vmem:[%s3 + $0x94] sm:$0xf]
        %v1040 = vld [vmem:[%s3 + $0x98] sm:$0xf]
        %v1041 = vld [vmem:[%s3 + $0x9c] sm:$0xf]
        %v1042 = vld [vmem:[%s3 + $0xa0] sm:$0xf]
        %v1043 = vld [vmem:[%s3 + $0xa4] sm:$0xf]
        %v1044 = vld [vmem:[%s3 + $0xa8] sm:$0xf]
        %v1045 = vld [vmem:[%s3 + $0xac] sm:$0xf]
        %v1046 = vld [vmem:[%s3 + $0xb0] sm:$0xf]
        %v1047 = vld [vmem:[%s3 + $0xb4] sm:$0xf]
        %v1048 = vld [vmem:[%s3 + $0xb8] sm:$0xf]
        %v1049 = vld [vmem:[%s3 + $0xbc] sm:$0xf]
        %v1050 = vld [vmem:[%s3 + $0xc0] sm:$0xf]
        %v1051 = vld [vmem:[%s3 + $0xc4] sm:$0xf]
        %v1052 = vld [vmem:[%s3 + $0xc8] sm:$0xf]
        %v1053 = vld [vmem:[%s3 + $0xcc] sm:$0xf]
        %v1054 = vld [vmem:[%s3 + $0xd0] sm:$0xf]
        %v1055 = vld [vmem:[%s3 + $0xd4] sm:$0xf]
        %v1056 = vld [vmem:[%s3 + $0xd8] sm:$0xf]
        %v1057 = vld [vmem:[%s3 + $0xdc] sm:$0xf]
        %v1058 = vld [vmem:[%s3 + $0xe0] sm:$0xf]
        %v1059 = vld [vmem:[%s3 + $0xe4] sm:$0xf]
        %v1060 = vld [vmem:[%s3 + $0xe8] sm:$0xf]
        %v1061 = vld [vmem:[%s3 + $0xec] sm:$0xf]
        %v1062 = vld [vmem:[%s3 + $0xf0] sm:$0xf]
        %v1063 = vld [vmem:[%s3 + $0xf4] sm:$0xf]
        %v1064 = vld [vmem:[%s3 + $0xf8] sm:$0xf]
        %v1065 = vld [vmem:[%s3 + $0xfc] sm:$0xf]
        %v1066 = vld [vmem:[%s3 + $0x100] sm:$0xf]
        %v1067 = vld [vmem:[%s3 + $0x104] sm:$0xf]
        %v1068 = vld [vmem:[%s3 + $0x108] sm:$0xf]
        %v1069 = vld [vmem:[%s3 + $0x10c] sm:$0xf]
        %v1070 = vld [vmem:[%s3 + $0x110] sm:$0xf]
        %v1071 = vld [vmem:[%s3 + $0x114] sm:$0xf]
        %v1072 = vld [vmem:[%s3 + $0x118] sm:$0xf]
        %v1073 = vld [vmem:[%s3 + $0x11c] sm:$0xf]
        %v1074 = vld [vmem:[%s2] sm:$0x1]
        %v1075 = vld [vmem:[%s4] sm:$0x1]
        %v1077 = vlaneseq
        %v1078 = vshrl.u32 %v1077, 7
        %v1079 = vsub.s32 0, %v1078
        %v1080 = vrot.slane %v1074, %v1079
        %v1082 = vld [vmem:[#allocation2] sm:$0xf]
        %v1083 = vld [vmem:[#allocation2 + $0x4] sm:$0xf]
        %v1084 = vld [vmem:[#allocation2 + $0x8] sm:$0x1]
        %v1085 = vld [vmem:[#allocation2 + $0xc] sm:$0xf]
        %v1086 = vld [vmem:[#allocation2 + $0x10] sm:$0xf]
        %v1087 = vld [vmem:[#allocation2 + $0x14] sm:$0x1]
        %v1088 = vld [vmem:[#allocation2 + $0x18] sm:$0xf]
        %v1089 = vld [vmem:[#allocation2 + $0x1c] sm:$0xf]
        %v1090 = vld [vmem:[#allocation2 + $0x20] sm:$0x1]
        %v1091 = vld [vmem:[#allocation2 + $0x24] sm:$0xf]
        %v1092 = vld [vmem:[#allocation2 + $0x28] sm:$0xf]
        %v1093 = vld [vmem:[#allocation2 + $0x2c] sm:$0x1]
        %v1094 = vld [vmem:[#allocation2 + $0x30] sm:$0xf]
        %v1095 = vld [vmem:[#allocation2 + $0x34] sm:$0xf]
        %v1096 = vld [vmem:[#allocation2 + $0x38] sm:$0x1]
        %v1097 = vld [vmem:[#allocation2 + $0x3c] sm:$0xf]
        %v1098 = vld [vmem:[#allocation2 + $0x40] sm:$0xf]
        %v1099 = vld [vmem:[#allocation2 + $0x44] sm:$0x1]
        %v1100 = vld [vmem:[#allocation2 + $0x48] sm:$0xf]
        %v1101 = vld [vmem:[#allocation2 + $0x4c] sm:$0xf]
        %v1102 = vld [vmem:[#allocation2 + $0x50] sm:$0x1]
        %v1103 = vld [vmem:[#allocation2 + $0x54] sm:$0xf]
        %v1104 = vld [vmem:[#allocation2 + $0x58] sm:$0xf]
        %v1105 = vld [vmem:[#allocation2 + $0x5c] sm:$0x1]
        %v1106 = vld [vmem:[#allocation2 + $0x60] sm:$0xf]
        %v1107 = vld [vmem:[#allocation2 + $0x64] sm:$0xf]
        %v1108 = vld [vmem:[#allocation2 + $0x68] sm:$0x1]
        %v1109 = vld [vmem:[#allocation2 + $0x6c] sm:$0xf]
        %v1110 = vld [vmem:[#allocation2 + $0x70] sm:$0xf]
        %v1111 = vld [vmem:[#allocation2 + $0x74] sm:$0x1]
        %v1112 = vld [vmem:[#allocation2 + $0x78] sm:$0xf]
        %v1113 = vld [vmem:[#allocation2 + $0x7c] sm:$0xf]
        %v1114 = vld [vmem:[#allocation2 + $0x80] sm:$0x1]
        %v1115 = vld [vmem:[#allocation2 + $0x84] sm:$0xf]
        %v1116 = vld [vmem:[#allocation2 + $0x88] sm:$0xf]
        %v1117 = vld [vmem:[#allocation2 + $0x8c] sm:$0x1]
        %v1118 = vld [vmem:[#allocation2 + $0x90] sm:$0xf]
        %v1119 = vld [vmem:[#allocation2 + $0x94] sm:$0xf]
        %v1120 = vld [vmem:[#allocation2 + $0x98] sm:$0x1]
        %v1121 = vld [vmem:[#allocation2 + $0x9c] sm:$0xf]
        %v1122 = vld [vmem:[#allocation2 + $0xa0] sm:$0xf]
        %v1123 = vld [vmem:[#allocation2 + $0xa4] sm:$0x1]
        %v1124 = vld [vmem:[#allocation2 + $0xa8] sm:$0xf]
        %v1125 = vld [vmem:[#allocation2 + $0xac] sm:$0xf]
        %v1126 = vld [vmem:[#allocation2 + $0xb0] sm:$0x1]
        %v1127 = vld [vmem:[#allocation2 + $0xb4] sm:$0xf]
        %v1128 = vld [vmem:[#allocation2 + $0xb8] sm:$0xf]
        %v1129 = vld [vmem:[#allocation2 + $0xbc] sm:$0x1]
        %vm1130 = vsmask.f32 3328
        %vm1131 = vsmask.f32 7440
        %vm1132 = vmor %vm1130, %vm1131
        %v1134 = vshrl.u32 %v1082, 16
        %v1136 = vrot.slane %v1134, 4
        %v1137 = vshll.u32 %v1082, 16
        %v1139 = vrot.slane %v1137, 5
        %v1140 = vor.u32 %v1136, %v1139
        %v1141 = vrot.slane %v1140, 4
        %v1143 = vshll.u32 %v1083, 16
        %v1145 = vrot.slane %v1143, 5
        %v1146 = vsel %vm1132, %v1141, %v1145
        %v1147 = vshrl.u32 %v1083, 16
        %v1149 = vrot.slane %v1147, 4
        %v1150 = vor.u32 %v1149, %v1145
        %v1151 = vrot.slane %v1150, 4
        %v1153 = vshll.u32 %v1084, 16
        %v1155 = vrot.slane %v1153, 5
        %v1156 = vsel %vm1132, %v1151, %v1155
        %v1158 = vshrl.u32 %v1085, 16
        %v1160 = vrot.slane %v1158, 4
        %v1161 = vshll.u32 %v1085, 16
        %v1163 = vrot.slane %v1161, 5
        %v1164 = vor.u32 %v1160, %v1163
        %v1165 = vrot.slane %v1164, 4
        %v1167 = vshll.u32 %v1086, 16
        %v1169 = vrot.slane %v1167, 5
        %v1170 = vsel %vm1132, %v1165, %v1169
        %v1171 = vshrl.u32 %v1086, 16
        %v1173 = vrot.slane %v1171, 4
        %v1174 = vor.u32 %v1173, %v1169
        %v1175 = vrot.slane %v1174, 4
        %v1177 = vshll.u32 %v1087, 16
        %v1179 = vrot.slane %v1177, 5
        %v1180 = vsel %vm1132, %v1175, %v1179
        %v1182 = vshrl.u32 %v1088, 16
        %v1184 = vrot.slane %v1182, 4
        %v1185 = vshll.u32 %v1088, 16
        %v1187 = vrot.slane %v1185, 5
        %v1188 = vor.u32 %v1184, %v1187
        %v1189 = vrot.slane %v1188, 4
        %v1191 = vshll.u32 %v1089, 16
        %v1193 = vrot.slane %v1191, 5
        %v1194 = vsel %vm1132, %v1189, %v1193
        %v1195 = vshrl.u32 %v1089, 16
        %v1197 = vrot.slane %v1195, 4
        %v1198 = vor.u32 %v1197, %v1193
        %v1199 = vrot.slane %v1198, 4
        %v1201 = vshll.u32 %v1090, 16
        %v1203 = vrot.slane %v1201, 5
        %v1204 = vsel %vm1132, %v1199, %v1203
        %v1206 = vshrl.u32 %v1091, 16
        %v1208 = vrot.slane %v1206, 4
        %v1209 = vshll.u32 %v1091, 16
        %v1211 = vrot.slane %v1209, 5
        %v1212 = vor.u32 %v1208, %v1211
        %v1213 = vrot.slane %v1212, 4
        %v1215 = vshll.u32 %v1092, 16
        %v1217 = vrot.slane %v1215, 5
        %v1218 = vsel %vm1132, %v1213, %v1217
        %v1219 = vshrl.u32 %v1092, 16
        %v1221 = vrot.slane %v1219, 4
        %v1222 = vor.u32 %v1221, %v1217
        %v1223 = vrot.slane %v1222, 4
        %v1225 = vshll.u32 %v1093, 16
        %v1227 = vrot.slane %v1225, 5
        %v1228 = vsel %vm1132, %v1223, %v1227
        %v1230 = vshrl.u32 %v1094, 16
        %v1232 = vrot.slane %v1230, 4
        %v1233 = vshll.u32 %v1094, 16
        %v1235 = vrot.slane %v1233, 5
        %v1236 = vor.u32 %v1232, %v1235
        %v1237 = vrot.slane %v1236, 4
        %v1239 = vshll.u32 %v1095, 16
        %v1241 = vrot.slane %v1239, 5
        %v1242 = vsel %vm1132, %v1237, %v1241
        %v1243 = vshrl.u32 %v1095, 16
        %v1245 = vrot.slane %v1243, 4
        %v1246 = vor.u32 %v1245, %v1241
        %v1247 = vrot.slane %v1246, 4
        %v1249 = vshll.u32 %v1096, 16
        %v1251 = vrot.slane %v1249, 5
        %v1252 = vsel %vm1132, %v1247, %v1251
        %v1254 = vshrl.u32 %v1097, 16
        %v1256 = vrot.slane %v1254, 4
        %v1257 = vshll.u32 %v1097, 16
        %v1259 = vrot.slane %v1257, 5
        %v1260 = vor.u32 %v1256, %v1259
        %v1261 = vrot.slane %v1260, 4
        %v1263 = vshll.u32 %v1098, 16
        %v1265 = vrot.slane %v1263, 5
        %v1266 = vsel %vm1132, %v1261, %v1265
        %v1267 = vshrl.u32 %v1098, 16
        %v1269 = vrot.slane %v1267, 4
        %v1270 = vor.u32 %v1269, %v1265
        %v1271 = vrot.slane %v1270, 4
        %v1273 = vshll.u32 %v1099, 16
        %v1275 = vrot.slane %v1273, 5
        %v1276 = vsel %vm1132, %v1271, %v1275
        %v1278 = vshrl.u32 %v1100, 16
        %v1280 = vrot.slane %v1278, 4
        %v1281 = vshll.u32 %v1100, 16
        %v1283 = vrot.slane %v1281, 5
        %v1284 = vor.u32 %v1280, %v1283
        %v1285 = vrot.slane %v1284, 4
        %v1287 = vshll.u32 %v1101, 16
        %v1289 = vrot.slane %v1287, 5
        %v1290 = vsel %vm1132, %v1285, %v1289
        %v1291 = vshrl.u32 %v1101, 16
        %v1293 = vrot.slane %v1291, 4
        %v1294 = vor.u32 %v1293, %v1289
        %v1295 = vrot.slane %v1294, 4
        %v1297 = vshll.u32 %v1102, 16
        %v1299 = vrot.slane %v1297, 5
        %v1300 = vsel %vm1132, %v1295, %v1299
        %v1302 = vshrl.u32 %v1103, 16
        %v1304 = vrot.slane %v1302, 4
        %v1305 = vshll.u32 %v1103, 16
        %v1307 = vrot.slane %v1305, 5
        %v1308 = vor.u32 %v1304, %v1307
        %v1309 = vrot.slane %v1308, 4
        %v1311 = vshll.u32 %v1104, 16
        %v1313 = vrot.slane %v1311, 5
        %v1314 = vsel %vm1132, %v1309, %v1313
        %v1315 = vshrl.u32 %v1104, 16
        %v1317 = vrot.slane %v1315, 4
        %v1318 = vor.u32 %v1317, %v1313
        %v1319 = vrot.slane %v1318, 4
        %v1321 = vshll.u32 %v1105, 16
        %v1323 = vrot.slane %v1321, 5
        %v1324 = vsel %vm1132, %v1319, %v1323
        %v1326 = vshrl.u32 %v1106, 16
        %v1328 = vrot.slane %v1326, 4
        %v1329 = vshll.u32 %v1106, 16
        %v1331 = vrot.slane %v1329, 5
        %v1332 = vor.u32 %v1328, %v1331
        %v1333 = vrot.slane %v1332, 4
        %v1335 = vshll.u32 %v1107, 16
        %v1337 = vrot.slane %v1335, 5
        %v1338 = vsel %vm1132, %v1333, %v1337
        %v1339 = vshrl.u32 %v1107, 16
        %v1341 = vrot.slane %v1339, 4
        %v1342 = vor.u32 %v1341, %v1337
        %v1343 = vrot.slane %v1342, 4
        %v1345 = vshll.u32 %v1108, 16
        %v1347 = vrot.slane %v1345, 5
        %v1348 = vsel %vm1132, %v1343, %v1347
        %v1350 = vshrl.u32 %v1109, 16
        %v1352 = vrot.slane %v1350, 4
        %v1353 = vshll.u32 %v1109, 16
        %v1355 = vrot.slane %v1353, 5
        %v1356 = vor.u32 %v1352, %v1355
        %v1357 = vrot.slane %v1356, 4
        %v1359 = vshll.u32 %v1110, 16
        %v1361 = vrot.slane %v1359, 5
        %v1362 = vsel %vm1132, %v1357, %v1361
        %v1363 = vshrl.u32 %v1110, 16
        %v1365 = vrot.slane %v1363, 4
        %v1366 = vor.u32 %v1365, %v1361
        %v1367 = vrot.slane %v1366, 4
        %v1369 = vshll.u32 %v1111, 16
        %v1371 = vrot.slane %v1369, 5
        %v1372 = vsel %vm1132, %v1367, %v1371
        %v1374 = vshrl.u32 %v1112, 16
        %v1376 = vrot.slane %v1374, 4
        %v1377 = vshll.u32 %v1112, 16
        %v1379 = vrot.slane %v1377, 5
        %v1380 = vor.u32 %v1376, %v1379
        %v1381 = vrot.slane %v1380, 4
        %v1383 = vshll.u32 %v1113, 16
        %v1385 = vrot.slane %v1383, 5
        %v1386 = vsel %vm1132, %v1381, %v1385
        %v1387 = vshrl.u32 %v1113, 16
        %v1389 = vrot.slane %v1387, 4
        %v1390 = vor.u32 %v1389, %v1385
        %v1391 = vrot.slane %v1390, 4
        %v1393 = vshll.u32 %v1114, 16
        %v1395 = vrot.slane %v1393, 5
        %v1396 = vsel %vm1132, %v1391, %v1395
        %v1398 = vshrl.u32 %v1115, 16
        %v1400 = vrot.slane %v1398, 4
        %v1401 = vshll.u32 %v1115, 16
        %v1403 = vrot.slane %v1401, 5
        %v1404 = vor.u32 %v1400, %v1403
        %v1405 = vrot.slane %v1404, 4
        %v1407 = vshll.u32 %v1116, 16
        %v1409 = vrot.slane %v1407, 5
        %v1410 = vsel %vm1132, %v1405, %v1409
        %v1411 = vshrl.u32 %v1116, 16
        %v1413 = vrot.slane %v1411, 4
        %v1414 = vor.u32 %v1413, %v1409
        %v1415 = vrot.slane %v1414, 4
        %v1417 = vshll.u32 %v1117, 16
        %v1419 = vrot.slane %v1417, 5
        %v1420 = vsel %vm1132, %v1415, %v1419
        %v1422 = vshrl.u32 %v1118, 16
        %v1424 = vrot.slane %v1422, 4
        %v1425 = vshll.u32 %v1118, 16
        %v1427 = vrot.slane %v1425, 5
        %v1428 = vor.u32 %v1424, %v1427
        %v1429 = vrot.slane %v1428, 4
        %v1431 = vshll.u32 %v1119, 16
        %v1433 = vrot.slane %v1431, 5
        %v1434 = vsel %vm1132, %v1429, %v1433
        %v1435 = vshrl.u32 %v1119, 16
        %v1437 = vrot.slane %v1435, 4
        %v1438 = vor.u32 %v1437, %v1433
        %v1439 = vrot.slane %v1438, 4
        %v1441 = vshll.u32 %v1120, 16
        %v1443 = vrot.slane %v1441, 5
        %v1444 = vsel %vm1132, %v1439, %v1443
        %v1446 = vshrl.u32 %v1121, 16
        %v1448 = vrot.slane %v1446, 4
        %v1449 = vshll.u32 %v1121, 16
        %v1451 = vrot.slane %v1449, 5
        %v1452 = vor.u32 %v1448, %v1451
        %v1453 = vrot.slane %v1452, 4
        %v1455 = vshll.u32 %v1122, 16
        %v1457 = vrot.slane %v1455, 5
        %v1458 = vsel %vm1132, %v1453, %v1457
        %v1459 = vshrl.u32 %v1122, 16
        %v1461 = vrot.slane %v1459, 4
        %v1462 = vor.u32 %v1461, %v1457
        %v1463 = vrot.slane %v1462, 4
        %v1465 = vshll.u32 %v1123, 16
        %v1467 = vrot.slane %v1465, 5
        %v1468 = vsel %vm1132, %v1463, %v1467
        %v1470 = vshrl.u32 %v1124, 16
        %v1472 = vrot.slane %v1470, 4
        %v1473 = vshll.u32 %v1124, 16
        %v1475 = vrot.slane %v1473, 5
        %v1476 = vor.u32 %v1472, %v1475
        %v1477 = vrot.slane %v1476, 4
        %v1479 = vshll.u32 %v1125, 16
        %v1481 = vrot.slane %v1479, 5
        %v1482 = vsel %vm1132, %v1477, %v1481
        %v1483 = vshrl.u32 %v1125, 16
        %v1485 = vrot.slane %v1483, 4
        %v1486 = vor.u32 %v1485, %v1481
        %v1487 = vrot.slane %v1486, 4
        %v1489 = vshll.u32 %v1126, 16
        %v1491 = vrot.slane %v1489, 5
        %v1492 = vsel %vm1132, %v1487, %v1491
        %v1494 = vshrl.u32 %v1127, 16
        %v1496 = vrot.slane %v1494, 4
        %v1497 = vshll.u32 %v1127, 16
        %v1499 = vrot.slane %v1497, 5
        %v1500 = vor.u32 %v1496, %v1499
        %v1501 = vrot.slane %v1500, 4
        %v1503 = vshll.u32 %v1128, 16
        %v1505 = vrot.slane %v1503, 5
        %v1506 = vsel %vm1132, %v1501, %v1505
        %v1507 = vshrl.u32 %v1128, 16
        %v1509 = vrot.slane %v1507, 4
        %v1510 = vor.u32 %v1509, %v1505
        %v1511 = vrot.slane %v1510, 4
        %v1513 = vshll.u32 %v1129, 16
        %v1515 = vrot.slane %v1513, 5
        %v1516 = vsel %vm1132, %v1511, %v1515
        %vm1565 = vcmask 1042432
        %vm1566 = vcmask 1046532
        %vm1567 = vmor %vm1565, %vm1566
        %v1568 = vrot.slane %v1082, 5
        %v1569 = vrot.slane %v1568, 4
        %v1570 = vrot.slane %v1083, 5
        %v1571 = vsel %vm1567, %v1569, %v1570
        %v1572 = vrot.slane %v1570, 4
        %v1573 = vrot.slane %v1084, 5
        %v1574 = vsel %vm1567, %v1572, %v1573
        %v1575 = vrot.slane %v1085, 5
        %v1576 = vrot.slane %v1575, 4
        %v1577 = vrot.slane %v1086, 5
        %v1578 = vsel %vm1567, %v1576, %v1577
        %v1579 = vrot.slane %v1577, 4
        %v1580 = vrot.slane %v1087, 5
        %v1581 = vsel %vm1567, %v1579, %v1580
        %v1582 = vrot.slane %v1088, 5
        %v1583 = vrot.slane %v1582, 4
        %v1584 = vrot.slane %v1089, 5
        %v1585 = vsel %vm1567, %v1583, %v1584
        %v1586 = vrot.slane %v1584, 4
        %v1587 = vrot.slane %v1090, 5
        %v1588 = vsel %vm1567, %v1586, %v1587
        %v1589 = vrot.slane %v1091, 5
        %v1590 = vrot.slane %v1589, 4
        %v1591 = vrot.slane %v1092, 5
        %v1592 = vsel %vm1567, %v1590, %v1591
        %v1593 = vrot.slane %v1591, 4
        %v1594 = vrot.slane %v1093, 5
        %v1595 = vsel %vm1567, %v1593, %v1594
        %v1596 = vrot.slane %v1094, 5
        %v1597 = vrot.slane %v1596, 4
        %v1598 = vrot.slane %v1095, 5
        %v1599 = vsel %vm1567, %v1597, %v1598
        %v1600 = vrot.slane %v1598, 4
        %v1601 = vrot.slane %v1096, 5
        %v1602 = vsel %vm1567, %v1600, %v1601
        %v1603 = vrot.slane %v1097, 5
        %v1604 = vrot.slane %v1603, 4
        %v1605 = vrot.slane %v1098, 5
        %v1606 = vsel %vm1567, %v1604, %v1605
        %v1607 = vrot.slane %v1605, 4
        %v1608 = vrot.slane %v1099, 5
        %v1609 = vsel %vm1567, %v1607, %v1608
        %v1610 = vrot.slane %v1100, 5
        %v1611 = vrot.slane %v1610, 4
        %v1612 = vrot.slane %v1101, 5
        %v1613 = vsel %vm1567, %v1611, %v1612
        %v1614 = vrot.slane %v1612, 4
        %v1615 = vrot.slane %v1102, 5
        %v1616 = vsel %vm1567, %v1614, %v1615
        %v1617 = vrot.slane %v1103, 5
        %v1618 = vrot.slane %v1617, 4
        %v1619 = vrot.slane %v1104, 5
        %v1620 = vsel %vm1567, %v1618, %v1619
        %v1621 = vrot.slane %v1619, 4
        %v1622 = vrot.slane %v1105, 5
        %v1623 = vsel %vm1567, %v1621, %v1622
        %v1624 = vrot.slane %v1106, 5
        %v1625 = vrot.slane %v1624, 4
        %v1626 = vrot.slane %v1107, 5
        %v1627 = vsel %vm1567, %v1625, %v1626
        %v1628 = vrot.slane %v1626, 4
        %v1629 = vrot.slane %v1108, 5
        %v1630 = vsel %vm1567, %v1628, %v1629
        %v1631 = vrot.slane %v1109, 5
        %v1632 = vrot.slane %v1631, 4
        %v1633 = vrot.slane %v1110, 5
        %v1634 = vsel %vm1567, %v1632, %v1633
        %v1635 = vrot.slane %v1633, 4
        %v1636 = vrot.slane %v1111, 5
        %v1637 = vsel %vm1567, %v1635, %v1636
        %v1638 = vrot.slane %v1112, 5
        %v1639 = vrot.slane %v1638, 4
        %v1640 = vrot.slane %v1113, 5
        %v1641 = vsel %vm1567, %v1639, %v1640
        %v1642 = vrot.slane %v1640, 4
        %v1643 = vrot.slane %v1114, 5
        %v1644 = vsel %vm1567, %v1642, %v1643
        %v1645 = vrot.slane %v1115, 5
        %v1646 = vrot.slane %v1645, 4
        %v1647 = vrot.slane %v1116, 5
        %v1648 = vsel %vm1567, %v1646, %v1647
        %v1649 = vrot.slane %v1647, 4
        %v1650 = vrot.slane %v1117, 5
        %v1651 = vsel %vm1567, %v1649, %v1650
        %v1652 = vrot.slane %v1118, 5
        %v1653 = vrot.slane %v1652, 4
        %v1654 = vrot.slane %v1119, 5
        %v1655 = vsel %vm1567, %v1653, %v1654
        %v1656 = vrot.slane %v1654, 4
        %v1657 = vrot.slane %v1120, 5
        %v1658 = vsel %vm1567, %v1656, %v1657
        %v1659 = vrot.slane %v1121, 5
        %v1660 = vrot.slane %v1659, 4
        %v1661 = vrot.slane %v1122, 5
        %v1662 = vsel %vm1567, %v1660, %v1661
        %v1663 = vrot.slane %v1661, 4
        %v1664 = vrot.slane %v1123, 5
        %v1665 = vsel %vm1567, %v1663, %v1664
        %v1666 = vrot.slane %v1124, 5
        %v1667 = vrot.slane %v1666, 4
        %v1668 = vrot.slane %v1125, 5
        %v1669 = vsel %vm1567, %v1667, %v1668
        %v1670 = vrot.slane %v1668, 4
        %v1671 = vrot.slane %v1126, 5
        %v1672 = vsel %vm1567, %v1670, %v1671
        %v1673 = vrot.slane %v1127, 5
        %v1674 = vrot.slane %v1673, 4
        %v1675 = vrot.slane %v1128, 5
        %v1676 = vsel %vm1567, %v1674, %v1675
        %v1677 = vrot.slane %v1675, 4
        %v1678 = vrot.slane %v1129, 5
        %v1679 = vsel %vm1567, %v1677, %v1678
        %v1680 = vunpack.c.l.b16 %v1082
        %v1681 = vunpack.c.l.b16 %v1083
        %v1682 = vunpack.c.l.b16 %v1085
        %v1683 = vunpack.c.l.b16 %v1086
        %v1684 = vunpack.c.l.b16 %v1088
        %v1685 = vunpack.c.l.b16 %v1089
        %v1686 = vunpack.c.l.b16 %v1091
        %v1687 = vunpack.c.l.b16 %v1092
        %v1688 = vunpack.c.l.b16 %v1094
        %v1689 = vunpack.c.l.b16 %v1095
        %v1690 = vunpack.c.l.b16 %v1097
        %v1691 = vunpack.c.l.b16 %v1098
        %v1692 = vunpack.c.l.b16 %v1100
        %v1693 = vunpack.c.l.b16 %v1101
        %v1694 = vunpack.c.l.b16 %v1103
        %v1695 = vunpack.c.l.b16 %v1104
        %v1696 = vunpack.c.l.b16 %v1106
        %v1697 = vunpack.c.l.b16 %v1107
        %v1698 = vunpack.c.l.b16 %v1109
        %v1699 = vunpack.c.l.b16 %v1110
        %v1700 = vunpack.c.l.b16 %v1112
        %v1701 = vunpack.c.l.b16 %v1113
        %v1702 = vunpack.c.l.b16 %v1115
        %v1703 = vunpack.c.l.b16 %v1116
        %v1704 = vunpack.c.l.b16 %v1118
        %v1705 = vunpack.c.l.b16 %v1119
        %v1706 = vunpack.c.l.b16 %v1121
        %v1707 = vunpack.c.l.b16 %v1122
        %v1708 = vunpack.c.l.b16 %v1124
        %v1709 = vunpack.c.l.b16 %v1125
        %v1710 = vunpack.c.l.b16 %v1127
        %v1711 = vunpack.c.l.b16 %v1128
        %v1712 = vpack.c.b16 %v1681, %v1680
        %v1713 = vpack.c.b16 %v1683, %v1682
        %v1714 = vpack.c.b16 %v1685, %v1684
        %v1715 = vpack.c.b16 %v1687, %v1686
        %v1716 = vpack.c.b16 %v1689, %v1688
        %v1717 = vpack.c.b16 %v1691, %v1690
        %v1718 = vpack.c.b16 %v1693, %v1692
        %v1719 = vpack.c.b16 %v1695, %v1694
        %v1720 = vpack.c.b16 %v1697, %v1696
        %v1721 = vpack.c.b16 %v1699, %v1698
        %v1722 = vpack.c.b16 %v1701, %v1700
        %v1723 = vpack.c.b16 %v1703, %v1702
        %v1724 = vpack.c.b16 %v1705, %v1704
        %v1725 = vpack.c.b16 %v1707, %v1706
        %v1726 = vpack.c.b16 %v1709, %v1708
        %v1727 = vpack.c.b16 %v1711, %v1710
        %v1728 = vunpack.c.l.b16 %v1146
        %v1729 = vunpack.c.l.b16 %v1156
        %v1730 = vunpack.c.l.b16 %v1170
        %v1731 = vunpack.c.l.b16 %v1180
        %v1732 = vunpack.c.l.b16 %v1194
        %v1733 = vunpack.c.l.b16 %v1204
        %v1734 = vunpack.c.l.b16 %v1218
        %v1735 = vunpack.c.l.b16 %v1228
        %v1736 = vunpack.c.l.b16 %v1242
        %v1737 = vunpack.c.l.b16 %v1252
        %v1738 = vunpack.c.l.b16 %v1266
        %v1739 = vunpack.c.l.b16 %v1276
        %v1740 = vunpack.c.l.b16 %v1290
        %v1741 = vunpack.c.l.b16 %v1300
        %v1742 = vunpack.c.l.b16 %v1314
        %v1743 = vunpack.c.l.b16 %v1324
        %v1744 = vunpack.c.l.b16 %v1338
        %v1745 = vunpack.c.l.b16 %v1348
        %v1746 = vunpack.c.l.b16 %v1362
        %v1747 = vunpack.c.l.b16 %v1372
        %v1748 = vunpack.c.l.b16 %v1386
        %v1749 = vunpack.c.l.b16 %v1396
        %v1750 = vunpack.c.l.b16 %v1410
        %v1751 = vunpack.c.l.b16 %v1420
        %v1752 = vunpack.c.l.b16 %v1434
        %v1753 = vunpack.c.l.b16 %v1444
        %v1754 = vunpack.c.l.b16 %v1458
        %v1755 = vunpack.c.l.b16 %v1468
        %v1756 = vunpack.c.l.b16 %v1482
        %v1757 = vunpack.c.l.b16 %v1492
        %v1758 = vunpack.c.l.b16 %v1506
        %v1759 = vunpack.c.l.b16 %v1516
        %v1760 = vpack.c.b16 %v1729, %v1728
        %v1761 = vpack.c.b16 %v1731, %v1730
        %v1762 = vpack.c.b16 %v1733, %v1732
        %v1763 = vpack.c.b16 %v1735, %v1734
        %v1764 = vpack.c.b16 %v1737, %v1736
        %v1765 = vpack.c.b16 %v1739, %v1738
        %v1766 = vpack.c.b16 %v1741, %v1740
        %v1767 = vpack.c.b16 %v1743, %v1742
        %v1768 = vpack.c.b16 %v1745, %v1744
        %v1769 = vpack.c.b16 %v1747, %v1746
        %v1770 = vpack.c.b16 %v1749, %v1748
        %v1771 = vpack.c.b16 %v1751, %v1750
        %v1772 = vpack.c.b16 %v1753, %v1752
        %v1773 = vpack.c.b16 %v1755, %v1754
        %v1774 = vpack.c.b16 %v1757, %v1756
        %v1775 = vpack.c.b16 %v1759, %v1758
        %1776 = vrot.lane.b32.xlu0 %v1760, 64
        %v1777 = vpop.permute.xlu0 %1776
        %1778 = vrot.lane.b32.xlu0 %v1761, 64
        %v1779 = vpop.permute.xlu0 %1778
        %1780 = vrot.lane.b32.xlu0 %v1762, 64
        %v1781 = vpop.permute.xlu0 %1780
        %1782 = vrot.lane.b32.xlu0 %v1763, 64
        %v1783 = vpop.permute.xlu0 %1782
        %1784 = vrot.lane.b32.xlu0 %v1764, 64
        %v1785 = vpop.permute.xlu0 %1784
        %1786 = vrot.lane.b32.xlu0 %v1765, 64
        %v1787 = vpop.permute.xlu0 %1786
        %1788 = vrot.lane.b32.xlu0 %v1766, 64
        %v1789 = vpop.permute.xlu0 %1788
        %1790 = vrot.lane.b32.xlu0 %v1767, 64
        %v1791 = vpop.permute.xlu0 %1790
        %1792 = vrot.lane.b32.xlu0 %v1768, 64
        %v1793 = vpop.permute.xlu0 %1792
        %1794 = vrot.lane.b32.xlu0 %v1769, 64
        %v1795 = vpop.permute.xlu0 %1794
        %1796 = vrot.lane.b32.xlu0 %v1770, 64
        %v1797 = vpop.permute.xlu0 %1796
        %1798 = vrot.lane.b32.xlu0 %v1771, 64
        %v1799 = vpop.permute.xlu0 %1798
        %1800 = vrot.lane.b32.xlu0 %v1772, 64
        %v1801 = vpop.permute.xlu0 %1800
        %1802 = vrot.lane.b32.xlu0 %v1773, 64
        %v1803 = vpop.permute.xlu0 %1802
        %1804 = vrot.lane.b32.xlu0 %v1774, 64
        %v1805 = vpop.permute.xlu0 %1804
        %1806 = vrot.lane.b32.xlu0 %v1775, 64
        %v1807 = vpop.permute.xlu0 %1806
        %v1808 = vunpack.c.l.b16 %v1571
        %v1809 = vunpack.c.l.b16 %v1574
        %v1810 = vunpack.c.l.b16 %v1578
        %v1811 = vunpack.c.l.b16 %v1581
        %v1812 = vunpack.c.l.b16 %v1585
        %v1813 = vunpack.c.l.b16 %v1588
        %v1814 = vunpack.c.l.b16 %v1592
        %v1815 = vunpack.c.l.b16 %v1595
        %v1816 = vunpack.c.l.b16 %v1599
        %v1817 = vunpack.c.l.b16 %v1602
        %v1818 = vunpack.c.l.b16 %v1606
        %v1819 = vunpack.c.l.b16 %v1609
        %v1820 = vunpack.c.l.b16 %v1613
        %v1821 = vunpack.c.l.b16 %v1616
        %v1822 = vunpack.c.l.b16 %v1620
        %v1823 = vunpack.c.l.b16 %v1623
        %v1824 = vunpack.c.l.b16 %v1627
        %v1825 = vunpack.c.l.b16 %v1630
        %v1826 = vunpack.c.l.b16 %v1634
        %v1827 = vunpack.c.l.b16 %v1637
        %v1828 = vunpack.c.l.b16 %v1641
        %v1829 = vunpack.c.l.b16 %v1644
        %v1830 = vunpack.c.l.b16 %v1648
        %v1831 = vunpack.c.l.b16 %v1651
        %v1832 = vunpack.c.l.b16 %v1655
        %v1833 = vunpack.c.l.b16 %v1658
        %v1834 = vunpack.c.l.b16 %v1662
        %v1835 = vunpack.c.l.b16 %v1665
        %v1836 = vunpack.c.l.b16 %v1669
        %v1837 = vunpack.c.l.b16 %v1672
        %v1838 = vunpack.c.l.b16 %v1676
        %v1839 = vunpack.c.l.b16 %v1679
        %v1840 = vpack.c.b16 %v1809, %v1808
        %v1841 = vpack.c.b16 %v1811, %v1810
        %v1842 = vpack.c.b16 %v1813, %v1812
        %v1843 = vpack.c.b16 %v1815, %v1814
        %v1844 = vpack.c.b16 %v1817, %v1816
        %v1845 = vpack.c.b16 %v1819, %v1818
        %v1846 = vpack.c.b16 %v1821, %v1820
        %v1847 = vpack.c.b16 %v1823, %v1822
        %v1848 = vpack.c.b16 %v1825, %v1824
        %v1849 = vpack.c.b16 %v1827, %v1826
        %v1850 = vpack.c.b16 %v1829, %v1828
        %v1851 = vpack.c.b16 %v1831, %v1830
        %v1852 = vpack.c.b16 %v1833, %v1832
        %v1853 = vpack.c.b16 %v1835, %v1834
        %v1854 = vpack.c.b16 %v1837, %v1836
        %v1855 = vpack.c.b16 %v1839, %v1838
        %vm1856 = vcmask 523264
        %v1859 = vsel %vm1856, %v1712, %v1777
        %v1863 = vsel %vm1856, %v1713, %v1779
        %v1867 = vsel %vm1856, %v1714, %v1781
        %v1871 = vsel %vm1856, %v1715, %v1783
        %v1875 = vsel %vm1856, %v1716, %v1785
        %v1879 = vsel %vm1856, %v1717, %v1787
        %v1883 = vsel %vm1856, %v1718, %v1789
        %v1887 = vsel %vm1856, %v1719, %v1791
        %v1891 = vsel %vm1856, %v1720, %v1793
        %v1895 = vsel %vm1856, %v1721, %v1795
        %v1899 = vsel %vm1856, %v1722, %v1797
        %v1903 = vsel %vm1856, %v1723, %v1799
        %v1907 = vsel %vm1856, %v1724, %v1801
        %v1911 = vsel %vm1856, %v1725, %v1803
        %v1915 = vsel %vm1856, %v1726, %v1805
        %v1919 = vsel %vm1856, %v1727, %v1807
        %v1945 = vunpack.c.l.b16 %v930
        %v1946 = vunpack.c.l.b16 %v931
        %v1947 = vunpack.c.l.b16 %v932
        %v1948 = vunpack.c.l.b16 %v933
        %v1949 = vunpack.c.l.b16 %v934
        %v1950 = vunpack.c.l.b16 %v935
        %v1951 = vunpack.c.l.b16 %v936
        %v1952 = vunpack.c.l.b16 %v937
        %v1953 = vunpack.c.l.b16 %v938
        %v1954 = vunpack.c.l.b16 %v939
        %v1955 = vunpack.c.l.b16 %v940
        %v1956 = vunpack.c.l.b16 %v941
        %v1957 = vunpack.c.l.b16 %v942
        %v1958 = vunpack.c.l.b16 %v943
        %v1959 = vunpack.c.l.b16 %v944
        %v1960 = vunpack.c.l.b16 %v945
        %v1961 = vunpack.c.l.b16 %v946
        %v1962 = vunpack.c.l.b16 %v947
        %v1963 = vunpack.c.l.b16 %v948
        %v1964 = vunpack.c.l.b16 %v949
        %v1965 = vunpack.c.l.b16 %v950
        %v1966 = vunpack.c.l.b16 %v951
        %v1967 = vunpack.c.l.b16 %v952
        %v1968 = vunpack.c.l.b16 %v953
        %v1969 = vpack.c.b16 %v1946, %v1945
        %v1970 = vpack.c.b16 %v1948, %v1947
        %v1971 = vpack.c.b16 %v1950, %v1949
        %v1972 = vpack.c.b16 %v1952, %v1951
        %v1973 = vpack.c.b16 %v1954, %v1953
        %v1974 = vpack.c.b16 %v1956, %v1955
        %v1975 = vpack.c.b16 %v1958, %v1957
        %v1976 = vpack.c.b16 %v1960, %v1959
        %v1977 = vpack.c.b16 %v1962, %v1961
        %v1978 = vpack.c.b16 %v1964, %v1963
        %v1979 = vpack.c.b16 %v1966, %v1965
        %v1980 = vpack.c.b16 %v1968, %v1967
        %v1994 = vsel %vm1856, %v1840, 0
        %v1997 = vsel %vm1856, %v1841, 0
        %v2000 = vsel %vm1856, %v1842, 0
        %v2003 = vsel %vm1856, %v1843, 0
        %v2006 = vsel %vm1856, %v1844, 0
        %v2009 = vsel %vm1856, %v1845, 0
        %v2012 = vsel %vm1856, %v1846, 0
        %v2015 = vsel %vm1856, %v1847, 0
        %v2018 = vsel %vm1856, %v1848, 0
        %v2021 = vsel %vm1856, %v1849, 0
        %v2024 = vsel %vm1856, %v1850, 0
        %v2027 = vsel %vm1856, %v1851, 0
        %v2030 = vsel %vm1856, %v1852, 0
        %v2033 = vsel %vm1856, %v1853, 0
        %v2036 = vsel %vm1856, %v1854, 0
        %v2039 = vsel %vm1856, %v1855, 0
        %2041 = vmatprep.subr.bf16.mxu0 0
        %2042 = vmatpush1.bf16.msra.mxu0 %v1976
        %2043 = vmatprep.subr.bf16.mxu0 0
        %2044 = vmatpush1.bf16.msra.mxu0 %v1975
        %2045 = vmatprep.subr.bf16.mxu0 0
        %2046 = vmatpush1.bf16.msra.mxu0 %v1974
        %2047 = vmatprep.subr.bf16.mxu0 0
        %2048 = vmatpush1.bf16.msra.mxu0 %v1973
        %2049 = vmatprep.subr.bf16.mxu0 0
        %2050 = vmatpush1.bf16.msra.mxu0 %v1972
        %2051 = vmatprep.subr.bf16.mxu0 0
        %2052 = vmatpush1.bf16.msra.mxu0 %v1971
        %2053 = vmatprep.subr.bf16.mxu0 0
        %2054 = vmatpush1.bf16.msra.mxu0 %v1970
        %2055 = vmatprep.subr.bf16.mxu0 0
        %2056 = vmatpush1.bf16.msra.mxu0 %v1969
        %2057 = vmatprep.subr.bf16.mxu0 0
        %2058 = vmatpush2.bf16.msra.mxu0 0
        %2059 = vmatprep.subr.bf16.mxu0 0
        %2060 = vmatpush2.bf16.msra.mxu0 0
        %2061 = vmatprep.subr.bf16.mxu0 0
        %2062 = vmatpush2.bf16.msra.mxu0 0
        %2063 = vmatprep.subr.bf16.mxu0 0
        %2064 = vmatpush2.bf16.msra.mxu0 0
        %2065 = vmatprep.subr.bf16.mxu0 0
        %2066 = vmatpush2.bf16.msra.mxu0 %v1980
        %2067 = vmatprep.subr.bf16.mxu0 0
        %2068 = vmatpush2.bf16.msra.mxu0 %v1979
        %2069 = vmatprep.subr.bf16.mxu0 0
        %2070 = vmatpush2.bf16.msra.mxu0 %v1978
        %2071 = vmatprep.subr.bf16.mxu0 0
        %2072 = vmatpush2.bf16.msra.mxu0 %v1977
        %2073 = vmatprep.mubr.bf16.mxu0 %v1994
        %2074 = vmatmul.mubr.bf16.gmra.mxu0 %v1859
        %v2075 = vpop.f32.mrf.mxu0
        %v2076 = vadd.f32 0.0, %v2075
        %v2077 = vpop.f32.mrf.mxu0
        %v2078 = vpop.f32.mrf.mxu0
        %v2079 = vadd.f32 0.0, %v2078
        %v2080 = vpop.f32.mrf.mxu0
        %2081 = vmatprep.mubr.bf16.mxu0 %v1997
        %2082 = vmatmul.mubr.bf16.gmra.mxu0 %v1863
        %v2083 = vpop.f32.mrf.mxu0
        %v2084 = vadd.f32 0.0, %v2083
        %v2085 = vpop.f32.mrf.mxu0
        %v2086 = vpop.f32.mrf.mxu0
        %v2087 = vadd.f32 0.0, %v2086
        %v2088 = vpop.f32.mrf.mxu0
        %2089 = vmatprep.mubr.bf16.mxu0 %v2000
        %2090 = vmatmul.mubr.bf16.gmra.mxu0 %v1867
        %v2091 = vpop.f32.mrf.mxu0
        %v2092 = vadd.f32 0.0, %v2091
        %v2093 = vpop.f32.mrf.mxu0
        %v2094 = vpop.f32.mrf.mxu0
        %v2095 = vadd.f32 0.0, %v2094
        %v2096 = vpop.f32.mrf.mxu0
        %2097 = vmatprep.mubr.bf16.mxu0 %v2003
        %2098 = vmatmul.mubr.bf16.gmra.mxu0 %v1871
        %v2099 = vpop.f32.mrf.mxu0
        %v2100 = vadd.f32 0.0, %v2099
        %v2101 = vpop.f32.mrf.mxu0
        %v2102 = vpop.f32.mrf.mxu0
        %v2103 = vadd.f32 0.0, %v2102
        %v2104 = vpop.f32.mrf.mxu0
        %2105 = vmatprep.mubr.bf16.mxu0 %v2006
        %2106 = vmatmul.mubr.bf16.gmra.mxu0 %v1875
        %v2107 = vpop.f32.mrf.mxu0
        %v2108 = vadd.f32 0.0, %v2107
        %v2109 = vpop.f32.mrf.mxu0
        %v2110 = vpop.f32.mrf.mxu0
        %v2111 = vadd.f32 0.0, %v2110
        %v2112 = vpop.f32.mrf.mxu0
        %2113 = vmatprep.mubr.bf16.mxu0 %v2009
        %2114 = vmatmul.mubr.bf16.gmra.mxu0 %v1879
        %v2115 = vpop.f32.mrf.mxu0
        %v2116 = vadd.f32 0.0, %v2115
        %v2117 = vpop.f32.mrf.mxu0
        %v2118 = vpop.f32.mrf.mxu0
        %v2119 = vadd.f32 0.0, %v2118
        %v2120 = vpop.f32.mrf.mxu0
        %2121 = vmatprep.mubr.bf16.mxu0 %v2012
        %2122 = vmatmul.mubr.bf16.gmra.mxu0 %v1883
        %v2123 = vpop.f32.mrf.mxu0
        %v2124 = vadd.f32 0.0, %v2123
        %v2125 = vpop.f32.mrf.mxu0
        %v2126 = vpop.f32.mrf.mxu0
        %v2127 = vadd.f32 0.0, %v2126
        %v2128 = vpop.f32.mrf.mxu0
        %2129 = vmatprep.mubr.bf16.mxu0 %v2015
        %2130 = vmatmul.mubr.bf16.gmra.mxu0 %v1887
        %v2131 = vpop.f32.mrf.mxu0
        %v2132 = vadd.f32 0.0, %v2131
        %v2133 = vpop.f32.mrf.mxu0
        %v2134 = vpop.f32.mrf.mxu0
        %v2135 = vadd.f32 0.0, %v2134
        %v2136 = vpop.f32.mrf.mxu0
        %2137 = vmatprep.mubr.bf16.mxu0 %v2018
        %2138 = vmatmul.mubr.bf16.gmra.mxu0 %v1891
        %v2139 = vpop.f32.mrf.mxu0
        %v2140 = vadd.f32 0.0, %v2139
        %v2141 = vpop.f32.mrf.mxu0
        %v2142 = vpop.f32.mrf.mxu0
        %v2143 = vadd.f32 0.0, %v2142
        %v2144 = vpop.f32.mrf.mxu0
        %2145 = vmatprep.mubr.bf16.mxu0 %v2021
        %2146 = vmatmul.mubr.bf16.gmra.mxu0 %v1895
        %v2147 = vpop.f32.mrf.mxu0
        %v2148 = vadd.f32 0.0, %v2147
        %v2149 = vpop.f32.mrf.mxu0
        %v2150 = vpop.f32.mrf.mxu0
        %v2151 = vadd.f32 0.0, %v2150
        %v2152 = vpop.f32.mrf.mxu0
        %2153 = vmatprep.mubr.bf16.mxu0 %v2024
        %2154 = vmatmul.mubr.bf16.gmra.mxu0 %v1899
        %v2155 = vpop.f32.mrf.mxu0
        %v2156 = vadd.f32 0.0, %v2155
        %v2157 = vpop.f32.mrf.mxu0
        %v2158 = vpop.f32.mrf.mxu0
        %v2159 = vadd.f32 0.0, %v2158
        %v2160 = vpop.f32.mrf.mxu0
        %2161 = vmatprep.mubr.bf16.mxu0 %v2027
        %2162 = vmatmul.mubr.bf16.gmra.mxu0 %v1903
        %v2163 = vpop.f32.mrf.mxu0
        %v2164 = vadd.f32 0.0, %v2163
        %v2165 = vpop.f32.mrf.mxu0
        %v2166 = vpop.f32.mrf.mxu0
        %v2167 = vadd.f32 0.0, %v2166
        %v2168 = vpop.f32.mrf.mxu0
        %2169 = vmatprep.mubr.bf16.mxu0 %v2030
        %2170 = vmatmul.mubr.bf16.gmra.mxu0 %v1907
        %v2171 = vpop.f32.mrf.mxu0
        %v2172 = vadd.f32 0.0, %v2171
        %v2173 = vpop.f32.mrf.mxu0
        %v2174 = vpop.f32.mrf.mxu0
        %v2175 = vadd.f32 0.0, %v2174
        %v2176 = vpop.f32.mrf.mxu0
        %2177 = vmatprep.mubr.bf16.mxu0 %v2033
        %2178 = vmatmul.mubr.bf16.gmra.mxu0 %v1911
        %v2179 = vpop.f32.mrf.mxu0
        %v2180 = vadd.f32 0.0, %v2179
        %v2181 = vpop.f32.mrf.mxu0
        %v2182 = vpop.f32.mrf.mxu0
        %v2183 = vadd.f32 0.0, %v2182
        %v2184 = vpop.f32.mrf.mxu0
        %2185 = vmatprep.mubr.bf16.mxu0 %v2036
        %2186 = vmatmul.mubr.bf16.gmra.mxu0 %v1915
        %v2187 = vpop.f32.mrf.mxu0
        %v2188 = vadd.f32 0.0, %v2187
        %v2189 = vpop.f32.mrf.mxu0
        %v2190 = vpop.f32.mrf.mxu0
        %v2191 = vadd.f32 0.0, %v2190
        %v2192 = vpop.f32.mrf.mxu0
        %2193 = vmatprep.mubr.bf16.mxu0 %v2039
        %2194 = vmatmul.mubr.bf16.gmra.mxu0 %v1919
        %v2195 = vpop.f32.mrf.mxu0
        %v2196 = vadd.f32 0.0, %v2195
        %v2197 = vpop.f32.mrf.mxu0
        %v2198 = vpop.f32.mrf.mxu0
        %v2199 = vadd.f32 0.0, %v2198
        %v2200 = vpop.f32.mrf.mxu0
        %2201 = vdwg.mxu0
        %v2202 = vadd.f32 %v1080, %v2076
        %v2203 = vadd.f32 %v1080, %v2079
        %v2204 = vadd.f32 %v1080, %v2084
        %v2205 = vadd.f32 %v1080, %v2087
        %v2206 = vadd.f32 %v1080, %v2092
        %v2207 = vadd.f32 %v1080, %v2095
        %v2208 = vadd.f32 %v1080, %v2100
        %v2209 = vadd.f32 %v1080, %v2103
        %v2210 = vadd.f32 %v1080, %v2108
        %v2211 = vadd.f32 %v1080, %v2111
        %v2212 = vadd.f32 %v1080, %v2116
        %v2213 = vadd.f32 %v1080, %v2119
        %v2214 = vadd.f32 %v1080, %v2124
        %v2215 = vadd.f32 %v1080, %v2127
        %v2216 = vadd.f32 %v1080, %v2132
        %v2217 = vadd.f32 %v1080, %v2135
        %v2218 = vadd.f32 %v1080, %v2140
        %v2219 = vadd.f32 %v1080, %v2143
        %v2220 = vadd.f32 %v1080, %v2148
        %v2221 = vadd.f32 %v1080, %v2151
        %v2222 = vadd.f32 %v1080, %v2156
        %v2223 = vadd.f32 %v1080, %v2159
        %v2224 = vadd.f32 %v1080, %v2164
        %v2225 = vadd.f32 %v1080, %v2167
        %v2226 = vadd.f32 %v1080, %v2172
        %v2227 = vadd.f32 %v1080, %v2175
        %v2228 = vadd.f32 %v1080, %v2180
        %v2229 = vadd.f32 %v1080, %v2183
        %v2230 = vadd.f32 %v1080, %v2188
        %v2231 = vadd.f32 %v1080, %v2191
        %v2232 = vadd.f32 %v1080, %v2196
        %v2233 = vadd.f32 %v1080, %v2199
        %v2234 = vld [vmem:[%s700] sm:$0xf]
        %v2235 = vld [vmem:[%s700 + $0x4] sm:$0xf]
        %v2236 = vld [vmem:[%s700 + $0x8] sm:$0x1]
        %v2237 = vld [vmem:[%s700 + $0xc] sm:$0xf]
        %v2238 = vld [vmem:[%s700 + $0x10] sm:$0xf]
        %v2239 = vld [vmem:[%s700 + $0x14] sm:$0x1]
        %v2240 = vld [vmem:[%s700 + $0x18] sm:$0xf]
        %v2241 = vld [vmem:[%s700 + $0x1c] sm:$0xf]
        %v2242 = vld [vmem:[%s700 + $0x20] sm:$0x1]
        %v2243 = vld [vmem:[%s700 + $0x24] sm:$0xf]
        %v2244 = vld [vmem:[%s700 + $0x28] sm:$0xf]
        %v2245 = vld [vmem:[%s700 + $0x2c] sm:$0x1]
        %v2246 = vld [vmem:[%s700 + $0x30] sm:$0xf]
        %v2247 = vld [vmem:[%s700 + $0x34] sm:$0xf]
        %v2248 = vld [vmem:[%s700 + $0x38] sm:$0x1]
        %v2249 = vld [vmem:[%s700 + $0x3c] sm:$0xf]
        %v2250 = vld [vmem:[%s700 + $0x40] sm:$0xf]
        %v2251 = vld [vmem:[%s700 + $0x44] sm:$0x1]
        %v2252 = vld [vmem:[%s700 + $0x48] sm:$0xf]
        %v2253 = vld [vmem:[%s700 + $0x4c] sm:$0xf]
        %v2254 = vld [vmem:[%s700 + $0x50] sm:$0x1]
        %v2255 = vld [vmem:[%s700 + $0x54] sm:$0xf]
        %v2256 = vld [vmem:[%s700 + $0x58] sm:$0xf]
        %v2257 = vld [vmem:[%s700 + $0x5c] sm:$0x1]
        %v2258 = vld [vmem:[%s700 + $0x60] sm:$0xf]
        %v2259 = vld [vmem:[%s700 + $0x64] sm:$0xf]
        %v2260 = vld [vmem:[%s700 + $0x68] sm:$0x1]
        %v2261 = vld [vmem:[%s700 + $0x6c] sm:$0xf]
        %v2262 = vld [vmem:[%s700 + $0x70] sm:$0xf]
        %v2263 = vld [vmem:[%s700 + $0x74] sm:$0x1]
        %v2264 = vld [vmem:[%s700 + $0x78] sm:$0xf]
        %v2265 = vld [vmem:[%s700 + $0x7c] sm:$0xf]
        %v2266 = vld [vmem:[%s700 + $0x80] sm:$0x1]
        %v2267 = vld [vmem:[%s700 + $0x84] sm:$0xf]
        %v2268 = vld [vmem:[%s700 + $0x88] sm:$0xf]
        %v2269 = vld [vmem:[%s700 + $0x8c] sm:$0x1]
        %v2270 = vld [vmem:[%s700 + $0x90] sm:$0xf]
        %v2271 = vld [vmem:[%s700 + $0x94] sm:$0xf]
        %v2272 = vld [vmem:[%s700 + $0x98] sm:$0x1]
        %v2273 = vld [vmem:[%s700 + $0x9c] sm:$0xf]
        %v2274 = vld [vmem:[%s700 + $0xa0] sm:$0xf]
        %v2275 = vld [vmem:[%s700 + $0xa4] sm:$0x1]
        %v2276 = vld [vmem:[%s700 + $0xa8] sm:$0xf]
        %v2277 = vld [vmem:[%s700 + $0xac] sm:$0xf]
        %v2278 = vld [vmem:[%s700 + $0xb0] sm:$0x1]
        %v2279 = vld [vmem:[%s700 + $0xb4] sm:$0xf]
        %v2280 = vld [vmem:[%s700 + $0xb8] sm:$0xf]
        %v2281 = vld [vmem:[%s700 + $0xbc] sm:$0x1]
        %v2283 = vshrl.u32 %v2234, 16
        %v2285 = vrot.slane %v2283, 4
        %v2286 = vshll.u32 %v2234, 16
        %v2288 = vrot.slane %v2286, 5
        %v2289 = vor.u32 %v2285, %v2288
        %v2290 = vrot.slane %v2289, 4
        %v2292 = vshll.u32 %v2235, 16
        %v2294 = vrot.slane %v2292, 5
        %v2295 = vsel %vm1132, %v2290, %v2294
        %v2296 = vshrl.u32 %v2235, 16
        %v2298 = vrot.slane %v2296, 4
        %v2299 = vor.u32 %v2298, %v2294
        %v2300 = vrot.slane %v2299, 4
        %v2302 = vshll.u32 %v2236, 16
        %v2304 = vrot.slane %v2302, 5
        %v2305 = vsel %vm1132, %v2300, %v2304
        %v2307 = vshrl.u32 %v2237, 16
        %v2309 = vrot.slane %v2307, 4
        %v2310 = vshll.u32 %v2237, 16
        %v2312 = vrot.slane %v2310, 5
        %v2313 = vor.u32 %v2309, %v2312
        %v2314 = vrot.slane %v2313, 4
        %v2316 = vshll.u32 %v2238, 16
        %v2318 = vrot.slane %v2316, 5
        %v2319 = vsel %vm1132, %v2314, %v2318
        %v2320 = vshrl.u32 %v2238, 16
        %v2322 = vrot.slane %v2320, 4
        %v2323 = vor.u32 %v2322, %v2318
        %v2324 = vrot.slane %v2323, 4
        %v2326 = vshll.u32 %v2239, 16
        %v2328 = vrot.slane %v2326, 5
        %v2329 = vsel %vm1132, %v2324, %v2328
        %v2331 = vshrl.u32 %v2240, 16
        %v2333 = vrot.slane %v2331, 4
        %v2334 = vshll.u32 %v2240, 16
        %v2336 = vrot.slane %v2334, 5
        %v2337 = vor.u32 %v2333, %v2336
        %v2338 = vrot.slane %v2337, 4
        %v2340 = vshll.u32 %v2241, 16
        %v2342 = vrot.slane %v2340, 5
        %v2343 = vsel %vm1132, %v2338, %v2342
        %v2344 = vshrl.u32 %v2241, 16
        %v2346 = vrot.slane %v2344, 4
        %v2347 = vor.u32 %v2346, %v2342
        %v2348 = vrot.slane %v2347, 4
        %v2350 = vshll.u32 %v2242, 16
        %v2352 = vrot.slane %v2350, 5
        %v2353 = vsel %vm1132, %v2348, %v2352
        %v2355 = vshrl.u32 %v2243, 16
        %v2357 = vrot.slane %v2355, 4
        %v2358 = vshll.u32 %v2243, 16
        %v2360 = vrot.slane %v2358, 5
        %v2361 = vor.u32 %v2357, %v2360
        %v2362 = vrot.slane %v2361, 4
        %v2364 = vshll.u32 %v2244, 16
        %v2366 = vrot.slane %v2364, 5
        %v2367 = vsel %vm1132, %v2362, %v2366
        %v2368 = vshrl.u32 %v2244, 16
        %v2370 = vrot.slane %v2368, 4
        %v2371 = vor.u32 %v2370, %v2366
        %v2372 = vrot.slane %v2371, 4
        %v2374 = vshll.u32 %v2245, 16
        %v2376 = vrot.slane %v2374, 5
        %v2377 = vsel %vm1132, %v2372, %v2376
        %v2379 = vshrl.u32 %v2246, 16
        %v2381 = vrot.slane %v2379, 4
        %v2382 = vshll.u32 %v2246, 16
        %v2384 = vrot.slane %v2382, 5
        %v2385 = vor.u32 %v2381, %v2384
        %v2386 = vrot.slane %v2385, 4
        %v2388 = vshll.u32 %v2247, 16
        %v2390 = vrot.slane %v2388, 5
        %v2391 = vsel %vm1132, %v2386, %v2390
        %v2392 = vshrl.u32 %v2247, 16
        %v2394 = vrot.slane %v2392, 4
        %v2395 = vor.u32 %v2394, %v2390
        %v2396 = vrot.slane %v2395, 4
        %v2398 = vshll.u32 %v2248, 16
        %v2400 = vrot.slane %v2398, 5
        %v2401 = vsel %vm1132, %v2396, %v2400
        %v2403 = vshrl.u32 %v2249, 16
        %v2405 = vrot.slane %v2403, 4
        %v2406 = vshll.u32 %v2249, 16
        %v2408 = vrot.slane %v2406, 5
        %v2409 = vor.u32 %v2405, %v2408
        %v2410 = vrot.slane %v2409, 4
        %v2412 = vshll.u32 %v2250, 16
        %v2414 = vrot.slane %v2412, 5
        %v2415 = vsel %vm1132, %v2410, %v2414
        %v2416 = vshrl.u32 %v2250, 16
        %v2418 = vrot.slane %v2416, 4
        %v2419 = vor.u32 %v2418, %v2414
        %v2420 = vrot.slane %v2419, 4
        %v2422 = vshll.u32 %v2251, 16
        %v2424 = vrot.slane %v2422, 5
        %v2425 = vsel %vm1132, %v2420, %v2424
        %v2427 = vshrl.u32 %v2252, 16
        %v2429 = vrot.slane %v2427, 4
        %v2430 = vshll.u32 %v2252, 16
        %v2432 = vrot.slane %v2430, 5
        %v2433 = vor.u32 %v2429, %v2432
        %v2434 = vrot.slane %v2433, 4
        %v2436 = vshll.u32 %v2253, 16
        %v2438 = vrot.slane %v2436, 5
        %v2439 = vsel %vm1132, %v2434, %v2438
        %v2440 = vshrl.u32 %v2253, 16
        %v2442 = vrot.slane %v2440, 4
        %v2443 = vor.u32 %v2442, %v2438
        %v2444 = vrot.slane %v2443, 4
        %v2446 = vshll.u32 %v2254, 16
        %v2448 = vrot.slane %v2446, 5
        %v2449 = vsel %vm1132, %v2444, %v2448
        %v2451 = vshrl.u32 %v2255, 16
        %v2453 = vrot.slane %v2451, 4
        %v2454 = vshll.u32 %v2255, 16
        %v2456 = vrot.slane %v2454, 5
        %v2457 = vor.u32 %v2453, %v2456
        %v2458 = vrot.slane %v2457, 4
        %v2460 = vshll.u32 %v2256, 16
        %v2462 = vrot.slane %v2460, 5
        %v2463 = vsel %vm1132, %v2458, %v2462
        %v2464 = vshrl.u32 %v2256, 16
        %v2466 = vrot.slane %v2464, 4
        %v2467 = vor.u32 %v2466, %v2462
        %v2468 = vrot.slane %v2467, 4
        %v2470 = vshll.u32 %v2257, 16
        %v2472 = vrot.slane %v2470, 5
        %v2473 = vsel %vm1132, %v2468, %v2472
        %v2475 = vshrl.u32 %v2258, 16
        %v2477 = vrot.slane %v2475, 4
        %v2478 = vshll.u32 %v2258, 16
        %v2480 = vrot.slane %v2478, 5
        %v2481 = vor.u32 %v2477, %v2480
        %v2482 = vrot.slane %v2481, 4
        %v2484 = vshll.u32 %v2259, 16
        %v2486 = vrot.slane %v2484, 5
        %v2487 = vsel %vm1132, %v2482, %v2486
        %v2488 = vshrl.u32 %v2259, 16
        %v2490 = vrot.slane %v2488, 4
        %v2491 = vor.u32 %v2490, %v2486
        %v2492 = vrot.slane %v2491, 4
        %v2494 = vshll.u32 %v2260, 16
        %v2496 = vrot.slane %v2494, 5
        %v2497 = vsel %vm1132, %v2492, %v2496
        %v2499 = vshrl.u32 %v2261, 16
        %v2501 = vrot.slane %v2499, 4
        %v2502 = vshll.u32 %v2261, 16
        %v2504 = vrot.slane %v2502, 5
        %v2505 = vor.u32 %v2501, %v2504
        %v2506 = vrot.slane %v2505, 4
        %v2508 = vshll.u32 %v2262, 16
        %v2510 = vrot.slane %v2508, 5
        %v2511 = vsel %vm1132, %v2506, %v2510
        %v2512 = vshrl.u32 %v2262, 16
        %v2514 = vrot.slane %v2512, 4
        %v2515 = vor.u32 %v2514, %v2510
        %v2516 = vrot.slane %v2515, 4
        %v2518 = vshll.u32 %v2263, 16
        %v2520 = vrot.slane %v2518, 5
        %v2521 = vsel %vm1132, %v2516, %v2520
        %v2523 = vshrl.u32 %v2264, 16
        %v2525 = vrot.slane %v2523, 4
        %v2526 = vshll.u32 %v2264, 16
        %v2528 = vrot.slane %v2526, 5
        %v2529 = vor.u32 %v2525, %v2528
        %v2530 = vrot.slane %v2529, 4
        %v2532 = vshll.u32 %v2265, 16
        %v2534 = vrot.slane %v2532, 5
        %v2535 = vsel %vm1132, %v2530, %v2534
        %v2536 = vshrl.u32 %v2265, 16
        %v2538 = vrot.slane %v2536, 4
        %v2539 = vor.u32 %v2538, %v2534
        %v2540 = vrot.slane %v2539, 4
        %v2542 = vshll.u32 %v2266, 16
        %v2544 = vrot.slane %v2542, 5
        %v2545 = vsel %vm1132, %v2540, %v2544
        %v2547 = vshrl.u32 %v2267, 16
        %v2549 = vrot.slane %v2547, 4
        %v2550 = vshll.u32 %v2267, 16
        %v2552 = vrot.slane %v2550, 5
        %v2553 = vor.u32 %v2549, %v2552
        %v2554 = vrot.slane %v2553, 4
        %v2556 = vshll.u32 %v2268, 16
        %v2558 = vrot.slane %v2556, 5
        %v2559 = vsel %vm1132, %v2554, %v2558
        %v2560 = vshrl.u32 %v2268, 16
        %v2562 = vrot.slane %v2560, 4
        %v2563 = vor.u32 %v2562, %v2558
        %v2564 = vrot.slane %v2563, 4
        %v2566 = vshll.u32 %v2269, 16
        %v2568 = vrot.slane %v2566, 5
        %v2569 = vsel %vm1132, %v2564, %v2568
        %v2571 = vshrl.u32 %v2270, 16
        %v2573 = vrot.slane %v2571, 4
        %v2574 = vshll.u32 %v2270, 16
        %v2576 = vrot.slane %v2574, 5
        %v2577 = vor.u32 %v2573, %v2576
        %v2578 = vrot.slane %v2577, 4
        %v2580 = vshll.u32 %v2271, 16
        %v2582 = vrot.slane %v2580, 5
        %v2583 = vsel %vm1132, %v2578, %v2582
        %v2584 = vshrl.u32 %v2271, 16
        %v2586 = vrot.slane %v2584, 4
        %v2587 = vor.u32 %v2586, %v2582
        %v2588 = vrot.slane %v2587, 4
        %v2590 = vshll.u32 %v2272, 16
        %v2592 = vrot.slane %v2590, 5
        %v2593 = vsel %vm1132, %v2588, %v2592
        %v2595 = vshrl.u32 %v2273, 16
        %v2597 = vrot.slane %v2595, 4
        %v2598 = vshll.u32 %v2273, 16
        %v2600 = vrot.slane %v2598, 5
        %v2601 = vor.u32 %v2597, %v2600
        %v2602 = vrot.slane %v2601, 4
        %v2604 = vshll.u32 %v2274, 16
        %v2606 = vrot.slane %v2604, 5
        %v2607 = vsel %vm1132, %v2602, %v2606
        %v2608 = vshrl.u32 %v2274, 16
        %v2610 = vrot.slane %v2608, 4
        %v2611 = vor.u32 %v2610, %v2606
        %v2612 = vrot.slane %v2611, 4
        %v2614 = vshll.u32 %v2275, 16
        %v2616 = vrot.slane %v2614, 5
        %v2617 = vsel %vm1132, %v2612, %v2616
        %v2619 = vshrl.u32 %v2276, 16
        %v2621 = vrot.slane %v2619, 4
        %v2622 = vshll.u32 %v2276, 16
        %v2624 = vrot.slane %v2622, 5
        %v2625 = vor.u32 %v2621, %v2624
        %v2626 = vrot.slane %v2625, 4
        %v2628 = vshll.u32 %v2277, 16
        %v2630 = vrot.slane %v2628, 5
        %v2631 = vsel %vm1132, %v2626, %v2630
        %v2632 = vshrl.u32 %v2277, 16
        %v2634 = vrot.slane %v2632, 4
        %v2635 = vor.u32 %v2634, %v2630
        %v2636 = vrot.slane %v2635, 4
        %v2638 = vshll.u32 %v2278, 16
        %v2640 = vrot.slane %v2638, 5
        %v2641 = vsel %vm1132, %v2636, %v2640
        %v2643 = vshrl.u32 %v2279, 16
        %v2645 = vrot.slane %v2643, 4
        %v2646 = vshll.u32 %v2279, 16
        %v2648 = vrot.slane %v2646, 5
        %v2649 = vor.u32 %v2645, %v2648
        %v2650 = vrot.slane %v2649, 4
        %v2652 = vshll.u32 %v2280, 16
        %v2654 = vrot.slane %v2652, 5
        %v2655 = vsel %vm1132, %v2650, %v2654
        %v2656 = vshrl.u32 %v2280, 16
        %v2658 = vrot.slane %v2656, 4
        %v2659 = vor.u32 %v2658, %v2654
        %v2660 = vrot.slane %v2659, 4
        %v2662 = vshll.u32 %v2281, 16
        %v2664 = vrot.slane %v2662, 5
        %v2665 = vsel %vm1132, %v2660, %v2664
        %v2714 = vrot.slane %v2234, 5
        %v2715 = vrot.slane %v2714, 4
        %v2716 = vrot.slane %v2235, 5
        %v2717 = vsel %vm1567, %v2715, %v2716
        %v2718 = vrot.slane %v2716, 4
        %v2719 = vrot.slane %v2236, 5
        %v2720 = vsel %vm1567, %v2718, %v2719
        %v2721 = vrot.slane %v2237, 5
        %v2722 = vrot.slane %v2721, 4
        %v2723 = vrot.slane %v2238, 5
        %v2724 = vsel %vm1567, %v2722, %v2723
        %v2725 = vrot.slane %v2723, 4
        %v2726 = vrot.slane %v2239, 5
        %v2727 = vsel %vm1567, %v2725, %v2726
        %v2728 = vrot.slane %v2240, 5
        %v2729 = vrot.slane %v2728, 4
        %v2730 = vrot.slane %v2241, 5
        %v2731 = vsel %vm1567, %v2729, %v2730
        %v2732 = vrot.slane %v2730, 4
        %v2733 = vrot.slane %v2242, 5
        %v2734 = vsel %vm1567, %v2732, %v2733
        %v2735 = vrot.slane %v2243, 5
        %v2736 = vrot.slane %v2735, 4
        %v2737 = vrot.slane %v2244, 5
        %v2738 = vsel %vm1567, %v2736, %v2737
        %v2739 = vrot.slane %v2737, 4
        %v2740 = vrot.slane %v2245, 5
        %v2741 = vsel %vm1567, %v2739, %v2740
        %v2742 = vrot.slane %v2246, 5
        %v2743 = vrot.slane %v2742, 4
        %v2744 = vrot.slane %v2247, 5
        %v2745 = vsel %vm1567, %v2743, %v2744
        %v2746 = vrot.slane %v2744, 4
        %v2747 = vrot.slane %v2248, 5
        %v2748 = vsel %vm1567, %v2746, %v2747
        %v2749 = vrot.slane %v2249, 5
        %v2750 = vrot.slane %v2749, 4
        %v2751 = vrot.slane %v2250, 5
        %v2752 = vsel %vm1567, %v2750, %v2751
        %v2753 = vrot.slane %v2751, 4
        %v2754 = vrot.slane %v2251, 5
        %v2755 = vsel %vm1567, %v2753, %v2754
        %v2756 = vrot.slane %v2252, 5
        %v2757 = vrot.slane %v2756, 4
        %v2758 = vrot.slane %v2253, 5
        %v2759 = vsel %vm1567, %v2757, %v2758
        %v2760 = vrot.slane %v2758, 4
        %v2761 = vrot.slane %v2254, 5
        %v2762 = vsel %vm1567, %v2760, %v2761
        %v2763 = vrot.slane %v2255, 5
        %v2764 = vrot.slane %v2763, 4
        %v2765 = vrot.slane %v2256, 5
        %v2766 = vsel %vm1567, %v2764, %v2765
        %v2767 = vrot.slane %v2765, 4
        %v2768 = vrot.slane %v2257, 5
        %v2769 = vsel %vm1567, %v2767, %v2768
        %v2770 = vrot.slane %v2258, 5
        %v2771 = vrot.slane %v2770, 4
        %v2772 = vrot.slane %v2259, 5
        %v2773 = vsel %vm1567, %v2771, %v2772
        %v2774 = vrot.slane %v2772, 4
        %v2775 = vrot.slane %v2260, 5
        %v2776 = vsel %vm1567, %v2774, %v2775
        %v2777 = vrot.slane %v2261, 5
        %v2778 = vrot.slane %v2777, 4
        %v2779 = vrot.slane %v2262, 5
        %v2780 = vsel %vm1567, %v2778, %v2779
        %v2781 = vrot.slane %v2779, 4
        %v2782 = vrot.slane %v2263, 5
        %v2783 = vsel %vm1567, %v2781, %v2782
        %v2784 = vrot.slane %v2264, 5
        %v2785 = vrot.slane %v2784, 4
        %v2786 = vrot.slane %v2265, 5
        %v2787 = vsel %vm1567, %v2785, %v2786
        %v2788 = vrot.slane %v2786, 4
        %v2789 = vrot.slane %v2266, 5
        %v2790 = vsel %vm1567, %v2788, %v2789
        %v2791 = vrot.slane %v2267, 5
        %v2792 = vrot.slane %v2791, 4
        %v2793 = vrot.slane %v2268, 5
        %v2794 = vsel %vm1567, %v2792, %v2793
        %v2795 = vrot.slane %v2793, 4
        %v2796 = vrot.slane %v2269, 5
        %v2797 = vsel %vm1567, %v2795, %v2796
        %v2798 = vrot.slane %v2270, 5
        %v2799 = vrot.slane %v2798, 4
        %v2800 = vrot.slane %v2271, 5
        %v2801 = vsel %vm1567, %v2799, %v2800
        %v2802 = vrot.slane %v2800, 4
        %v2803 = vrot.slane %v2272, 5
        %v2804 = vsel %vm1567, %v2802, %v2803
        %v2805 = vrot.slane %v2273, 5
        %v2806 = vrot.slane %v2805, 4
        %v2807 = vrot.slane %v2274, 5
        %v2808 = vsel %vm1567, %v2806, %v2807
        %v2809 = vrot.slane %v2807, 4
        %v2810 = vrot.slane %v2275, 5
        %v2811 = vsel %vm1567, %v2809, %v2810
        %v2812 = vrot.slane %v2276, 5
        %v2813 = vrot.slane %v2812, 4
        %v2814 = vrot.slane %v2277, 5
        %v2815 = vsel %vm1567, %v2813, %v2814
        %v2816 = vrot.slane %v2814, 4
        %v2817 = vrot.slane %v2278, 5
        %v2818 = vsel %vm1567, %v2816, %v2817
        %v2819 = vrot.slane %v2279, 5
        %v2820 = vrot.slane %v2819, 4
        %v2821 = vrot.slane %v2280, 5
        %v2822 = vsel %vm1567, %v2820, %v2821
        %v2823 = vrot.slane %v2821, 4
        %v2824 = vrot.slane %v2281, 5
        %v2825 = vsel %vm1567, %v2823, %v2824
        %v2826 = vunpack.c.l.b16 %v2234
        %v2827 = vunpack.c.l.b16 %v2235
        %v2828 = vunpack.c.l.b16 %v2237
        %v2829 = vunpack.c.l.b16 %v2238
        %v2830 = vunpack.c.l.b16 %v2240
        %v2831 = vunpack.c.l.b16 %v2241
        %v2832 = vunpack.c.l.b16 %v2243
        %v2833 = vunpack.c.l.b16 %v2244
        %v2834 = vunpack.c.l.b16 %v2246
        %v2835 = vunpack.c.l.b16 %v2247
        %v2836 = vunpack.c.l.b16 %v2249
        %v2837 = vunpack.c.l.b16 %v2250
        %v2838 = vunpack.c.l.b16 %v2252
        %v2839 = vunpack.c.l.b16 %v2253
        %v2840 = vunpack.c.l.b16 %v2255
        %v2841 = vunpack.c.l.b16 %v2256
        %v2842 = vunpack.c.l.b16 %v2258
        %v2843 = vunpack.c.l.b16 %v2259
        %v2844 = vunpack.c.l.b16 %v2261
        %v2845 = vunpack.c.l.b16 %v2262
        %v2846 = vunpack.c.l.b16 %v2264
        %v2847 = vunpack.c.l.b16 %v2265
        %v2848 = vunpack.c.l.b16 %v2267
        %v2849 = vunpack.c.l.b16 %v2268
        %v2850 = vunpack.c.l.b16 %v2270
        %v2851 = vunpack.c.l.b16 %v2271
        %v2852 = vunpack.c.l.b16 %v2273
        %v2853 = vunpack.c.l.b16 %v2274
        %v2854 = vunpack.c.l.b16 %v2276
        %v2855 = vunpack.c.l.b16 %v2277
        %v2856 = vunpack.c.l.b16 %v2279
        %v2857 = vunpack.c.l.b16 %v2280
        %v2858 = vpack.c.b16 %v2827, %v2826
        %v2859 = vpack.c.b16 %v2829, %v2828
        %v2860 = vpack.c.b16 %v2831, %v2830
        %v2861 = vpack.c.b16 %v2833, %v2832
        %v2862 = vpack.c.b16 %v2835, %v2834
        %v2863 = vpack.c.b16 %v2837, %v2836
        %v2864 = vpack.c.b16 %v2839, %v2838
        %v2865 = vpack.c.b16 %v2841, %v2840
        %v2866 = vpack.c.b16 %v2843, %v2842
        %v2867 = vpack.c.b16 %v2845, %v2844
        %v2868 = vpack.c.b16 %v2847, %v2846
        %v2869 = vpack.c.b16 %v2849, %v2848
        %v2870 = vpack.c.b16 %v2851, %v2850
        %v2871 = vpack.c.b16 %v2853, %v2852
        %v2872 = vpack.c.b16 %v2855, %v2854
        %v2873 = vpack.c.b16 %v2857, %v2856
        %v2874 = vunpack.c.l.b16 %v2295
        %v2875 = vunpack.c.l.b16 %v2305
        %v2876 = vunpack.c.l.b16 %v2319
        %v2877 = vunpack.c.l.b16 %v2329
        %v2878 = vunpack.c.l.b16 %v2343
        %v2879 = vunpack.c.l.b16 %v2353
        %v2880 = vunpack.c.l.b16 %v2367
        %v2881 = vunpack.c.l.b16 %v2377
        %v2882 = vunpack.c.l.b16 %v2391
        %v2883 = vunpack.c.l.b16 %v2401
        %v2884 = vunpack.c.l.b16 %v2415
        %v2885 = vunpack.c.l.b16 %v2425
        %v2886 = vunpack.c.l.b16 %v2439
        %v2887 = vunpack.c.l.b16 %v2449
        %v2888 = vunpack.c.l.b16 %v2463
        %v2889 = vunpack.c.l.b16 %v2473
        %v2890 = vunpack.c.l.b16 %v2487
        %v2891 = vunpack.c.l.b16 %v2497
        %v2892 = vunpack.c.l.b16 %v2511
        %v2893 = vunpack.c.l.b16 %v2521
        %v2894 = vunpack.c.l.b16 %v2535
        %v2895 = vunpack.c.l.b16 %v2545
        %v2896 = vunpack.c.l.b16 %v2559
        %v2897 = vunpack.c.l.b16 %v2569
        %v2898 = vunpack.c.l.b16 %v2583
        %v2899 = vunpack.c.l.b16 %v2593
        %v2900 = vunpack.c.l.b16 %v2607
        %v2901 = vunpack.c.l.b16 %v2617
        %v2902 = vunpack.c.l.b16 %v2631
        %v2903 = vunpack.c.l.b16 %v2641
        %v2904 = vunpack.c.l.b16 %v2655
        %v2905 = vunpack.c.l.b16 %v2665
        %v2906 = vpack.c.b16 %v2875, %v2874
        %v2907 = vpack.c.b16 %v2877, %v2876
        %v2908 = vpack.c.b16 %v2879, %v2878
        %v2909 = vpack.c.b16 %v2881, %v2880
        %v2910 = vpack.c.b16 %v2883, %v2882
        %v2911 = vpack.c.b16 %v2885, %v2884
        %v2912 = vpack.c.b16 %v2887, %v2886
        %v2913 = vpack.c.b16 %v2889, %v2888
        %v2914 = vpack.c.b16 %v2891, %v2890
        %v2915 = vpack.c.b16 %v2893, %v2892
        %v2916 = vpack.c.b16 %v2895, %v2894
        %v2917 = vpack.c.b16 %v2897, %v2896
        %v2918 = vpack.c.b16 %v2899, %v2898
        %v2919 = vpack.c.b16 %v2901, %v2900
        %v2920 = vpack.c.b16 %v2903, %v2902
        %v2921 = vpack.c.b16 %v2905, %v2904
        %2922 = vrot.lane.b32.xlu0 %v2906, 64
        %v2923 = vpop.permute.xlu0 %2922
        %2924 = vrot.lane.b32.xlu0 %v2907, 64
        %v2925 = vpop.permute.xlu0 %2924
        %2926 = vrot.lane.b32.xlu0 %v2908, 64
        %v2927 = vpop.permute.xlu0 %2926
        %2928 = vrot.lane.b32.xlu0 %v2909, 64
        %v2929 = vpop.permute.xlu0 %2928
        %2930 = vrot.lane.b32.xlu0 %v2910, 64
        %v2931 = vpop.permute.xlu0 %2930
        %2932 = vrot.lane.b32.xlu0 %v2911, 64
        %v2933 = vpop.permute.xlu0 %2932
        %2934 = vrot.lane.b32.xlu0 %v2912, 64
        %v2935 = vpop.permute.xlu0 %2934
        %2936 = vrot.lane.b32.xlu0 %v2913, 64
        %v2937 = vpop.permute.xlu0 %2936
        %2938 = vrot.lane.b32.xlu0 %v2914, 64
        %v2939 = vpop.permute.xlu0 %2938
        %2940 = vrot.lane.b32.xlu0 %v2915, 64
        %v2941 = vpop.permute.xlu0 %2940
        %2942 = vrot.lane.b32.xlu0 %v2916, 64
        %v2943 = vpop.permute.xlu0 %2942
        %2944 = vrot.lane.b32.xlu0 %v2917, 64
        %v2945 = vpop.permute.xlu0 %2944
        %2946 = vrot.lane.b32.xlu0 %v2918, 64
        %v2947 = vpop.permute.xlu0 %2946
        %2948 = vrot.lane.b32.xlu0 %v2919, 64
        %v2949 = vpop.permute.xlu0 %2948
        %2950 = vrot.lane.b32.xlu0 %v2920, 64
        %v2951 = vpop.permute.xlu0 %2950
        %2952 = vrot.lane.b32.xlu0 %v2921, 64
        %v2953 = vpop.permute.xlu0 %2952
        %v2954 = vunpack.c.l.b16 %v2717
        %v2955 = vunpack.c.l.b16 %v2720
        %v2956 = vunpack.c.l.b16 %v2724
        %v2957 = vunpack.c.l.b16 %v2727
        %v2958 = vunpack.c.l.b16 %v2731
        %v2959 = vunpack.c.l.b16 %v2734
        %v2960 = vunpack.c.l.b16 %v2738
        %v2961 = vunpack.c.l.b16 %v2741
        %v2962 = vunpack.c.l.b16 %v2745
        %v2963 = vunpack.c.l.b16 %v2748
        %v2964 = vunpack.c.l.b16 %v2752
        %v2965 = vunpack.c.l.b16 %v2755
        %v2966 = vunpack.c.l.b16 %v2759
        %v2967 = vunpack.c.l.b16 %v2762
        %v2968 = vunpack.c.l.b16 %v2766
        %v2969 = vunpack.c.l.b16 %v2769
        %v2970 = vunpack.c.l.b16 %v2773
        %v2971 = vunpack.c.l.b16 %v2776
        %v2972 = vunpack.c.l.b16 %v2780
        %v2973 = vunpack.c.l.b16 %v2783
        %v2974 = vunpack.c.l.b16 %v2787
        %v2975 = vunpack.c.l.b16 %v2790
        %v2976 = vunpack.c.l.b16 %v2794
        %v2977 = vunpack.c.l.b16 %v2797
        %v2978 = vunpack.c.l.b16 %v2801
        %v2979 = vunpack.c.l.b16 %v2804
        %v2980 = vunpack.c.l.b16 %v2808
        %v2981 = vunpack.c.l.b16 %v2811
        %v2982 = vunpack.c.l.b16 %v2815
        %v2983 = vunpack.c.l.b16 %v2818
        %v2984 = vunpack.c.l.b16 %v2822
        %v2985 = vunpack.c.l.b16 %v2825
        %v2986 = vpack.c.b16 %v2955, %v2954
        %v2987 = vpack.c.b16 %v2957, %v2956
        %v2988 = vpack.c.b16 %v2959, %v2958
        %v2989 = vpack.c.b16 %v2961, %v2960
        %v2990 = vpack.c.b16 %v2963, %v2962
        %v2991 = vpack.c.b16 %v2965, %v2964
        %v2992 = vpack.c.b16 %v2967, %v2966
        %v2993 = vpack.c.b16 %v2969, %v2968
        %v2994 = vpack.c.b16 %v2971, %v2970
        %v2995 = vpack.c.b16 %v2973, %v2972
        %v2996 = vpack.c.b16 %v2975, %v2974
        %v2997 = vpack.c.b16 %v2977, %v2976
        %v2998 = vpack.c.b16 %v2979, %v2978
        %v2999 = vpack.c.b16 %v2981, %v2980
        %v3000 = vpack.c.b16 %v2983, %v2982
        %v3001 = vpack.c.b16 %v2985, %v2984
        %v3004 = vsel %vm1856, %v2858, %v2923
        %v3008 = vsel %vm1856, %v2859, %v2925
        %v3012 = vsel %vm1856, %v2860, %v2927
        %v3016 = vsel %vm1856, %v2861, %v2929
        %v3020 = vsel %vm1856, %v2862, %v2931
        %v3024 = vsel %vm1856, %v2863, %v2933
        %v3028 = vsel %vm1856, %v2864, %v2935
        %v3032 = vsel %vm1856, %v2865, %v2937
        %v3036 = vsel %vm1856, %v2866, %v2939
        %v3040 = vsel %vm1856, %v2867, %v2941
        %v3044 = vsel %vm1856, %v2868, %v2943
        %v3048 = vsel %vm1856, %v2869, %v2945
        %v3052 = vsel %vm1856, %v2870, %v2947
        %v3056 = vsel %vm1856, %v2871, %v2949
        %v3060 = vsel %vm1856, %v2872, %v2951
        %v3064 = vsel %vm1856, %v2873, %v2953
        %v3090 = vunpack.c.l.b16 %v954
        %v3091 = vunpack.c.l.b16 %v955
        %v3092 = vunpack.c.l.b16 %v956
        %v3093 = vunpack.c.l.b16 %v957
        %v3094 = vunpack.c.l.b16 %v958
        %v3095 = vunpack.c.l.b16 %v959
        %v3096 = vunpack.c.l.b16 %v960
        %v3097 = vunpack.c.l.b16 %v961
        %v3098 = vunpack.c.l.b16 %v962
        %v3099 = vunpack.c.l.b16 %v963
        %v3100 = vunpack.c.l.b16 %v964
        %v3101 = vunpack.c.l.b16 %v965
        %v3102 = vunpack.c.l.b16 %v966
        %v3103 = vunpack.c.l.b16 %v967
        %v3104 = vunpack.c.l.b16 %v968
        %v3105 = vunpack.c.l.b16 %v969
        %v3106 = vunpack.c.l.b16 %v970
        %v3107 = vunpack.c.l.b16 %v971
        %v3108 = vunpack.c.l.b16 %v972
        %v3109 = vunpack.c.l.b16 %v973
        %v3110 = vunpack.c.l.b16 %v974
        %v3111 = vunpack.c.l.b16 %v975
        %v3112 = vunpack.c.l.b16 %v976
        %v3113 = vunpack.c.l.b16 %v977
        %v3114 = vpack.c.b16 %v3091, %v3090
        %v3115 = vpack.c.b16 %v3093, %v3092
        %v3116 = vpack.c.b16 %v3095, %v3094
        %v3117 = vpack.c.b16 %v3097, %v3096
        %v3118 = vpack.c.b16 %v3099, %v3098
        %v3119 = vpack.c.b16 %v3101, %v3100
        %v3120 = vpack.c.b16 %v3103, %v3102
        %v3121 = vpack.c.b16 %v3105, %v3104
        %v3122 = vpack.c.b16 %v3107, %v3106
        %v3123 = vpack.c.b16 %v3109, %v3108
        %v3124 = vpack.c.b16 %v3111, %v3110
        %v3125 = vpack.c.b16 %v3113, %v3112
        %v3139 = vsel %vm1856, %v2986, 0
        %v3142 = vsel %vm1856, %v2987, 0
        %v3145 = vsel %vm1856, %v2988, 0
        %v3148 = vsel %vm1856, %v2989, 0
        %v3151 = vsel %vm1856, %v2990, 0
        %v3154 = vsel %vm1856, %v2991, 0
        %v3157 = vsel %vm1856, %v2992, 0
        %v3160 = vsel %vm1856, %v2993, 0
        %v3163 = vsel %vm1856, %v2994, 0
        %v3166 = vsel %vm1856, %v2995, 0
        %v3169 = vsel %vm1856, %v2996, 0
        %v3172 = vsel %vm1856, %v2997, 0
        %v3175 = vsel %vm1856, %v2998, 0
        %v3178 = vsel %vm1856, %v2999, 0
        %v3181 = vsel %vm1856, %v3000, 0
        %v3184 = vsel %vm1856, %v3001, 0
        %3186 = vmatprep.subr.bf16.mxu0 0
        %3187 = vmatpush1.bf16.msra.mxu0 %v3121
        %3188 = vmatprep.subr.bf16.mxu0 0
        %3189 = vmatpush1.bf16.msra.mxu0 %v3120
        %3190 = vmatprep.subr.bf16.mxu0 0
        %3191 = vmatpush1.bf16.msra.mxu0 %v3119
        %3192 = vmatprep.subr.bf16.mxu0 0
        %3193 = vmatpush1.bf16.msra.mxu0 %v3118
        %3194 = vmatprep.subr.bf16.mxu0 0
        %3195 = vmatpush1.bf16.msra.mxu0 %v3117
        %3196 = vmatprep.subr.bf16.mxu0 0
        %3197 = vmatpush1.bf16.msra.mxu0 %v3116
        %3198 = vmatprep.subr.bf16.mxu0 0
        %3199 = vmatpush1.bf16.msra.mxu0 %v3115
        %3200 = vmatprep.subr.bf16.mxu0 0
        %3201 = vmatpush1.bf16.msra.mxu0 %v3114
        %3202 = vmatprep.subr.bf16.mxu0 0
        %3203 = vmatpush2.bf16.msra.mxu0 0
        %3204 = vmatprep.subr.bf16.mxu0 0
        %3205 = vmatpush2.bf16.msra.mxu0 0
        %3206 = vmatprep.subr.bf16.mxu0 0
        %3207 = vmatpush2.bf16.msra.mxu0 0
        %3208 = vmatprep.subr.bf16.mxu0 0
        %3209 = vmatpush2.bf16.msra.mxu0 0
        %3210 = vmatprep.subr.bf16.mxu0 0
        %3211 = vmatpush2.bf16.msra.mxu0 %v3125
        %3212 = vmatprep.subr.bf16.mxu0 0
        %3213 = vmatpush2.bf16.msra.mxu0 %v3124
        %3214 = vmatprep.subr.bf16.mxu0 0
        %3215 = vmatpush2.bf16.msra.mxu0 %v3123
        %3216 = vmatprep.subr.bf16.mxu0 0
        %3217 = vmatpush2.bf16.msra.mxu0 %v3122
        %3218 = vmatprep.mubr.bf16.mxu0 %v3139
        %3219 = vmatmul.mubr.bf16.gmra.mxu0 %v3004
        %v3220 = vpop.f32.mrf.mxu0
        %v3221 = vadd.f32 0.0, %v3220
        %v3222 = vpop.f32.mrf.mxu0
        %v3223 = vpop.f32.mrf.mxu0
        %v3224 = vadd.f32 0.0, %v3223
        %v3225 = vpop.f32.mrf.mxu0
        %3226 = vmatprep.mubr.bf16.mxu0 %v3142
        %3227 = vmatmul.mubr.bf16.gmra.mxu0 %v3008
        %v3228 = vpop.f32.mrf.mxu0
        %v3229 = vadd.f32 0.0, %v3228
        %v3230 = vpop.f32.mrf.mxu0
        %v3231 = vpop.f32.mrf.mxu0
        %v3232 = vadd.f32 0.0, %v3231
        %v3233 = vpop.f32.mrf.mxu0
        %3234 = vmatprep.mubr.bf16.mxu0 %v3145
        %3235 = vmatmul.mubr.bf16.gmra.mxu0 %v3012
        %v3236 = vpop.f32.mrf.mxu0
        %v3237 = vadd.f32 0.0, %v3236
        %v3238 = vpop.f32.mrf.mxu0
        %v3239 = vpop.f32.mrf.mxu0
        %v3240 = vadd.f32 0.0, %v3239
        %v3241 = vpop.f32.mrf.mxu0
        %3242 = vmatprep.mubr.bf16.mxu0 %v3148
        %3243 = vmatmul.mubr.bf16.gmra.mxu0 %v3016
        %v3244 = vpop.f32.mrf.mxu0
        %v3245 = vadd.f32 0.0, %v3244
        %v3246 = vpop.f32.mrf.mxu0
        %v3247 = vpop.f32.mrf.mxu0
        %v3248 = vadd.f32 0.0, %v3247
        %v3249 = vpop.f32.mrf.mxu0
        %3250 = vmatprep.mubr.bf16.mxu0 %v3151
        %3251 = vmatmul.mubr.bf16.gmra.mxu0 %v3020
        %v3252 = vpop.f32.mrf.mxu0
        %v3253 = vadd.f32 0.0, %v3252
        %v3254 = vpop.f32.mrf.mxu0
        %v3255 = vpop.f32.mrf.mxu0
        %v3256 = vadd.f32 0.0, %v3255
        %v3257 = vpop.f32.mrf.mxu0
        %3258 = vmatprep.mubr.bf16.mxu0 %v3154
        %3259 = vmatmul.mubr.bf16.gmra.mxu0 %v3024
        %v3260 = vpop.f32.mrf.mxu0
        %v3261 = vadd.f32 0.0, %v3260
        %v3262 = vpop.f32.mrf.mxu0
        %v3263 = vpop.f32.mrf.mxu0
        %v3264 = vadd.f32 0.0, %v3263
        %v3265 = vpop.f32.mrf.mxu0
        %3266 = vmatprep.mubr.bf16.mxu0 %v3157
        %3267 = vmatmul.mubr.bf16.gmra.mxu0 %v3028
        %v3268 = vpop.f32.mrf.mxu0
        %v3269 = vadd.f32 0.0, %v3268
        %v3270 = vpop.f32.mrf.mxu0
        %v3271 = vpop.f32.mrf.mxu0
        %v3272 = vadd.f32 0.0, %v3271
        %v3273 = vpop.f32.mrf.mxu0
        %3274 = vmatprep.mubr.bf16.mxu0 %v3160
        %3275 = vmatmul.mubr.bf16.gmra.mxu0 %v3032
        %v3276 = vpop.f32.mrf.mxu0
        %v3277 = vadd.f32 0.0, %v3276
        %v3278 = vpop.f32.mrf.mxu0
        %v3279 = vpop.f32.mrf.mxu0
        %v3280 = vadd.f32 0.0, %v3279
        %v3281 = vpop.f32.mrf.mxu0
        %3282 = vmatprep.mubr.bf16.mxu0 %v3163
        %3283 = vmatmul.mubr.bf16.gmra.mxu0 %v3036
        %v3284 = vpop.f32.mrf.mxu0
        %v3285 = vadd.f32 0.0, %v3284
        %v3286 = vpop.f32.mrf.mxu0
        %v3287 = vpop.f32.mrf.mxu0
        %v3288 = vadd.f32 0.0, %v3287
        %v3289 = vpop.f32.mrf.mxu0
        %3290 = vmatprep.mubr.bf16.mxu0 %v3166
        %3291 = vmatmul.mubr.bf16.gmra.mxu0 %v3040
        %v3292 = vpop.f32.mrf.mxu0
        %v3293 = vadd.f32 0.0, %v3292
        %v3294 = vpop.f32.mrf.mxu0
        %v3295 = vpop.f32.mrf.mxu0
        %v3296 = vadd.f32 0.0, %v3295
        %v3297 = vpop.f32.mrf.mxu0
        %3298 = vmatprep.mubr.bf16.mxu0 %v3169
        %3299 = vmatmul.mubr.bf16.gmra.mxu0 %v3044
        %v3300 = vpop.f32.mrf.mxu0
        %v3301 = vadd.f32 0.0, %v3300
        %v3302 = vpop.f32.mrf.mxu0
        %v3303 = vpop.f32.mrf.mxu0
        %v3304 = vadd.f32 0.0, %v3303
        %v3305 = vpop.f32.mrf.mxu0
        %3306 = vmatprep.mubr.bf16.mxu0 %v3172
        %3307 = vmatmul.mubr.bf16.gmra.mxu0 %v3048
        %v3308 = vpop.f32.mrf.mxu0
        %v3309 = vadd.f32 0.0, %v3308
        %v3310 = vpop.f32.mrf.mxu0
        %v3311 = vpop.f32.mrf.mxu0
        %v3312 = vadd.f32 0.0, %v3311
        %v3313 = vpop.f32.mrf.mxu0
        %3314 = vmatprep.mubr.bf16.mxu0 %v3175
        %3315 = vmatmul.mubr.bf16.gmra.mxu0 %v3052
        %v3316 = vpop.f32.mrf.mxu0
        %v3317 = vadd.f32 0.0, %v3316
        %v3318 = vpop.f32.mrf.mxu0
        %v3319 = vpop.f32.mrf.mxu0
        %v3320 = vadd.f32 0.0, %v3319
        %v3321 = vpop.f32.mrf.mxu0
        %3322 = vmatprep.mubr.bf16.mxu0 %v3178
        %3323 = vmatmul.mubr.bf16.gmra.mxu0 %v3056
        %v3324 = vpop.f32.mrf.mxu0
        %v3325 = vadd.f32 0.0, %v3324
        %v3326 = vpop.f32.mrf.mxu0
        %v3327 = vpop.f32.mrf.mxu0
        %v3328 = vadd.f32 0.0, %v3327
        %v3329 = vpop.f32.mrf.mxu0
        %3330 = vmatprep.mubr.bf16.mxu0 %v3181
        %3331 = vmatmul.mubr.bf16.gmra.mxu0 %v3060
        %v3332 = vpop.f32.mrf.mxu0
        %v3333 = vadd.f32 0.0, %v3332
        %v3334 = vpop.f32.mrf.mxu0
        %v3335 = vpop.f32.mrf.mxu0
        %v3336 = vadd.f32 0.0, %v3335
        %v3337 = vpop.f32.mrf.mxu0
        %3338 = vmatprep.mubr.bf16.mxu0 %v3184
        %3339 = vmatmul.mubr.bf16.gmra.mxu0 %v3064
        %v3340 = vpop.f32.mrf.mxu0
        %v3341 = vadd.f32 0.0, %v3340
        %v3342 = vpop.f32.mrf.mxu0
        %v3343 = vpop.f32.mrf.mxu0
        %v3344 = vadd.f32 0.0, %v3343
        %v3345 = vpop.f32.mrf.mxu0
        %3346 = vdwg.mxu0
        %v3347 = vadd.f32 %v2202, %v3221
        %v3348 = vadd.f32 %v2203, %v3224
        %v3349 = vadd.f32 %v2204, %v3229
        %v3350 = vadd.f32 %v2205, %v3232
        %v3351 = vadd.f32 %v2206, %v3237
        %v3352 = vadd.f32 %v2207, %v3240
        %v3353 = vadd.f32 %v2208, %v3245
        %v3354 = vadd.f32 %v2209, %v3248
        %v3355 = vadd.f32 %v2210, %v3253
        %v3356 = vadd.f32 %v2211, %v3256
        %v3357 = vadd.f32 %v2212, %v3261
        %v3358 = vadd.f32 %v2213, %v3264
        %v3359 = vadd.f32 %v2214, %v3269
        %v3360 = vadd.f32 %v2215, %v3272
        %v3361 = vadd.f32 %v2216, %v3277
        %v3362 = vadd.f32 %v2217, %v3280
        %v3363 = vadd.f32 %v2218, %v3285
        %v3364 = vadd.f32 %v2219, %v3288
        %v3365 = vadd.f32 %v2220, %v3293
        %v3366 = vadd.f32 %v2221, %v3296
        %v3367 = vadd.f32 %v2222, %v3301
        %v3368 = vadd.f32 %v2223, %v3304
        %v3369 = vadd.f32 %v2224, %v3309
        %v3370 = vadd.f32 %v2225, %v3312
        %v3371 = vadd.f32 %v2226, %v3317
        %v3372 = vadd.f32 %v2227, %v3320
        %v3373 = vadd.f32 %v2228, %v3325
        %v3374 = vadd.f32 %v2229, %v3328
        %v3375 = vadd.f32 %v2230, %v3333
        %v3376 = vadd.f32 %v2231, %v3336
        %v3377 = vadd.f32 %v2232, %v3341
        %v3378 = vadd.f32 %v2233, %v3344
        %s3379 = scalar_lea.vmem [#allocation2], 24
        %v3380 = vld [vmem:[%s3379] sm:$0xf]
        %v3381 = vld [vmem:[%s3379 + $0x4] sm:$0xf]
        %v3382 = vld [vmem:[%s3379 + $0x8] sm:$0x1]
        %v3383 = vld [vmem:[%s3379 + $0xc] sm:$0xf]
        %v3384 = vld [vmem:[%s3379 + $0x10] sm:$0xf]
        %v3385 = vld [vmem:[%s3379 + $0x14] sm:$0x1]
        %v3386 = vld [vmem:[%s3379 + $0x18] sm:$0xf]
        %v3387 = vld [vmem:[%s3379 + $0x1c] sm:$0xf]
        %v3388 = vld [vmem:[%s3379 + $0x20] sm:$0x1]
        %v3389 = vld [vmem:[%s3379 + $0x24] sm:$0xf]
        %v3390 = vld [vmem:[%s3379 + $0x28] sm:$0xf]
        %v3391 = vld [vmem:[%s3379 + $0x2c] sm:$0x1]
        %v3392 = vld [vmem:[%s3379 + $0x30] sm:$0xf]
        %v3393 = vld [vmem:[%s3379 + $0x34] sm:$0xf]
        %v3394 = vld [vmem:[%s3379 + $0x38] sm:$0x1]
        %v3395 = vld [vmem:[%s3379 + $0x3c] sm:$0xf]
        %v3396 = vld [vmem:[%s3379 + $0x40] sm:$0xf]
        %v3397 = vld [vmem:[%s3379 + $0x44] sm:$0x1]
        %v3398 = vld [vmem:[%s3379 + $0x48] sm:$0xf]
        %v3399 = vld [vmem:[%s3379 + $0x4c] sm:$0xf]
        %v3400 = vld [vmem:[%s3379 + $0x50] sm:$0x1]
        %v3401 = vld [vmem:[%s3379 + $0x54] sm:$0xf]
        %v3402 = vld [vmem:[%s3379 + $0x58] sm:$0xf]
        %v3403 = vld [vmem:[%s3379 + $0x5c] sm:$0x1]
        %v3404 = vld [vmem:[%s3379 + $0x60] sm:$0xf]
        %v3405 = vld [vmem:[%s3379 + $0x64] sm:$0xf]
        %v3406 = vld [vmem:[%s3379 + $0x68] sm:$0x1]
        %v3407 = vld [vmem:[%s3379 + $0x6c] sm:$0xf]
        %v3408 = vld [vmem:[%s3379 + $0x70] sm:$0xf]
        %v3409 = vld [vmem:[%s3379 + $0x74] sm:$0x1]
        %v3410 = vld [vmem:[%s3379 + $0x78] sm:$0xf]
        %v3411 = vld [vmem:[%s3379 + $0x7c] sm:$0xf]
        %v3412 = vld [vmem:[%s3379 + $0x80] sm:$0x1]
        %v3413 = vld [vmem:[%s3379 + $0x84] sm:$0xf]
        %v3414 = vld [vmem:[%s3379 + $0x88] sm:$0xf]
        %v3415 = vld [vmem:[%s3379 + $0x8c] sm:$0x1]
        %v3416 = vld [vmem:[%s3379 + $0x90] sm:$0xf]
        %v3417 = vld [vmem:[%s3379 + $0x94] sm:$0xf]
        %v3418 = vld [vmem:[%s3379 + $0x98] sm:$0x1]
        %v3419 = vld [vmem:[%s3379 + $0x9c] sm:$0xf]
        %v3420 = vld [vmem:[%s3379 + $0xa0] sm:$0xf]
        %v3421 = vld [vmem:[%s3379 + $0xa4] sm:$0x1]
        %v3422 = vld [vmem:[%s3379 + $0xa8] sm:$0xf]
        %v3423 = vld [vmem:[%s3379 + $0xac] sm:$0xf]
        %v3424 = vld [vmem:[%s3379 + $0xb0] sm:$0x1]
        %v3425 = vld [vmem:[%s3379 + $0xb4] sm:$0xf]
        %v3426 = vld [vmem:[%s3379 + $0xb8] sm:$0xf]
        %v3427 = vld [vmem:[%s3379 + $0xbc] sm:$0x1]
        %v3429 = vshrl.u32 %v3380, 16
        %v3431 = vrot.slane %v3429, 4
        %v3432 = vshll.u32 %v3380, 16
        %v3434 = vrot.slane %v3432, 5
        %v3435 = vor.u32 %v3431, %v3434
        %v3436 = vrot.slane %v3435, 4
        %v3438 = vshll.u32 %v3381, 16
        %v3440 = vrot.slane %v3438, 5
        %v3441 = vsel %vm1132, %v3436, %v3440
        %v3442 = vshrl.u32 %v3381, 16
        %v3444 = vrot.slane %v3442, 4
        %v3445 = vor.u32 %v3444, %v3440
        %v3446 = vrot.slane %v3445, 4
        %v3448 = vshll.u32 %v3382, 16
        %v3450 = vrot.slane %v3448, 5
        %v3451 = vsel %vm1132, %v3446, %v3450
        %v3453 = vshrl.u32 %v3383, 16
        %v3455 = vrot.slane %v3453, 4
        %v3456 = vshll.u32 %v3383, 16
        %v3458 = vrot.slane %v3456, 5
        %v3459 = vor.u32 %v3455, %v3458
        %v3460 = vrot.slane %v3459, 4
        %v3462 = vshll.u32 %v3384, 16
        %v3464 = vrot.slane %v3462, 5
        %v3465 = vsel %vm1132, %v3460, %v3464
        %v3466 = vshrl.u32 %v3384, 16
        %v3468 = vrot.slane %v3466, 4
        %v3469 = vor.u32 %v3468, %v3464
        %v3470 = vrot.slane %v3469, 4
        %v3472 = vshll.u32 %v3385, 16
        %v3474 = vrot.slane %v3472, 5
        %v3475 = vsel %vm1132, %v3470, %v3474
        %v3477 = vshrl.u32 %v3386, 16
        %v3479 = vrot.slane %v3477, 4
        %v3480 = vshll.u32 %v3386, 16
        %v3482 = vrot.slane %v3480, 5
        %v3483 = vor.u32 %v3479, %v3482
        %v3484 = vrot.slane %v3483, 4
        %v3486 = vshll.u32 %v3387, 16
        %v3488 = vrot.slane %v3486, 5
        %v3489 = vsel %vm1132, %v3484, %v3488
        %v3490 = vshrl.u32 %v3387, 16
        %v3492 = vrot.slane %v3490, 4
        %v3493 = vor.u32 %v3492, %v3488
        %v3494 = vrot.slane %v3493, 4
        %v3496 = vshll.u32 %v3388, 16
        %v3498 = vrot.slane %v3496, 5
        %v3499 = vsel %vm1132, %v3494, %v3498
        %v3501 = vshrl.u32 %v3389, 16
        %v3503 = vrot.slane %v3501, 4
        %v3504 = vshll.u32 %v3389, 16
        %v3506 = vrot.slane %v3504, 5
        %v3507 = vor.u32 %v3503, %v3506
        %v3508 = vrot.slane %v3507, 4
        %v3510 = vshll.u32 %v3390, 16
        %v3512 = vrot.slane %v3510, 5
        %v3513 = vsel %vm1132, %v3508, %v3512
        %v3514 = vshrl.u32 %v3390, 16
        %v3516 = vrot.slane %v3514, 4
        %v3517 = vor.u32 %v3516, %v3512
        %v3518 = vrot.slane %v3517, 4
        %v3520 = vshll.u32 %v3391, 16
        %v3522 = vrot.slane %v3520, 5
        %v3523 = vsel %vm1132, %v3518, %v3522
        %v3525 = vshrl.u32 %v3392, 16
        %v3527 = vrot.slane %v3525, 4
        %v3528 = vshll.u32 %v3392, 16
        %v3530 = vrot.slane %v3528, 5
        %v3531 = vor.u32 %v3527, %v3530
        %v3532 = vrot.slane %v3531, 4
        %v3534 = vshll.u32 %v3393, 16
        %v3536 = vrot.slane %v3534, 5
        %v3537 = vsel %vm1132, %v3532, %v3536
        %v3538 = vshrl.u32 %v3393, 16
        %v3540 = vrot.slane %v3538, 4
        %v3541 = vor.u32 %v3540, %v3536
        %v3542 = vrot.slane %v3541, 4
        %v3544 = vshll.u32 %v3394, 16
        %v3546 = vrot.slane %v3544, 5
        %v3547 = vsel %vm1132, %v3542, %v3546
        %v3549 = vshrl.u32 %v3395, 16
        %v3551 = vrot.slane %v3549, 4
        %v3552 = vshll.u32 %v3395, 16
        %v3554 = vrot.slane %v3552, 5
        %v3555 = vor.u32 %v3551, %v3554
        %v3556 = vrot.slane %v3555, 4
        %v3558 = vshll.u32 %v3396, 16
        %v3560 = vrot.slane %v3558, 5
        %v3561 = vsel %vm1132, %v3556, %v3560
        %v3562 = vshrl.u32 %v3396, 16
        %v3564 = vrot.slane %v3562, 4
        %v3565 = vor.u32 %v3564, %v3560
        %v3566 = vrot.slane %v3565, 4
        %v3568 = vshll.u32 %v3397, 16
        %v3570 = vrot.slane %v3568, 5
        %v3571 = vsel %vm1132, %v3566, %v3570
        %v3573 = vshrl.u32 %v3398, 16
        %v3575 = vrot.slane %v3573, 4
        %v3576 = vshll.u32 %v3398, 16
        %v3578 = vrot.slane %v3576, 5
        %v3579 = vor.u32 %v3575, %v3578
        %v3580 = vrot.slane %v3579, 4
        %v3582 = vshll.u32 %v3399, 16
        %v3584 = vrot.slane %v3582, 5
        %v3585 = vsel %vm1132, %v3580, %v3584
        %v3586 = vshrl.u32 %v3399, 16
        %v3588 = vrot.slane %v3586, 4
        %v3589 = vor.u32 %v3588, %v3584
        %v3590 = vrot.slane %v3589, 4
        %v3592 = vshll.u32 %v3400, 16
        %v3594 = vrot.slane %v3592, 5
        %v3595 = vsel %vm1132, %v3590, %v3594
        %v3597 = vshrl.u32 %v3401, 16
        %v3599 = vrot.slane %v3597, 4
        %v3600 = vshll.u32 %v3401, 16
        %v3602 = vrot.slane %v3600, 5
        %v3603 = vor.u32 %v3599, %v3602
        %v3604 = vrot.slane %v3603, 4
        %v3606 = vshll.u32 %v3402, 16
        %v3608 = vrot.slane %v3606, 5
        %v3609 = vsel %vm1132, %v3604, %v3608
        %v3610 = vshrl.u32 %v3402, 16
        %v3612 = vrot.slane %v3610, 4
        %v3613 = vor.u32 %v3612, %v3608
        %v3614 = vrot.slane %v3613, 4
        %v3616 = vshll.u32 %v3403, 16
        %v3618 = vrot.slane %v3616, 5
        %v3619 = vsel %vm1132, %v3614, %v3618
        %v3621 = vshrl.u32 %v3404, 16
        %v3623 = vrot.slane %v3621, 4
        %v3624 = vshll.u32 %v3404, 16
        %v3626 = vrot.slane %v3624, 5
        %v3627 = vor.u32 %v3623, %v3626
        %v3628 = vrot.slane %v3627, 4
        %v3630 = vshll.u32 %v3405, 16
        %v3632 = vrot.slane %v3630, 5
        %v3633 = vsel %vm1132, %v3628, %v3632
        %v3634 = vshrl.u32 %v3405, 16
        %v3636 = vrot.slane %v3634, 4
        %v3637 = vor.u32 %v3636, %v3632
        %v3638 = vrot.slane %v3637, 4
        %v3640 = vshll.u32 %v3406, 16
        %v3642 = vrot.slane %v3640, 5
        %v3643 = vsel %vm1132, %v3638, %v3642
        %v3645 = vshrl.u32 %v3407, 16
        %v3647 = vrot.slane %v3645, 4
        %v3648 = vshll.u32 %v3407, 16
        %v3650 = vrot.slane %v3648, 5
        %v3651 = vor.u32 %v3647, %v3650
        %v3652 = vrot.slane %v3651, 4
        %v3654 = vshll.u32 %v3408, 16
        %v3656 = vrot.slane %v3654, 5
        %v3657 = vsel %vm1132, %v3652, %v3656
        %v3658 = vshrl.u32 %v3408, 16
        %v3660 = vrot.slane %v3658, 4
        %v3661 = vor.u32 %v3660, %v3656
        %v3662 = vrot.slane %v3661, 4
        %v3664 = vshll.u32 %v3409, 16
        %v3666 = vrot.slane %v3664, 5
        %v3667 = vsel %vm1132, %v3662, %v3666
        %v3669 = vshrl.u32 %v3410, 16
        %v3671 = vrot.slane %v3669, 4
        %v3672 = vshll.u32 %v3410, 16
        %v3674 = vrot.slane %v3672, 5
        %v3675 = vor.u32 %v3671, %v3674
        %v3676 = vrot.slane %v3675, 4
        %v3678 = vshll.u32 %v3411, 16
        %v3680 = vrot.slane %v3678, 5
        %v3681 = vsel %vm1132, %v3676, %v3680
        %v3682 = vshrl.u32 %v3411, 16
        %v3684 = vrot.slane %v3682, 4
        %v3685 = vor.u32 %v3684, %v3680
        %v3686 = vrot.slane %v3685, 4
        %v3688 = vshll.u32 %v3412, 16
        %v3690 = vrot.slane %v3688, 5
        %v3691 = vsel %vm1132, %v3686, %v3690
        %v3693 = vshrl.u32 %v3413, 16
        %v3695 = vrot.slane %v3693, 4
        %v3696 = vshll.u32 %v3413, 16
        %v3698 = vrot.slane %v3696, 5
        %v3699 = vor.u32 %v3695, %v3698
        %v3700 = vrot.slane %v3699, 4
        %v3702 = vshll.u32 %v3414, 16
        %v3704 = vrot.slane %v3702, 5
        %v3705 = vsel %vm1132, %v3700, %v3704
        %v3706 = vshrl.u32 %v3414, 16
        %v3708 = vrot.slane %v3706, 4
        %v3709 = vor.u32 %v3708, %v3704
        %v3710 = vrot.slane %v3709, 4
        %v3712 = vshll.u32 %v3415, 16
        %v3714 = vrot.slane %v3712, 5
        %v3715 = vsel %vm1132, %v3710, %v3714
        %v3717 = vshrl.u32 %v3416, 16
        %v3719 = vrot.slane %v3717, 4
        %v3720 = vshll.u32 %v3416, 16
        %v3722 = vrot.slane %v3720, 5
        %v3723 = vor.u32 %v3719, %v3722
        %v3724 = vrot.slane %v3723, 4
        %v3726 = vshll.u32 %v3417, 16
        %v3728 = vrot.slane %v3726, 5
        %v3729 = vsel %vm1132, %v3724, %v3728
        %v3730 = vshrl.u32 %v3417, 16
        %v3732 = vrot.slane %v3730, 4
        %v3733 = vor.u32 %v3732, %v3728
        %v3734 = vrot.slane %v3733, 4
        %v3736 = vshll.u32 %v3418, 16
        %v3738 = vrot.slane %v3736, 5
        %v3739 = vsel %vm1132, %v3734, %v3738
        %v3741 = vshrl.u32 %v3419, 16
        %v3743 = vrot.slane %v3741, 4
        %v3744 = vshll.u32 %v3419, 16
        %v3746 = vrot.slane %v3744, 5
        %v3747 = vor.u32 %v3743, %v3746
        %v3748 = vrot.slane %v3747, 4
        %v3750 = vshll.u32 %v3420, 16
        %v3752 = vrot.slane %v3750, 5
        %v3753 = vsel %vm1132, %v3748, %v3752
        %v3754 = vshrl.u32 %v3420, 16
        %v3756 = vrot.slane %v3754, 4
        %v3757 = vor.u32 %v3756, %v3752
        %v3758 = vrot.slane %v3757, 4
        %v3760 = vshll.u32 %v3421, 16
        %v3762 = vrot.slane %v3760, 5
        %v3763 = vsel %vm1132, %v3758, %v3762
        %v3765 = vshrl.u32 %v3422, 16
        %v3767 = vrot.slane %v3765, 4
        %v3768 = vshll.u32 %v3422, 16
        %v3770 = vrot.slane %v3768, 5
        %v3771 = vor.u32 %v3767, %v3770
        %v3772 = vrot.slane %v3771, 4
        %v3774 = vshll.u32 %v3423, 16
        %v3776 = vrot.slane %v3774, 5
        %v3777 = vsel %vm1132, %v3772, %v3776
        %v3778 = vshrl.u32 %v3423, 16
        %v3780 = vrot.slane %v3778, 4
        %v3781 = vor.u32 %v3780, %v3776
        %v3782 = vrot.slane %v3781, 4
        %v3784 = vshll.u32 %v3424, 16
        %v3786 = vrot.slane %v3784, 5
        %v3787 = vsel %vm1132, %v3782, %v3786
        %v3789 = vshrl.u32 %v3425, 16
        %v3791 = vrot.slane %v3789, 4
        %v3792 = vshll.u32 %v3425, 16
        %v3794 = vrot.slane %v3792, 5
        %v3795 = vor.u32 %v3791, %v3794
        %v3796 = vrot.slane %v3795, 4
        %v3798 = vshll.u32 %v3426, 16
        %v3800 = vrot.slane %v3798, 5
        %v3801 = vsel %vm1132, %v3796, %v3800
        %v3802 = vshrl.u32 %v3426, 16
        %v3804 = vrot.slane %v3802, 4
        %v3805 = vor.u32 %v3804, %v3800
        %v3806 = vrot.slane %v3805, 4
        %v3808 = vshll.u32 %v3427, 16
        %v3810 = vrot.slane %v3808, 5
        %v3811 = vsel %vm1132, %v3806, %v3810
        %v3860 = vrot.slane %v3380, 5
        %v3861 = vrot.slane %v3860, 4
        %v3862 = vrot.slane %v3381, 5
        %v3863 = vsel %vm1567, %v3861, %v3862
        %v3864 = vrot.slane %v3862, 4
        %v3865 = vrot.slane %v3382, 5
        %v3866 = vsel %vm1567, %v3864, %v3865
        %v3867 = vrot.slane %v3383, 5
        %v3868 = vrot.slane %v3867, 4
        %v3869 = vrot.slane %v3384, 5
        %v3870 = vsel %vm1567, %v3868, %v3869
        %v3871 = vrot.slane %v3869, 4
        %v3872 = vrot.slane %v3385, 5
        %v3873 = vsel %vm1567, %v3871, %v3872
        %v3874 = vrot.slane %v3386, 5
        %v3875 = vrot.slane %v3874, 4
        %v3876 = vrot.slane %v3387, 5
        %v3877 = vsel %vm1567, %v3875, %v3876
        %v3878 = vrot.slane %v3876, 4
        %v3879 = vrot.slane %v3388, 5
        %v3880 = vsel %vm1567, %v3878, %v3879
        %v3881 = vrot.slane %v3389, 5
        %v3882 = vrot.slane %v3881, 4
        %v3883 = vrot.slane %v3390, 5
        %v3884 = vsel %vm1567, %v3882, %v3883
        %v3885 = vrot.slane %v3883, 4
        %v3886 = vrot.slane %v3391, 5
        %v3887 = vsel %vm1567, %v3885, %v3886
        %v3888 = vrot.slane %v3392, 5
        %v3889 = vrot.slane %v3888, 4
        %v3890 = vrot.slane %v3393, 5
        %v3891 = vsel %vm1567, %v3889, %v3890
        %v3892 = vrot.slane %v3890, 4
        %v3893 = vrot.slane %v3394, 5
        %v3894 = vsel %vm1567, %v3892, %v3893
        %v3895 = vrot.slane %v3395, 5
        %v3896 = vrot.slane %v3895, 4
        %v3897 = vrot.slane %v3396, 5
        %v3898 = vsel %vm1567, %v3896, %v3897
        %v3899 = vrot.slane %v3897, 4
        %v3900 = vrot.slane %v3397, 5
        %v3901 = vsel %vm1567, %v3899, %v3900
        %v3902 = vrot.slane %v3398, 5
        %v3903 = vrot.slane %v3902, 4
        %v3904 = vrot.slane %v3399, 5
        %v3905 = vsel %vm1567, %v3903, %v3904
        %v3906 = vrot.slane %v3904, 4
        %v3907 = vrot.slane %v3400, 5
        %v3908 = vsel %vm1567, %v3906, %v3907
        %v3909 = vrot.slane %v3401, 5
        %v3910 = vrot.slane %v3909, 4
        %v3911 = vrot.slane %v3402, 5
        %v3912 = vsel %vm1567, %v3910, %v3911
        %v3913 = vrot.slane %v3911, 4
        %v3914 = vrot.slane %v3403, 5
        %v3915 = vsel %vm1567, %v3913, %v3914
        %v3916 = vrot.slane %v3404, 5
        %v3917 = vrot.slane %v3916, 4
        %v3918 = vrot.slane %v3405, 5
        %v3919 = vsel %vm1567, %v3917, %v3918
        %v3920 = vrot.slane %v3918, 4
        %v3921 = vrot.slane %v3406, 5
        %v3922 = vsel %vm1567, %v3920, %v3921
        %v3923 = vrot.slane %v3407, 5
        %v3924 = vrot.slane %v3923, 4
        %v3925 = vrot.slane %v3408, 5
        %v3926 = vsel %vm1567, %v3924, %v3925
        %v3927 = vrot.slane %v3925, 4
        %v3928 = vrot.slane %v3409, 5
        %v3929 = vsel %vm1567, %v3927, %v3928
        %v3930 = vrot.slane %v3410, 5
        %v3931 = vrot.slane %v3930, 4
        %v3932 = vrot.slane %v3411, 5
        %v3933 = vsel %vm1567, %v3931, %v3932
        %v3934 = vrot.slane %v3932, 4
        %v3935 = vrot.slane %v3412, 5
        %v3936 = vsel %vm1567, %v3934, %v3935
        %v3937 = vrot.slane %v3413, 5
        %v3938 = vrot.slane %v3937, 4
        %v3939 = vrot.slane %v3414, 5
        %v3940 = vsel %vm1567, %v3938, %v3939
        %v3941 = vrot.slane %v3939, 4
        %v3942 = vrot.slane %v3415, 5
        %v3943 = vsel %vm1567, %v3941, %v3942
        %v3944 = vrot.slane %v3416, 5
        %v3945 = vrot.slane %v3944, 4
        %v3946 = vrot.slane %v3417, 5
        %v3947 = vsel %vm1567, %v3945, %v3946
        %v3948 = vrot.slane %v3946, 4
        %v3949 = vrot.slane %v3418, 5
        %v3950 = vsel %vm1567, %v3948, %v3949
        %v3951 = vrot.slane %v3419, 5
        %v3952 = vrot.slane %v3951, 4
        %v3953 = vrot.slane %v3420, 5
        %v3954 = vsel %vm1567, %v3952, %v3953
        %v3955 = vrot.slane %v3953, 4
        %v3956 = vrot.slane %v3421, 5
        %v3957 = vsel %vm1567, %v3955, %v3956
        %v3958 = vrot.slane %v3422, 5
        %v3959 = vrot.slane %v3958, 4
        %v3960 = vrot.slane %v3423, 5
        %v3961 = vsel %vm1567, %v3959, %v3960
        %v3962 = vrot.slane %v3960, 4
        %v3963 = vrot.slane %v3424, 5
        %v3964 = vsel %vm1567, %v3962, %v3963
        %v3965 = vrot.slane %v3425, 5
        %v3966 = vrot.slane %v3965, 4
        %v3967 = vrot.slane %v3426, 5
        %v3968 = vsel %vm1567, %v3966, %v3967
        %v3969 = vrot.slane %v3967, 4
        %v3970 = vrot.slane %v3427, 5
        %v3971 = vsel %vm1567, %v3969, %v3970
        %v3972 = vunpack.c.l.b16 %v3380
        %v3973 = vunpack.c.l.b16 %v3381
        %v3974 = vunpack.c.l.b16 %v3383
        %v3975 = vunpack.c.l.b16 %v3384
        %v3976 = vunpack.c.l.b16 %v3386
        %v3977 = vunpack.c.l.b16 %v3387
        %v3978 = vunpack.c.l.b16 %v3389
        %v3979 = vunpack.c.l.b16 %v3390
        %v3980 = vunpack.c.l.b16 %v3392
        %v3981 = vunpack.c.l.b16 %v3393
        %v3982 = vunpack.c.l.b16 %v3395
        %v3983 = vunpack.c.l.b16 %v3396
        %v3984 = vunpack.c.l.b16 %v3398
        %v3985 = vunpack.c.l.b16 %v3399
        %v3986 = vunpack.c.l.b16 %v3401
        %v3987 = vunpack.c.l.b16 %v3402
        %v3988 = vunpack.c.l.b16 %v3404
        %v3989 = vunpack.c.l.b16 %v3405
        %v3990 = vunpack.c.l.b16 %v3407
        %v3991 = vunpack.c.l.b16 %v3408
        %v3992 = vunpack.c.l.b16 %v3410
        %v3993 = vunpack.c.l.b16 %v3411
        %v3994 = vunpack.c.l.b16 %v3413
        %v3995 = vunpack.c.l.b16 %v3414
        %v3996 = vunpack.c.l.b16 %v3416
        %v3997 = vunpack.c.l.b16 %v3417
        %v3998 = vunpack.c.l.b16 %v3419
        %v3999 = vunpack.c.l.b16 %v3420
        %v4000 = vunpack.c.l.b16 %v3422
        %v4001 = vunpack.c.l.b16 %v3423
        %v4002 = vunpack.c.l.b16 %v3425
        %v4003 = vunpack.c.l.b16 %v3426
        %v4004 = vpack.c.b16 %v3973, %v3972
        %v4005 = vpack.c.b16 %v3975, %v3974
        %v4006 = vpack.c.b16 %v3977, %v3976
        %v4007 = vpack.c.b16 %v3979, %v3978
        %v4008 = vpack.c.b16 %v3981, %v3980
        %v4009 = vpack.c.b16 %v3983, %v3982
        %v4010 = vpack.c.b16 %v3985, %v3984
        %v4011 = vpack.c.b16 %v3987, %v3986
        %v4012 = vpack.c.b16 %v3989, %v3988
        %v4013 = vpack.c.b16 %v3991, %v3990
        %v4014 = vpack.c.b16 %v3993, %v3992
        %v4015 = vpack.c.b16 %v3995, %v3994
        %v4016 = vpack.c.b16 %v3997, %v3996
        %v4017 = vpack.c.b16 %v3999, %v3998
        %v4018 = vpack.c.b16 %v4001, %v4000
        %v4019 = vpack.c.b16 %v4003, %v4002
        %v4020 = vunpack.c.l.b16 %v3441
        %v4021 = vunpack.c.l.b16 %v3451
        %v4022 = vunpack.c.l.b16 %v3465
        %v4023 = vunpack.c.l.b16 %v3475
        %v4024 = vunpack.c.l.b16 %v3489
        %v4025 = vunpack.c.l.b16 %v3499
        %v4026 = vunpack.c.l.b16 %v3513
        %v4027 = vunpack.c.l.b16 %v3523
        %v4028 = vunpack.c.l.b16 %v3537
        %v4029 = vunpack.c.l.b16 %v3547
        %v4030 = vunpack.c.l.b16 %v3561
        %v4031 = vunpack.c.l.b16 %v3571
        %v4032 = vunpack.c.l.b16 %v3585
        %v4033 = vunpack.c.l.b16 %v3595
        %v4034 = vunpack.c.l.b16 %v3609
        %v4035 = vunpack.c.l.b16 %v3619
        %v4036 = vunpack.c.l.b16 %v3633
        %v4037 = vunpack.c.l.b16 %v3643
        %v4038 = vunpack.c.l.b16 %v3657
        %v4039 = vunpack.c.l.b16 %v3667
        %v4040 = vunpack.c.l.b16 %v3681
        %v4041 = vunpack.c.l.b16 %v3691
        %v4042 = vunpack.c.l.b16 %v3705
        %v4043 = vunpack.c.l.b16 %v3715
        %v4044 = vunpack.c.l.b16 %v3729
        %v4045 = vunpack.c.l.b16 %v3739
        %v4046 = vunpack.c.l.b16 %v3753
        %v4047 = vunpack.c.l.b16 %v3763
        %v4048 = vunpack.c.l.b16 %v3777
        %v4049 = vunpack.c.l.b16 %v3787
        %v4050 = vunpack.c.l.b16 %v3801
        %v4051 = vunpack.c.l.b16 %v3811
        %v4052 = vpack.c.b16 %v4021, %v4020
        %v4053 = vpack.c.b16 %v4023, %v4022
        %v4054 = vpack.c.b16 %v4025, %v4024
        %v4055 = vpack.c.b16 %v4027, %v4026
        %v4056 = vpack.c.b16 %v4029, %v4028
        %v4057 = vpack.c.b16 %v4031, %v4030
        %v4058 = vpack.c.b16 %v4033, %v4032
        %v4059 = vpack.c.b16 %v4035, %v4034
        %v4060 = vpack.c.b16 %v4037, %v4036
        %v4061 = vpack.c.b16 %v4039, %v4038
        %v4062 = vpack.c.b16 %v4041, %v4040
        %v4063 = vpack.c.b16 %v4043, %v4042
        %v4064 = vpack.c.b16 %v4045, %v4044
        %v4065 = vpack.c.b16 %v4047, %v4046
        %v4066 = vpack.c.b16 %v4049, %v4048
        %v4067 = vpack.c.b16 %v4051, %v4050
        %4068 = vrot.lane.b32.xlu0 %v4052, 64
        %v4069 = vpop.permute.xlu0 %4068
        %4070 = vrot.lane.b32.xlu0 %v4053, 64
        %v4071 = vpop.permute.xlu0 %4070
        %4072 = vrot.lane.b32.xlu0 %v4054, 64
        %v4073 = vpop.permute.xlu0 %4072
        %4074 = vrot.lane.b32.xlu0 %v4055, 64
        %v4075 = vpop.permute.xlu0 %4074
        %4076 = vrot.lane.b32.xlu0 %v4056, 64
        %v4077 = vpop.permute.xlu0 %4076
        %4078 = vrot.lane.b32.xlu0 %v4057, 64
        %v4079 = vpop.permute.xlu0 %4078
        %4080 = vrot.lane.b32.xlu0 %v4058, 64
        %v4081 = vpop.permute.xlu0 %4080
        %4082 = vrot.lane.b32.xlu0 %v4059, 64
        %v4083 = vpop.permute.xlu0 %4082
        %4084 = vrot.lane.b32.xlu0 %v4060, 64
        %v4085 = vpop.permute.xlu0 %4084
        %4086 = vrot.lane.b32.xlu0 %v4061, 64
        %v4087 = vpop.permute.xlu0 %4086
        %4088 = vrot.lane.b32.xlu0 %v4062, 64
        %v4089 = vpop.permute.xlu0 %4088
        %4090 = vrot.lane.b32.xlu0 %v4063, 64
        %v4091 = vpop.permute.xlu0 %4090
        %4092 = vrot.lane.b32.xlu0 %v4064, 64
        %v4093 = vpop.permute.xlu0 %4092
        %4094 = vrot.lane.b32.xlu0 %v4065, 64
        %v4095 = vpop.permute.xlu0 %4094
        %4096 = vrot.lane.b32.xlu0 %v4066, 64
        %v4097 = vpop.permute.xlu0 %4096
        %4098 = vrot.lane.b32.xlu0 %v4067, 64
        %v4099 = vpop.permute.xlu0 %4098
        %v4100 = vunpack.c.l.b16 %v3863
        %v4101 = vunpack.c.l.b16 %v3866
        %v4102 = vunpack.c.l.b16 %v3870
        %v4103 = vunpack.c.l.b16 %v3873
        %v4104 = vunpack.c.l.b16 %v3877
        %v4105 = vunpack.c.l.b16 %v3880
        %v4106 = vunpack.c.l.b16 %v3884
        %v4107 = vunpack.c.l.b16 %v3887
        %v4108 = vunpack.c.l.b16 %v3891
        %v4109 = vunpack.c.l.b16 %v3894
        %v4110 = vunpack.c.l.b16 %v3898
        %v4111 = vunpack.c.l.b16 %v3901
        %v4112 = vunpack.c.l.b16 %v3905
        %v4113 = vunpack.c.l.b16 %v3908
        %v4114 = vunpack.c.l.b16 %v3912
        %v4115 = vunpack.c.l.b16 %v3915
        %v4116 = vunpack.c.l.b16 %v3919
        %v4117 = vunpack.c.l.b16 %v3922
        %v4118 = vunpack.c.l.b16 %v3926
        %v4119 = vunpack.c.l.b16 %v3929
        %v4120 = vunpack.c.l.b16 %v3933
        %v4121 = vunpack.c.l.b16 %v3936
        %v4122 = vunpack.c.l.b16 %v3940
        %v4123 = vunpack.c.l.b16 %v3943
        %v4124 = vunpack.c.l.b16 %v3947
        %v4125 = vunpack.c.l.b16 %v3950
        %v4126 = vunpack.c.l.b16 %v3954
        %v4127 = vunpack.c.l.b16 %v3957
        %v4128 = vunpack.c.l.b16 %v3961
        %v4129 = vunpack.c.l.b16 %v3964
        %v4130 = vunpack.c.l.b16 %v3968
        %v4131 = vunpack.c.l.b16 %v3971
        %v4132 = vpack.c.b16 %v4101, %v4100
        %v4133 = vpack.c.b16 %v4103, %v4102
        %v4134 = vpack.c.b16 %v4105, %v4104
        %v4135 = vpack.c.b16 %v4107, %v4106
        %v4136 = vpack.c.b16 %v4109, %v4108
        %v4137 = vpack.c.b16 %v4111, %v4110
        %v4138 = vpack.c.b16 %v4113, %v4112
        %v4139 = vpack.c.b16 %v4115, %v4114
        %v4140 = vpack.c.b16 %v4117, %v4116
        %v4141 = vpack.c.b16 %v4119, %v4118
        %v4142 = vpack.c.b16 %v4121, %v4120
        %v4143 = vpack.c.b16 %v4123, %v4122
        %v4144 = vpack.c.b16 %v4125, %v4124
        %v4145 = vpack.c.b16 %v4127, %v4126
        %v4146 = vpack.c.b16 %v4129, %v4128
        %v4147 = vpack.c.b16 %v4131, %v4130
        %v4150 = vsel %vm1856, %v4004, %v4069
        %v4154 = vsel %vm1856, %v4005, %v4071
        %v4158 = vsel %vm1856, %v4006, %v4073
        %v4162 = vsel %vm1856, %v4007, %v4075
        %v4166 = vsel %vm1856, %v4008, %v4077
        %v4170 = vsel %vm1856, %v4009, %v4079
        %v4174 = vsel %vm1856, %v4010, %v4081
        %v4178 = vsel %vm1856, %v4011, %v4083
        %v4182 = vsel %vm1856, %v4012, %v4085
        %v4186 = vsel %vm1856, %v4013, %v4087
        %v4190 = vsel %vm1856, %v4014, %v4089
        %v4194 = vsel %vm1856, %v4015, %v4091
        %v4198 = vsel %vm1856, %v4016, %v4093
        %v4202 = vsel %vm1856, %v4017, %v4095
        %v4206 = vsel %vm1856, %v4018, %v4097
        %v4210 = vsel %vm1856, %v4019, %v4099
        %v4236 = vunpack.c.l.b16 %v978
        %v4237 = vunpack.c.l.b16 %v979
        %v4238 = vunpack.c.l.b16 %v980
        %v4239 = vunpack.c.l.b16 %v981
        %v4240 = vunpack.c.l.b16 %v982
        %v4241 = vunpack.c.l.b16 %v983
        %v4242 = vunpack.c.l.b16 %v984
        %v4243 = vunpack.c.l.b16 %v985
        %v4244 = vunpack.c.l.b16 %v986
        %v4245 = vunpack.c.l.b16 %v987
        %v4246 = vunpack.c.l.b16 %v988
        %v4247 = vunpack.c.l.b16 %v989
        %v4248 = vunpack.c.l.b16 %v990
        %v4249 = vunpack.c.l.b16 %v991
        %v4250 = vunpack.c.l.b16 %v992
        %v4251 = vunpack.c.l.b16 %v993
        %v4252 = vunpack.c.l.b16 %v994
        %v4253 = vunpack.c.l.b16 %v995
        %v4254 = vunpack.c.l.b16 %v996
        %v4255 = vunpack.c.l.b16 %v997
        %v4256 = vunpack.c.l.b16 %v998
        %v4257 = vunpack.c.l.b16 %v999
        %v4258 = vunpack.c.l.b16 %v1000
        %v4259 = vunpack.c.l.b16 %v1001
        %v4260 = vpack.c.b16 %v4237, %v4236
        %v4261 = vpack.c.b16 %v4239, %v4238
        %v4262 = vpack.c.b16 %v4241, %v4240
        %v4263 = vpack.c.b16 %v4243, %v4242
        %v4264 = vpack.c.b16 %v4245, %v4244
        %v4265 = vpack.c.b16 %v4247, %v4246
        %v4266 = vpack.c.b16 %v4249, %v4248
        %v4267 = vpack.c.b16 %v4251, %v4250
        %v4268 = vpack.c.b16 %v4253, %v4252
        %v4269 = vpack.c.b16 %v4255, %v4254
        %v4270 = vpack.c.b16 %v4257, %v4256
        %v4271 = vpack.c.b16 %v4259, %v4258
        %v4285 = vsel %vm1856, %v4132, 0
        %v4288 = vsel %vm1856, %v4133, 0
        %v4291 = vsel %vm1856, %v4134, 0
        %v4294 = vsel %vm1856, %v4135, 0
        %v4297 = vsel %vm1856, %v4136, 0
        %v4300 = vsel %vm1856, %v4137, 0
        %v4303 = vsel %vm1856, %v4138, 0
        %v4306 = vsel %vm1856, %v4139, 0
        %v4309 = vsel %vm1856, %v4140, 0
        %v4312 = vsel %vm1856, %v4141, 0
        %v4315 = vsel %vm1856, %v4142, 0
        %v4318 = vsel %vm1856, %v4143, 0
        %v4321 = vsel %vm1856, %v4144, 0
        %v4324 = vsel %vm1856, %v4145, 0
        %v4327 = vsel %vm1856, %v4146, 0
        %v4330 = vsel %vm1856, %v4147, 0
        %4332 = vmatprep.subr.bf16.mxu0 0
        %4333 = vmatpush1.bf16.msra.mxu0 %v4267
        %4334 = vmatprep.subr.bf16.mxu0 0
        %4335 = vmatpush1.bf16.msra.mxu0 %v4266
        %4336 = vmatprep.subr.bf16.mxu0 0
        %4337 = vmatpush1.bf16.msra.mxu0 %v4265
        %4338 = vmatprep.subr.bf16.mxu0 0
        %4339 = vmatpush1.bf16.msra.mxu0 %v4264
        %4340 = vmatprep.subr.bf16.mxu0 0
        %4341 = vmatpush1.bf16.msra.mxu0 %v4263
        %4342 = vmatprep.subr.bf16.mxu0 0
        %4343 = vmatpush1.bf16.msra.mxu0 %v4262
        %4344 = vmatprep.subr.bf16.mxu0 0
        %4345 = vmatpush1.bf16.msra.mxu0 %v4261
        %4346 = vmatprep.subr.bf16.mxu0 0
        %4347 = vmatpush1.bf16.msra.mxu0 %v4260
        %4348 = vmatprep.subr.bf16.mxu0 0
        %4349 = vmatpush2.bf16.msra.mxu0 0
        %4350 = vmatprep.subr.bf16.mxu0 0
        %4351 = vmatpush2.bf16.msra.mxu0 0
        %4352 = vmatprep.subr.bf16.mxu0 0
        %4353 = vmatpush2.bf16.msra.mxu0 0
        %4354 = vmatprep.subr.bf16.mxu0 0
        %4355 = vmatpush2.bf16.msra.mxu0 0
        %4356 = vmatprep.subr.bf16.mxu0 0
        %4357 = vmatpush2.bf16.msra.mxu0 %v4271
        %4358 = vmatprep.subr.bf16.mxu0 0
        %4359 = vmatpush2.bf16.msra.mxu0 %v4270
        %4360 = vmatprep.subr.bf16.mxu0 0
        %4361 = vmatpush2.bf16.msra.mxu0 %v4269
        %4362 = vmatprep.subr.bf16.mxu0 0
        %4363 = vmatpush2.bf16.msra.mxu0 %v4268
        %4364 = vmatprep.mubr.bf16.mxu0 %v4285
        %4365 = vmatmul.mubr.bf16.gmra.mxu0 %v4150
        %v4366 = vpop.f32.mrf.mxu0
        %v4367 = vadd.f32 0.0, %v4366
        %v4368 = vpop.f32.mrf.mxu0
        %v4369 = vpop.f32.mrf.mxu0
        %v4370 = vadd.f32 0.0, %v4369
        %v4371 = vpop.f32.mrf.mxu0
        %4372 = vmatprep.mubr.bf16.mxu0 %v4288
        %4373 = vmatmul.mubr.bf16.gmra.mxu0 %v4154
        %v4374 = vpop.f32.mrf.mxu0
        %v4375 = vadd.f32 0.0, %v4374
        %v4376 = vpop.f32.mrf.mxu0
        %v4377 = vpop.f32.mrf.mxu0
        %v4378 = vadd.f32 0.0, %v4377
        %v4379 = vpop.f32.mrf.mxu0
        %4380 = vmatprep.mubr.bf16.mxu0 %v4291
        %4381 = vmatmul.mubr.bf16.gmra.mxu0 %v4158
        %v4382 = vpop.f32.mrf.mxu0
        %v4383 = vadd.f32 0.0, %v4382
        %v4384 = vpop.f32.mrf.mxu0
        %v4385 = vpop.f32.mrf.mxu0
        %v4386 = vadd.f32 0.0, %v4385
        %v4387 = vpop.f32.mrf.mxu0
        %4388 = vmatprep.mubr.bf16.mxu0 %v4294
        %4389 = vmatmul.mubr.bf16.gmra.mxu0 %v4162
        %v4390 = vpop.f32.mrf.mxu0
        %v4391 = vadd.f32 0.0, %v4390
        %v4392 = vpop.f32.mrf.mxu0
        %v4393 = vpop.f32.mrf.mxu0
        %v4394 = vadd.f32 0.0, %v4393
        %v4395 = vpop.f32.mrf.mxu0
        %4396 = vmatprep.mubr.bf16.mxu0 %v4297
        %4397 = vmatmul.mubr.bf16.gmra.mxu0 %v4166
        %v4398 = vpop.f32.mrf.mxu0
        %v4399 = vadd.f32 0.0, %v4398
        %v4400 = vpop.f32.mrf.mxu0
        %v4401 = vpop.f32.mrf.mxu0
        %v4402 = vadd.f32 0.0, %v4401
        %v4403 = vpop.f32.mrf.mxu0
        %4404 = vmatprep.mubr.bf16.mxu0 %v4300
        %4405 = vmatmul.mubr.bf16.gmra.mxu0 %v4170
        %v4406 = vpop.f32.mrf.mxu0
        %v4407 = vadd.f32 0.0, %v4406
        %v4408 = vpop.f32.mrf.mxu0
        %v4409 = vpop.f32.mrf.mxu0
        %v4410 = vadd.f32 0.0, %v4409
        %v4411 = vpop.f32.mrf.mxu0
        %4412 = vmatprep.mubr.bf16.mxu0 %v4303
        %4413 = vmatmul.mubr.bf16.gmra.mxu0 %v4174
        %v4414 = vpop.f32.mrf.mxu0
        %v4415 = vadd.f32 0.0, %v4414
        %v4416 = vpop.f32.mrf.mxu0
        %v4417 = vpop.f32.mrf.mxu0
        %v4418 = vadd.f32 0.0, %v4417
        %v4419 = vpop.f32.mrf.mxu0
        %4420 = vmatprep.mubr.bf16.mxu0 %v4306
        %4421 = vmatmul.mubr.bf16.gmra.mxu0 %v4178
        %v4422 = vpop.f32.mrf.mxu0
        %v4423 = vadd.f32 0.0, %v4422
        %v4424 = vpop.f32.mrf.mxu0
        %v4425 = vpop.f32.mrf.mxu0
        %v4426 = vadd.f32 0.0, %v4425
        %v4427 = vpop.f32.mrf.mxu0
        %4428 = vmatprep.mubr.bf16.mxu0 %v4309
        %4429 = vmatmul.mubr.bf16.gmra.mxu0 %v4182
        %v4430 = vpop.f32.mrf.mxu0
        %v4431 = vadd.f32 0.0, %v4430
        %v4432 = vpop.f32.mrf.mxu0
        %v4433 = vpop.f32.mrf.mxu0
        %v4434 = vadd.f32 0.0, %v4433
        %v4435 = vpop.f32.mrf.mxu0
        %4436 = vmatprep.mubr.bf16.mxu0 %v4312
        %4437 = vmatmul.mubr.bf16.gmra.mxu0 %v4186
        %v4438 = vpop.f32.mrf.mxu0
        %v4439 = vadd.f32 0.0, %v4438
        %v4440 = vpop.f32.mrf.mxu0
        %v4441 = vpop.f32.mrf.mxu0
        %v4442 = vadd.f32 0.0, %v4441
        %v4443 = vpop.f32.mrf.mxu0
        %4444 = vmatprep.mubr.bf16.mxu0 %v4315
        %4445 = vmatmul.mubr.bf16.gmra.mxu0 %v4190
        %v4446 = vpop.f32.mrf.mxu0
        %v4447 = vadd.f32 0.0, %v4446
        %v4448 = vpop.f32.mrf.mxu0
        %v4449 = vpop.f32.mrf.mxu0
        %v4450 = vadd.f32 0.0, %v4449
        %v4451 = vpop.f32.mrf.mxu0
        %4452 = vmatprep.mubr.bf16.mxu0 %v4318
        %4453 = vmatmul.mubr.bf16.gmra.mxu0 %v4194
        %v4454 = vpop.f32.mrf.mxu0
        %v4455 = vadd.f32 0.0, %v4454
        %v4456 = vpop.f32.mrf.mxu0
        %v4457 = vpop.f32.mrf.mxu0
        %v4458 = vadd.f32 0.0, %v4457
        %v4459 = vpop.f32.mrf.mxu0
        %4460 = vmatprep.mubr.bf16.mxu0 %v4321
        %4461 = vmatmul.mubr.bf16.gmra.mxu0 %v4198
        %v4462 = vpop.f32.mrf.mxu0
        %v4463 = vadd.f32 0.0, %v4462
        %v4464 = vpop.f32.mrf.mxu0
        %v4465 = vpop.f32.mrf.mxu0
        %v4466 = vadd.f32 0.0, %v4465
        %v4467 = vpop.f32.mrf.mxu0
        %4468 = vmatprep.mubr.bf16.mxu0 %v4324
        %4469 = vmatmul.mubr.bf16.gmra.mxu0 %v4202
        %v4470 = vpop.f32.mrf.mxu0
        %v4471 = vadd.f32 0.0, %v4470
        %v4472 = vpop.f32.mrf.mxu0
        %v4473 = vpop.f32.mrf.mxu0
        %v4474 = vadd.f32 0.0, %v4473
        %v4475 = vpop.f32.mrf.mxu0
        %4476 = vmatprep.mubr.bf16.mxu0 %v4327
        %4477 = vmatmul.mubr.bf16.gmra.mxu0 %v4206
        %v4478 = vpop.f32.mrf.mxu0
        %v4479 = vadd.f32 0.0, %v4478
        %v4480 = vpop.f32.mrf.mxu0
        %v4481 = vpop.f32.mrf.mxu0
        %v4482 = vadd.f32 0.0, %v4481
        %v4483 = vpop.f32.mrf.mxu0
        %4484 = vmatprep.mubr.bf16.mxu0 %v4330
        %4485 = vmatmul.mubr.bf16.gmra.mxu0 %v4210
        %v4486 = vpop.f32.mrf.mxu0
        %v4487 = vadd.f32 0.0, %v4486
        %v4488 = vpop.f32.mrf.mxu0
        %v4489 = vpop.f32.mrf.mxu0
        %v4490 = vadd.f32 0.0, %v4489
        %v4491 = vpop.f32.mrf.mxu0
        %4492 = vdwg.mxu0
        %v4493 = vadd.f32 %v3347, %v4367
        %v4494 = vadd.f32 %v3348, %v4370
        %v4495 = vadd.f32 %v3349, %v4375
        %v4496 = vadd.f32 %v3350, %v4378
        %v4497 = vadd.f32 %v3351, %v4383
        %v4498 = vadd.f32 %v3352, %v4386
        %v4499 = vadd.f32 %v3353, %v4391
        %v4500 = vadd.f32 %v3354, %v4394
        %v4501 = vadd.f32 %v3355, %v4399
        %v4502 = vadd.f32 %v3356, %v4402
        %v4503 = vadd.f32 %v3357, %v4407
        %v4504 = vadd.f32 %v3358, %v4410
        %v4505 = vadd.f32 %v3359, %v4415
        %v4506 = vadd.f32 %v3360, %v4418
        %v4507 = vadd.f32 %v3361, %v4423
        %v4508 = vadd.f32 %v3362, %v4426
        %v4509 = vadd.f32 %v3363, %v4431
        %v4510 = vadd.f32 %v3364, %v4434
        %v4511 = vadd.f32 %v3365, %v4439
        %v4512 = vadd.f32 %v3366, %v4442
        %v4513 = vadd.f32 %v3367, %v4447
        %v4514 = vadd.f32 %v3368, %v4450
        %v4515 = vadd.f32 %v3369, %v4455
        %v4516 = vadd.f32 %v3370, %v4458
        %v4517 = vadd.f32 %v3371, %v4463
        %v4518 = vadd.f32 %v3372, %v4466
        %v4519 = vadd.f32 %v3373, %v4471
        %v4520 = vadd.f32 %v3374, %v4474
        %v4521 = vadd.f32 %v3375, %v4479
        %v4522 = vadd.f32 %v3376, %v4482
        %v4523 = vadd.f32 %v3377, %v4487
        %v4524 = vadd.f32 %v3378, %v4490
        %v4525 = vmax.f32 %v4493, 0.0
        %v4526 = vmax.f32 %v4494, 0.0
        %v4527 = vmax.f32 %v4495, 0.0
        %v4528 = vmax.f32 %v4496, 0.0
        %v4529 = vmax.f32 %v4497, 0.0
        %v4530 = vmax.f32 %v4498, 0.0
        %v4531 = vmax.f32 %v4499, 0.0
        %v4532 = vmax.f32 %v4500, 0.0
        %v4533 = vmax.f32 %v4501, 0.0
        %v4534 = vmax.f32 %v4502, 0.0
        %v4535 = vmax.f32 %v4503, 0.0
        %v4536 = vmax.f32 %v4504, 0.0
        %v4537 = vmax.f32 %v4505, 0.0
        %v4538 = vmax.f32 %v4506, 0.0
        %v4539 = vmax.f32 %v4507, 0.0
        %v4540 = vmax.f32 %v4508, 0.0
        %v4541 = vmax.f32 %v4509, 0.0
        %v4542 = vmax.f32 %v4510, 0.0
        %v4543 = vmax.f32 %v4511, 0.0
        %v4544 = vmax.f32 %v4512, 0.0
        %v4545 = vmax.f32 %v4513, 0.0
        %v4546 = vmax.f32 %v4514, 0.0
        %v4547 = vmax.f32 %v4515, 0.0
        %v4548 = vmax.f32 %v4516, 0.0
        %v4549 = vmax.f32 %v4517, 0.0
        %v4550 = vmax.f32 %v4518, 0.0
        %v4551 = vmax.f32 %v4519, 0.0
        %v4552 = vmax.f32 %v4520, 0.0
        %v4553 = vmax.f32 %v4521, 0.0
        %v4554 = vmax.f32 %v4522, 0.0
        %v4555 = vmax.f32 %v4523, 0.0
        %v4556 = vmax.f32 %v4524, 0.0
        %v4557 = vpack.c.bf16 %v4526, %v4525
        %v4558 = vpack.c.bf16 %v4528, %v4527
        %v4559 = vpack.c.bf16 %v4530, %v4529
        %v4560 = vpack.c.bf16 %v4532, %v4531
        %v4561 = vpack.c.bf16 %v4534, %v4533
        %v4562 = vpack.c.bf16 %v4536, %v4535
        %v4563 = vpack.c.bf16 %v4538, %v4537
        %v4564 = vpack.c.bf16 %v4540, %v4539
        %v4565 = vpack.c.bf16 %v4542, %v4541
        %v4566 = vpack.c.bf16 %v4544, %v4543
        %v4567 = vpack.c.bf16 %v4546, %v4545
        %v4568 = vpack.c.bf16 %v4548, %v4547
        %v4569 = vpack.c.bf16 %v4550, %v4549
        %v4570 = vpack.c.bf16 %v4552, %v4551
        %v4571 = vpack.c.bf16 %v4554, %v4553
        %v4572 = vpack.c.bf16 %v4556, %v4555
        %v4589 = vunpack.c.l.b16 %v4557
        %v4590 = vunpack.c.h.b16 %v4557
        %v4591 = vunpack.c.l.b16 %v4558
        %v4592 = vunpack.c.h.b16 %v4558
        %v4593 = vunpack.c.l.b16 %v4559
        %v4594 = vunpack.c.h.b16 %v4559
        %v4595 = vunpack.c.l.b16 %v4560
        %v4596 = vunpack.c.h.b16 %v4560
        %v4597 = vunpack.c.l.b16 %v4561
        %v4598 = vunpack.c.h.b16 %v4561
        %v4599 = vunpack.c.l.b16 %v4562
        %v4600 = vunpack.c.h.b16 %v4562
        %v4601 = vunpack.c.l.b16 %v4563
        %v4602 = vunpack.c.h.b16 %v4563
        %v4603 = vunpack.c.l.b16 %v4564
        %v4604 = vunpack.c.h.b16 %v4564
        %v4605 = vunpack.c.l.b16 %v4565
        %v4606 = vunpack.c.h.b16 %v4565
        %v4607 = vunpack.c.l.b16 %v4566
        %v4608 = vunpack.c.h.b16 %v4566
        %v4609 = vunpack.c.l.b16 %v4567
        %v4610 = vunpack.c.h.b16 %v4567
        %v4611 = vunpack.c.l.b16 %v4568
        %v4612 = vunpack.c.h.b16 %v4568
        %v4613 = vunpack.c.l.b16 %v4569
        %v4614 = vunpack.c.h.b16 %v4569
        %v4615 = vunpack.c.l.b16 %v4570
        %v4616 = vunpack.c.h.b16 %v4570
        %v4617 = vunpack.c.l.b16 %v4571
        %v4618 = vunpack.c.h.b16 %v4571
        %v4619 = vunpack.c.l.b16 %v4572
        %v4620 = vunpack.c.h.b16 %v4572
        %v4621 = vpack.c.b16 %v4589, %v4589
        %v4622 = vpack.c.b16 %v4590, %v4590
        %v4623 = vpack.c.b16 %v4591, %v4591
        %v4624 = vpack.c.b16 %v4592, %v4592
        %v4625 = vpack.c.b16 %v4593, %v4593
        %v4626 = vpack.c.b16 %v4594, %v4594
        %v4627 = vpack.c.b16 %v4595, %v4595
        %v4628 = vpack.c.b16 %v4596, %v4596
        %v4629 = vpack.c.b16 %v4597, %v4597
        %v4630 = vpack.c.b16 %v4598, %v4598
        %v4631 = vpack.c.b16 %v4599, %v4599
        %v4632 = vpack.c.b16 %v4600, %v4600
        %v4633 = vpack.c.b16 %v4601, %v4601
        %v4634 = vpack.c.b16 %v4602, %v4602
        %v4635 = vpack.c.b16 %v4603, %v4603
        %v4636 = vpack.c.b16 %v4604, %v4604
        %v4637 = vpack.c.b16 %v4605, %v4605
        %v4638 = vpack.c.b16 %v4606, %v4606
        %v4639 = vpack.c.b16 %v4607, %v4607
        %v4640 = vpack.c.b16 %v4608, %v4608
        %v4641 = vpack.c.b16 %v4609, %v4609
        %v4642 = vpack.c.b16 %v4610, %v4610
        %v4643 = vpack.c.b16 %v4611, %v4611
        %v4644 = vpack.c.b16 %v4612, %v4612
        %v4645 = vpack.c.b16 %v4613, %v4613
        %v4646 = vpack.c.b16 %v4614, %v4614
        %v4647 = vpack.c.b16 %v4615, %v4615
        %v4648 = vpack.c.b16 %v4616, %v4616
        %v4649 = vpack.c.b16 %v4617, %v4617
        %v4650 = vpack.c.b16 %v4618, %v4618
        %v4651 = vpack.c.b16 %v4619, %v4619
        %v4652 = vpack.c.b16 %v4620, %v4620
        %v4654 = vshrl.u32 %v4621, 16
        %v4656 = vrot.slane %v4654, 7
        %v4657 = vshll.u32 %v4621, 16
        %v4659 = vor.u32 %v4656, %v4657
        %v4660 = vrot.slane %v4656, 4
        %v4662 = vshrl.u32 %v4622, 16
        %v4664 = vrot.slane %v4662, 7
        %v4665 = vshll.u32 %v4622, 16
        %v4667 = vor.u32 %v4664, %v4665
        %v4668 = vsel %vm379, %v4660, %v4667
        %v4669 = vrot.slane %v4664, 4
        %v4671 = vshrl.u32 %v4623, 16
        %v4673 = vrot.slane %v4671, 7
        %v4674 = vshll.u32 %v4623, 16
        %v4676 = vor.u32 %v4673, %v4674
        %v4677 = vrot.slane %v4673, 4
        %v4679 = vshrl.u32 %v4624, 16
        %v4681 = vrot.slane %v4679, 7
        %v4682 = vshll.u32 %v4624, 16
        %v4684 = vor.u32 %v4681, %v4682
        %v4685 = vsel %vm379, %v4677, %v4684
        %v4686 = vrot.slane %v4681, 4
        %v4688 = vshrl.u32 %v4625, 16
        %v4690 = vrot.slane %v4688, 7
        %v4691 = vshll.u32 %v4625, 16
        %v4693 = vor.u32 %v4690, %v4691
        %v4694 = vrot.slane %v4690, 4
        %v4696 = vshrl.u32 %v4626, 16
        %v4698 = vrot.slane %v4696, 7
        %v4699 = vshll.u32 %v4626, 16
        %v4701 = vor.u32 %v4698, %v4699
        %v4702 = vsel %vm379, %v4694, %v4701
        %v4703 = vrot.slane %v4698, 4
        %v4705 = vshrl.u32 %v4627, 16
        %v4707 = vrot.slane %v4705, 7
        %v4708 = vshll.u32 %v4627, 16
        %v4710 = vor.u32 %v4707, %v4708
        %v4711 = vrot.slane %v4707, 4
        %v4713 = vshrl.u32 %v4628, 16
        %v4715 = vrot.slane %v4713, 7
        %v4716 = vshll.u32 %v4628, 16
        %v4718 = vor.u32 %v4715, %v4716
        %v4719 = vsel %vm379, %v4711, %v4718
        %v4720 = vrot.slane %v4715, 4
        %v4722 = vshrl.u32 %v4629, 16
        %v4724 = vrot.slane %v4722, 7
        %v4725 = vshll.u32 %v4629, 16
        %v4727 = vor.u32 %v4724, %v4725
        %v4728 = vrot.slane %v4724, 4
        %v4730 = vshrl.u32 %v4630, 16
        %v4732 = vrot.slane %v4730, 7
        %v4733 = vshll.u32 %v4630, 16
        %v4735 = vor.u32 %v4732, %v4733
        %v4736 = vsel %vm379, %v4728, %v4735
        %v4737 = vrot.slane %v4732, 4
        %v4739 = vshrl.u32 %v4631, 16
        %v4741 = vrot.slane %v4739, 7
        %v4742 = vshll.u32 %v4631, 16
        %v4744 = vor.u32 %v4741, %v4742
        %v4745 = vrot.slane %v4741, 4
        %v4747 = vshrl.u32 %v4632, 16
        %v4749 = vrot.slane %v4747, 7
        %v4750 = vshll.u32 %v4632, 16
        %v4752 = vor.u32 %v4749, %v4750
        %v4753 = vsel %vm379, %v4745, %v4752
        %v4754 = vrot.slane %v4749, 4
        %v4756 = vshrl.u32 %v4633, 16
        %v4758 = vrot.slane %v4756, 7
        %v4759 = vshll.u32 %v4633, 16
        %v4761 = vor.u32 %v4758, %v4759
        %v4762 = vrot.slane %v4758, 4
        %v4764 = vshrl.u32 %v4634, 16
        %v4766 = vrot.slane %v4764, 7
        %v4767 = vshll.u32 %v4634, 16
        %v4769 = vor.u32 %v4766, %v4767
        %v4770 = vsel %vm379, %v4762, %v4769
        %v4771 = vrot.slane %v4766, 4
        %v4773 = vshrl.u32 %v4635, 16
        %v4775 = vrot.slane %v4773, 7
        %v4776 = vshll.u32 %v4635, 16
        %v4778 = vor.u32 %v4775, %v4776
        %v4779 = vrot.slane %v4775, 4
        %v4781 = vshrl.u32 %v4636, 16
        %v4783 = vrot.slane %v4781, 7
        %v4784 = vshll.u32 %v4636, 16
        %v4786 = vor.u32 %v4783, %v4784
        %v4787 = vsel %vm379, %v4779, %v4786
        %v4788 = vrot.slane %v4783, 4
        %v4790 = vshrl.u32 %v4637, 16
        %v4792 = vrot.slane %v4790, 7
        %v4793 = vshll.u32 %v4637, 16
        %v4795 = vor.u32 %v4792, %v4793
        %v4796 = vrot.slane %v4792, 4
        %v4798 = vshrl.u32 %v4638, 16
        %v4800 = vrot.slane %v4798, 7
        %v4801 = vshll.u32 %v4638, 16
        %v4803 = vor.u32 %v4800, %v4801
        %v4804 = vsel %vm379, %v4796, %v4803
        %v4805 = vrot.slane %v4800, 4
        %v4807 = vshrl.u32 %v4639, 16
        %v4809 = vrot.slane %v4807, 7
        %v4810 = vshll.u32 %v4639, 16
        %v4812 = vor.u32 %v4809, %v4810
        %v4813 = vrot.slane %v4809, 4
        %v4815 = vshrl.u32 %v4640, 16
        %v4817 = vrot.slane %v4815, 7
        %v4818 = vshll.u32 %v4640, 16
        %v4820 = vor.u32 %v4817, %v4818
        %v4821 = vsel %vm379, %v4813, %v4820
        %v4822 = vrot.slane %v4817, 4
        %v4824 = vshrl.u32 %v4641, 16
        %v4826 = vrot.slane %v4824, 7
        %v4827 = vshll.u32 %v4641, 16
        %v4829 = vor.u32 %v4826, %v4827
        %v4830 = vrot.slane %v4826, 4
        %v4832 = vshrl.u32 %v4642, 16
        %v4834 = vrot.slane %v4832, 7
        %v4835 = vshll.u32 %v4642, 16
        %v4837 = vor.u32 %v4834, %v4835
        %v4838 = vsel %vm379, %v4830, %v4837
        %v4839 = vrot.slane %v4834, 4
        %v4841 = vshrl.u32 %v4643, 16
        %v4843 = vrot.slane %v4841, 7
        %v4844 = vshll.u32 %v4643, 16
        %v4846 = vor.u32 %v4843, %v4844
        %v4847 = vrot.slane %v4843, 4
        %v4849 = vshrl.u32 %v4644, 16
        %v4851 = vrot.slane %v4849, 7
        %v4852 = vshll.u32 %v4644, 16
        %v4854 = vor.u32 %v4851, %v4852
        %v4855 = vsel %vm379, %v4847, %v4854
        %v4856 = vrot.slane %v4851, 4
        %v4858 = vshrl.u32 %v4645, 16
        %v4860 = vrot.slane %v4858, 7
        %v4861 = vshll.u32 %v4645, 16
        %v4863 = vor.u32 %v4860, %v4861
        %v4864 = vrot.slane %v4860, 4
        %v4866 = vshrl.u32 %v4646, 16
        %v4868 = vrot.slane %v4866, 7
        %v4869 = vshll.u32 %v4646, 16
        %v4871 = vor.u32 %v4868, %v4869
        %v4872 = vsel %vm379, %v4864, %v4871
        %v4873 = vrot.slane %v4868, 4
        %v4875 = vshrl.u32 %v4647, 16
        %v4877 = vrot.slane %v4875, 7
        %v4878 = vshll.u32 %v4647, 16
        %v4880 = vor.u32 %v4877, %v4878
        %v4881 = vrot.slane %v4877, 4
        %v4883 = vshrl.u32 %v4648, 16
        %v4885 = vrot.slane %v4883, 7
        %v4886 = vshll.u32 %v4648, 16
        %v4888 = vor.u32 %v4885, %v4886
        %v4889 = vsel %vm379, %v4881, %v4888
        %v4890 = vrot.slane %v4885, 4
        %v4892 = vshrl.u32 %v4649, 16
        %v4894 = vrot.slane %v4892, 7
        %v4895 = vshll.u32 %v4649, 16
        %v4897 = vor.u32 %v4894, %v4895
        %v4898 = vrot.slane %v4894, 4
        %v4900 = vshrl.u32 %v4650, 16
        %v4902 = vrot.slane %v4900, 7
        %v4903 = vshll.u32 %v4650, 16
        %v4905 = vor.u32 %v4902, %v4903
        %v4906 = vsel %vm379, %v4898, %v4905
        %v4907 = vrot.slane %v4902, 4
        %v4909 = vshrl.u32 %v4651, 16
        %v4911 = vrot.slane %v4909, 7
        %v4912 = vshll.u32 %v4651, 16
        %v4914 = vor.u32 %v4911, %v4912
        %v4915 = vrot.slane %v4911, 4
        %v4917 = vshrl.u32 %v4652, 16
        %v4919 = vrot.slane %v4917, 7
        %v4920 = vshll.u32 %v4652, 16
        %v4922 = vor.u32 %v4919, %v4920
        %v4923 = vsel %vm379, %v4915, %v4922
        %v4924 = vrot.slane %v4919, 4
        %s4973 = scalar_lea.vmem [#allocation3], 12
        %v4974 = vld [vmem:[%s4973] sm:$0xf]
        %v4975 = vsel %vm702, %v4659, %v4974
        %4976 = vst [vmem:[%s4973] sm:$0xf] %v4975
        %4977 = vst.msk [vmem:[%s4973 + $0x4] sm:$0xf] %vm224, %v4668
        %v4978 = vld [vmem:[%s4973 + $0x8] sm:$0x1]
        %v4979 = vsel %vm235, %v4669, %v4978
        %4980 = vst [vmem:[%s4973 + $0x8] sm:$0x1] %v4979
        %v4981 = vld [vmem:[%s4973 + $0xc] sm:$0xf]
        %v4982 = vsel %vm702, %v4676, %v4981
        %4983 = vst [vmem:[%s4973 + $0xc] sm:$0xf] %v4982
        %4984 = vst.msk [vmem:[%s4973 + $0x10] sm:$0xf] %vm224, %v4685
        %v4985 = vld [vmem:[%s4973 + $0x14] sm:$0x1]
        %v4986 = vsel %vm235, %v4686, %v4985
        %4987 = vst [vmem:[%s4973 + $0x14] sm:$0x1] %v4986
        %v4988 = vld [vmem:[%s4973 + $0x18] sm:$0xf]
        %v4989 = vsel %vm702, %v4693, %v4988
        %4990 = vst [vmem:[%s4973 + $0x18] sm:$0xf] %v4989
        %4991 = vst.msk [vmem:[%s4973 + $0x1c] sm:$0xf] %vm224, %v4702
        %v4992 = vld [vmem:[%s4973 + $0x20] sm:$0x1]
        %v4993 = vsel %vm235, %v4703, %v4992
        %4994 = vst [vmem:[%s4973 + $0x20] sm:$0x1] %v4993
        %v4995 = vld [vmem:[%s4973 + $0x24] sm:$0xf]
        %v4996 = vsel %vm702, %v4710, %v4995
        %4997 = vst [vmem:[%s4973 + $0x24] sm:$0xf] %v4996
        %4998 = vst.msk [vmem:[%s4973 + $0x28] sm:$0xf] %vm224, %v4719
        %v4999 = vld [vmem:[%s4973 + $0x2c] sm:$0x1]
        %v5000 = vsel %vm235, %v4720, %v4999
        %5001 = vst [vmem:[%s4973 + $0x2c] sm:$0x1] %v5000
        %v5002 = vld [vmem:[%s4973 + $0x30] sm:$0xf]
        %v5003 = vsel %vm702, %v4727, %v5002
        %5004 = vst [vmem:[%s4973 + $0x30] sm:$0xf] %v5003
        %5005 = vst.msk [vmem:[%s4973 + $0x34] sm:$0xf] %vm224, %v4736
        %v5006 = vld [vmem:[%s4973 + $0x38] sm:$0x1]
        %v5007 = vsel %vm235, %v4737, %v5006
        %5008 = vst [vmem:[%s4973 + $0x38] sm:$0x1] %v5007
        %v5009 = vld [vmem:[%s4973 + $0x3c] sm:$0xf]
        %v5010 = vsel %vm702, %v4744, %v5009
        %5011 = vst [vmem:[%s4973 + $0x3c] sm:$0xf] %v5010
        %5012 = vst.msk [vmem:[%s4973 + $0x40] sm:$0xf] %vm224, %v4753
        %v5013 = vld [vmem:[%s4973 + $0x44] sm:$0x1]
        %v5014 = vsel %vm235, %v4754, %v5013
        %5015 = vst [vmem:[%s4973 + $0x44] sm:$0x1] %v5014
        %v5016 = vld [vmem:[%s4973 + $0x48] sm:$0xf]
        %v5017 = vsel %vm702, %v4761, %v5016
        %5018 = vst [vmem:[%s4973 + $0x48] sm:$0xf] %v5017
        %5019 = vst.msk [vmem:[%s4973 + $0x4c] sm:$0xf] %vm224, %v4770
        %v5020 = vld [vmem:[%s4973 + $0x50] sm:$0x1]
        %v5021 = vsel %vm235, %v4771, %v5020
        %5022 = vst [vmem:[%s4973 + $0x50] sm:$0x1] %v5021
        %v5023 = vld [vmem:[%s4973 + $0x54] sm:$0xf]
        %v5024 = vsel %vm702, %v4778, %v5023
        %5025 = vst [vmem:[%s4973 + $0x54] sm:$0xf] %v5024
        %5026 = vst.msk [vmem:[%s4973 + $0x58] sm:$0xf] %vm224, %v4787
        %v5027 = vld [vmem:[%s4973 + $0x5c] sm:$0x1]
        %v5028 = vsel %vm235, %v4788, %v5027
        %5029 = vst [vmem:[%s4973 + $0x5c] sm:$0x1] %v5028
        %v5030 = vld [vmem:[%s4973 + $0x60] sm:$0xf]
        %v5031 = vsel %vm702, %v4795, %v5030
        %5032 = vst [vmem:[%s4973 + $0x60] sm:$0xf] %v5031
        %5033 = vst.msk [vmem:[%s4973 + $0x64] sm:$0xf] %vm224, %v4804
        %v5034 = vld [vmem:[%s4973 + $0x68] sm:$0x1]
        %v5035 = vsel %vm235, %v4805, %v5034
        %5036 = vst [vmem:[%s4973 + $0x68] sm:$0x1] %v5035
        %v5037 = vld [vmem:[%s4973 + $0x6c] sm:$0xf]
        %v5038 = vsel %vm702, %v4812, %v5037
        %5039 = vst [vmem:[%s4973 + $0x6c] sm:$0xf] %v5038
        %5040 = vst.msk [vmem:[%s4973 + $0x70] sm:$0xf] %vm224, %v4821
        %v5041 = vld [vmem:[%s4973 + $0x74] sm:$0x1]
        %v5042 = vsel %vm235, %v4822, %v5041
        %5043 = vst [vmem:[%s4973 + $0x74] sm:$0x1] %v5042
        %v5044 = vld [vmem:[%s4973 + $0x78] sm:$0xf]
        %v5045 = vsel %vm702, %v4829, %v5044
        %5046 = vst [vmem:[%s4973 + $0x78] sm:$0xf] %v5045
        %5047 = vst.msk [vmem:[%s4973 + $0x7c] sm:$0xf] %vm224, %v4838
        %v5048 = vld [vmem:[%s4973 + $0x80] sm:$0x1]
        %v5049 = vsel %vm235, %v4839, %v5048
        %5050 = vst [vmem:[%s4973 + $0x80] sm:$0x1] %v5049
        %v5051 = vld [vmem:[%s4973 + $0x84] sm:$0xf]
        %v5052 = vsel %vm702, %v4846, %v5051
        %5053 = vst [vmem:[%s4973 + $0x84] sm:$0xf] %v5052
        %5054 = vst.msk [vmem:[%s4973 + $0x88] sm:$0xf] %vm224, %v4855
        %v5055 = vld [vmem:[%s4973 + $0x8c] sm:$0x1]
        %v5056 = vsel %vm235, %v4856, %v5055
        %5057 = vst [vmem:[%s4973 + $0x8c] sm:$0x1] %v5056
        %v5058 = vld [vmem:[%s4973 + $0x90] sm:$0xf]
        %v5059 = vsel %vm702, %v4863, %v5058
        %5060 = vst [vmem:[%s4973 + $0x90] sm:$0xf] %v5059
        %5061 = vst.msk [vmem:[%s4973 + $0x94] sm:$0xf] %vm224, %v4872
        %v5062 = vld [vmem:[%s4973 + $0x98] sm:$0x1]
        %v5063 = vsel %vm235, %v4873, %v5062
        %5064 = vst [vmem:[%s4973 + $0x98] sm:$0x1] %v5063
        %v5065 = vld [vmem:[%s4973 + $0x9c] sm:$0xf]
        %v5066 = vsel %vm702, %v4880, %v5065
        %5067 = vst [vmem:[%s4973 + $0x9c] sm:$0xf] %v5066
        %5068 = vst.msk [vmem:[%s4973 + $0xa0] sm:$0xf] %vm224, %v4889
        %v5069 = vld [vmem:[%s4973 + $0xa4] sm:$0x1]
        %v5070 = vsel %vm235, %v4890, %v5069
        %5071 = vst [vmem:[%s4973 + $0xa4] sm:$0x1] %v5070
        %v5072 = vld [vmem:[%s4973 + $0xa8] sm:$0xf]
        %v5073 = vsel %vm702, %v4897, %v5072
        %5074 = vst [vmem:[%s4973 + $0xa8] sm:$0xf] %v5073
        %5075 = vst.msk [vmem:[%s4973 + $0xac] sm:$0xf] %vm224, %v4906
        %v5076 = vld [vmem:[%s4973 + $0xb0] sm:$0x1]
        %v5077 = vsel %vm235, %v4907, %v5076
        %5078 = vst [vmem:[%s4973 + $0xb0] sm:$0x1] %v5077
        %v5079 = vld [vmem:[%s4973 + $0xb4] sm:$0xf]
        %v5080 = vsel %vm702, %v4914, %v5079
        %5081 = vst [vmem:[%s4973 + $0xb4] sm:$0xf] %v5080
        %5082 = vst.msk [vmem:[%s4973 + $0xb8] sm:$0xf] %vm224, %v4923
        %v5083 = vld [vmem:[%s4973 + $0xbc] sm:$0x1]
        %v5084 = vsel %vm235, %v4924, %v5083
        %5085 = vst [vmem:[%s4973 + $0xbc] sm:$0x1] %v5084
        %v5087 = vlaneseq
        %v5088 = vshrl.u32 %v5087, 7
        %v5089 = vsub.s32 0, %v5088
        %v5090 = vrot.slane %v1075, %v5089
        %v5092 = vld [vmem:[#allocation3] sm:$0xf]
        %v5093 = vld [vmem:[#allocation3 + $0x4] sm:$0xf]
        %v5094 = vld [vmem:[#allocation3 + $0x8] sm:$0x1]
        %v5095 = vld [vmem:[#allocation3 + $0xc] sm:$0xf]
        %v5096 = vld [vmem:[#allocation3 + $0x10] sm:$0xf]
        %v5097 = vld [vmem:[#allocation3 + $0x14] sm:$0x1]
        %v5098 = vld [vmem:[#allocation3 + $0x18] sm:$0xf]
        %v5099 = vld [vmem:[#allocation3 + $0x1c] sm:$0xf]
        %v5100 = vld [vmem:[#allocation3 + $0x20] sm:$0x1]
        %v5101 = vld [vmem:[#allocation3 + $0x24] sm:$0xf]
        %v5102 = vld [vmem:[#allocation3 + $0x28] sm:$0xf]
        %v5103 = vld [vmem:[#allocation3 + $0x2c] sm:$0x1]
        %v5104 = vld [vmem:[#allocation3 + $0x30] sm:$0xf]
        %v5105 = vld [vmem:[#allocation3 + $0x34] sm:$0xf]
        %v5106 = vld [vmem:[#allocation3 + $0x38] sm:$0x1]
        %v5107 = vld [vmem:[#allocation3 + $0x3c] sm:$0xf]
        %v5108 = vld [vmem:[#allocation3 + $0x40] sm:$0xf]
        %v5109 = vld [vmem:[#allocation3 + $0x44] sm:$0x1]
        %v5110 = vld [vmem:[#allocation3 + $0x48] sm:$0xf]
        %v5111 = vld [vmem:[#allocation3 + $0x4c] sm:$0xf]
        %v5112 = vld [vmem:[#allocation3 + $0x50] sm:$0x1]
        %v5113 = vld [vmem:[#allocation3 + $0x54] sm:$0xf]
        %v5114 = vld [vmem:[#allocation3 + $0x58] sm:$0xf]
        %v5115 = vld [vmem:[#allocation3 + $0x5c] sm:$0x1]
        %v5116 = vld [vmem:[#allocation3 + $0x60] sm:$0xf]
        %v5117 = vld [vmem:[#allocation3 + $0x64] sm:$0xf]
        %v5118 = vld [vmem:[#allocation3 + $0x68] sm:$0x1]
        %v5119 = vld [vmem:[#allocation3 + $0x6c] sm:$0xf]
        %v5120 = vld [vmem:[#allocation3 + $0x70] sm:$0xf]
        %v5121 = vld [vmem:[#allocation3 + $0x74] sm:$0x1]
        %v5122 = vld [vmem:[#allocation3 + $0x78] sm:$0xf]
        %v5123 = vld [vmem:[#allocation3 + $0x7c] sm:$0xf]
        %v5124 = vld [vmem:[#allocation3 + $0x80] sm:$0x1]
        %v5125 = vld [vmem:[#allocation3 + $0x84] sm:$0xf]
        %v5126 = vld [vmem:[#allocation3 + $0x88] sm:$0xf]
        %v5127 = vld [vmem:[#allocation3 + $0x8c] sm:$0x1]
        %v5128 = vld [vmem:[#allocation3 + $0x90] sm:$0xf]
        %v5129 = vld [vmem:[#allocation3 + $0x94] sm:$0xf]
        %v5130 = vld [vmem:[#allocation3 + $0x98] sm:$0x1]
        %v5131 = vld [vmem:[#allocation3 + $0x9c] sm:$0xf]
        %v5132 = vld [vmem:[#allocation3 + $0xa0] sm:$0xf]
        %v5133 = vld [vmem:[#allocation3 + $0xa4] sm:$0x1]
        %v5134 = vld [vmem:[#allocation3 + $0xa8] sm:$0xf]
        %v5135 = vld [vmem:[#allocation3 + $0xac] sm:$0xf]
        %v5136 = vld [vmem:[#allocation3 + $0xb0] sm:$0x1]
        %v5137 = vld [vmem:[#allocation3 + $0xb4] sm:$0xf]
        %v5138 = vld [vmem:[#allocation3 + $0xb8] sm:$0xf]
        %v5139 = vld [vmem:[#allocation3 + $0xbc] sm:$0x1]
        %v5141 = vshrl.u32 %v5092, 16
        %v5143 = vrot.slane %v5141, 4
        %v5144 = vshll.u32 %v5092, 16
        %v5146 = vrot.slane %v5144, 5
        %v5147 = vor.u32 %v5143, %v5146
        %v5148 = vrot.slane %v5147, 4
        %v5150 = vshll.u32 %v5093, 16
        %v5152 = vrot.slane %v5150, 5
        %v5153 = vsel %vm1132, %v5148, %v5152
        %v5154 = vshrl.u32 %v5093, 16
        %v5156 = vrot.slane %v5154, 4
        %v5157 = vor.u32 %v5156, %v5152
        %v5158 = vrot.slane %v5157, 4
        %v5160 = vshll.u32 %v5094, 16
        %v5162 = vrot.slane %v5160, 5
        %v5163 = vsel %vm1132, %v5158, %v5162
        %v5165 = vshrl.u32 %v5095, 16
        %v5167 = vrot.slane %v5165, 4
        %v5168 = vshll.u32 %v5095, 16
        %v5170 = vrot.slane %v5168, 5
        %v5171 = vor.u32 %v5167, %v5170
        %v5172 = vrot.slane %v5171, 4
        %v5174 = vshll.u32 %v5096, 16
        %v5176 = vrot.slane %v5174, 5
        %v5177 = vsel %vm1132, %v5172, %v5176
        %v5178 = vshrl.u32 %v5096, 16
        %v5180 = vrot.slane %v5178, 4
        %v5181 = vor.u32 %v5180, %v5176
        %v5182 = vrot.slane %v5181, 4
        %v5184 = vshll.u32 %v5097, 16
        %v5186 = vrot.slane %v5184, 5
        %v5187 = vsel %vm1132, %v5182, %v5186
        %v5189 = vshrl.u32 %v5098, 16
        %v5191 = vrot.slane %v5189, 4
        %v5192 = vshll.u32 %v5098, 16
        %v5194 = vrot.slane %v5192, 5
        %v5195 = vor.u32 %v5191, %v5194
        %v5196 = vrot.slane %v5195, 4
        %v5198 = vshll.u32 %v5099, 16
        %v5200 = vrot.slane %v5198, 5
        %v5201 = vsel %vm1132, %v5196, %v5200
        %v5202 = vshrl.u32 %v5099, 16
        %v5204 = vrot.slane %v5202, 4
        %v5205 = vor.u32 %v5204, %v5200
        %v5206 = vrot.slane %v5205, 4
        %v5208 = vshll.u32 %v5100, 16
        %v5210 = vrot.slane %v5208, 5
        %v5211 = vsel %vm1132, %v5206, %v5210
        %v5213 = vshrl.u32 %v5101, 16
        %v5215 = vrot.slane %v5213, 4
        %v5216 = vshll.u32 %v5101, 16
        %v5218 = vrot.slane %v5216, 5
        %v5219 = vor.u32 %v5215, %v5218
        %v5220 = vrot.slane %v5219, 4
        %v5222 = vshll.u32 %v5102, 16
        %v5224 = vrot.slane %v5222, 5
        %v5225 = vsel %vm1132, %v5220, %v5224
        %v5226 = vshrl.u32 %v5102, 16
        %v5228 = vrot.slane %v5226, 4
        %v5229 = vor.u32 %v5228, %v5224
        %v5230 = vrot.slane %v5229, 4
        %v5232 = vshll.u32 %v5103, 16
        %v5234 = vrot.slane %v5232, 5
        %v5235 = vsel %vm1132, %v5230, %v5234
        %v5237 = vshrl.u32 %v5104, 16
        %v5239 = vrot.slane %v5237, 4
        %v5240 = vshll.u32 %v5104, 16
        %v5242 = vrot.slane %v5240, 5
        %v5243 = vor.u32 %v5239, %v5242
        %v5244 = vrot.slane %v5243, 4
        %v5246 = vshll.u32 %v5105, 16
        %v5248 = vrot.slane %v5246, 5
        %v5249 = vsel %vm1132, %v5244, %v5248
        %v5250 = vshrl.u32 %v5105, 16
        %v5252 = vrot.slane %v5250, 4
        %v5253 = vor.u32 %v5252, %v5248
        %v5254 = vrot.slane %v5253, 4
        %v5256 = vshll.u32 %v5106, 16
        %v5258 = vrot.slane %v5256, 5
        %v5259 = vsel %vm1132, %v5254, %v5258
        %v5261 = vshrl.u32 %v5107, 16
        %v5263 = vrot.slane %v5261, 4
        %v5264 = vshll.u32 %v5107, 16
        %v5266 = vrot.slane %v5264, 5
        %v5267 = vor.u32 %v5263, %v5266
        %v5268 = vrot.slane %v5267, 4
        %v5270 = vshll.u32 %v5108, 16
        %v5272 = vrot.slane %v5270, 5
        %v5273 = vsel %vm1132, %v5268, %v5272
        %v5274 = vshrl.u32 %v5108, 16
        %v5276 = vrot.slane %v5274, 4
        %v5277 = vor.u32 %v5276, %v5272
        %v5278 = vrot.slane %v5277, 4
        %v5280 = vshll.u32 %v5109, 16
        %v5282 = vrot.slane %v5280, 5
        %v5283 = vsel %vm1132, %v5278, %v5282
        %v5285 = vshrl.u32 %v5110, 16
        %v5287 = vrot.slane %v5285, 4
        %v5288 = vshll.u32 %v5110, 16
        %v5290 = vrot.slane %v5288, 5
        %v5291 = vor.u32 %v5287, %v5290
        %v5292 = vrot.slane %v5291, 4
        %v5294 = vshll.u32 %v5111, 16
        %v5296 = vrot.slane %v5294, 5
        %v5297 = vsel %vm1132, %v5292, %v5296
        %v5298 = vshrl.u32 %v5111, 16
        %v5300 = vrot.slane %v5298, 4
        %v5301 = vor.u32 %v5300, %v5296
        %v5302 = vrot.slane %v5301, 4
        %v5304 = vshll.u32 %v5112, 16
        %v5306 = vrot.slane %v5304, 5
        %v5307 = vsel %vm1132, %v5302, %v5306
        %v5309 = vshrl.u32 %v5113, 16
        %v5311 = vrot.slane %v5309, 4
        %v5312 = vshll.u32 %v5113, 16
        %v5314 = vrot.slane %v5312, 5
        %v5315 = vor.u32 %v5311, %v5314
        %v5316 = vrot.slane %v5315, 4
        %v5318 = vshll.u32 %v5114, 16
        %v5320 = vrot.slane %v5318, 5
        %v5321 = vsel %vm1132, %v5316, %v5320
        %v5322 = vshrl.u32 %v5114, 16
        %v5324 = vrot.slane %v5322, 4
        %v5325 = vor.u32 %v5324, %v5320
        %v5326 = vrot.slane %v5325, 4
        %v5328 = vshll.u32 %v5115, 16
        %v5330 = vrot.slane %v5328, 5
        %v5331 = vsel %vm1132, %v5326, %v5330
        %v5333 = vshrl.u32 %v5116, 16
        %v5335 = vrot.slane %v5333, 4
        %v5336 = vshll.u32 %v5116, 16
        %v5338 = vrot.slane %v5336, 5
        %v5339 = vor.u32 %v5335, %v5338
        %v5340 = vrot.slane %v5339, 4
        %v5342 = vshll.u32 %v5117, 16
        %v5344 = vrot.slane %v5342, 5
        %v5345 = vsel %vm1132, %v5340, %v5344
        %v5346 = vshrl.u32 %v5117, 16
        %v5348 = vrot.slane %v5346, 4
        %v5349 = vor.u32 %v5348, %v5344
        %v5350 = vrot.slane %v5349, 4
        %v5352 = vshll.u32 %v5118, 16
        %v5354 = vrot.slane %v5352, 5
        %v5355 = vsel %vm1132, %v5350, %v5354
        %v5357 = vshrl.u32 %v5119, 16
        %v5359 = vrot.slane %v5357, 4
        %v5360 = vshll.u32 %v5119, 16
        %v5362 = vrot.slane %v5360, 5
        %v5363 = vor.u32 %v5359, %v5362
        %v5364 = vrot.slane %v5363, 4
        %v5366 = vshll.u32 %v5120, 16
        %v5368 = vrot.slane %v5366, 5
        %v5369 = vsel %vm1132, %v5364, %v5368
        %v5370 = vshrl.u32 %v5120, 16
        %v5372 = vrot.slane %v5370, 4
        %v5373 = vor.u32 %v5372, %v5368
        %v5374 = vrot.slane %v5373, 4
        %v5376 = vshll.u32 %v5121, 16
        %v5378 = vrot.slane %v5376, 5
        %v5379 = vsel %vm1132, %v5374, %v5378
        %v5381 = vshrl.u32 %v5122, 16
        %v5383 = vrot.slane %v5381, 4
        %v5384 = vshll.u32 %v5122, 16
        %v5386 = vrot.slane %v5384, 5
        %v5387 = vor.u32 %v5383, %v5386
        %v5388 = vrot.slane %v5387, 4
        %v5390 = vshll.u32 %v5123, 16
        %v5392 = vrot.slane %v5390, 5
        %v5393 = vsel %vm1132, %v5388, %v5392
        %v5394 = vshrl.u32 %v5123, 16
        %v5396 = vrot.slane %v5394, 4
        %v5397 = vor.u32 %v5396, %v5392
        %v5398 = vrot.slane %v5397, 4
        %v5400 = vshll.u32 %v5124, 16
        %v5402 = vrot.slane %v5400, 5
        %v5403 = vsel %vm1132, %v5398, %v5402
        %v5405 = vshrl.u32 %v5125, 16
        %v5407 = vrot.slane %v5405, 4
        %v5408 = vshll.u32 %v5125, 16
        %v5410 = vrot.slane %v5408, 5
        %v5411 = vor.u32 %v5407, %v5410
        %v5412 = vrot.slane %v5411, 4
        %v5414 = vshll.u32 %v5126, 16
        %v5416 = vrot.slane %v5414, 5
        %v5417 = vsel %vm1132, %v5412, %v5416
        %v5418 = vshrl.u32 %v5126, 16
        %v5420 = vrot.slane %v5418, 4
        %v5421 = vor.u32 %v5420, %v5416
        %v5422 = vrot.slane %v5421, 4
        %v5424 = vshll.u32 %v5127, 16
        %v5426 = vrot.slane %v5424, 5
        %v5427 = vsel %vm1132, %v5422, %v5426
        %v5429 = vshrl.u32 %v5128, 16
        %v5431 = vrot.slane %v5429, 4
        %v5432 = vshll.u32 %v5128, 16
        %v5434 = vrot.slane %v5432, 5
        %v5435 = vor.u32 %v5431, %v5434
        %v5436 = vrot.slane %v5435, 4
        %v5438 = vshll.u32 %v5129, 16
        %v5440 = vrot.slane %v5438, 5
        %v5441 = vsel %vm1132, %v5436, %v5440
        %v5442 = vshrl.u32 %v5129, 16
        %v5444 = vrot.slane %v5442, 4
        %v5445 = vor.u32 %v5444, %v5440
        %v5446 = vrot.slane %v5445, 4
        %v5448 = vshll.u32 %v5130, 16
        %v5450 = vrot.slane %v5448, 5
        %v5451 = vsel %vm1132, %v5446, %v5450
        %v5453 = vshrl.u32 %v5131, 16
        %v5455 = vrot.slane %v5453, 4
        %v5456 = vshll.u32 %v5131, 16
        %v5458 = vrot.slane %v5456, 5
        %v5459 = vor.u32 %v5455, %v5458
        %v5460 = vrot.slane %v5459, 4
        %v5462 = vshll.u32 %v5132, 16
        %v5464 = vrot.slane %v5462, 5
        %v5465 = vsel %vm1132, %v5460, %v5464
        %v5466 = vshrl.u32 %v5132, 16
        %v5468 = vrot.slane %v5466, 4
        %v5469 = vor.u32 %v5468, %v5464
        %v5470 = vrot.slane %v5469, 4
        %v5472 = vshll.u32 %v5133, 16
        %v5474 = vrot.slane %v5472, 5
        %v5475 = vsel %vm1132, %v5470, %v5474
        %v5477 = vshrl.u32 %v5134, 16
        %v5479 = vrot.slane %v5477, 4
        %v5480 = vshll.u32 %v5134, 16
        %v5482 = vrot.slane %v5480, 5
        %v5483 = vor.u32 %v5479, %v5482
        %v5484 = vrot.slane %v5483, 4
        %v5486 = vshll.u32 %v5135, 16
        %v5488 = vrot.slane %v5486, 5
        %v5489 = vsel %vm1132, %v5484, %v5488
        %v5490 = vshrl.u32 %v5135, 16
        %v5492 = vrot.slane %v5490, 4
        %v5493 = vor.u32 %v5492, %v5488
        %v5494 = vrot.slane %v5493, 4
        %v5496 = vshll.u32 %v5136, 16
        %v5498 = vrot.slane %v5496, 5
        %v5499 = vsel %vm1132, %v5494, %v5498
        %v5501 = vshrl.u32 %v5137, 16
        %v5503 = vrot.slane %v5501, 4
        %v5504 = vshll.u32 %v5137, 16
        %v5506 = vrot.slane %v5504, 5
        %v5507 = vor.u32 %v5503, %v5506
        %v5508 = vrot.slane %v5507, 4
        %v5510 = vshll.u32 %v5138, 16
        %v5512 = vrot.slane %v5510, 5
        %v5513 = vsel %vm1132, %v5508, %v5512
        %v5514 = vshrl.u32 %v5138, 16
        %v5516 = vrot.slane %v5514, 4
        %v5517 = vor.u32 %v5516, %v5512
        %v5518 = vrot.slane %v5517, 4
        %v5520 = vshll.u32 %v5139, 16
        %v5522 = vrot.slane %v5520, 5
        %v5523 = vsel %vm1132, %v5518, %v5522
        %v5572 = vrot.slane %v5092, 5
        %v5573 = vrot.slane %v5572, 4
        %v5574 = vrot.slane %v5093, 5
        %v5575 = vsel %vm1567, %v5573, %v5574
        %v5576 = vrot.slane %v5574, 4
        %v5577 = vrot.slane %v5094, 5
        %v5578 = vsel %vm1567, %v5576, %v5577
        %v5579 = vrot.slane %v5095, 5
        %v5580 = vrot.slane %v5579, 4
        %v5581 = vrot.slane %v5096, 5
        %v5582 = vsel %vm1567, %v5580, %v5581
        %v5583 = vrot.slane %v5581, 4
        %v5584 = vrot.slane %v5097, 5
        %v5585 = vsel %vm1567, %v5583, %v5584
        %v5586 = vrot.slane %v5098, 5
        %v5587 = vrot.slane %v5586, 4
        %v5588 = vrot.slane %v5099, 5
        %v5589 = vsel %vm1567, %v5587, %v5588
        %v5590 = vrot.slane %v5588, 4
        %v5591 = vrot.slane %v5100, 5
        %v5592 = vsel %vm1567, %v5590, %v5591
        %v5593 = vrot.slane %v5101, 5
        %v5594 = vrot.slane %v5593, 4
        %v5595 = vrot.slane %v5102, 5
        %v5596 = vsel %vm1567, %v5594, %v5595
        %v5597 = vrot.slane %v5595, 4
        %v5598 = vrot.slane %v5103, 5
        %v5599 = vsel %vm1567, %v5597, %v5598
        %v5600 = vrot.slane %v5104, 5
        %v5601 = vrot.slane %v5600, 4
        %v5602 = vrot.slane %v5105, 5
        %v5603 = vsel %vm1567, %v5601, %v5602
        %v5604 = vrot.slane %v5602, 4
        %v5605 = vrot.slane %v5106, 5
        %v5606 = vsel %vm1567, %v5604, %v5605
        %v5607 = vrot.slane %v5107, 5
        %v5608 = vrot.slane %v5607, 4
        %v5609 = vrot.slane %v5108, 5
        %v5610 = vsel %vm1567, %v5608, %v5609
        %v5611 = vrot.slane %v5609, 4
        %v5612 = vrot.slane %v5109, 5
        %v5613 = vsel %vm1567, %v5611, %v5612
        %v5614 = vrot.slane %v5110, 5
        %v5615 = vrot.slane %v5614, 4
        %v5616 = vrot.slane %v5111, 5
        %v5617 = vsel %vm1567, %v5615, %v5616
        %v5618 = vrot.slane %v5616, 4
        %v5619 = vrot.slane %v5112, 5
        %v5620 = vsel %vm1567, %v5618, %v5619
        %v5621 = vrot.slane %v5113, 5
        %v5622 = vrot.slane %v5621, 4
        %v5623 = vrot.slane %v5114, 5
        %v5624 = vsel %vm1567, %v5622, %v5623
        %v5625 = vrot.slane %v5623, 4
        %v5626 = vrot.slane %v5115, 5
        %v5627 = vsel %vm1567, %v5625, %v5626
        %v5628 = vrot.slane %v5116, 5
        %v5629 = vrot.slane %v5628, 4
        %v5630 = vrot.slane %v5117, 5
        %v5631 = vsel %vm1567, %v5629, %v5630
        %v5632 = vrot.slane %v5630, 4
        %v5633 = vrot.slane %v5118, 5
        %v5634 = vsel %vm1567, %v5632, %v5633
        %v5635 = vrot.slane %v5119, 5
        %v5636 = vrot.slane %v5635, 4
        %v5637 = vrot.slane %v5120, 5
        %v5638 = vsel %vm1567, %v5636, %v5637
        %v5639 = vrot.slane %v5637, 4
        %v5640 = vrot.slane %v5121, 5
        %v5641 = vsel %vm1567, %v5639, %v5640
        %v5642 = vrot.slane %v5122, 5
        %v5643 = vrot.slane %v5642, 4
        %v5644 = vrot.slane %v5123, 5
        %v5645 = vsel %vm1567, %v5643, %v5644
        %v5646 = vrot.slane %v5644, 4
        %v5647 = vrot.slane %v5124, 5
        %v5648 = vsel %vm1567, %v5646, %v5647
        %v5649 = vrot.slane %v5125, 5
        %v5650 = vrot.slane %v5649, 4
        %v5651 = vrot.slane %v5126, 5
        %v5652 = vsel %vm1567, %v5650, %v5651
        %v5653 = vrot.slane %v5651, 4
        %v5654 = vrot.slane %v5127, 5
        %v5655 = vsel %vm1567, %v5653, %v5654
        %v5656 = vrot.slane %v5128, 5
        %v5657 = vrot.slane %v5656, 4
        %v5658 = vrot.slane %v5129, 5
        %v5659 = vsel %vm1567, %v5657, %v5658
        %v5660 = vrot.slane %v5658, 4
        %v5661 = vrot.slane %v5130, 5
        %v5662 = vsel %vm1567, %v5660, %v5661
        %v5663 = vrot.slane %v5131, 5
        %v5664 = vrot.slane %v5663, 4
        %v5665 = vrot.slane %v5132, 5
        %v5666 = vsel %vm1567, %v5664, %v5665
        %v5667 = vrot.slane %v5665, 4
        %v5668 = vrot.slane %v5133, 5
        %v5669 = vsel %vm1567, %v5667, %v5668
        %v5670 = vrot.slane %v5134, 5
        %v5671 = vrot.slane %v5670, 4
        %v5672 = vrot.slane %v5135, 5
        %v5673 = vsel %vm1567, %v5671, %v5672
        %v5674 = vrot.slane %v5672, 4
        %v5675 = vrot.slane %v5136, 5
        %v5676 = vsel %vm1567, %v5674, %v5675
        %v5677 = vrot.slane %v5137, 5
        %v5678 = vrot.slane %v5677, 4
        %v5679 = vrot.slane %v5138, 5
        %v5680 = vsel %vm1567, %v5678, %v5679
        %v5681 = vrot.slane %v5679, 4
        %v5682 = vrot.slane %v5139, 5
        %v5683 = vsel %vm1567, %v5681, %v5682
        %v5684 = vunpack.c.l.b16 %v5092
        %v5685 = vunpack.c.l.b16 %v5093
        %v5686 = vunpack.c.l.b16 %v5095
        %v5687 = vunpack.c.l.b16 %v5096
        %v5688 = vunpack.c.l.b16 %v5098
        %v5689 = vunpack.c.l.b16 %v5099
        %v5690 = vunpack.c.l.b16 %v5101
        %v5691 = vunpack.c.l.b16 %v5102
        %v5692 = vunpack.c.l.b16 %v5104
        %v5693 = vunpack.c.l.b16 %v5105
        %v5694 = vunpack.c.l.b16 %v5107
        %v5695 = vunpack.c.l.b16 %v5108
        %v5696 = vunpack.c.l.b16 %v5110
        %v5697 = vunpack.c.l.b16 %v5111
        %v5698 = vunpack.c.l.b16 %v5113
        %v5699 = vunpack.c.l.b16 %v5114
        %v5700 = vunpack.c.l.b16 %v5116
        %v5701 = vunpack.c.l.b16 %v5117
        %v5702 = vunpack.c.l.b16 %v5119
        %v5703 = vunpack.c.l.b16 %v5120
        %v5704 = vunpack.c.l.b16 %v5122
        %v5705 = vunpack.c.l.b16 %v5123
        %v5706 = vunpack.c.l.b16 %v5125
        %v5707 = vunpack.c.l.b16 %v5126
        %v5708 = vunpack.c.l.b16 %v5128
        %v5709 = vunpack.c.l.b16 %v5129
        %v5710 = vunpack.c.l.b16 %v5131
        %v5711 = vunpack.c.l.b16 %v5132
        %v5712 = vunpack.c.l.b16 %v5134
        %v5713 = vunpack.c.l.b16 %v5135
        %v5714 = vunpack.c.l.b16 %v5137
        %v5715 = vunpack.c.l.b16 %v5138
        %v5716 = vpack.c.b16 %v5685, %v5684
        %v5717 = vpack.c.b16 %v5687, %v5686
        %v5718 = vpack.c.b16 %v5689, %v5688
        %v5719 = vpack.c.b16 %v5691, %v5690
        %v5720 = vpack.c.b16 %v5693, %v5692
        %v5721 = vpack.c.b16 %v5695, %v5694
        %v5722 = vpack.c.b16 %v5697, %v5696
        %v5723 = vpack.c.b16 %v5699, %v5698
        %v5724 = vpack.c.b16 %v5701, %v5700
        %v5725 = vpack.c.b16 %v5703, %v5702
        %v5726 = vpack.c.b16 %v5705, %v5704
        %v5727 = vpack.c.b16 %v5707, %v5706
        %v5728 = vpack.c.b16 %v5709, %v5708
        %v5729 = vpack.c.b16 %v5711, %v5710
        %v5730 = vpack.c.b16 %v5713, %v5712
        %v5731 = vpack.c.b16 %v5715, %v5714
        %v5732 = vunpack.c.l.b16 %v5153
        %v5733 = vunpack.c.l.b16 %v5163
        %v5734 = vunpack.c.l.b16 %v5177
        %v5735 = vunpack.c.l.b16 %v5187
        %v5736 = vunpack.c.l.b16 %v5201
        %v5737 = vunpack.c.l.b16 %v5211
        %v5738 = vunpack.c.l.b16 %v5225
        %v5739 = vunpack.c.l.b16 %v5235
        %v5740 = vunpack.c.l.b16 %v5249
        %v5741 = vunpack.c.l.b16 %v5259
        %v5742 = vunpack.c.l.b16 %v5273
        %v5743 = vunpack.c.l.b16 %v5283
        %v5744 = vunpack.c.l.b16 %v5297
        %v5745 = vunpack.c.l.b16 %v5307
        %v5746 = vunpack.c.l.b16 %v5321
        %v5747 = vunpack.c.l.b16 %v5331
        %v5748 = vunpack.c.l.b16 %v5345
        %v5749 = vunpack.c.l.b16 %v5355
        %v5750 = vunpack.c.l.b16 %v5369
        %v5751 = vunpack.c.l.b16 %v5379
        %v5752 = vunpack.c.l.b16 %v5393
        %v5753 = vunpack.c.l.b16 %v5403
        %v5754 = vunpack.c.l.b16 %v5417
        %v5755 = vunpack.c.l.b16 %v5427
        %v5756 = vunpack.c.l.b16 %v5441
        %v5757 = vunpack.c.l.b16 %v5451
        %v5758 = vunpack.c.l.b16 %v5465
        %v5759 = vunpack.c.l.b16 %v5475
        %v5760 = vunpack.c.l.b16 %v5489
        %v5761 = vunpack.c.l.b16 %v5499
        %v5762 = vunpack.c.l.b16 %v5513
        %v5763 = vunpack.c.l.b16 %v5523
        %v5764 = vpack.c.b16 %v5733, %v5732
        %v5765 = vpack.c.b16 %v5735, %v5734
        %v5766 = vpack.c.b16 %v5737, %v5736
        %v5767 = vpack.c.b16 %v5739, %v5738
        %v5768 = vpack.c.b16 %v5741, %v5740
        %v5769 = vpack.c.b16 %v5743, %v5742
        %v5770 = vpack.c.b16 %v5745, %v5744
        %v5771 = vpack.c.b16 %v5747, %v5746
        %v5772 = vpack.c.b16 %v5749, %v5748
        %v5773 = vpack.c.b16 %v5751, %v5750
        %v5774 = vpack.c.b16 %v5753, %v5752
        %v5775 = vpack.c.b16 %v5755, %v5754
        %v5776 = vpack.c.b16 %v5757, %v5756
        %v5777 = vpack.c.b16 %v5759, %v5758
        %v5778 = vpack.c.b16 %v5761, %v5760
        %v5779 = vpack.c.b16 %v5763, %v5762
        %5780 = vrot.lane.b32.xlu0 %v5764, 64
        %v5781 = vpop.permute.xlu0 %5780
        %5782 = vrot.lane.b32.xlu0 %v5765, 64
        %v5783 = vpop.permute.xlu0 %5782
        %5784 = vrot.lane.b32.xlu0 %v5766, 64
        %v5785 = vpop.permute.xlu0 %5784
        %5786 = vrot.lane.b32.xlu0 %v5767, 64
        %v5787 = vpop.permute.xlu0 %5786
        %5788 = vrot.lane.b32.xlu0 %v5768, 64
        %v5789 = vpop.permute.xlu0 %5788
        %5790 = vrot.lane.b32.xlu0 %v5769, 64
        %v5791 = vpop.permute.xlu0 %5790
        %5792 = vrot.lane.b32.xlu0 %v5770, 64
        %v5793 = vpop.permute.xlu0 %5792
        %5794 = vrot.lane.b32.xlu0 %v5771, 64
        %v5795 = vpop.permute.xlu0 %5794
        %5796 = vrot.lane.b32.xlu0 %v5772, 64
        %v5797 = vpop.permute.xlu0 %5796
        %5798 = vrot.lane.b32.xlu0 %v5773, 64
        %v5799 = vpop.permute.xlu0 %5798
        %5800 = vrot.lane.b32.xlu0 %v5774, 64
        %v5801 = vpop.permute.xlu0 %5800
        %5802 = vrot.lane.b32.xlu0 %v5775, 64
        %v5803 = vpop.permute.xlu0 %5802
        %5804 = vrot.lane.b32.xlu0 %v5776, 64
        %v5805 = vpop.permute.xlu0 %5804
        %5806 = vrot.lane.b32.xlu0 %v5777, 64
        %v5807 = vpop.permute.xlu0 %5806
        %5808 = vrot.lane.b32.xlu0 %v5778, 64
        %v5809 = vpop.permute.xlu0 %5808
        %5810 = vrot.lane.b32.xlu0 %v5779, 64
        %v5811 = vpop.permute.xlu0 %5810
        %v5812 = vunpack.c.l.b16 %v5575
        %v5813 = vunpack.c.l.b16 %v5578
        %v5814 = vunpack.c.l.b16 %v5582
        %v5815 = vunpack.c.l.b16 %v5585
        %v5816 = vunpack.c.l.b16 %v5589
        %v5817 = vunpack.c.l.b16 %v5592
        %v5818 = vunpack.c.l.b16 %v5596
        %v5819 = vunpack.c.l.b16 %v5599
        %v5820 = vunpack.c.l.b16 %v5603
        %v5821 = vunpack.c.l.b16 %v5606
        %v5822 = vunpack.c.l.b16 %v5610
        %v5823 = vunpack.c.l.b16 %v5613
        %v5824 = vunpack.c.l.b16 %v5617
        %v5825 = vunpack.c.l.b16 %v5620
        %v5826 = vunpack.c.l.b16 %v5624
        %v5827 = vunpack.c.l.b16 %v5627
        %v5828 = vunpack.c.l.b16 %v5631
        %v5829 = vunpack.c.l.b16 %v5634
        %v5830 = vunpack.c.l.b16 %v5638
        %v5831 = vunpack.c.l.b16 %v5641
        %v5832 = vunpack.c.l.b16 %v5645
        %v5833 = vunpack.c.l.b16 %v5648
        %v5834 = vunpack.c.l.b16 %v5652
        %v5835 = vunpack.c.l.b16 %v5655
        %v5836 = vunpack.c.l.b16 %v5659
        %v5837 = vunpack.c.l.b16 %v5662
        %v5838 = vunpack.c.l.b16 %v5666
        %v5839 = vunpack.c.l.b16 %v5669
        %v5840 = vunpack.c.l.b16 %v5673
        %v5841 = vunpack.c.l.b16 %v5676
        %v5842 = vunpack.c.l.b16 %v5680
        %v5843 = vunpack.c.l.b16 %v5683
        %v5844 = vpack.c.b16 %v5813, %v5812
        %v5845 = vpack.c.b16 %v5815, %v5814
        %v5846 = vpack.c.b16 %v5817, %v5816
        %v5847 = vpack.c.b16 %v5819, %v5818
        %v5848 = vpack.c.b16 %v5821, %v5820
        %v5849 = vpack.c.b16 %v5823, %v5822
        %v5850 = vpack.c.b16 %v5825, %v5824
        %v5851 = vpack.c.b16 %v5827, %v5826
        %v5852 = vpack.c.b16 %v5829, %v5828
        %v5853 = vpack.c.b16 %v5831, %v5830
        %v5854 = vpack.c.b16 %v5833, %v5832
        %v5855 = vpack.c.b16 %v5835, %v5834
        %v5856 = vpack.c.b16 %v5837, %v5836
        %v5857 = vpack.c.b16 %v5839, %v5838
        %v5858 = vpack.c.b16 %v5841, %v5840
        %v5859 = vpack.c.b16 %v5843, %v5842
        %v5862 = vsel %vm1856, %v5716, %v5781
        %v5866 = vsel %vm1856, %v5717, %v5783
        %v5870 = vsel %vm1856, %v5718, %v5785
        %v5874 = vsel %vm1856, %v5719, %v5787
        %v5878 = vsel %vm1856, %v5720, %v5789
        %v5882 = vsel %vm1856, %v5721, %v5791
        %v5886 = vsel %vm1856, %v5722, %v5793
        %v5890 = vsel %vm1856, %v5723, %v5795
        %v5894 = vsel %vm1856, %v5724, %v5797
        %v5898 = vsel %vm1856, %v5725, %v5799
        %v5902 = vsel %vm1856, %v5726, %v5801
        %v5906 = vsel %vm1856, %v5727, %v5803
        %v5910 = vsel %vm1856, %v5728, %v5805
        %v5914 = vsel %vm1856, %v5729, %v5807
        %v5918 = vsel %vm1856, %v5730, %v5809
        %v5922 = vsel %vm1856, %v5731, %v5811
        %v5948 = vunpack.c.l.b16 %v1002
        %v5949 = vunpack.c.l.b16 %v1003
        %v5950 = vunpack.c.l.b16 %v1004
        %v5951 = vunpack.c.l.b16 %v1005
        %v5952 = vunpack.c.l.b16 %v1006
        %v5953 = vunpack.c.l.b16 %v1007
        %v5954 = vunpack.c.l.b16 %v1008
        %v5955 = vunpack.c.l.b16 %v1009
        %v5956 = vunpack.c.l.b16 %v1010
        %v5957 = vunpack.c.l.b16 %v1011
        %v5958 = vunpack.c.l.b16 %v1012
        %v5959 = vunpack.c.l.b16 %v1013
        %v5960 = vunpack.c.l.b16 %v1014
        %v5961 = vunpack.c.l.b16 %v1015
        %v5962 = vunpack.c.l.b16 %v1016
        %v5963 = vunpack.c.l.b16 %v1017
        %v5964 = vunpack.c.l.b16 %v1018
        %v5965 = vunpack.c.l.b16 %v1019
        %v5966 = vunpack.c.l.b16 %v1020
        %v5967 = vunpack.c.l.b16 %v1021
        %v5968 = vunpack.c.l.b16 %v1022
        %v5969 = vunpack.c.l.b16 %v1023
        %v5970 = vunpack.c.l.b16 %v1024
        %v5971 = vunpack.c.l.b16 %v1025
        %v5972 = vpack.c.b16 %v5949, %v5948
        %v5973 = vpack.c.b16 %v5951, %v5950
        %v5974 = vpack.c.b16 %v5953, %v5952
        %v5975 = vpack.c.b16 %v5955, %v5954
        %v5976 = vpack.c.b16 %v5957, %v5956
        %v5977 = vpack.c.b16 %v5959, %v5958
        %v5978 = vpack.c.b16 %v5961, %v5960
        %v5979 = vpack.c.b16 %v5963, %v5962
        %v5980 = vpack.c.b16 %v5965, %v5964
        %v5981 = vpack.c.b16 %v5967, %v5966
        %v5982 = vpack.c.b16 %v5969, %v5968
        %v5983 = vpack.c.b16 %v5971, %v5970
        %v5997 = vsel %vm1856, %v5844, 0
        %v6000 = vsel %vm1856, %v5845, 0
        %v6003 = vsel %vm1856, %v5846, 0
        %v6006 = vsel %vm1856, %v5847, 0
        %v6009 = vsel %vm1856, %v5848, 0
        %v6012 = vsel %vm1856, %v5849, 0
        %v6015 = vsel %vm1856, %v5850, 0
        %v6018 = vsel %vm1856, %v5851, 0
        %v6021 = vsel %vm1856, %v5852, 0
        %v6024 = vsel %vm1856, %v5853, 0
        %v6027 = vsel %vm1856, %v5854, 0
        %v6030 = vsel %vm1856, %v5855, 0
        %v6033 = vsel %vm1856, %v5856, 0
        %v6036 = vsel %vm1856, %v5857, 0
        %v6039 = vsel %vm1856, %v5858, 0
        %v6042 = vsel %vm1856, %v5859, 0
        %6044 = vmatprep.subr.bf16.mxu0 0
        %6045 = vmatpush1.bf16.msra.mxu0 %v5979
        %6046 = vmatprep.subr.bf16.mxu0 0
        %6047 = vmatpush1.bf16.msra.mxu0 %v5978
        %6048 = vmatprep.subr.bf16.mxu0 0
        %6049 = vmatpush1.bf16.msra.mxu0 %v5977
        %6050 = vmatprep.subr.bf16.mxu0 0
        %6051 = vmatpush1.bf16.msra.mxu0 %v5976
        %6052 = vmatprep.subr.bf16.mxu0 0
        %6053 = vmatpush1.bf16.msra.mxu0 %v5975
        %6054 = vmatprep.subr.bf16.mxu0 0
        %6055 = vmatpush1.bf16.msra.mxu0 %v5974
        %6056 = vmatprep.subr.bf16.mxu0 0
        %6057 = vmatpush1.bf16.msra.mxu0 %v5973
        %6058 = vmatprep.subr.bf16.mxu0 0
        %6059 = vmatpush1.bf16.msra.mxu0 %v5972
        %6060 = vmatprep.subr.bf16.mxu0 0
        %6061 = vmatpush2.bf16.msra.mxu0 0
        %6062 = vmatprep.subr.bf16.mxu0 0
        %6063 = vmatpush2.bf16.msra.mxu0 0
        %6064 = vmatprep.subr.bf16.mxu0 0
        %6065 = vmatpush2.bf16.msra.mxu0 0
        %6066 = vmatprep.subr.bf16.mxu0 0
        %6067 = vmatpush2.bf16.msra.mxu0 0
        %6068 = vmatprep.subr.bf16.mxu0 0
        %6069 = vmatpush2.bf16.msra.mxu0 %v5983
        %6070 = vmatprep.subr.bf16.mxu0 0
        %6071 = vmatpush2.bf16.msra.mxu0 %v5982
        %6072 = vmatprep.subr.bf16.mxu0 0
        %6073 = vmatpush2.bf16.msra.mxu0 %v5981
        %6074 = vmatprep.subr.bf16.mxu0 0
        %6075 = vmatpush2.bf16.msra.mxu0 %v5980
        %6076 = vmatprep.mubr.bf16.mxu0 %v5997
        %6077 = vmatmul.mubr.bf16.gmra.mxu0 %v5862
        %v6078 = vpop.f32.mrf.mxu0
        %v6079 = vadd.f32 0.0, %v6078
        %v6080 = vpop.f32.mrf.mxu0
        %v6081 = vpop.f32.mrf.mxu0
        %v6082 = vadd.f32 0.0, %v6081
        %v6083 = vpop.f32.mrf.mxu0
        %6084 = vmatprep.mubr.bf16.mxu0 %v6000
        %6085 = vmatmul.mubr.bf16.gmra.mxu0 %v5866
        %v6086 = vpop.f32.mrf.mxu0
        %v6087 = vadd.f32 0.0, %v6086
        %v6088 = vpop.f32.mrf.mxu0
        %v6089 = vpop.f32.mrf.mxu0
        %v6090 = vadd.f32 0.0, %v6089
        %v6091 = vpop.f32.mrf.mxu0
        %6092 = vmatprep.mubr.bf16.mxu0 %v6003
        %6093 = vmatmul.mubr.bf16.gmra.mxu0 %v5870
        %v6094 = vpop.f32.mrf.mxu0
        %v6095 = vadd.f32 0.0, %v6094
        %v6096 = vpop.f32.mrf.mxu0
        %v6097 = vpop.f32.mrf.mxu0
        %v6098 = vadd.f32 0.0, %v6097
        %v6099 = vpop.f32.mrf.mxu0
        %6100 = vmatprep.mubr.bf16.mxu0 %v6006
        %6101 = vmatmul.mubr.bf16.gmra.mxu0 %v5874
        %v6102 = vpop.f32.mrf.mxu0
        %v6103 = vadd.f32 0.0, %v6102
        %v6104 = vpop.f32.mrf.mxu0
        %v6105 = vpop.f32.mrf.mxu0
        %v6106 = vadd.f32 0.0, %v6105
        %v6107 = vpop.f32.mrf.mxu0
        %6108 = vmatprep.mubr.bf16.mxu0 %v6009
        %6109 = vmatmul.mubr.bf16.gmra.mxu0 %v5878
        %v6110 = vpop.f32.mrf.mxu0
        %v6111 = vadd.f32 0.0, %v6110
        %v6112 = vpop.f32.mrf.mxu0
        %v6113 = vpop.f32.mrf.mxu0
        %v6114 = vadd.f32 0.0, %v6113
        %v6115 = vpop.f32.mrf.mxu0
        %6116 = vmatprep.mubr.bf16.mxu0 %v6012
        %6117 = vmatmul.mubr.bf16.gmra.mxu0 %v5882
        %v6118 = vpop.f32.mrf.mxu0
        %v6119 = vadd.f32 0.0, %v6118
        %v6120 = vpop.f32.mrf.mxu0
        %v6121 = vpop.f32.mrf.mxu0
        %v6122 = vadd.f32 0.0, %v6121
        %v6123 = vpop.f32.mrf.mxu0
        %6124 = vmatprep.mubr.bf16.mxu0 %v6015
        %6125 = vmatmul.mubr.bf16.gmra.mxu0 %v5886
        %v6126 = vpop.f32.mrf.mxu0
        %v6127 = vadd.f32 0.0, %v6126
        %v6128 = vpop.f32.mrf.mxu0
        %v6129 = vpop.f32.mrf.mxu0
        %v6130 = vadd.f32 0.0, %v6129
        %v6131 = vpop.f32.mrf.mxu0
        %6132 = vmatprep.mubr.bf16.mxu0 %v6018
        %6133 = vmatmul.mubr.bf16.gmra.mxu0 %v5890
        %v6134 = vpop.f32.mrf.mxu0
        %v6135 = vadd.f32 0.0, %v6134
        %v6136 = vpop.f32.mrf.mxu0
        %v6137 = vpop.f32.mrf.mxu0
        %v6138 = vadd.f32 0.0, %v6137
        %v6139 = vpop.f32.mrf.mxu0
        %6140 = vmatprep.mubr.bf16.mxu0 %v6021
        %6141 = vmatmul.mubr.bf16.gmra.mxu0 %v5894
        %v6142 = vpop.f32.mrf.mxu0
        %v6143 = vadd.f32 0.0, %v6142
        %v6144 = vpop.f32.mrf.mxu0
        %v6145 = vpop.f32.mrf.mxu0
        %v6146 = vadd.f32 0.0, %v6145
        %v6147 = vpop.f32.mrf.mxu0
        %6148 = vmatprep.mubr.bf16.mxu0 %v6024
        %6149 = vmatmul.mubr.bf16.gmra.mxu0 %v5898
        %v6150 = vpop.f32.mrf.mxu0
        %v6151 = vadd.f32 0.0, %v6150
        %v6152 = vpop.f32.mrf.mxu0
        %v6153 = vpop.f32.mrf.mxu0
        %v6154 = vadd.f32 0.0, %v6153
        %v6155 = vpop.f32.mrf.mxu0
        %6156 = vmatprep.mubr.bf16.mxu0 %v6027
        %6157 = vmatmul.mubr.bf16.gmra.mxu0 %v5902
        %v6158 = vpop.f32.mrf.mxu0
        %v6159 = vadd.f32 0.0, %v6158
        %v6160 = vpop.f32.mrf.mxu0
        %v6161 = vpop.f32.mrf.mxu0
        %v6162 = vadd.f32 0.0, %v6161
        %v6163 = vpop.f32.mrf.mxu0
        %6164 = vmatprep.mubr.bf16.mxu0 %v6030
        %6165 = vmatmul.mubr.bf16.gmra.mxu0 %v5906
        %v6166 = vpop.f32.mrf.mxu0
        %v6167 = vadd.f32 0.0, %v6166
        %v6168 = vpop.f32.mrf.mxu0
        %v6169 = vpop.f32.mrf.mxu0
        %v6170 = vadd.f32 0.0, %v6169
        %v6171 = vpop.f32.mrf.mxu0
        %6172 = vmatprep.mubr.bf16.mxu0 %v6033
        %6173 = vmatmul.mubr.bf16.gmra.mxu0 %v5910
        %v6174 = vpop.f32.mrf.mxu0
        %v6175 = vadd.f32 0.0, %v6174
        %v6176 = vpop.f32.mrf.mxu0
        %v6177 = vpop.f32.mrf.mxu0
        %v6178 = vadd.f32 0.0, %v6177
        %v6179 = vpop.f32.mrf.mxu0
        %6180 = vmatprep.mubr.bf16.mxu0 %v6036
        %6181 = vmatmul.mubr.bf16.gmra.mxu0 %v5914
        %v6182 = vpop.f32.mrf.mxu0
        %v6183 = vadd.f32 0.0, %v6182
        %v6184 = vpop.f32.mrf.mxu0
        %v6185 = vpop.f32.mrf.mxu0
        %v6186 = vadd.f32 0.0, %v6185
        %v6187 = vpop.f32.mrf.mxu0
        %6188 = vmatprep.mubr.bf16.mxu0 %v6039
        %6189 = vmatmul.mubr.bf16.gmra.mxu0 %v5918
        %v6190 = vpop.f32.mrf.mxu0
        %v6191 = vadd.f32 0.0, %v6190
        %v6192 = vpop.f32.mrf.mxu0
        %v6193 = vpop.f32.mrf.mxu0
        %v6194 = vadd.f32 0.0, %v6193
        %v6195 = vpop.f32.mrf.mxu0
        %6196 = vmatprep.mubr.bf16.mxu0 %v6042
        %6197 = vmatmul.mubr.bf16.gmra.mxu0 %v5922
        %v6198 = vpop.f32.mrf.mxu0
        %v6199 = vadd.f32 0.0, %v6198
        %v6200 = vpop.f32.mrf.mxu0
        %v6201 = vpop.f32.mrf.mxu0
        %v6202 = vadd.f32 0.0, %v6201
        %v6203 = vpop.f32.mrf.mxu0
        %6204 = vdwg.mxu0
        %v6205 = vadd.f32 %v5090, %v6079
        %v6206 = vadd.f32 %v5090, %v6082
        %v6207 = vadd.f32 %v5090, %v6087
        %v6208 = vadd.f32 %v5090, %v6090
        %v6209 = vadd.f32 %v5090, %v6095
        %v6210 = vadd.f32 %v5090, %v6098
        %v6211 = vadd.f32 %v5090, %v6103
        %v6212 = vadd.f32 %v5090, %v6106
        %v6213 = vadd.f32 %v5090, %v6111
        %v6214 = vadd.f32 %v5090, %v6114
        %v6215 = vadd.f32 %v5090, %v6119
        %v6216 = vadd.f32 %v5090, %v6122
        %v6217 = vadd.f32 %v5090, %v6127
        %v6218 = vadd.f32 %v5090, %v6130
        %v6219 = vadd.f32 %v5090, %v6135
        %v6220 = vadd.f32 %v5090, %v6138
        %v6221 = vadd.f32 %v5090, %v6143
        %v6222 = vadd.f32 %v5090, %v6146
        %v6223 = vadd.f32 %v5090, %v6151
        %v6224 = vadd.f32 %v5090, %v6154
        %v6225 = vadd.f32 %v5090, %v6159
        %v6226 = vadd.f32 %v5090, %v6162
        %v6227 = vadd.f32 %v5090, %v6167
        %v6228 = vadd.f32 %v5090, %v6170
        %v6229 = vadd.f32 %v5090, %v6175
        %v6230 = vadd.f32 %v5090, %v6178
        %v6231 = vadd.f32 %v5090, %v6183
        %v6232 = vadd.f32 %v5090, %v6186
        %v6233 = vadd.f32 %v5090, %v6191
        %v6234 = vadd.f32 %v5090, %v6194
        %v6235 = vadd.f32 %v5090, %v6199
        %v6236 = vadd.f32 %v5090, %v6202
        %v6237 = vld [vmem:[%s4973] sm:$0xf]
        %v6238 = vld [vmem:[%s4973 + $0x4] sm:$0xf]
        %v6239 = vld [vmem:[%s4973 + $0x8] sm:$0x1]
        %v6240 = vld [vmem:[%s4973 + $0xc] sm:$0xf]
        %v6241 = vld [vmem:[%s4973 + $0x10] sm:$0xf]
        %v6242 = vld [vmem:[%s4973 + $0x14] sm:$0x1]
        %v6243 = vld [vmem:[%s4973 + $0x18] sm:$0xf]
        %v6244 = vld [vmem:[%s4973 + $0x1c] sm:$0xf]
        %v6245 = vld [vmem:[%s4973 + $0x20] sm:$0x1]
        %v6246 = vld [vmem:[%s4973 + $0x24] sm:$0xf]
        %v6247 = vld [vmem:[%s4973 + $0x28] sm:$0xf]
        %v6248 = vld [vmem:[%s4973 + $0x2c] sm:$0x1]
        %v6249 = vld [vmem:[%s4973 + $0x30] sm:$0xf]
        %v6250 = vld [vmem:[%s4973 + $0x34] sm:$0xf]
        %v6251 = vld [vmem:[%s4973 + $0x38] sm:$0x1]
        %v6252 = vld [vmem:[%s4973 + $0x3c] sm:$0xf]
        %v6253 = vld [vmem:[%s4973 + $0x40] sm:$0xf]
        %v6254 = vld [vmem:[%s4973 + $0x44] sm:$0x1]
        %v6255 = vld [vmem:[%s4973 + $0x48] sm:$0xf]
        %v6256 = vld [vmem:[%s4973 + $0x4c] sm:$0xf]
        %v6257 = vld [vmem:[%s4973 + $0x50] sm:$0x1]
        %v6258 = vld [vmem:[%s4973 + $0x54] sm:$0xf]
        %v6259 = vld [vmem:[%s4973 + $0x58] sm:$0xf]
        %v6260 = vld [vmem:[%s4973 + $0x5c] sm:$0x1]
        %v6261 = vld [vmem:[%s4973 + $0x60] sm:$0xf]
        %v6262 = vld [vmem:[%s4973 + $0x64] sm:$0xf]
        %v6263 = vld [vmem:[%s4973 + $0x68] sm:$0x1]
        %v6264 = vld [vmem:[%s4973 + $0x6c] sm:$0xf]
        %v6265 = vld [vmem:[%s4973 + $0x70] sm:$0xf]
        %v6266 = vld [vmem:[%s4973 + $0x74] sm:$0x1]
        %v6267 = vld [vmem:[%s4973 + $0x78] sm:$0xf]
        %v6268 = vld [vmem:[%s4973 + $0x7c] sm:$0xf]
        %v6269 = vld [vmem:[%s4973 + $0x80] sm:$0x1]
        %v6270 = vld [vmem:[%s4973 + $0x84] sm:$0xf]
        %v6271 = vld [vmem:[%s4973 + $0x88] sm:$0xf]
        %v6272 = vld [vmem:[%s4973 + $0x8c] sm:$0x1]
        %v6273 = vld [vmem:[%s4973 + $0x90] sm:$0xf]
        %v6274 = vld [vmem:[%s4973 + $0x94] sm:$0xf]
        %v6275 = vld [vmem:[%s4973 + $0x98] sm:$0x1]
        %v6276 = vld [vmem:[%s4973 + $0x9c] sm:$0xf]
        %v6277 = vld [vmem:[%s4973 + $0xa0] sm:$0xf]
        %v6278 = vld [vmem:[%s4973 + $0xa4] sm:$0x1]
        %v6279 = vld [vmem:[%s4973 + $0xa8] sm:$0xf]
        %v6280 = vld [vmem:[%s4973 + $0xac] sm:$0xf]
        %v6281 = vld [vmem:[%s4973 + $0xb0] sm:$0x1]
        %v6282 = vld [vmem:[%s4973 + $0xb4] sm:$0xf]
        %v6283 = vld [vmem:[%s4973 + $0xb8] sm:$0xf]
        %v6284 = vld [vmem:[%s4973 + $0xbc] sm:$0x1]
        %v6286 = vshrl.u32 %v6237, 16
        %v6288 = vrot.slane %v6286, 4
        %v6289 = vshll.u32 %v6237, 16
        %v6291 = vrot.slane %v6289, 5
        %v6292 = vor.u32 %v6288, %v6291
        %v6293 = vrot.slane %v6292, 4
        %v6295 = vshll.u32 %v6238, 16
        %v6297 = vrot.slane %v6295, 5
        %v6298 = vsel %vm1132, %v6293, %v6297
        %v6299 = vshrl.u32 %v6238, 16
        %v6301 = vrot.slane %v6299, 4
        %v6302 = vor.u32 %v6301, %v6297
        %v6303 = vrot.slane %v6302, 4
        %v6305 = vshll.u32 %v6239, 16
        %v6307 = vrot.slane %v6305, 5
        %v6308 = vsel %vm1132, %v6303, %v6307
        %v6310 = vshrl.u32 %v6240, 16
        %v6312 = vrot.slane %v6310, 4
        %v6313 = vshll.u32 %v6240, 16
        %v6315 = vrot.slane %v6313, 5
        %v6316 = vor.u32 %v6312, %v6315
        %v6317 = vrot.slane %v6316, 4
        %v6319 = vshll.u32 %v6241, 16
        %v6321 = vrot.slane %v6319, 5
        %v6322 = vsel %vm1132, %v6317, %v6321
        %v6323 = vshrl.u32 %v6241, 16
        %v6325 = vrot.slane %v6323, 4
        %v6326 = vor.u32 %v6325, %v6321
        %v6327 = vrot.slane %v6326, 4
        %v6329 = vshll.u32 %v6242, 16
        %v6331 = vrot.slane %v6329, 5
        %v6332 = vsel %vm1132, %v6327, %v6331
        %v6334 = vshrl.u32 %v6243, 16
        %v6336 = vrot.slane %v6334, 4
        %v6337 = vshll.u32 %v6243, 16
        %v6339 = vrot.slane %v6337, 5
        %v6340 = vor.u32 %v6336, %v6339
        %v6341 = vrot.slane %v6340, 4
        %v6343 = vshll.u32 %v6244, 16
        %v6345 = vrot.slane %v6343, 5
        %v6346 = vsel %vm1132, %v6341, %v6345
        %v6347 = vshrl.u32 %v6244, 16
        %v6349 = vrot.slane %v6347, 4
        %v6350 = vor.u32 %v6349, %v6345
        %v6351 = vrot.slane %v6350, 4
        %v6353 = vshll.u32 %v6245, 16
        %v6355 = vrot.slane %v6353, 5
        %v6356 = vsel %vm1132, %v6351, %v6355
        %v6358 = vshrl.u32 %v6246, 16
        %v6360 = vrot.slane %v6358, 4
        %v6361 = vshll.u32 %v6246, 16
        %v6363 = vrot.slane %v6361, 5
        %v6364 = vor.u32 %v6360, %v6363
        %v6365 = vrot.slane %v6364, 4
        %v6367 = vshll.u32 %v6247, 16
        %v6369 = vrot.slane %v6367, 5
        %v6370 = vsel %vm1132, %v6365, %v6369
        %v6371 = vshrl.u32 %v6247, 16
        %v6373 = vrot.slane %v6371, 4
        %v6374 = vor.u32 %v6373, %v6369
        %v6375 = vrot.slane %v6374, 4
        %v6377 = vshll.u32 %v6248, 16
        %v6379 = vrot.slane %v6377, 5
        %v6380 = vsel %vm1132, %v6375, %v6379
        %v6382 = vshrl.u32 %v6249, 16
        %v6384 = vrot.slane %v6382, 4
        %v6385 = vshll.u32 %v6249, 16
        %v6387 = vrot.slane %v6385, 5
        %v6388 = vor.u32 %v6384, %v6387
        %v6389 = vrot.slane %v6388, 4
        %v6391 = vshll.u32 %v6250, 16
        %v6393 = vrot.slane %v6391, 5
        %v6394 = vsel %vm1132, %v6389, %v6393
        %v6395 = vshrl.u32 %v6250, 16
        %v6397 = vrot.slane %v6395, 4
        %v6398 = vor.u32 %v6397, %v6393
        %v6399 = vrot.slane %v6398, 4
        %v6401 = vshll.u32 %v6251, 16
        %v6403 = vrot.slane %v6401, 5
        %v6404 = vsel %vm1132, %v6399, %v6403
        %v6406 = vshrl.u32 %v6252, 16
        %v6408 = vrot.slane %v6406, 4
        %v6409 = vshll.u32 %v6252, 16
        %v6411 = vrot.slane %v6409, 5
        %v6412 = vor.u32 %v6408, %v6411
        %v6413 = vrot.slane %v6412, 4
        %v6415 = vshll.u32 %v6253, 16
        %v6417 = vrot.slane %v6415, 5
        %v6418 = vsel %vm1132, %v6413, %v6417
        %v6419 = vshrl.u32 %v6253, 16
        %v6421 = vrot.slane %v6419, 4
        %v6422 = vor.u32 %v6421, %v6417
        %v6423 = vrot.slane %v6422, 4
        %v6425 = vshll.u32 %v6254, 16
        %v6427 = vrot.slane %v6425, 5
        %v6428 = vsel %vm1132, %v6423, %v6427
        %v6430 = vshrl.u32 %v6255, 16
        %v6432 = vrot.slane %v6430, 4
        %v6433 = vshll.u32 %v6255, 16
        %v6435 = vrot.slane %v6433, 5
        %v6436 = vor.u32 %v6432, %v6435
        %v6437 = vrot.slane %v6436, 4
        %v6439 = vshll.u32 %v6256, 16
        %v6441 = vrot.slane %v6439, 5
        %v6442 = vsel %vm1132, %v6437, %v6441
        %v6443 = vshrl.u32 %v6256, 16
        %v6445 = vrot.slane %v6443, 4
        %v6446 = vor.u32 %v6445, %v6441
        %v6447 = vrot.slane %v6446, 4
        %v6449 = vshll.u32 %v6257, 16
        %v6451 = vrot.slane %v6449, 5
        %v6452 = vsel %vm1132, %v6447, %v6451
        %v6454 = vshrl.u32 %v6258, 16
        %v6456 = vrot.slane %v6454, 4
        %v6457 = vshll.u32 %v6258, 16
        %v6459 = vrot.slane %v6457, 5
        %v6460 = vor.u32 %v6456, %v6459
        %v6461 = vrot.slane %v6460, 4
        %v6463 = vshll.u32 %v6259, 16
        %v6465 = vrot.slane %v6463, 5
        %v6466 = vsel %vm1132, %v6461, %v6465
        %v6467 = vshrl.u32 %v6259, 16
        %v6469 = vrot.slane %v6467, 4
        %v6470 = vor.u32 %v6469, %v6465
        %v6471 = vrot.slane %v6470, 4
        %v6473 = vshll.u32 %v6260, 16
        %v6475 = vrot.slane %v6473, 5
        %v6476 = vsel %vm1132, %v6471, %v6475
        %v6478 = vshrl.u32 %v6261, 16
        %v6480 = vrot.slane %v6478, 4
        %v6481 = vshll.u32 %v6261, 16
        %v6483 = vrot.slane %v6481, 5
        %v6484 = vor.u32 %v6480, %v6483
        %v6485 = vrot.slane %v6484, 4
        %v6487 = vshll.u32 %v6262, 16
        %v6489 = vrot.slane %v6487, 5
        %v6490 = vsel %vm1132, %v6485, %v6489
        %v6491 = vshrl.u32 %v6262, 16
        %v6493 = vrot.slane %v6491, 4
        %v6494 = vor.u32 %v6493, %v6489
        %v6495 = vrot.slane %v6494, 4
        %v6497 = vshll.u32 %v6263, 16
        %v6499 = vrot.slane %v6497, 5
        %v6500 = vsel %vm1132, %v6495, %v6499
        %v6502 = vshrl.u32 %v6264, 16
        %v6504 = vrot.slane %v6502, 4
        %v6505 = vshll.u32 %v6264, 16
        %v6507 = vrot.slane %v6505, 5
        %v6508 = vor.u32 %v6504, %v6507
        %v6509 = vrot.slane %v6508, 4
        %v6511 = vshll.u32 %v6265, 16
        %v6513 = vrot.slane %v6511, 5
        %v6514 = vsel %vm1132, %v6509, %v6513
        %v6515 = vshrl.u32 %v6265, 16
        %v6517 = vrot.slane %v6515, 4
        %v6518 = vor.u32 %v6517, %v6513
        %v6519 = vrot.slane %v6518, 4
        %v6521 = vshll.u32 %v6266, 16
        %v6523 = vrot.slane %v6521, 5
        %v6524 = vsel %vm1132, %v6519, %v6523
        %v6526 = vshrl.u32 %v6267, 16
        %v6528 = vrot.slane %v6526, 4
        %v6529 = vshll.u32 %v6267, 16
        %v6531 = vrot.slane %v6529, 5
        %v6532 = vor.u32 %v6528, %v6531
        %v6533 = vrot.slane %v6532, 4
        %v6535 = vshll.u32 %v6268, 16
        %v6537 = vrot.slane %v6535, 5
        %v6538 = vsel %vm1132, %v6533, %v6537
        %v6539 = vshrl.u32 %v6268, 16
        %v6541 = vrot.slane %v6539, 4
        %v6542 = vor.u32 %v6541, %v6537
        %v6543 = vrot.slane %v6542, 4
        %v6545 = vshll.u32 %v6269, 16
        %v6547 = vrot.slane %v6545, 5
        %v6548 = vsel %vm1132, %v6543, %v6547
        %v6550 = vshrl.u32 %v6270, 16
        %v6552 = vrot.slane %v6550, 4
        %v6553 = vshll.u32 %v6270, 16
        %v6555 = vrot.slane %v6553, 5
        %v6556 = vor.u32 %v6552, %v6555
        %v6557 = vrot.slane %v6556, 4
        %v6559 = vshll.u32 %v6271, 16
        %v6561 = vrot.slane %v6559, 5
        %v6562 = vsel %vm1132, %v6557, %v6561
        %v6563 = vshrl.u32 %v6271, 16
        %v6565 = vrot.slane %v6563, 4
        %v6566 = vor.u32 %v6565, %v6561
        %v6567 = vrot.slane %v6566, 4
        %v6569 = vshll.u32 %v6272, 16
        %v6571 = vrot.slane %v6569, 5
        %v6572 = vsel %vm1132, %v6567, %v6571
        %v6574 = vshrl.u32 %v6273, 16
        %v6576 = vrot.slane %v6574, 4
        %v6577 = vshll.u32 %v6273, 16
        %v6579 = vrot.slane %v6577, 5
        %v6580 = vor.u32 %v6576, %v6579
        %v6581 = vrot.slane %v6580, 4
        %v6583 = vshll.u32 %v6274, 16
        %v6585 = vrot.slane %v6583, 5
        %v6586 = vsel %vm1132, %v6581, %v6585
        %v6587 = vshrl.u32 %v6274, 16
        %v6589 = vrot.slane %v6587, 4
        %v6590 = vor.u32 %v6589, %v6585
        %v6591 = vrot.slane %v6590, 4
        %v6593 = vshll.u32 %v6275, 16
        %v6595 = vrot.slane %v6593, 5
        %v6596 = vsel %vm1132, %v6591, %v6595
        %v6598 = vshrl.u32 %v6276, 16
        %v6600 = vrot.slane %v6598, 4
        %v6601 = vshll.u32 %v6276, 16
        %v6603 = vrot.slane %v6601, 5
        %v6604 = vor.u32 %v6600, %v6603
        %v6605 = vrot.slane %v6604, 4
        %v6607 = vshll.u32 %v6277, 16
        %v6609 = vrot.slane %v6607, 5
        %v6610 = vsel %vm1132, %v6605, %v6609
        %v6611 = vshrl.u32 %v6277, 16
        %v6613 = vrot.slane %v6611, 4
        %v6614 = vor.u32 %v6613, %v6609
        %v6615 = vrot.slane %v6614, 4
        %v6617 = vshll.u32 %v6278, 16
        %v6619 = vrot.slane %v6617, 5
        %v6620 = vsel %vm1132, %v6615, %v6619
        %v6622 = vshrl.u32 %v6279, 16
        %v6624 = vrot.slane %v6622, 4
        %v6625 = vshll.u32 %v6279, 16
        %v6627 = vrot.slane %v6625, 5
        %v6628 = vor.u32 %v6624, %v6627
        %v6629 = vrot.slane %v6628, 4
        %v6631 = vshll.u32 %v6280, 16
        %v6633 = vrot.slane %v6631, 5
        %v6634 = vsel %vm1132, %v6629, %v6633
        %v6635 = vshrl.u32 %v6280, 16
        %v6637 = vrot.slane %v6635, 4
        %v6638 = vor.u32 %v6637, %v6633
        %v6639 = vrot.slane %v6638, 4
        %v6641 = vshll.u32 %v6281, 16
        %v6643 = vrot.slane %v6641, 5
        %v6644 = vsel %vm1132, %v6639, %v6643
        %v6646 = vshrl.u32 %v6282, 16
        %v6648 = vrot.slane %v6646, 4
        %v6649 = vshll.u32 %v6282, 16
        %v6651 = vrot.slane %v6649, 5
        %v6652 = vor.u32 %v6648, %v6651
        %v6653 = vrot.slane %v6652, 4
        %v6655 = vshll.u32 %v6283, 16
        %v6657 = vrot.slane %v6655, 5
        %v6658 = vsel %vm1132, %v6653, %v6657
        %v6659 = vshrl.u32 %v6283, 16
        %v6661 = vrot.slane %v6659, 4
        %v6662 = vor.u32 %v6661, %v6657
        %v6663 = vrot.slane %v6662, 4
        %v6665 = vshll.u32 %v6284, 16
        %v6667 = vrot.slane %v6665, 5
        %v6668 = vsel %vm1132, %v6663, %v6667
        %v6717 = vrot.slane %v6237, 5
        %v6718 = vrot.slane %v6717, 4
        %v6719 = vrot.slane %v6238, 5
        %v6720 = vsel %vm1567, %v6718, %v6719
        %v6721 = vrot.slane %v6719, 4
        %v6722 = vrot.slane %v6239, 5
        %v6723 = vsel %vm1567, %v6721, %v6722
        %v6724 = vrot.slane %v6240, 5
        %v6725 = vrot.slane %v6724, 4
        %v6726 = vrot.slane %v6241, 5
        %v6727 = vsel %vm1567, %v6725, %v6726
        %v6728 = vrot.slane %v6726, 4
        %v6729 = vrot.slane %v6242, 5
        %v6730 = vsel %vm1567, %v6728, %v6729
        %v6731 = vrot.slane %v6243, 5
        %v6732 = vrot.slane %v6731, 4
        %v6733 = vrot.slane %v6244, 5
        %v6734 = vsel %vm1567, %v6732, %v6733
        %v6735 = vrot.slane %v6733, 4
        %v6736 = vrot.slane %v6245, 5
        %v6737 = vsel %vm1567, %v6735, %v6736
        %v6738 = vrot.slane %v6246, 5
        %v6739 = vrot.slane %v6738, 4
        %v6740 = vrot.slane %v6247, 5
        %v6741 = vsel %vm1567, %v6739, %v6740
        %v6742 = vrot.slane %v6740, 4
        %v6743 = vrot.slane %v6248, 5
        %v6744 = vsel %vm1567, %v6742, %v6743
        %v6745 = vrot.slane %v6249, 5
        %v6746 = vrot.slane %v6745, 4
        %v6747 = vrot.slane %v6250, 5
        %v6748 = vsel %vm1567, %v6746, %v6747
        %v6749 = vrot.slane %v6747, 4
        %v6750 = vrot.slane %v6251, 5
        %v6751 = vsel %vm1567, %v6749, %v6750
        %v6752 = vrot.slane %v6252, 5
        %v6753 = vrot.slane %v6752, 4
        %v6754 = vrot.slane %v6253, 5
        %v6755 = vsel %vm1567, %v6753, %v6754
        %v6756 = vrot.slane %v6754, 4
        %v6757 = vrot.slane %v6254, 5
        %v6758 = vsel %vm1567, %v6756, %v6757
        %v6759 = vrot.slane %v6255, 5
        %v6760 = vrot.slane %v6759, 4
        %v6761 = vrot.slane %v6256, 5
        %v6762 = vsel %vm1567, %v6760, %v6761
        %v6763 = vrot.slane %v6761, 4
        %v6764 = vrot.slane %v6257, 5
        %v6765 = vsel %vm1567, %v6763, %v6764
        %v6766 = vrot.slane %v6258, 5
        %v6767 = vrot.slane %v6766, 4
        %v6768 = vrot.slane %v6259, 5
        %v6769 = vsel %vm1567, %v6767, %v6768
        %v6770 = vrot.slane %v6768, 4
        %v6771 = vrot.slane %v6260, 5
        %v6772 = vsel %vm1567, %v6770, %v6771
        %v6773 = vrot.slane %v6261, 5
        %v6774 = vrot.slane %v6773, 4
        %v6775 = vrot.slane %v6262, 5
        %v6776 = vsel %vm1567, %v6774, %v6775
        %v6777 = vrot.slane %v6775, 4
        %v6778 = vrot.slane %v6263, 5
        %v6779 = vsel %vm1567, %v6777, %v6778
        %v6780 = vrot.slane %v6264, 5
        %v6781 = vrot.slane %v6780, 4
        %v6782 = vrot.slane %v6265, 5
        %v6783 = vsel %vm1567, %v6781, %v6782
        %v6784 = vrot.slane %v6782, 4
        %v6785 = vrot.slane %v6266, 5
        %v6786 = vsel %vm1567, %v6784, %v6785
        %v6787 = vrot.slane %v6267, 5
        %v6788 = vrot.slane %v6787, 4
        %v6789 = vrot.slane %v6268, 5
        %v6790 = vsel %vm1567, %v6788, %v6789
        %v6791 = vrot.slane %v6789, 4
        %v6792 = vrot.slane %v6269, 5
        %v6793 = vsel %vm1567, %v6791, %v6792
        %v6794 = vrot.slane %v6270, 5
        %v6795 = vrot.slane %v6794, 4
        %v6796 = vrot.slane %v6271, 5
        %v6797 = vsel %vm1567, %v6795, %v6796
        %v6798 = vrot.slane %v6796, 4
        %v6799 = vrot.slane %v6272, 5
        %v6800 = vsel %vm1567, %v6798, %v6799
        %v6801 = vrot.slane %v6273, 5
        %v6802 = vrot.slane %v6801, 4
        %v6803 = vrot.slane %v6274, 5
        %v6804 = vsel %vm1567, %v6802, %v6803
        %v6805 = vrot.slane %v6803, 4
        %v6806 = vrot.slane %v6275, 5
        %v6807 = vsel %vm1567, %v6805, %v6806
        %v6808 = vrot.slane %v6276, 5
        %v6809 = vrot.slane %v6808, 4
        %v6810 = vrot.slane %v6277, 5
        %v6811 = vsel %vm1567, %v6809, %v6810
        %v6812 = vrot.slane %v6810, 4
        %v6813 = vrot.slane %v6278, 5
        %v6814 = vsel %vm1567, %v6812, %v6813
        %v6815 = vrot.slane %v6279, 5
        %v6816 = vrot.slane %v6815, 4
        %v6817 = vrot.slane %v6280, 5
        %v6818 = vsel %vm1567, %v6816, %v6817
        %v6819 = vrot.slane %v6817, 4
        %v6820 = vrot.slane %v6281, 5
        %v6821 = vsel %vm1567, %v6819, %v6820
        %v6822 = vrot.slane %v6282, 5
        %v6823 = vrot.slane %v6822, 4
        %v6824 = vrot.slane %v6283, 5
        %v6825 = vsel %vm1567, %v6823, %v6824
        %v6826 = vrot.slane %v6824, 4
        %v6827 = vrot.slane %v6284, 5
        %v6828 = vsel %vm1567, %v6826, %v6827
        %v6829 = vunpack.c.l.b16 %v6237
        %v6830 = vunpack.c.l.b16 %v6238
        %v6831 = vunpack.c.l.b16 %v6240
        %v6832 = vunpack.c.l.b16 %v6241
        %v6833 = vunpack.c.l.b16 %v6243
        %v6834 = vunpack.c.l.b16 %v6244
        %v6835 = vunpack.c.l.b16 %v6246
        %v6836 = vunpack.c.l.b16 %v6247
        %v6837 = vunpack.c.l.b16 %v6249
        %v6838 = vunpack.c.l.b16 %v6250
        %v6839 = vunpack.c.l.b16 %v6252
        %v6840 = vunpack.c.l.b16 %v6253
        %v6841 = vunpack.c.l.b16 %v6255
        %v6842 = vunpack.c.l.b16 %v6256
        %v6843 = vunpack.c.l.b16 %v6258
        %v6844 = vunpack.c.l.b16 %v6259
        %v6845 = vunpack.c.l.b16 %v6261
        %v6846 = vunpack.c.l.b16 %v6262
        %v6847 = vunpack.c.l.b16 %v6264
        %v6848 = vunpack.c.l.b16 %v6265
        %v6849 = vunpack.c.l.b16 %v6267
        %v6850 = vunpack.c.l.b16 %v6268
        %v6851 = vunpack.c.l.b16 %v6270
        %v6852 = vunpack.c.l.b16 %v6271
        %v6853 = vunpack.c.l.b16 %v6273
        %v6854 = vunpack.c.l.b16 %v6274
        %v6855 = vunpack.c.l.b16 %v6276
        %v6856 = vunpack.c.l.b16 %v6277
        %v6857 = vunpack.c.l.b16 %v6279
        %v6858 = vunpack.c.l.b16 %v6280
        %v6859 = vunpack.c.l.b16 %v6282
        %v6860 = vunpack.c.l.b16 %v6283
        %v6861 = vpack.c.b16 %v6830, %v6829
        %v6862 = vpack.c.b16 %v6832, %v6831
        %v6863 = vpack.c.b16 %v6834, %v6833
        %v6864 = vpack.c.b16 %v6836, %v6835
        %v6865 = vpack.c.b16 %v6838, %v6837
        %v6866 = vpack.c.b16 %v6840, %v6839
        %v6867 = vpack.c.b16 %v6842, %v6841
        %v6868 = vpack.c.b16 %v6844, %v6843
        %v6869 = vpack.c.b16 %v6846, %v6845
        %v6870 = vpack.c.b16 %v6848, %v6847
        %v6871 = vpack.c.b16 %v6850, %v6849
        %v6872 = vpack.c.b16 %v6852, %v6851
        %v6873 = vpack.c.b16 %v6854, %v6853
        %v6874 = vpack.c.b16 %v6856, %v6855
        %v6875 = vpack.c.b16 %v6858, %v6857
        %v6876 = vpack.c.b16 %v6860, %v6859
        %v6877 = vunpack.c.l.b16 %v6298
        %v6878 = vunpack.c.l.b16 %v6308
        %v6879 = vunpack.c.l.b16 %v6322
        %v6880 = vunpack.c.l.b16 %v6332
        %v6881 = vunpack.c.l.b16 %v6346
        %v6882 = vunpack.c.l.b16 %v6356
        %v6883 = vunpack.c.l.b16 %v6370
        %v6884 = vunpack.c.l.b16 %v6380
        %v6885 = vunpack.c.l.b16 %v6394
        %v6886 = vunpack.c.l.b16 %v6404
        %v6887 = vunpack.c.l.b16 %v6418
        %v6888 = vunpack.c.l.b16 %v6428
        %v6889 = vunpack.c.l.b16 %v6442
        %v6890 = vunpack.c.l.b16 %v6452
        %v6891 = vunpack.c.l.b16 %v6466
        %v6892 = vunpack.c.l.b16 %v6476
        %v6893 = vunpack.c.l.b16 %v6490
        %v6894 = vunpack.c.l.b16 %v6500
        %v6895 = vunpack.c.l.b16 %v6514
        %v6896 = vunpack.c.l.b16 %v6524
        %v6897 = vunpack.c.l.b16 %v6538
        %v6898 = vunpack.c.l.b16 %v6548
        %v6899 = vunpack.c.l.b16 %v6562
        %v6900 = vunpack.c.l.b16 %v6572
        %v6901 = vunpack.c.l.b16 %v6586
        %v6902 = vunpack.c.l.b16 %v6596
        %v6903 = vunpack.c.l.b16 %v6610
        %v6904 = vunpack.c.l.b16 %v6620
        %v6905 = vunpack.c.l.b16 %v6634
        %v6906 = vunpack.c.l.b16 %v6644
        %v6907 = vunpack.c.l.b16 %v6658
        %v6908 = vunpack.c.l.b16 %v6668
        %v6909 = vpack.c.b16 %v6878, %v6877
        %v6910 = vpack.c.b16 %v6880, %v6879
        %v6911 = vpack.c.b16 %v6882, %v6881
        %v6912 = vpack.c.b16 %v6884, %v6883
        %v6913 = vpack.c.b16 %v6886, %v6885
        %v6914 = vpack.c.b16 %v6888, %v6887
        %v6915 = vpack.c.b16 %v6890, %v6889
        %v6916 = vpack.c.b16 %v6892, %v6891
        %v6917 = vpack.c.b16 %v6894, %v6893
        %v6918 = vpack.c.b16 %v6896, %v6895
        %v6919 = vpack.c.b16 %v6898, %v6897
        %v6920 = vpack.c.b16 %v6900, %v6899
        %v6921 = vpack.c.b16 %v6902, %v6901
        %v6922 = vpack.c.b16 %v6904, %v6903
        %v6923 = vpack.c.b16 %v6906, %v6905
        %v6924 = vpack.c.b16 %v6908, %v6907
        %6925 = vrot.lane.b32.xlu0 %v6909, 64
        %v6926 = vpop.permute.xlu0 %6925
        %6927 = vrot.lane.b32.xlu0 %v6910, 64
        %v6928 = vpop.permute.xlu0 %6927
        %6929 = vrot.lane.b32.xlu0 %v6911, 64
        %v6930 = vpop.permute.xlu0 %6929
        %6931 = vrot.lane.b32.xlu0 %v6912, 64
        %v6932 = vpop.permute.xlu0 %6931
        %6933 = vrot.lane.b32.xlu0 %v6913, 64
        %v6934 = vpop.permute.xlu0 %6933
        %6935 = vrot.lane.b32.xlu0 %v6914, 64
        %v6936 = vpop.permute.xlu0 %6935
        %6937 = vrot.lane.b32.xlu0 %v6915, 64
        %v6938 = vpop.permute.xlu0 %6937
        %6939 = vrot.lane.b32.xlu0 %v6916, 64
        %v6940 = vpop.permute.xlu0 %6939
        %6941 = vrot.lane.b32.xlu0 %v6917, 64
        %v6942 = vpop.permute.xlu0 %6941
        %6943 = vrot.lane.b32.xlu0 %v6918, 64
        %v6944 = vpop.permute.xlu0 %6943
        %6945 = vrot.lane.b32.xlu0 %v6919, 64
        %v6946 = vpop.permute.xlu0 %6945
        %6947 = vrot.lane.b32.xlu0 %v6920, 64
        %v6948 = vpop.permute.xlu0 %6947
        %6949 = vrot.lane.b32.xlu0 %v6921, 64
        %v6950 = vpop.permute.xlu0 %6949
        %6951 = vrot.lane.b32.xlu0 %v6922, 64
        %v6952 = vpop.permute.xlu0 %6951
        %6953 = vrot.lane.b32.xlu0 %v6923, 64
        %v6954 = vpop.permute.xlu0 %6953
        %6955 = vrot.lane.b32.xlu0 %v6924, 64
        %v6956 = vpop.permute.xlu0 %6955
        %v6957 = vunpack.c.l.b16 %v6720
        %v6958 = vunpack.c.l.b16 %v6723
        %v6959 = vunpack.c.l.b16 %v6727
        %v6960 = vunpack.c.l.b16 %v6730
        %v6961 = vunpack.c.l.b16 %v6734
        %v6962 = vunpack.c.l.b16 %v6737
        %v6963 = vunpack.c.l.b16 %v6741
        %v6964 = vunpack.c.l.b16 %v6744
        %v6965 = vunpack.c.l.b16 %v6748
        %v6966 = vunpack.c.l.b16 %v6751
        %v6967 = vunpack.c.l.b16 %v6755
        %v6968 = vunpack.c.l.b16 %v6758
        %v6969 = vunpack.c.l.b16 %v6762
        %v6970 = vunpack.c.l.b16 %v6765
        %v6971 = vunpack.c.l.b16 %v6769
        %v6972 = vunpack.c.l.b16 %v6772
        %v6973 = vunpack.c.l.b16 %v6776
        %v6974 = vunpack.c.l.b16 %v6779
        %v6975 = vunpack.c.l.b16 %v6783
        %v6976 = vunpack.c.l.b16 %v6786
        %v6977 = vunpack.c.l.b16 %v6790
        %v6978 = vunpack.c.l.b16 %v6793
        %v6979 = vunpack.c.l.b16 %v6797
        %v6980 = vunpack.c.l.b16 %v6800
        %v6981 = vunpack.c.l.b16 %v6804
        %v6982 = vunpack.c.l.b16 %v6807
        %v6983 = vunpack.c.l.b16 %v6811
        %v6984 = vunpack.c.l.b16 %v6814
        %v6985 = vunpack.c.l.b16 %v6818
        %v6986 = vunpack.c.l.b16 %v6821
        %v6987 = vunpack.c.l.b16 %v6825
        %v6988 = vunpack.c.l.b16 %v6828
        %v6989 = vpack.c.b16 %v6958, %v6957
        %v6990 = vpack.c.b16 %v6960, %v6959
        %v6991 = vpack.c.b16 %v6962, %v6961
        %v6992 = vpack.c.b16 %v6964, %v6963
        %v6993 = vpack.c.b16 %v6966, %v6965
        %v6994 = vpack.c.b16 %v6968, %v6967
        %v6995 = vpack.c.b16 %v6970, %v6969
        %v6996 = vpack.c.b16 %v6972, %v6971
        %v6997 = vpack.c.b16 %v6974, %v6973
        %v6998 = vpack.c.b16 %v6976, %v6975
        %v6999 = vpack.c.b16 %v6978, %v6977
        %v7000 = vpack.c.b16 %v6980, %v6979
        %v7001 = vpack.c.b16 %v6982, %v6981
        %v7002 = vpack.c.b16 %v6984, %v6983
        %v7003 = vpack.c.b16 %v6986, %v6985
        %v7004 = vpack.c.b16 %v6988, %v6987
        %v7007 = vsel %vm1856, %v6861, %v6926
        %v7011 = vsel %vm1856, %v6862, %v6928
        %v7015 = vsel %vm1856, %v6863, %v6930
        %v7019 = vsel %vm1856, %v6864, %v6932
        %v7023 = vsel %vm1856, %v6865, %v6934
        %v7027 = vsel %vm1856, %v6866, %v6936
        %v7031 = vsel %vm1856, %v6867, %v6938
        %v7035 = vsel %vm1856, %v6868, %v6940
        %v7039 = vsel %vm1856, %v6869, %v6942
        %v7043 = vsel %vm1856, %v6870, %v6944
        %v7047 = vsel %vm1856, %v6871, %v6946
        %v7051 = vsel %vm1856, %v6872, %v6948
        %v7055 = vsel %vm1856, %v6873, %v6950
        %v7059 = vsel %vm1856, %v6874, %v6952
        %v7063 = vsel %vm1856, %v6875, %v6954
        %v7067 = vsel %vm1856, %v6876, %v6956
        %v7093 = vunpack.c.l.b16 %v1026
        %v7094 = vunpack.c.l.b16 %v1027
        %v7095 = vunpack.c.l.b16 %v1028
        %v7096 = vunpack.c.l.b16 %v1029
        %v7097 = vunpack.c.l.b16 %v1030
        %v7098 = vunpack.c.l.b16 %v1031
        %v7099 = vunpack.c.l.b16 %v1032
        %v7100 = vunpack.c.l.b16 %v1033
        %v7101 = vunpack.c.l.b16 %v1034
        %v7102 = vunpack.c.l.b16 %v1035
        %v7103 = vunpack.c.l.b16 %v1036
        %v7104 = vunpack.c.l.b16 %v1037
        %v7105 = vunpack.c.l.b16 %v1038
        %v7106 = vunpack.c.l.b16 %v1039
        %v7107 = vunpack.c.l.b16 %v1040
        %v7108 = vunpack.c.l.b16 %v1041
        %v7109 = vunpack.c.l.b16 %v1042
        %v7110 = vunpack.c.l.b16 %v1043
        %v7111 = vunpack.c.l.b16 %v1044
        %v7112 = vunpack.c.l.b16 %v1045
        %v7113 = vunpack.c.l.b16 %v1046
        %v7114 = vunpack.c.l.b16 %v1047
        %v7115 = vunpack.c.l.b16 %v1048
        %v7116 = vunpack.c.l.b16 %v1049
        %v7117 = vpack.c.b16 %v7094, %v7093
        %v7118 = vpack.c.b16 %v7096, %v7095
        %v7119 = vpack.c.b16 %v7098, %v7097
        %v7120 = vpack.c.b16 %v7100, %v7099
        %v7121 = vpack.c.b16 %v7102, %v7101
        %v7122 = vpack.c.b16 %v7104, %v7103
        %v7123 = vpack.c.b16 %v7106, %v7105
        %v7124 = vpack.c.b16 %v7108, %v7107
        %v7125 = vpack.c.b16 %v7110, %v7109
        %v7126 = vpack.c.b16 %v7112, %v7111
        %v7127 = vpack.c.b16 %v7114, %v7113
        %v7128 = vpack.c.b16 %v7116, %v7115
        %v7142 = vsel %vm1856, %v6989, 0
        %v7145 = vsel %vm1856, %v6990, 0
        %v7148 = vsel %vm1856, %v6991, 0
        %v7151 = vsel %vm1856, %v6992, 0
        %v7154 = vsel %vm1856, %v6993, 0
        %v7157 = vsel %vm1856, %v6994, 0
        %v7160 = vsel %vm1856, %v6995, 0
        %v7163 = vsel %vm1856, %v6996, 0
        %v7166 = vsel %vm1856, %v6997, 0
        %v7169 = vsel %vm1856, %v6998, 0
        %v7172 = vsel %vm1856, %v6999, 0
        %v7175 = vsel %vm1856, %v7000, 0
        %v7178 = vsel %vm1856, %v7001, 0
        %v7181 = vsel %vm1856, %v7002, 0
        %v7184 = vsel %vm1856, %v7003, 0
        %v7187 = vsel %vm1856, %v7004, 0
        %7189 = vmatprep.subr.bf16.mxu0 0
        %7190 = vmatpush1.bf16.msra.mxu0 %v7124
        %7191 = vmatprep.subr.bf16.mxu0 0
        %7192 = vmatpush1.bf16.msra.mxu0 %v7123
        %7193 = vmatprep.subr.bf16.mxu0 0
        %7194 = vmatpush1.bf16.msra.mxu0 %v7122
        %7195 = vmatprep.subr.bf16.mxu0 0
        %7196 = vmatpush1.bf16.msra.mxu0 %v7121
        %7197 = vmatprep.subr.bf16.mxu0 0
        %7198 = vmatpush1.bf16.msra.mxu0 %v7120
        %7199 = vmatprep.subr.bf16.mxu0 0
        %7200 = vmatpush1.bf16.msra.mxu0 %v7119
        %7201 = vmatprep.subr.bf16.mxu0 0
        %7202 = vmatpush1.bf16.msra.mxu0 %v7118
        %7203 = vmatprep.subr.bf16.mxu0 0
        %7204 = vmatpush1.bf16.msra.mxu0 %v7117
        %7205 = vmatprep.subr.bf16.mxu0 0
        %7206 = vmatpush2.bf16.msra.mxu0 0
        %7207 = vmatprep.subr.bf16.mxu0 0
        %7208 = vmatpush2.bf16.msra.mxu0 0
        %7209 = vmatprep.subr.bf16.mxu0 0
        %7210 = vmatpush2.bf16.msra.mxu0 0
        %7211 = vmatprep.subr.bf16.mxu0 0
        %7212 = vmatpush2.bf16.msra.mxu0 0
        %7213 = vmatprep.subr.bf16.mxu0 0
        %7214 = vmatpush2.bf16.msra.mxu0 %v7128
        %7215 = vmatprep.subr.bf16.mxu0 0
        %7216 = vmatpush2.bf16.msra.mxu0 %v7127
        %7217 = vmatprep.subr.bf16.mxu0 0
        %7218 = vmatpush2.bf16.msra.mxu0 %v7126
        %7219 = vmatprep.subr.bf16.mxu0 0
        %7220 = vmatpush2.bf16.msra.mxu0 %v7125
        %7221 = vmatprep.mubr.bf16.mxu0 %v7142
        %7222 = vmatmul.mubr.bf16.gmra.mxu0 %v7007
        %v7223 = vpop.f32.mrf.mxu0
        %v7224 = vadd.f32 0.0, %v7223
        %v7225 = vpop.f32.mrf.mxu0
        %v7226 = vpop.f32.mrf.mxu0
        %v7227 = vadd.f32 0.0, %v7226
        %v7228 = vpop.f32.mrf.mxu0
        %7229 = vmatprep.mubr.bf16.mxu0 %v7145
        %7230 = vmatmul.mubr.bf16.gmra.mxu0 %v7011
        %v7231 = vpop.f32.mrf.mxu0
        %v7232 = vadd.f32 0.0, %v7231
        %v7233 = vpop.f32.mrf.mxu0
        %v7234 = vpop.f32.mrf.mxu0
        %v7235 = vadd.f32 0.0, %v7234
        %v7236 = vpop.f32.mrf.mxu0
        %7237 = vmatprep.mubr.bf16.mxu0 %v7148
        %7238 = vmatmul.mubr.bf16.gmra.mxu0 %v7015
        %v7239 = vpop.f32.mrf.mxu0
        %v7240 = vadd.f32 0.0, %v7239
        %v7241 = vpop.f32.mrf.mxu0
        %v7242 = vpop.f32.mrf.mxu0
        %v7243 = vadd.f32 0.0, %v7242
        %v7244 = vpop.f32.mrf.mxu0
        %7245 = vmatprep.mubr.bf16.mxu0 %v7151
        %7246 = vmatmul.mubr.bf16.gmra.mxu0 %v7019
        %v7247 = vpop.f32.mrf.mxu0
        %v7248 = vadd.f32 0.0, %v7247
        %v7249 = vpop.f32.mrf.mxu0
        %v7250 = vpop.f32.mrf.mxu0
        %v7251 = vadd.f32 0.0, %v7250
        %v7252 = vpop.f32.mrf.mxu0
        %7253 = vmatprep.mubr.bf16.mxu0 %v7154
        %7254 = vmatmul.mubr.bf16.gmra.mxu0 %v7023
        %v7255 = vpop.f32.mrf.mxu0
        %v7256 = vadd.f32 0.0, %v7255
        %v7257 = vpop.f32.mrf.mxu0
        %v7258 = vpop.f32.mrf.mxu0
        %v7259 = vadd.f32 0.0, %v7258
        %v7260 = vpop.f32.mrf.mxu0
        %7261 = vmatprep.mubr.bf16.mxu0 %v7157
        %7262 = vmatmul.mubr.bf16.gmra.mxu0 %v7027
        %v7263 = vpop.f32.mrf.mxu0
        %v7264 = vadd.f32 0.0, %v7263
        %v7265 = vpop.f32.mrf.mxu0
        %v7266 = vpop.f32.mrf.mxu0
        %v7267 = vadd.f32 0.0, %v7266
        %v7268 = vpop.f32.mrf.mxu0
        %7269 = vmatprep.mubr.bf16.mxu0 %v7160
        %7270 = vmatmul.mubr.bf16.gmra.mxu0 %v7031
        %v7271 = vpop.f32.mrf.mxu0
        %v7272 = vadd.f32 0.0, %v7271
        %v7273 = vpop.f32.mrf.mxu0
        %v7274 = vpop.f32.mrf.mxu0
        %v7275 = vadd.f32 0.0, %v7274
        %v7276 = vpop.f32.mrf.mxu0
        %7277 = vmatprep.mubr.bf16.mxu0 %v7163
        %7278 = vmatmul.mubr.bf16.gmra.mxu0 %v7035
        %v7279 = vpop.f32.mrf.mxu0
        %v7280 = vadd.f32 0.0, %v7279
        %v7281 = vpop.f32.mrf.mxu0
        %v7282 = vpop.f32.mrf.mxu0
        %v7283 = vadd.f32 0.0, %v7282
        %v7284 = vpop.f32.mrf.mxu0
        %7285 = vmatprep.mubr.bf16.mxu0 %v7166
        %7286 = vmatmul.mubr.bf16.gmra.mxu0 %v7039
        %v7287 = vpop.f32.mrf.mxu0
        %v7288 = vadd.f32 0.0, %v7287
        %v7289 = vpop.f32.mrf.mxu0
        %v7290 = vpop.f32.mrf.mxu0
        %v7291 = vadd.f32 0.0, %v7290
        %v7292 = vpop.f32.mrf.mxu0
        %7293 = vmatprep.mubr.bf16.mxu0 %v7169
        %7294 = vmatmul.mubr.bf16.gmra.mxu0 %v7043
        %v7295 = vpop.f32.mrf.mxu0
        %v7296 = vadd.f32 0.0, %v7295
        %v7297 = vpop.f32.mrf.mxu0
        %v7298 = vpop.f32.mrf.mxu0
        %v7299 = vadd.f32 0.0, %v7298
        %v7300 = vpop.f32.mrf.mxu0
        %7301 = vmatprep.mubr.bf16.mxu0 %v7172
        %7302 = vmatmul.mubr.bf16.gmra.mxu0 %v7047
        %v7303 = vpop.f32.mrf.mxu0
        %v7304 = vadd.f32 0.0, %v7303
        %v7305 = vpop.f32.mrf.mxu0
        %v7306 = vpop.f32.mrf.mxu0
        %v7307 = vadd.f32 0.0, %v7306
        %v7308 = vpop.f32.mrf.mxu0
        %7309 = vmatprep.mubr.bf16.mxu0 %v7175
        %7310 = vmatmul.mubr.bf16.gmra.mxu0 %v7051
        %v7311 = vpop.f32.mrf.mxu0
        %v7312 = vadd.f32 0.0, %v7311
        %v7313 = vpop.f32.mrf.mxu0
        %v7314 = vpop.f32.mrf.mxu0
        %v7315 = vadd.f32 0.0, %v7314
        %v7316 = vpop.f32.mrf.mxu0
        %7317 = vmatprep.mubr.bf16.mxu0 %v7178
        %7318 = vmatmul.mubr.bf16.gmra.mxu0 %v7055
        %v7319 = vpop.f32.mrf.mxu0
        %v7320 = vadd.f32 0.0, %v7319
        %v7321 = vpop.f32.mrf.mxu0
        %v7322 = vpop.f32.mrf.mxu0
        %v7323 = vadd.f32 0.0, %v7322
        %v7324 = vpop.f32.mrf.mxu0
        %7325 = vmatprep.mubr.bf16.mxu0 %v7181
        %7326 = vmatmul.mubr.bf16.gmra.mxu0 %v7059
        %v7327 = vpop.f32.mrf.mxu0
        %v7328 = vadd.f32 0.0, %v7327
        %v7329 = vpop.f32.mrf.mxu0
        %v7330 = vpop.f32.mrf.mxu0
        %v7331 = vadd.f32 0.0, %v7330
        %v7332 = vpop.f32.mrf.mxu0
        %7333 = vmatprep.mubr.bf16.mxu0 %v7184
        %7334 = vmatmul.mubr.bf16.gmra.mxu0 %v7063
        %v7335 = vpop.f32.mrf.mxu0
        %v7336 = vadd.f32 0.0, %v7335
        %v7337 = vpop.f32.mrf.mxu0
        %v7338 = vpop.f32.mrf.mxu0
        %v7339 = vadd.f32 0.0, %v7338
        %v7340 = vpop.f32.mrf.mxu0
        %7341 = vmatprep.mubr.bf16.mxu0 %v7187
        %7342 = vmatmul.mubr.bf16.gmra.mxu0 %v7067
        %v7343 = vpop.f32.mrf.mxu0
        %v7344 = vadd.f32 0.0, %v7343
        %v7345 = vpop.f32.mrf.mxu0
        %v7346 = vpop.f32.mrf.mxu0
        %v7347 = vadd.f32 0.0, %v7346
        %v7348 = vpop.f32.mrf.mxu0
        %7349 = vdwg.mxu0
        %v7350 = vadd.f32 %v6205, %v7224
        %v7351 = vadd.f32 %v6206, %v7227
        %v7352 = vadd.f32 %v6207, %v7232
        %v7353 = vadd.f32 %v6208, %v7235
        %v7354 = vadd.f32 %v6209, %v7240
        %v7355 = vadd.f32 %v6210, %v7243
        %v7356 = vadd.f32 %v6211, %v7248
        %v7357 = vadd.f32 %v6212, %v7251
        %v7358 = vadd.f32 %v6213, %v7256
        %v7359 = vadd.f32 %v6214, %v7259
        %v7360 = vadd.f32 %v6215, %v7264
        %v7361 = vadd.f32 %v6216, %v7267
        %v7362 = vadd.f32 %v6217, %v7272
        %v7363 = vadd.f32 %v6218, %v7275
        %v7364 = vadd.f32 %v6219, %v7280
        %v7365 = vadd.f32 %v6220, %v7283
        %v7366 = vadd.f32 %v6221, %v7288
        %v7367 = vadd.f32 %v6222, %v7291
        %v7368 = vadd.f32 %v6223, %v7296
        %v7369 = vadd.f32 %v6224, %v7299
        %v7370 = vadd.f32 %v6225, %v7304
        %v7371 = vadd.f32 %v6226, %v7307
        %v7372 = vadd.f32 %v6227, %v7312
        %v7373 = vadd.f32 %v6228, %v7315
        %v7374 = vadd.f32 %v6229, %v7320
        %v7375 = vadd.f32 %v6230, %v7323
        %v7376 = vadd.f32 %v6231, %v7328
        %v7377 = vadd.f32 %v6232, %v7331
        %v7378 = vadd.f32 %v6233, %v7336
        %v7379 = vadd.f32 %v6234, %v7339
        %v7380 = vadd.f32 %v6235, %v7344
        %v7381 = vadd.f32 %v6236, %v7347
        %s7382 = scalar_lea.vmem [#allocation3], 24
        %v7383 = vld [vmem:[%s7382] sm:$0xf]
        %v7384 = vld [vmem:[%s7382 + $0x4] sm:$0xf]
        %v7385 = vld [vmem:[%s7382 + $0x8] sm:$0x1]
        %v7386 = vld [vmem:[%s7382 + $0xc] sm:$0xf]
        %v7387 = vld [vmem:[%s7382 + $0x10] sm:$0xf]
        %v7388 = vld [vmem:[%s7382 + $0x14] sm:$0x1]
        %v7389 = vld [vmem:[%s7382 + $0x18] sm:$0xf]
        %v7390 = vld [vmem:[%s7382 + $0x1c] sm:$0xf]
        %v7391 = vld [vmem:[%s7382 + $0x20] sm:$0x1]
        %v7392 = vld [vmem:[%s7382 + $0x24] sm:$0xf]
        %v7393 = vld [vmem:[%s7382 + $0x28] sm:$0xf]
        %v7394 = vld [vmem:[%s7382 + $0x2c] sm:$0x1]
        %v7395 = vld [vmem:[%s7382 + $0x30] sm:$0xf]
        %v7396 = vld [vmem:[%s7382 + $0x34] sm:$0xf]
        %v7397 = vld [vmem:[%s7382 + $0x38] sm:$0x1]
        %v7398 = vld [vmem:[%s7382 + $0x3c] sm:$0xf]
        %v7399 = vld [vmem:[%s7382 + $0x40] sm:$0xf]
        %v7400 = vld [vmem:[%s7382 + $0x44] sm:$0x1]
        %v7401 = vld [vmem:[%s7382 + $0x48] sm:$0xf]
        %v7402 = vld [vmem:[%s7382 + $0x4c] sm:$0xf]
        %v7403 = vld [vmem:[%s7382 + $0x50] sm:$0x1]
        %v7404 = vld [vmem:[%s7382 + $0x54] sm:$0xf]
        %v7405 = vld [vmem:[%s7382 + $0x58] sm:$0xf]
        %v7406 = vld [vmem:[%s7382 + $0x5c] sm:$0x1]
        %v7407 = vld [vmem:[%s7382 + $0x60] sm:$0xf]
        %v7408 = vld [vmem:[%s7382 + $0x64] sm:$0xf]
        %v7409 = vld [vmem:[%s7382 + $0x68] sm:$0x1]
        %v7410 = vld [vmem:[%s7382 + $0x6c] sm:$0xf]
        %v7411 = vld [vmem:[%s7382 + $0x70] sm:$0xf]
        %v7412 = vld [vmem:[%s7382 + $0x74] sm:$0x1]
        %v7413 = vld [vmem:[%s7382 + $0x78] sm:$0xf]
        %v7414 = vld [vmem:[%s7382 + $0x7c] sm:$0xf]
        %v7415 = vld [vmem:[%s7382 + $0x80] sm:$0x1]
        %v7416 = vld [vmem:[%s7382 + $0x84] sm:$0xf]
        %v7417 = vld [vmem:[%s7382 + $0x88] sm:$0xf]
        %v7418 = vld [vmem:[%s7382 + $0x8c] sm:$0x1]
        %v7419 = vld [vmem:[%s7382 + $0x90] sm:$0xf]
        %v7420 = vld [vmem:[%s7382 + $0x94] sm:$0xf]
        %v7421 = vld [vmem:[%s7382 + $0x98] sm:$0x1]
        %v7422 = vld [vmem:[%s7382 + $0x9c] sm:$0xf]
        %v7423 = vld [vmem:[%s7382 + $0xa0] sm:$0xf]
        %v7424 = vld [vmem:[%s7382 + $0xa4] sm:$0x1]
        %v7425 = vld [vmem:[%s7382 + $0xa8] sm:$0xf]
        %v7426 = vld [vmem:[%s7382 + $0xac] sm:$0xf]
        %v7427 = vld [vmem:[%s7382 + $0xb0] sm:$0x1]
        %v7428 = vld [vmem:[%s7382 + $0xb4] sm:$0xf]
        %v7429 = vld [vmem:[%s7382 + $0xb8] sm:$0xf]
        %v7430 = vld [vmem:[%s7382 + $0xbc] sm:$0x1]
        %v7432 = vshrl.u32 %v7383, 16
        %v7434 = vrot.slane %v7432, 4
        %v7435 = vshll.u32 %v7383, 16
        %v7437 = vrot.slane %v7435, 5
        %v7438 = vor.u32 %v7434, %v7437
        %v7439 = vrot.slane %v7438, 4
        %v7441 = vshll.u32 %v7384, 16
        %v7443 = vrot.slane %v7441, 5
        %v7444 = vsel %vm1132, %v7439, %v7443
        %v7445 = vshrl.u32 %v7384, 16
        %v7447 = vrot.slane %v7445, 4
        %v7448 = vor.u32 %v7447, %v7443
        %v7449 = vrot.slane %v7448, 4
        %v7451 = vshll.u32 %v7385, 16
        %v7453 = vrot.slane %v7451, 5
        %v7454 = vsel %vm1132, %v7449, %v7453
        %v7456 = vshrl.u32 %v7386, 16
        %v7458 = vrot.slane %v7456, 4
        %v7459 = vshll.u32 %v7386, 16
        %v7461 = vrot.slane %v7459, 5
        %v7462 = vor.u32 %v7458, %v7461
        %v7463 = vrot.slane %v7462, 4
        %v7465 = vshll.u32 %v7387, 16
        %v7467 = vrot.slane %v7465, 5
        %v7468 = vsel %vm1132, %v7463, %v7467
        %v7469 = vshrl.u32 %v7387, 16
        %v7471 = vrot.slane %v7469, 4
        %v7472 = vor.u32 %v7471, %v7467
        %v7473 = vrot.slane %v7472, 4
        %v7475 = vshll.u32 %v7388, 16
        %v7477 = vrot.slane %v7475, 5
        %v7478 = vsel %vm1132, %v7473, %v7477
        %v7480 = vshrl.u32 %v7389, 16
        %v7482 = vrot.slane %v7480, 4
        %v7483 = vshll.u32 %v7389, 16
        %v7485 = vrot.slane %v7483, 5
        %v7486 = vor.u32 %v7482, %v7485
        %v7487 = vrot.slane %v7486, 4
        %v7489 = vshll.u32 %v7390, 16
        %v7491 = vrot.slane %v7489, 5
        %v7492 = vsel %vm1132, %v7487, %v7491
        %v7493 = vshrl.u32 %v7390, 16
        %v7495 = vrot.slane %v7493, 4
        %v7496 = vor.u32 %v7495, %v7491
        %v7497 = vrot.slane %v7496, 4
        %v7499 = vshll.u32 %v7391, 16
        %v7501 = vrot.slane %v7499, 5
        %v7502 = vsel %vm1132, %v7497, %v7501
        %v7504 = vshrl.u32 %v7392, 16
        %v7506 = vrot.slane %v7504, 4
        %v7507 = vshll.u32 %v7392, 16
        %v7509 = vrot.slane %v7507, 5
        %v7510 = vor.u32 %v7506, %v7509
        %v7511 = vrot.slane %v7510, 4
        %v7513 = vshll.u32 %v7393, 16
        %v7515 = vrot.slane %v7513, 5
        %v7516 = vsel %vm1132, %v7511, %v7515
        %v7517 = vshrl.u32 %v7393, 16
        %v7519 = vrot.slane %v7517, 4
        %v7520 = vor.u32 %v7519, %v7515
        %v7521 = vrot.slane %v7520, 4
        %v7523 = vshll.u32 %v7394, 16
        %v7525 = vrot.slane %v7523, 5
        %v7526 = vsel %vm1132, %v7521, %v7525
        %v7528 = vshrl.u32 %v7395, 16
        %v7530 = vrot.slane %v7528, 4
        %v7531 = vshll.u32 %v7395, 16
        %v7533 = vrot.slane %v7531, 5
        %v7534 = vor.u32 %v7530, %v7533
        %v7535 = vrot.slane %v7534, 4
        %v7537 = vshll.u32 %v7396, 16
        %v7539 = vrot.slane %v7537, 5
        %v7540 = vsel %vm1132, %v7535, %v7539
        %v7541 = vshrl.u32 %v7396, 16
        %v7543 = vrot.slane %v7541, 4
        %v7544 = vor.u32 %v7543, %v7539
        %v7545 = vrot.slane %v7544, 4
        %v7547 = vshll.u32 %v7397, 16
        %v7549 = vrot.slane %v7547, 5
        %v7550 = vsel %vm1132, %v7545, %v7549
        %v7552 = vshrl.u32 %v7398, 16
        %v7554 = vrot.slane %v7552, 4
        %v7555 = vshll.u32 %v7398, 16
        %v7557 = vrot.slane %v7555, 5
        %v7558 = vor.u32 %v7554, %v7557
        %v7559 = vrot.slane %v7558, 4
        %v7561 = vshll.u32 %v7399, 16
        %v7563 = vrot.slane %v7561, 5
        %v7564 = vsel %vm1132, %v7559, %v7563
        %v7565 = vshrl.u32 %v7399, 16
        %v7567 = vrot.slane %v7565, 4
        %v7568 = vor.u32 %v7567, %v7563
        %v7569 = vrot.slane %v7568, 4
        %v7571 = vshll.u32 %v7400, 16
        %v7573 = vrot.slane %v7571, 5
        %v7574 = vsel %vm1132, %v7569, %v7573
        %v7576 = vshrl.u32 %v7401, 16
        %v7578 = vrot.slane %v7576, 4
        %v7579 = vshll.u32 %v7401, 16
        %v7581 = vrot.slane %v7579, 5
        %v7582 = vor.u32 %v7578, %v7581
        %v7583 = vrot.slane %v7582, 4
        %v7585 = vshll.u32 %v7402, 16
        %v7587 = vrot.slane %v7585, 5
        %v7588 = vsel %vm1132, %v7583, %v7587
        %v7589 = vshrl.u32 %v7402, 16
        %v7591 = vrot.slane %v7589, 4
        %v7592 = vor.u32 %v7591, %v7587
        %v7593 = vrot.slane %v7592, 4
        %v7595 = vshll.u32 %v7403, 16
        %v7597 = vrot.slane %v7595, 5
        %v7598 = vsel %vm1132, %v7593, %v7597
        %v7600 = vshrl.u32 %v7404, 16
        %v7602 = vrot.slane %v7600, 4
        %v7603 = vshll.u32 %v7404, 16
        %v7605 = vrot.slane %v7603, 5
        %v7606 = vor.u32 %v7602, %v7605
        %v7607 = vrot.slane %v7606, 4
        %v7609 = vshll.u32 %v7405, 16
        %v7611 = vrot.slane %v7609, 5
        %v7612 = vsel %vm1132, %v7607, %v7611
        %v7613 = vshrl.u32 %v7405, 16
        %v7615 = vrot.slane %v7613, 4
        %v7616 = vor.u32 %v7615, %v7611
        %v7617 = vrot.slane %v7616, 4
        %v7619 = vshll.u32 %v7406, 16
        %v7621 = vrot.slane %v7619, 5
        %v7622 = vsel %vm1132, %v7617, %v7621
        %v7624 = vshrl.u32 %v7407, 16
        %v7626 = vrot.slane %v7624, 4
        %v7627 = vshll.u32 %v7407, 16
        %v7629 = vrot.slane %v7627, 5
        %v7630 = vor.u32 %v7626, %v7629
        %v7631 = vrot.slane %v7630, 4
        %v7633 = vshll.u32 %v7408, 16
        %v7635 = vrot.slane %v7633, 5
        %v7636 = vsel %vm1132, %v7631, %v7635
        %v7637 = vshrl.u32 %v7408, 16
        %v7639 = vrot.slane %v7637, 4
        %v7640 = vor.u32 %v7639, %v7635
        %v7641 = vrot.slane %v7640, 4
        %v7643 = vshll.u32 %v7409, 16
        %v7645 = vrot.slane %v7643, 5
        %v7646 = vsel %vm1132, %v7641, %v7645
        %v7648 = vshrl.u32 %v7410, 16
        %v7650 = vrot.slane %v7648, 4
        %v7651 = vshll.u32 %v7410, 16
        %v7653 = vrot.slane %v7651, 5
        %v7654 = vor.u32 %v7650, %v7653
        %v7655 = vrot.slane %v7654, 4
        %v7657 = vshll.u32 %v7411, 16
        %v7659 = vrot.slane %v7657, 5
        %v7660 = vsel %vm1132, %v7655, %v7659
        %v7661 = vshrl.u32 %v7411, 16
        %v7663 = vrot.slane %v7661, 4
        %v7664 = vor.u32 %v7663, %v7659
        %v7665 = vrot.slane %v7664, 4
        %v7667 = vshll.u32 %v7412, 16
        %v7669 = vrot.slane %v7667, 5
        %v7670 = vsel %vm1132, %v7665, %v7669
        %v7672 = vshrl.u32 %v7413, 16
        %v7674 = vrot.slane %v7672, 4
        %v7675 = vshll.u32 %v7413, 16
        %v7677 = vrot.slane %v7675, 5
        %v7678 = vor.u32 %v7674, %v7677
        %v7679 = vrot.slane %v7678, 4
        %v7681 = vshll.u32 %v7414, 16
        %v7683 = vrot.slane %v7681, 5
        %v7684 = vsel %vm1132, %v7679, %v7683
        %v7685 = vshrl.u32 %v7414, 16
        %v7687 = vrot.slane %v7685, 4
        %v7688 = vor.u32 %v7687, %v7683
        %v7689 = vrot.slane %v7688, 4
        %v7691 = vshll.u32 %v7415, 16
        %v7693 = vrot.slane %v7691, 5
        %v7694 = vsel %vm1132, %v7689, %v7693
        %v7696 = vshrl.u32 %v7416, 16
        %v7698 = vrot.slane %v7696, 4
        %v7699 = vshll.u32 %v7416, 16
        %v7701 = vrot.slane %v7699, 5
        %v7702 = vor.u32 %v7698, %v7701
        %v7703 = vrot.slane %v7702, 4
        %v7705 = vshll.u32 %v7417, 16
        %v7707 = vrot.slane %v7705, 5
        %v7708 = vsel %vm1132, %v7703, %v7707
        %v7709 = vshrl.u32 %v7417, 16
        %v7711 = vrot.slane %v7709, 4
        %v7712 = vor.u32 %v7711, %v7707
        %v7713 = vrot.slane %v7712, 4
        %v7715 = vshll.u32 %v7418, 16
        %v7717 = vrot.slane %v7715, 5
        %v7718 = vsel %vm1132, %v7713, %v7717
        %v7720 = vshrl.u32 %v7419, 16
        %v7722 = vrot.slane %v7720, 4
        %v7723 = vshll.u32 %v7419, 16
        %v7725 = vrot.slane %v7723, 5
        %v7726 = vor.u32 %v7722, %v7725
        %v7727 = vrot.slane %v7726, 4
        %v7729 = vshll.u32 %v7420, 16
        %v7731 = vrot.slane %v7729, 5
        %v7732 = vsel %vm1132, %v7727, %v7731
        %v7733 = vshrl.u32 %v7420, 16
        %v7735 = vrot.slane %v7733, 4
        %v7736 = vor.u32 %v7735, %v7731
        %v7737 = vrot.slane %v7736, 4
        %v7739 = vshll.u32 %v7421, 16
        %v7741 = vrot.slane %v7739, 5
        %v7742 = vsel %vm1132, %v7737, %v7741
        %v7744 = vshrl.u32 %v7422, 16
        %v7746 = vrot.slane %v7744, 4
        %v7747 = vshll.u32 %v7422, 16
        %v7749 = vrot.slane %v7747, 5
        %v7750 = vor.u32 %v7746, %v7749
        %v7751 = vrot.slane %v7750, 4
        %v7753 = vshll.u32 %v7423, 16
        %v7755 = vrot.slane %v7753, 5
        %v7756 = vsel %vm1132, %v7751, %v7755
        %v7757 = vshrl.u32 %v7423, 16
        %v7759 = vrot.slane %v7757, 4
        %v7760 = vor.u32 %v7759, %v7755
        %v7761 = vrot.slane %v7760, 4
        %v7763 = vshll.u32 %v7424, 16
        %v7765 = vrot.slane %v7763, 5
        %v7766 = vsel %vm1132, %v7761, %v7765
        %v7768 = vshrl.u32 %v7425, 16
        %v7770 = vrot.slane %v7768, 4
        %v7771 = vshll.u32 %v7425, 16
        %v7773 = vrot.slane %v7771, 5
        %v7774 = vor.u32 %v7770, %v7773
        %v7775 = vrot.slane %v7774, 4
        %v7777 = vshll.u32 %v7426, 16
        %v7779 = vrot.slane %v7777, 5
        %v7780 = vsel %vm1132, %v7775, %v7779
        %v7781 = vshrl.u32 %v7426, 16
        %v7783 = vrot.slane %v7781, 4
        %v7784 = vor.u32 %v7783, %v7779
        %v7785 = vrot.slane %v7784, 4
        %v7787 = vshll.u32 %v7427, 16
        %v7789 = vrot.slane %v7787, 5
        %v7790 = vsel %vm1132, %v7785, %v7789
        %v7792 = vshrl.u32 %v7428, 16
        %v7794 = vrot.slane %v7792, 4
        %v7795 = vshll.u32 %v7428, 16
        %v7797 = vrot.slane %v7795, 5
        %v7798 = vor.u32 %v7794, %v7797
        %v7799 = vrot.slane %v7798, 4
        %v7801 = vshll.u32 %v7429, 16
        %v7803 = vrot.slane %v7801, 5
        %v7804 = vsel %vm1132, %v7799, %v7803
        %v7805 = vshrl.u32 %v7429, 16
        %v7807 = vrot.slane %v7805, 4
        %v7808 = vor.u32 %v7807, %v7803
        %v7809 = vrot.slane %v7808, 4
        %v7811 = vshll.u32 %v7430, 16
        %v7813 = vrot.slane %v7811, 5
        %v7814 = vsel %vm1132, %v7809, %v7813
        %v7863 = vrot.slane %v7383, 5
        %v7864 = vrot.slane %v7863, 4
        %v7865 = vrot.slane %v7384, 5
        %v7866 = vsel %vm1567, %v7864, %v7865
        %v7867 = vrot.slane %v7865, 4
        %v7868 = vrot.slane %v7385, 5
        %v7869 = vsel %vm1567, %v7867, %v7868
        %v7870 = vrot.slane %v7386, 5
        %v7871 = vrot.slane %v7870, 4
        %v7872 = vrot.slane %v7387, 5
        %v7873 = vsel %vm1567, %v7871, %v7872
        %v7874 = vrot.slane %v7872, 4
        %v7875 = vrot.slane %v7388, 5
        %v7876 = vsel %vm1567, %v7874, %v7875
        %v7877 = vrot.slane %v7389, 5
        %v7878 = vrot.slane %v7877, 4
        %v7879 = vrot.slane %v7390, 5
        %v7880 = vsel %vm1567, %v7878, %v7879
        %v7881 = vrot.slane %v7879, 4
        %v7882 = vrot.slane %v7391, 5
        %v7883 = vsel %vm1567, %v7881, %v7882
        %v7884 = vrot.slane %v7392, 5
        %v7885 = vrot.slane %v7884, 4
        %v7886 = vrot.slane %v7393, 5
        %v7887 = vsel %vm1567, %v7885, %v7886
        %v7888 = vrot.slane %v7886, 4
        %v7889 = vrot.slane %v7394, 5
        %v7890 = vsel %vm1567, %v7888, %v7889
        %v7891 = vrot.slane %v7395, 5
        %v7892 = vrot.slane %v7891, 4
        %v7893 = vrot.slane %v7396, 5
        %v7894 = vsel %vm1567, %v7892, %v7893
        %v7895 = vrot.slane %v7893, 4
        %v7896 = vrot.slane %v7397, 5
        %v7897 = vsel %vm1567, %v7895, %v7896
        %v7898 = vrot.slane %v7398, 5
        %v7899 = vrot.slane %v7898, 4
        %v7900 = vrot.slane %v7399, 5
        %v7901 = vsel %vm1567, %v7899, %v7900
        %v7902 = vrot.slane %v7900, 4
        %v7903 = vrot.slane %v7400, 5
        %v7904 = vsel %vm1567, %v7902, %v7903
        %v7905 = vrot.slane %v7401, 5
        %v7906 = vrot.slane %v7905, 4
        %v7907 = vrot.slane %v7402, 5
        %v7908 = vsel %vm1567, %v7906, %v7907
        %v7909 = vrot.slane %v7907, 4
        %v7910 = vrot.slane %v7403, 5
        %v7911 = vsel %vm1567, %v7909, %v7910
        %v7912 = vrot.slane %v7404, 5
        %v7913 = vrot.slane %v7912, 4
        %v7914 = vrot.slane %v7405, 5
        %v7915 = vsel %vm1567, %v7913, %v7914
        %v7916 = vrot.slane %v7914, 4
        %v7917 = vrot.slane %v7406, 5
        %v7918 = vsel %vm1567, %v7916, %v7917
        %v7919 = vrot.slane %v7407, 5
        %v7920 = vrot.slane %v7919, 4
        %v7921 = vrot.slane %v7408, 5
        %v7922 = vsel %vm1567, %v7920, %v7921
        %v7923 = vrot.slane %v7921, 4
        %v7924 = vrot.slane %v7409, 5
        %v7925 = vsel %vm1567, %v7923, %v7924
        %v7926 = vrot.slane %v7410, 5
        %v7927 = vrot.slane %v7926, 4
        %v7928 = vrot.slane %v7411, 5
        %v7929 = vsel %vm1567, %v7927, %v7928
        %v7930 = vrot.slane %v7928, 4
        %v7931 = vrot.slane %v7412, 5
        %v7932 = vsel %vm1567, %v7930, %v7931
        %v7933 = vrot.slane %v7413, 5
        %v7934 = vrot.slane %v7933, 4
        %v7935 = vrot.slane %v7414, 5
        %v7936 = vsel %vm1567, %v7934, %v7935
        %v7937 = vrot.slane %v7935, 4
        %v7938 = vrot.slane %v7415, 5
        %v7939 = vsel %vm1567, %v7937, %v7938
        %v7940 = vrot.slane %v7416, 5
        %v7941 = vrot.slane %v7940, 4
        %v7942 = vrot.slane %v7417, 5
        %v7943 = vsel %vm1567, %v7941, %v7942
        %v7944 = vrot.slane %v7942, 4
        %v7945 = vrot.slane %v7418, 5
        %v7946 = vsel %vm1567, %v7944, %v7945
        %v7947 = vrot.slane %v7419, 5
        %v7948 = vrot.slane %v7947, 4
        %v7949 = vrot.slane %v7420, 5
        %v7950 = vsel %vm1567, %v7948, %v7949
        %v7951 = vrot.slane %v7949, 4
        %v7952 = vrot.slane %v7421, 5
        %v7953 = vsel %vm1567, %v7951, %v7952
        %v7954 = vrot.slane %v7422, 5
        %v7955 = vrot.slane %v7954, 4
        %v7956 = vrot.slane %v7423, 5
        %v7957 = vsel %vm1567, %v7955, %v7956
        %v7958 = vrot.slane %v7956, 4
        %v7959 = vrot.slane %v7424, 5
        %v7960 = vsel %vm1567, %v7958, %v7959
        %v7961 = vrot.slane %v7425, 5
        %v7962 = vrot.slane %v7961, 4
        %v7963 = vrot.slane %v7426, 5
        %v7964 = vsel %vm1567, %v7962, %v7963
        %v7965 = vrot.slane %v7963, 4
        %v7966 = vrot.slane %v7427, 5
        %v7967 = vsel %vm1567, %v7965, %v7966
        %v7968 = vrot.slane %v7428, 5
        %v7969 = vrot.slane %v7968, 4
        %v7970 = vrot.slane %v7429, 5
        %v7971 = vsel %vm1567, %v7969, %v7970
        %v7972 = vrot.slane %v7970, 4
        %v7973 = vrot.slane %v7430, 5
        %v7974 = vsel %vm1567, %v7972, %v7973
        %v7975 = vunpack.c.l.b16 %v7383
        %v7976 = vunpack.c.l.b16 %v7384
        %v7977 = vunpack.c.l.b16 %v7386
        %v7978 = vunpack.c.l.b16 %v7387
        %v7979 = vunpack.c.l.b16 %v7389
        %v7980 = vunpack.c.l.b16 %v7390
        %v7981 = vunpack.c.l.b16 %v7392
        %v7982 = vunpack.c.l.b16 %v7393
        %v7983 = vunpack.c.l.b16 %v7395
        %v7984 = vunpack.c.l.b16 %v7396
        %v7985 = vunpack.c.l.b16 %v7398
        %v7986 = vunpack.c.l.b16 %v7399
        %v7987 = vunpack.c.l.b16 %v7401
        %v7988 = vunpack.c.l.b16 %v7402
        %v7989 = vunpack.c.l.b16 %v7404
        %v7990 = vunpack.c.l.b16 %v7405
        %v7991 = vunpack.c.l.b16 %v7407
        %v7992 = vunpack.c.l.b16 %v7408
        %v7993 = vunpack.c.l.b16 %v7410
        %v7994 = vunpack.c.l.b16 %v7411
        %v7995 = vunpack.c.l.b16 %v7413
        %v7996 = vunpack.c.l.b16 %v7414
        %v7997 = vunpack.c.l.b16 %v7416
        %v7998 = vunpack.c.l.b16 %v7417
        %v7999 = vunpack.c.l.b16 %v7419
        %v8000 = vunpack.c.l.b16 %v7420
        %v8001 = vunpack.c.l.b16 %v7422
        %v8002 = vunpack.c.l.b16 %v7423
        %v8003 = vunpack.c.l.b16 %v7425
        %v8004 = vunpack.c.l.b16 %v7426
        %v8005 = vunpack.c.l.b16 %v7428
        %v8006 = vunpack.c.l.b16 %v7429
        %v8007 = vpack.c.b16 %v7976, %v7975
        %v8008 = vpack.c.b16 %v7978, %v7977
        %v8009 = vpack.c.b16 %v7980, %v7979
        %v8010 = vpack.c.b16 %v7982, %v7981
        %v8011 = vpack.c.b16 %v7984, %v7983
        %v8012 = vpack.c.b16 %v7986, %v7985
        %v8013 = vpack.c.b16 %v7988, %v7987
        %v8014 = vpack.c.b16 %v7990, %v7989
        %v8015 = vpack.c.b16 %v7992, %v7991
        %v8016 = vpack.c.b16 %v7994, %v7993
        %v8017 = vpack.c.b16 %v7996, %v7995
        %v8018 = vpack.c.b16 %v7998, %v7997
        %v8019 = vpack.c.b16 %v8000, %v7999
        %v8020 = vpack.c.b16 %v8002, %v8001
        %v8021 = vpack.c.b16 %v8004, %v8003
        %v8022 = vpack.c.b16 %v8006, %v8005
        %v8023 = vunpack.c.l.b16 %v7444
        %v8024 = vunpack.c.l.b16 %v7454
        %v8025 = vunpack.c.l.b16 %v7468
        %v8026 = vunpack.c.l.b16 %v7478
        %v8027 = vunpack.c.l.b16 %v7492
        %v8028 = vunpack.c.l.b16 %v7502
        %v8029 = vunpack.c.l.b16 %v7516
        %v8030 = vunpack.c.l.b16 %v7526
        %v8031 = vunpack.c.l.b16 %v7540
        %v8032 = vunpack.c.l.b16 %v7550
        %v8033 = vunpack.c.l.b16 %v7564
        %v8034 = vunpack.c.l.b16 %v7574
        %v8035 = vunpack.c.l.b16 %v7588
        %v8036 = vunpack.c.l.b16 %v7598
        %v8037 = vunpack.c.l.b16 %v7612
        %v8038 = vunpack.c.l.b16 %v7622
        %v8039 = vunpack.c.l.b16 %v7636
        %v8040 = vunpack.c.l.b16 %v7646
        %v8041 = vunpack.c.l.b16 %v7660
        %v8042 = vunpack.c.l.b16 %v7670
        %v8043 = vunpack.c.l.b16 %v7684
        %v8044 = vunpack.c.l.b16 %v7694
        %v8045 = vunpack.c.l.b16 %v7708
        %v8046 = vunpack.c.l.b16 %v7718
        %v8047 = vunpack.c.l.b16 %v7732
        %v8048 = vunpack.c.l.b16 %v7742
        %v8049 = vunpack.c.l.b16 %v7756
        %v8050 = vunpack.c.l.b16 %v7766
        %v8051 = vunpack.c.l.b16 %v7780
        %v8052 = vunpack.c.l.b16 %v7790
        %v8053 = vunpack.c.l.b16 %v7804
        %v8054 = vunpack.c.l.b16 %v7814
        %v8055 = vpack.c.b16 %v8024, %v8023
        %v8056 = vpack.c.b16 %v8026, %v8025
        %v8057 = vpack.c.b16 %v8028, %v8027
        %v8058 = vpack.c.b16 %v8030, %v8029
        %v8059 = vpack.c.b16 %v8032, %v8031
        %v8060 = vpack.c.b16 %v8034, %v8033
        %v8061 = vpack.c.b16 %v8036, %v8035
        %v8062 = vpack.c.b16 %v8038, %v8037
        %v8063 = vpack.c.b16 %v8040, %v8039
        %v8064 = vpack.c.b16 %v8042, %v8041
        %v8065 = vpack.c.b16 %v8044, %v8043
        %v8066 = vpack.c.b16 %v8046, %v8045
        %v8067 = vpack.c.b16 %v8048, %v8047
        %v8068 = vpack.c.b16 %v8050, %v8049
        %v8069 = vpack.c.b16 %v8052, %v8051
        %v8070 = vpack.c.b16 %v8054, %v8053
        %8071 = vrot.lane.b32.xlu0 %v8055, 64
        %v8072 = vpop.permute.xlu0 %8071
        %8073 = vrot.lane.b32.xlu0 %v8056, 64
        %v8074 = vpop.permute.xlu0 %8073
        %8075 = vrot.lane.b32.xlu0 %v8057, 64
        %v8076 = vpop.permute.xlu0 %8075
        %8077 = vrot.lane.b32.xlu0 %v8058, 64
        %v8078 = vpop.permute.xlu0 %8077
        %8079 = vrot.lane.b32.xlu0 %v8059, 64
        %v8080 = vpop.permute.xlu0 %8079
        %8081 = vrot.lane.b32.xlu0 %v8060, 64
        %v8082 = vpop.permute.xlu0 %8081
        %8083 = vrot.lane.b32.xlu0 %v8061, 64
        %v8084 = vpop.permute.xlu0 %8083
        %8085 = vrot.lane.b32.xlu0 %v8062, 64
        %v8086 = vpop.permute.xlu0 %8085
        %8087 = vrot.lane.b32.xlu0 %v8063, 64
        %v8088 = vpop.permute.xlu0 %8087
        %8089 = vrot.lane.b32.xlu0 %v8064, 64
        %v8090 = vpop.permute.xlu0 %8089
        %8091 = vrot.lane.b32.xlu0 %v8065, 64
        %v8092 = vpop.permute.xlu0 %8091
        %8093 = vrot.lane.b32.xlu0 %v8066, 64
        %v8094 = vpop.permute.xlu0 %8093
        %8095 = vrot.lane.b32.xlu0 %v8067, 64
        %v8096 = vpop.permute.xlu0 %8095
        %8097 = vrot.lane.b32.xlu0 %v8068, 64
        %v8098 = vpop.permute.xlu0 %8097
        %8099 = vrot.lane.b32.xlu0 %v8069, 64
        %v8100 = vpop.permute.xlu0 %8099
        %8101 = vrot.lane.b32.xlu0 %v8070, 64
        %v8102 = vpop.permute.xlu0 %8101
        %v8103 = vunpack.c.l.b16 %v7866
        %v8104 = vunpack.c.l.b16 %v7869
        %v8105 = vunpack.c.l.b16 %v7873
        %v8106 = vunpack.c.l.b16 %v7876
        %v8107 = vunpack.c.l.b16 %v7880
        %v8108 = vunpack.c.l.b16 %v7883
        %v8109 = vunpack.c.l.b16 %v7887
        %v8110 = vunpack.c.l.b16 %v7890
        %v8111 = vunpack.c.l.b16 %v7894
        %v8112 = vunpack.c.l.b16 %v7897
        %v8113 = vunpack.c.l.b16 %v7901
        %v8114 = vunpack.c.l.b16 %v7904
        %v8115 = vunpack.c.l.b16 %v7908
        %v8116 = vunpack.c.l.b16 %v7911
        %v8117 = vunpack.c.l.b16 %v7915
        %v8118 = vunpack.c.l.b16 %v7918
        %v8119 = vunpack.c.l.b16 %v7922
        %v8120 = vunpack.c.l.b16 %v7925
        %v8121 = vunpack.c.l.b16 %v7929
        %v8122 = vunpack.c.l.b16 %v7932
        %v8123 = vunpack.c.l.b16 %v7936
        %v8124 = vunpack.c.l.b16 %v7939
        %v8125 = vunpack.c.l.b16 %v7943
        %v8126 = vunpack.c.l.b16 %v7946
        %v8127 = vunpack.c.l.b16 %v7950
        %v8128 = vunpack.c.l.b16 %v7953
        %v8129 = vunpack.c.l.b16 %v7957
        %v8130 = vunpack.c.l.b16 %v7960
        %v8131 = vunpack.c.l.b16 %v7964
        %v8132 = vunpack.c.l.b16 %v7967
        %v8133 = vunpack.c.l.b16 %v7971
        %v8134 = vunpack.c.l.b16 %v7974
        %v8135 = vpack.c.b16 %v8104, %v8103
        %v8136 = vpack.c.b16 %v8106, %v8105
        %v8137 = vpack.c.b16 %v8108, %v8107
        %v8138 = vpack.c.b16 %v8110, %v8109
        %v8139 = vpack.c.b16 %v8112, %v8111
        %v8140 = vpack.c.b16 %v8114, %v8113
        %v8141 = vpack.c.b16 %v8116, %v8115
        %v8142 = vpack.c.b16 %v8118, %v8117
        %v8143 = vpack.c.b16 %v8120, %v8119
        %v8144 = vpack.c.b16 %v8122, %v8121
        %v8145 = vpack.c.b16 %v8124, %v8123
        %v8146 = vpack.c.b16 %v8126, %v8125
        %v8147 = vpack.c.b16 %v8128, %v8127
        %v8148 = vpack.c.b16 %v8130, %v8129
        %v8149 = vpack.c.b16 %v8132, %v8131
        %v8150 = vpack.c.b16 %v8134, %v8133
        %v8153 = vsel %vm1856, %v8007, %v8072
        %v8157 = vsel %vm1856, %v8008, %v8074
        %v8161 = vsel %vm1856, %v8009, %v8076
        %v8165 = vsel %vm1856, %v8010, %v8078
        %v8169 = vsel %vm1856, %v8011, %v8080
        %v8173 = vsel %vm1856, %v8012, %v8082
        %v8177 = vsel %vm1856, %v8013, %v8084
        %v8181 = vsel %vm1856, %v8014, %v8086
        %v8185 = vsel %vm1856, %v8015, %v8088
        %v8189 = vsel %vm1856, %v8016, %v8090
        %v8193 = vsel %vm1856, %v8017, %v8092
        %v8197 = vsel %vm1856, %v8018, %v8094
        %v8201 = vsel %vm1856, %v8019, %v8096
        %v8205 = vsel %vm1856, %v8020, %v8098
        %v8209 = vsel %vm1856, %v8021, %v8100
        %v8213 = vsel %vm1856, %v8022, %v8102
        %v8239 = vunpack.c.l.b16 %v1050
        %v8240 = vunpack.c.l.b16 %v1051
        %v8241 = vunpack.c.l.b16 %v1052
        %v8242 = vunpack.c.l.b16 %v1053
        %v8243 = vunpack.c.l.b16 %v1054
        %v8244 = vunpack.c.l.b16 %v1055
        %v8245 = vunpack.c.l.b16 %v1056
        %v8246 = vunpack.c.l.b16 %v1057
        %v8247 = vunpack.c.l.b16 %v1058
        %v8248 = vunpack.c.l.b16 %v1059
        %v8249 = vunpack.c.l.b16 %v1060
        %v8250 = vunpack.c.l.b16 %v1061
        %v8251 = vunpack.c.l.b16 %v1062
        %v8252 = vunpack.c.l.b16 %v1063
        %v8253 = vunpack.c.l.b16 %v1064
        %v8254 = vunpack.c.l.b16 %v1065
        %v8255 = vunpack.c.l.b16 %v1066
        %v8256 = vunpack.c.l.b16 %v1067
        %v8257 = vunpack.c.l.b16 %v1068
        %v8258 = vunpack.c.l.b16 %v1069
        %v8259 = vunpack.c.l.b16 %v1070
        %v8260 = vunpack.c.l.b16 %v1071
        %v8261 = vunpack.c.l.b16 %v1072
        %v8262 = vunpack.c.l.b16 %v1073
        %v8263 = vpack.c.b16 %v8240, %v8239
        %v8264 = vpack.c.b16 %v8242, %v8241
        %v8265 = vpack.c.b16 %v8244, %v8243
        %v8266 = vpack.c.b16 %v8246, %v8245
        %v8267 = vpack.c.b16 %v8248, %v8247
        %v8268 = vpack.c.b16 %v8250, %v8249
        %v8269 = vpack.c.b16 %v8252, %v8251
        %v8270 = vpack.c.b16 %v8254, %v8253
        %v8271 = vpack.c.b16 %v8256, %v8255
        %v8272 = vpack.c.b16 %v8258, %v8257
        %v8273 = vpack.c.b16 %v8260, %v8259
        %v8274 = vpack.c.b16 %v8262, %v8261
        %v8288 = vsel %vm1856, %v8135, 0
        %v8291 = vsel %vm1856, %v8136, 0
        %v8294 = vsel %vm1856, %v8137, 0
        %v8297 = vsel %vm1856, %v8138, 0
        %v8300 = vsel %vm1856, %v8139, 0
        %v8303 = vsel %vm1856, %v8140, 0
        %v8306 = vsel %vm1856, %v8141, 0
        %v8309 = vsel %vm1856, %v8142, 0
        %v8312 = vsel %vm1856, %v8143, 0
        %v8315 = vsel %vm1856, %v8144, 0
        %v8318 = vsel %vm1856, %v8145, 0
        %v8321 = vsel %vm1856, %v8146, 0
        %v8324 = vsel %vm1856, %v8147, 0
        %v8327 = vsel %vm1856, %v8148, 0
        %v8330 = vsel %vm1856, %v8149, 0
        %v8333 = vsel %vm1856, %v8150, 0
        %8335 = vmatprep.subr.bf16.mxu0 0
        %8336 = vmatpush1.bf16.msra.mxu0 %v8270
        %8337 = vmatprep.subr.bf16.mxu0 0
        %8338 = vmatpush1.bf16.msra.mxu0 %v8269
        %8339 = vmatprep.subr.bf16.mxu0 0
        %8340 = vmatpush1.bf16.msra.mxu0 %v8268
        %8341 = vmatprep.subr.bf16.mxu0 0
        %8342 = vmatpush1.bf16.msra.mxu0 %v8267
        %8343 = vmatprep.subr.bf16.mxu0 0
        %8344 = vmatpush1.bf16.msra.mxu0 %v8266
        %8345 = vmatprep.subr.bf16.mxu0 0
        %8346 = vmatpush1.bf16.msra.mxu0 %v8265
        %8347 = vmatprep.subr.bf16.mxu0 0
        %8348 = vmatpush1.bf16.msra.mxu0 %v8264
        %8349 = vmatprep.subr.bf16.mxu0 0
        %8350 = vmatpush1.bf16.msra.mxu0 %v8263
        %8351 = vmatprep.subr.bf16.mxu0 0
        %8352 = vmatpush2.bf16.msra.mxu0 0
        %8353 = vmatprep.subr.bf16.mxu0 0
        %8354 = vmatpush2.bf16.msra.mxu0 0
        %8355 = vmatprep.subr.bf16.mxu0 0
        %8356 = vmatpush2.bf16.msra.mxu0 0
        %8357 = vmatprep.subr.bf16.mxu0 0
        %8358 = vmatpush2.bf16.msra.mxu0 0
        %8359 = vmatprep.subr.bf16.mxu0 0
        %8360 = vmatpush2.bf16.msra.mxu0 %v8274
        %8361 = vmatprep.subr.bf16.mxu0 0
        %8362 = vmatpush2.bf16.msra.mxu0 %v8273
        %8363 = vmatprep.subr.bf16.mxu0 0
        %8364 = vmatpush2.bf16.msra.mxu0 %v8272
        %8365 = vmatprep.subr.bf16.mxu0 0
        %8366 = vmatpush2.bf16.msra.mxu0 %v8271
        %8367 = vmatprep.mubr.bf16.mxu0 %v8288
        %8368 = vmatmul.mubr.bf16.gmra.mxu0 %v8153
        %v8369 = vpop.f32.mrf.mxu0
        %v8370 = vadd.f32 0.0, %v8369
        %v8371 = vpop.f32.mrf.mxu0
        %v8372 = vpop.f32.mrf.mxu0
        %v8373 = vadd.f32 0.0, %v8372
        %v8374 = vpop.f32.mrf.mxu0
        %8375 = vmatprep.mubr.bf16.mxu0 %v8291
        %8376 = vmatmul.mubr.bf16.gmra.mxu0 %v8157
        %v8377 = vpop.f32.mrf.mxu0
        %v8378 = vadd.f32 0.0, %v8377
        %v8379 = vpop.f32.mrf.mxu0
        %v8380 = vpop.f32.mrf.mxu0
        %v8381 = vadd.f32 0.0, %v8380
        %v8382 = vpop.f32.mrf.mxu0
        %8383 = vmatprep.mubr.bf16.mxu0 %v8294
        %8384 = vmatmul.mubr.bf16.gmra.mxu0 %v8161
        %v8385 = vpop.f32.mrf.mxu0
        %v8386 = vadd.f32 0.0, %v8385
        %v8387 = vpop.f32.mrf.mxu0
        %v8388 = vpop.f32.mrf.mxu0
        %v8389 = vadd.f32 0.0, %v8388
        %v8390 = vpop.f32.mrf.mxu0
        %8391 = vmatprep.mubr.bf16.mxu0 %v8297
        %8392 = vmatmul.mubr.bf16.gmra.mxu0 %v8165
        %v8393 = vpop.f32.mrf.mxu0
        %v8394 = vadd.f32 0.0, %v8393
        %v8395 = vpop.f32.mrf.mxu0
        %v8396 = vpop.f32.mrf.mxu0
        %v8397 = vadd.f32 0.0, %v8396
        %v8398 = vpop.f32.mrf.mxu0
        %8399 = vmatprep.mubr.bf16.mxu0 %v8300
        %8400 = vmatmul.mubr.bf16.gmra.mxu0 %v8169
        %v8401 = vpop.f32.mrf.mxu0
        %v8402 = vadd.f32 0.0, %v8401
        %v8403 = vpop.f32.mrf.mxu0
        %v8404 = vpop.f32.mrf.mxu0
        %v8405 = vadd.f32 0.0, %v8404
        %v8406 = vpop.f32.mrf.mxu0
        %8407 = vmatprep.mubr.bf16.mxu0 %v8303
        %8408 = vmatmul.mubr.bf16.gmra.mxu0 %v8173
        %v8409 = vpop.f32.mrf.mxu0
        %v8410 = vadd.f32 0.0, %v8409
        %v8411 = vpop.f32.mrf.mxu0
        %v8412 = vpop.f32.mrf.mxu0
        %v8413 = vadd.f32 0.0, %v8412
        %v8414 = vpop.f32.mrf.mxu0
        %8415 = vmatprep.mubr.bf16.mxu0 %v8306
        %8416 = vmatmul.mubr.bf16.gmra.mxu0 %v8177
        %v8417 = vpop.f32.mrf.mxu0
        %v8418 = vadd.f32 0.0, %v8417
        %v8419 = vpop.f32.mrf.mxu0
        %v8420 = vpop.f32.mrf.mxu0
        %v8421 = vadd.f32 0.0, %v8420
        %v8422 = vpop.f32.mrf.mxu0
        %8423 = vmatprep.mubr.bf16.mxu0 %v8309
        %8424 = vmatmul.mubr.bf16.gmra.mxu0 %v8181
        %v8425 = vpop.f32.mrf.mxu0
        %v8426 = vadd.f32 0.0, %v8425
        %v8427 = vpop.f32.mrf.mxu0
        %v8428 = vpop.f32.mrf.mxu0
        %v8429 = vadd.f32 0.0, %v8428
        %v8430 = vpop.f32.mrf.mxu0
        %8431 = vmatprep.mubr.bf16.mxu0 %v8312
        %8432 = vmatmul.mubr.bf16.gmra.mxu0 %v8185
        %v8433 = vpop.f32.mrf.mxu0
        %v8434 = vadd.f32 0.0, %v8433
        %v8435 = vpop.f32.mrf.mxu0
        %v8436 = vpop.f32.mrf.mxu0
        %v8437 = vadd.f32 0.0, %v8436
        %v8438 = vpop.f32.mrf.mxu0
        %8439 = vmatprep.mubr.bf16.mxu0 %v8315
        %8440 = vmatmul.mubr.bf16.gmra.mxu0 %v8189
        %v8441 = vpop.f32.mrf.mxu0
        %v8442 = vadd.f32 0.0, %v8441
        %v8443 = vpop.f32.mrf.mxu0
        %v8444 = vpop.f32.mrf.mxu0
        %v8445 = vadd.f32 0.0, %v8444
        %v8446 = vpop.f32.mrf.mxu0
        %8447 = vmatprep.mubr.bf16.mxu0 %v8318
        %8448 = vmatmul.mubr.bf16.gmra.mxu0 %v8193
        %v8449 = vpop.f32.mrf.mxu0
        %v8450 = vadd.f32 0.0, %v8449
        %v8451 = vpop.f32.mrf.mxu0
        %v8452 = vpop.f32.mrf.mxu0
        %v8453 = vadd.f32 0.0, %v8452
        %v8454 = vpop.f32.mrf.mxu0
        %8455 = vmatprep.mubr.bf16.mxu0 %v8321
        %8456 = vmatmul.mubr.bf16.gmra.mxu0 %v8197
        %v8457 = vpop.f32.mrf.mxu0
        %v8458 = vadd.f32 0.0, %v8457
        %v8459 = vpop.f32.mrf.mxu0
        %v8460 = vpop.f32.mrf.mxu0
        %v8461 = vadd.f32 0.0, %v8460
        %v8462 = vpop.f32.mrf.mxu0
        %8463 = vmatprep.mubr.bf16.mxu0 %v8324
        %8464 = vmatmul.mubr.bf16.gmra.mxu0 %v8201
        %v8465 = vpop.f32.mrf.mxu0
        %v8466 = vadd.f32 0.0, %v8465
        %v8467 = vpop.f32.mrf.mxu0
        %v8468 = vpop.f32.mrf.mxu0
        %v8469 = vadd.f32 0.0, %v8468
        %v8470 = vpop.f32.mrf.mxu0
        %8471 = vmatprep.mubr.bf16.mxu0 %v8327
        %8472 = vmatmul.mubr.bf16.gmra.mxu0 %v8205
        %v8473 = vpop.f32.mrf.mxu0
        %v8474 = vadd.f32 0.0, %v8473
        %v8475 = vpop.f32.mrf.mxu0
        %v8476 = vpop.f32.mrf.mxu0
        %v8477 = vadd.f32 0.0, %v8476
        %v8478 = vpop.f32.mrf.mxu0
        %8479 = vmatprep.mubr.bf16.mxu0 %v8330
        %8480 = vmatmul.mubr.bf16.gmra.mxu0 %v8209
        %v8481 = vpop.f32.mrf.mxu0
        %v8482 = vadd.f32 0.0, %v8481
        %v8483 = vpop.f32.mrf.mxu0
        %v8484 = vpop.f32.mrf.mxu0
        %v8485 = vadd.f32 0.0, %v8484
        %v8486 = vpop.f32.mrf.mxu0
        %8487 = vmatprep.mubr.bf16.mxu0 %v8333
        %8488 = vmatmul.mubr.bf16.gmra.mxu0 %v8213
        %v8489 = vpop.f32.mrf.mxu0
        %v8490 = vadd.f32 0.0, %v8489
        %v8491 = vpop.f32.mrf.mxu0
        %v8492 = vpop.f32.mrf.mxu0
        %v8493 = vadd.f32 0.0, %v8492
        %v8494 = vpop.f32.mrf.mxu0
        %8495 = vdwg.mxu0
        %v8496 = vadd.f32 %v7350, %v8370
        %v8497 = vadd.f32 %v7351, %v8373
        %v8498 = vadd.f32 %v7352, %v8378
        %v8499 = vadd.f32 %v7353, %v8381
        %v8500 = vadd.f32 %v7354, %v8386
        %v8501 = vadd.f32 %v7355, %v8389
        %v8502 = vadd.f32 %v7356, %v8394
        %v8503 = vadd.f32 %v7357, %v8397
        %v8504 = vadd.f32 %v7358, %v8402
        %v8505 = vadd.f32 %v7359, %v8405
        %v8506 = vadd.f32 %v7360, %v8410
        %v8507 = vadd.f32 %v7361, %v8413
        %v8508 = vadd.f32 %v7362, %v8418
        %v8509 = vadd.f32 %v7363, %v8421
        %v8510 = vadd.f32 %v7364, %v8426
        %v8511 = vadd.f32 %v7365, %v8429
        %v8512 = vadd.f32 %v7366, %v8434
        %v8513 = vadd.f32 %v7367, %v8437
        %v8514 = vadd.f32 %v7368, %v8442
        %v8515 = vadd.f32 %v7369, %v8445
        %v8516 = vadd.f32 %v7370, %v8450
        %v8517 = vadd.f32 %v7371, %v8453
        %v8518 = vadd.f32 %v7372, %v8458
        %v8519 = vadd.f32 %v7373, %v8461
        %v8520 = vadd.f32 %v7374, %v8466
        %v8521 = vadd.f32 %v7375, %v8469
        %v8522 = vadd.f32 %v7376, %v8474
        %v8523 = vadd.f32 %v7377, %v8477
        %v8524 = vadd.f32 %v7378, %v8482
        %v8525 = vadd.f32 %v7379, %v8485
        %v8526 = vadd.f32 %v7380, %v8490
        %v8527 = vadd.f32 %v7381, %v8493
        %8528 = vst.msk [vmem:[%s217] sm:$0xff] %vm1856, %v8496
        %8529 = vst.msk [vmem:[%s217 + $0x8] sm:$0xff] %vm1856, %v8497
        %8530 = vst.msk [vmem:[%s217 + $0x10] sm:$0xff] %vm1856, %v8498
        %8531 = vst.msk [vmem:[%s217 + $0x18] sm:$0xff] %vm1856, %v8499
        %8532 = vst.msk [vmem:[%s217 + $0x20] sm:$0xff] %vm1856, %v8500
        %8533 = vst.msk [vmem:[%s217 + $0x28] sm:$0xff] %vm1856, %v8501
        %8534 = vst.msk [vmem:[%s217 + $0x30] sm:$0xff] %vm1856, %v8502
        %8535 = vst.msk [vmem:[%s217 + $0x38] sm:$0xff] %vm1856, %v8503
        %8536 = vst.msk [vmem:[%s217 + $0x40] sm:$0xff] %vm1856, %v8504
        %8537 = vst.msk [vmem:[%s217 + $0x48] sm:$0xff] %vm1856, %v8505
        %8538 = vst.msk [vmem:[%s217 + $0x50] sm:$0xff] %vm1856, %v8506
        %8539 = vst.msk [vmem:[%s217 + $0x58] sm:$0xff] %vm1856, %v8507
        %8540 = vst.msk [vmem:[%s217 + $0x60] sm:$0xff] %vm1856, %v8508
        %8541 = vst.msk [vmem:[%s217 + $0x68] sm:$0xff] %vm1856, %v8509
        %8542 = vst.msk [vmem:[%s217 + $0x70] sm:$0xff] %vm1856, %v8510
        %8543 = vst.msk [vmem:[%s217 + $0x78] sm:$0xff] %vm1856, %v8511
        %8544 = vst.msk [vmem:[%s217 + $0x80] sm:$0xff] %vm1856, %v8512
        %8545 = vst.msk [vmem:[%s217 + $0x88] sm:$0xff] %vm1856, %v8513
        %8546 = vst.msk [vmem:[%s217 + $0x90] sm:$0xff] %vm1856, %v8514
        %8547 = vst.msk [vmem:[%s217 + $0x98] sm:$0xff] %vm1856, %v8515
        %8548 = vst.msk [vmem:[%s217 + $0xa0] sm:$0xff] %vm1856, %v8516
        %8549 = vst.msk [vmem:[%s217 + $0xa8] sm:$0xff] %vm1856, %v8517
        %8550 = vst.msk [vmem:[%s217 + $0xb0] sm:$0xff] %vm1856, %v8518
        %8551 = vst.msk [vmem:[%s217 + $0xb8] sm:$0xff] %vm1856, %v8519
        %8552 = vst.msk [vmem:[%s217 + $0xc0] sm:$0xff] %vm1856, %v8520
        %8553 = vst.msk [vmem:[%s217 + $0xc8] sm:$0xff] %vm1856, %v8521
        %8554 = vst.msk [vmem:[%s217 + $0xd0] sm:$0xff] %vm1856, %v8522
        %8555 = vst.msk [vmem:[%s217 + $0xd8] sm:$0xff] %vm1856, %v8523
        %8556 = vst.msk [vmem:[%s217 + $0xe0] sm:$0xff] %vm1856, %v8524
        %8557 = vst.msk [vmem:[%s217 + $0xe8] sm:$0xff] %vm1856, %v8525
        %8558 = vst.msk [vmem:[%s217 + $0xf0] sm:$0xff] %vm1856, %v8526
        %8559 = vst.msk [vmem:[%s217 + $0xf8] sm:$0xff] %vm1856, %v8527
        %s8560 = sand.u32 %s137, 1
        %s8561 = scalar_lea.sflag [#allocation5], %s8560
        %s8562 = sand.u32 %s137, 1
        %s8563 = smul.addr %s8562, 256
        %s8564 = scalar_lea.vmem [#allocation4], %s8563
        // Predicated region
        $region41: #{tpu_custom_call.1} parent=39 // pred_check
          %p8565 = pneg %p147
        $region42: #{tpu_custom_call.1} parent=39 // pred_check_branch
          %8567 = sbr.rel (%p8565) target = $region44
        $region43: #{tpu_custom_call.1} parent=39 // pred_region
          %s8569 = ssub.s32 4096, 4096
          %8570 = vsyncadd %s8561, %s8569
          %s8571 = smul.addr %s19, 32
          %s8572 = smul.addr %s8571, 128
          %s8573 = scalar_lea.hbm %s5, %s8572
          %s8574 = sshll.u32 %s8564, 4
          %s8575 = int_to_ptr.vmem [resolvable:$true] %s8574
          %8580 = dma.vmem_to_hbm [thread:$0]  %s8575, 4096, %s8573, %s8561, 128, 128, 8
        $region44: #{tpu_custom_call.1} parent=39 // pred_fallthru
          _
      $region40: #{tpu_custom_call.1} parent=5 // pred_fallthru
        _
      %p8581 = scmp.le.s32.totalorder 2, %s14
      // Predicated region
      $region45: #{tpu_custom_call.1} parent=5 // pred_check
        %p8582 = pneg %p8581
      $region46: #{tpu_custom_call.1} parent=5 // pred_check_branch
        %8584 = sbr.rel (%p8582) target = $region48
      $region47: #{tpu_custom_call.1} parent=5 // pred_region
        %s8585 = ssub.s32 %s14, 2
        // Predicated region
        $region49: #{tpu_custom_call.1} parent=47 // pred_check
          %p8586 = pneg %p153
        $region50: #{tpu_custom_call.1} parent=47 // pred_check_branch
          %8588 = sbr.rel (%p8586) target = $region52
        $region51: #{tpu_custom_call.1} parent=47 // pred_region
          %s8589 = sand.u32 %s138, 1
          %s8590 = scalar_lea.sflag [#allocation5], %s8589
          %s8591 = sand.u32 %s138, 1
          %s8592 = smul.addr %s8591, 256
          %s8593 = scalar_lea.vmem [#allocation4], %s8592
          %8594 = dma.done %s8590, 4096
        $region52: #{tpu_custom_call.1} parent=47 // pred_fallthru
          _
      $region48: #{tpu_custom_call.1} parent=5 // pred_fallthru
        _
    $region6: #{tpu_custom_call.1} parent=1 // loop_footer
      %s18 = sadd.s32 1, %s14
    $region7: #{tpu_custom_call.1} parent=1 // loop_footer_branch
      %13 = sbr.rel target = $region3
    $region8: #{tpu_custom_call.1} parent=1 // loop_exit
      _
    %8595 = vsyncpa [#allocation5], 1
    %s8596 = scalar_lea.sflag [#allocation5], 1
    %8597 = vsyncpa %s8596, 1

</llo_original>
